<compile_context>
chip_gen: v7x
topology: tpu7x:2x2x1
jax: 0.10.0
libtpu: 0.0.40
codegen_flags: <defaults>
</compile_context>

<pallas_src>
import jax
import jax.numpy as jnp
from jax.experimental import pallas as pl
from jax.experimental.pallas import tpu as pltpu

BN_EPS = 1e-5
VMEM_SPEC = pl.BlockSpec(memory_space=pltpu.MemorySpace.VMEM)


# ----------------------------------------------------------------------------
# Pallas kernels
# ----------------------------------------------------------------------------
def conv_bn_relu_pool_kernel(p_ref, w_ref, shift_ref, o_ref):
    """Fused conv-as-GEMM (BN scale pre-folded) + 2x2 max-pool + shift + ReLU.

    p_ref:     (4, K, M) bf16  im2col patches, leading dim = pool position.
    w_ref:     (Cout, K) bf16  conv weights with gamma/sqrt(var+eps) folded in.
    shift_ref: (Cout, 1) f32   beta - mean*scale + conv_bias*scale.
    o_ref:     (Cout, M) bf16  pooled activations, M = B*Hp*Wp on lanes.
    """
    w = w_ref[...]
    acc = jnp.dot(w, p_ref[0], preferred_element_type=jnp.float32)
    for pos in range(1, 4):                       # static unroll, pool window
        acc = jnp.maximum(
            acc, jnp.dot(w, p_ref[pos], preferred_element_type=jnp.float32))
    # shift is per-channel => commutes with the max; ReLU commutes with max.
    o_ref[...] = jnp.maximum(acc + shift_ref[...], 0.0).astype(o_ref.dtype)


def convc_mlp_head_kernel(p_ref, wexp_ref, shiftc_ref,
                          w0_ref, b0_ref, w1_ref, b1_ref,
                          w2_ref, b2_ref, w3_ref, b3_ref,
                          quota_ref, consume_ref,
                          out_ref, d0_ref, d1_ref, d2_ref):
    """Fused conv stage c + li0/li1/li2 (Linear+ReLU) + tiring gates + li3 + softmax.

    p_ref:      (4, B, K*4)  bf16  stage-c patches (cols = (k, pooled-loc)).
    wexp_ref:   (K*4, 128)   bf16  block-diagonal stage-c weight, BN-scale folded;
                                   output column order = c*4 + hp*2 + wp (== torch view(B,-1)).
    shiftc_ref: (1, 128)     f32   per-feature BN shift (per-channel, repeated over loc).
    w*_ref:     bf16 head weights; b*_ref f32 biases (1, out).
    quota/consume: (3, B, 128) f32 tiring-gate buffers.
    """
    wexp = wexp_ref[...]
    acc = jnp.dot(p_ref[0], wexp, preferred_element_type=jnp.float32)
    for pos in range(1, 4):
        acc = jnp.maximum(
            acc, jnp.dot(p_ref[pos], wexp, preferred_element_type=jnp.float32))
    x = jnp.maximum(acc + shiftc_ref[...], 0.0)          # (B, 128) == x.view(B,-1)

    def tiring(h, idx):
        # relu((quota - consume) / quota); exact divide for parity with torch.
        ratio = jnp.maximum(
            (quota_ref[idx] - consume_ref[idx]) / quota_ref[idx], 0.0)
        return h * ratio
    # TODO(synk): the stateful consume_li*/resume_li* buffer update (affects
    # later forwards only, not this forward's outputs) is not carried across calls.

    def linear_relu(h, w_ref_, b_ref_):
        return jnp.maximum(
            jnp.dot(h.astype(jnp.bfloat16), w_ref_[...],
                    preferred_element_type=jnp.float32) + b_ref_[...], 0.0)

    h0 = linear_relu(x, w0_ref, b0_ref)
    d0_ref[...] = h0
    x1 = tiring(h0, 0)

    h1 = linear_relu(x1, w1_ref, b1_ref)
    d1_ref[...] = h1
    x2 = tiring(h1, 1)

    h2 = linear_relu(x2, w2_ref, b2_ref)
    d2_ref[...] = h2
    x3 = tiring(h2, 2)

    logits = (jnp.dot(x3.astype(jnp.bfloat16), w3_ref[...],
                      preferred_element_type=jnp.float32) + b3_ref[...])
    m = jnp.max(logits, axis=-1, keepdims=True)
    e = jnp.exp(logits - m)
    out_ref[...] = e * pl.reciprocal(jnp.sum(e, axis=-1, keepdims=True),
                                     approx=True)


# ----------------------------------------------------------------------------
# Wrappers
# ----------------------------------------------------------------------------
def _im2col_pooled_cm(x_cm, stride, Hp, Wp):
    """Channel-major im2col grouped by 2x2-pool position.

    x_cm: (Cin, B, H, W) bf16.  Returns (4, K, M) bf16 with
    K = Cin*9 (cin-major, 3x3-tap minor) and M = B*Hp*Wp ((b, hp, wp) order).
    No transposes: stack taps on axis=1, then reshape.
    """
    Cin, B = x_cm.shape[0], x_cm.shape[1]
    K, M = Cin * 9, B * Hp * Wp
    step = 2 * stride
    planes = []
    for ph in range(2):
        for pw in range(2):
            taps = []
            for di in range(3):
                for dj in range(3):
                    h0 = stride * ph + di
                    w0 = stride * pw + dj
                    taps.append(x_cm[:, :,
                                     h0:h0 + step * (Hp - 1) + 1:step,
                                     w0:w0 + step * (Wp - 1) + 1:step])
            t = jnp.stack(taps, axis=1)              # (Cin, 9, B, Hp, Wp)
            planes.append(t.reshape(K, M))
    return jnp.stack(planes, axis=0)                 # (4, K, M) bf16


def conv_block_cm(x_cm, params, stride):
    """Conv2d(3x3, stride) + BN(eval) + ReLU + MaxPool2d(2,2), channel-major.

    x_cm: (Cin, B, H, W) bf16 -> returns (Cout, B, Hp, Wp) bf16.
    """
    w, b, gamma, beta, rmean, rvar = params          # w: (Cout, Cin, 3, 3)
    cout, cin = w.shape[0], w.shape[1]
    _, B, H, W = x_cm.shape
    Ho = (H - 3) // stride + 1
    Wo = (W - 3) // stride + 1
    Hp, Wp = Ho // 2, Wo // 2                        # floor pooling
    K, M = cin * 9, B * Hp * Wp

    bn_scale = gamma / jnp.sqrt(rvar + BN_EPS)
    w_folded = (w.reshape(cout, K) * bn_scale[:, None]).astype(jnp.bfloat16)
    shift = (beta - rmean * bn_scale + b * bn_scale).reshape(cout, 1)

    patches = _im2col_pooled_cm(x_cm, stride, Hp, Wp)   # (4, K, M) bf16

    out = pl.pallas_call(
        conv_bn_relu_pool_kernel,
        out_shape=jax.ShapeDtypeStruct((cout, M), jnp.bfloat16),
        in_specs=[VMEM_SPEC, VMEM_SPEC, VMEM_SPEC],
        out_specs=VMEM_SPEC,
    )(patches, w_folded, shift)
    return out.reshape(cout, B, Hp, Wp)              # pure metadata reshape


def _build_stage_c_inputs(y_cm, params, stride=2):
    """Build fused stage-c operands from the channel-major stage-b output.

    y_cm: (Cin=32, B, 11, 11) bf16.
    Returns:
      patches (4, B, K*4) bf16 — column index = (cin*9+tap)*4 + (hp*2+wp),
      w_exp   (K*4, 128)  bf16 — block-diagonal over the 4 pooled positions,
                                 BN scale folded; column = c*4 + hp*2 + wp,
      shift   (1, 128)    f32  — per-channel BN shift repeated over positions.
    """
    w, b, gamma, beta, rmean, rvar = params          # w: (32, 32, 3, 3)
    cout, cin = w.shape[0], w.shape[1]
    _, B, H, W = y_cm.shape
    Ho = (H - 3) // stride + 1
    Wo = (W - 3) // stride + 1
    Hp, Wp = Ho // 2, Wo // 2                        # 2, 2
    nloc = Hp * Wp                                   # 4
    K = cin * 9                                      # 288
    Ke, F = K * nloc, cout * nloc                    # 1152, 128

    bn_scale = gamma / jnp.sqrt(rvar + BN_EPS)
    w2d = w.reshape(cout, K) * bn_scale[:, None]                 # (32, 288) f32
    eye = jnp.eye(nloc, dtype=w2d.dtype)
    # w_exp[k*4+loc, c*4+loc'] = w2d[c, k] * (loc == loc')
    w_exp = (w2d.T[:, None, :, None] * eye[None, :, None, :]).reshape(Ke, F)
    w_exp = w_exp.astype(jnp.bfloat16)
    shift = jnp.repeat(beta - rmean * bn_scale + b * bn_scale, nloc)
    shift = shift.reshape(1, F)

    step = 2 * stride
    planes = []
    for ph in range(2):
        for pw in range(2):
            taps = []
            for di in range(3):
                for dj in range(3):
                    h0 = stride * ph + di
                    w0 = stride * pw + dj
                    taps.append(y_cm[:, :,
                                     h0:h0 + step * (Hp - 1) + 1:step,
                                     w0:w0 + step * (Wp - 1) + 1:step])
            t = jnp.stack(taps, axis=1)              # (Cin, 9, B, Hp, Wp)
            t = jnp.transpose(t, (2, 0, 1, 3, 4))    # (B, Cin, 9, Hp, Wp) — 18 KB
            planes.append(t.reshape(B, Ke))
    patches = jnp.stack(planes, axis=0)              # (4, B, Ke) bf16
    return patches, w_exp, shift


def fused_head(patches_c, w_exp, shift_c, lin_params, quota, consume):
    B = patches_c.shape[1]
    (w0, b0), (w1, b1), (w2, b2), (w3, b3) = lin_params
    bf = lambda a: a.astype(jnp.bfloat16)
    return pl.pallas_call(
        convc_mlp_head_kernel,
        out_shape=(
            jax.ShapeDtypeStruct((B, 4), jnp.float32),
            jax.ShapeDtypeStruct((B, 128), jnp.float32),
            jax.ShapeDtypeStruct((B, 128), jnp.float32),
            jax.ShapeDtypeStruct((B, 128), jnp.float32),
        ),
        in_specs=[VMEM_SPEC] * 13,
        out_specs=(VMEM_SPEC, VMEM_SPEC, VMEM_SPEC, VMEM_SPEC),
    )(patches_c, w_exp, shift_c,
      bf(w0), b0.reshape(1, -1), bf(w1), b1.reshape(1, -1),
      bf(w2), b2.reshape(1, -1), bf(w3), b3.reshape(1, -1),
      quota, consume)


@jax.jit
def my_model_forward(x_nchw, conv_params, lin_params, quota, consume):
    # self.sigmoid.zero_grad() is a training no-op.
    # Cast to bf16 BEFORE slicing/transposing; keep channel-major between stages.
    x_cm = jnp.transpose(x_nchw.astype(jnp.bfloat16), (1, 0, 2, 3))  # (3,B,96,96)
    y_a = conv_block_cm(x_cm, conv_params[0], stride=1)   # (16,B,47,47) bf16
    y_b = conv_block_cm(y_a, conv_params[1], stride=2)    # (32,B,11,11) bf16
    patches_c, w_exp, shift_c = _build_stage_c_inputs(y_b, conv_params[2])
    probs, d0, d1, d2 = fused_head(patches_c, w_exp, shift_c,
                                   lin_params, quota, consume)
    # li*_dat are single-element lists in the PyTorch module.
    return probs, [d0], [d1], [d2]


# ----------------------------------------------------------------------------
# Deterministic parameter construction
# ----------------------------------------------------------------------------
def make_params(key):
    keys = jax.random.split(key, 8)

    def conv_p(k, cin, cout):
        kw_, kb_ = jax.random.split(k)
        w = jax.random.normal(kw_, (cout, cin, 3, 3), jnp.float32) * 0.05
        b = jax.random.normal(kb_, (cout,), jnp.float32) * 0.01
        gamma = jnp.ones((cout,), jnp.float32)
        beta = jnp.zeros((cout,), jnp.float32)
        rmean = jnp.zeros((cout,), jnp.float32)    # BN eval-mode running stats
        rvar = jnp.ones((cout,), jnp.float32)
        return (w, b, gamma, beta, rmean, rvar)

    def lin_p(k, din, dout):
        kw_, kb_ = jax.random.split(k)
        w = jax.random.normal(kw_, (din, dout), jnp.float32) * 0.05
        b = jax.random.normal(kb_, (dout,), jnp.float32) * 0.01
        return (w, b)

    conv_params = (conv_p(keys[0], 3, 16),
                   conv_p(keys[1], 16, 32),
                   conv_p(keys[2], 32, 32))
    lin_params = (lin_p(keys[3], 128, 128),
                  lin_p(keys[4], 128, 128),
                  lin_p(keys[5], 128, 128),
                  lin_p(keys[6], 128, 4))
    return conv_params, lin_params


if __name__ == "__main__":
    B = 2
    key = jax.random.PRNGKey(0)
    k_x, k_p = jax.random.split(key)
    x = jax.random.normal(k_x, (B, 3, 96, 96), jnp.float32)   # NCHW like PyTorch

    conv_params, lin_params = make_params(k_p)
    # quota_li{0,1,2} = 10, consume_li{0,1,2} = 0 (stacked per tiring stage).
    # resume_li* (=1.2) only enters the stateful consume update -> unused here.
    quota = jnp.full((3, B, 128), 10.0, jnp.float32)
    consume = jnp.zeros((3, B, 128), jnp.float32)

    probs, li0, li1, li2 = my_model_forward(x, conv_params, lin_params,
                                            quota, consume)
    jax.block_until_ready((probs, li0, li1, li2))

    assert probs.shape == (B, 4)
    assert li0[0].shape == (B, 128) and li1[0].shape == (B, 128)
    assert li2[0].shape == (B, 128)
    assert bool(jnp.all(jnp.isfinite(probs)))
    # approx reciprocal in the softmax denominator -> sum is ~1 to ~1e-4.
    assert bool(jnp.allclose(jnp.sum(probs, axis=-1), 1.0, atol=2e-3))
    print("KERNEL_OK")
</pallas_src>

<mosaic_0001>
module attributes {stable_mosaic.version = 11 : i64} {
  func.func @conv_bn_relu_pool_kernel(%arg0: memref<4x27x4418xbf16, #tpu.memory_space<vmem>>, %arg1: memref<16x27xbf16, #tpu.memory_space<vmem>>, %arg2: memref<16x1xf32, #tpu.memory_space<vmem>>, %arg3: memref<16x4418xbf16, #tpu.memory_space<vmem>>) attributes {dimension_semantics = [], scalar_prefetch = 0 : i64, scratch_operands = 0 : i64, tpu.core_type = #tpu.core_type<tc>} {
    %c0 = arith.constant 0 : index
    %c0_0 = arith.constant 0 : index
    %0 = vector.load %arg1[%c0, %c0_0] : memref<16x27xbf16, #tpu.memory_space<vmem>>, vector<16x27xbf16>
    %c0_1 = arith.constant 0 : index
    %c0_2 = arith.constant 0 : index
    %c0_3 = arith.constant 0 : index
    %1 = vector.load %arg0[%c0_1, %c0_2, %c0_3] : memref<4x27x4418xbf16, #tpu.memory_space<vmem>>, vector<1x27x4418xbf16>
    %2 = vector.shape_cast %1 : vector<1x27x4418xbf16> to vector<27x4418xbf16>
    %cst = arith.constant dense<0.000000e+00> : vector<16x4418xf32>
    %3 = tpu.matmul %0, %2, %cst {dimension_numbers = #tpu.dot_dimension_numbers<[1], [0], [0], [1], [0, 0, 1, 1], [], []>} : vector<16x27xbf16>, vector<27x4418xbf16>, vector<16x4418xf32> -> vector<16x4418xf32>
    %c1 = arith.constant 1 : index
    %c0_4 = arith.constant 0 : index
    %c0_5 = arith.constant 0 : index
    %4 = vector.load %arg0[%c1, %c0_4, %c0_5] : memref<4x27x4418xbf16, #tpu.memory_space<vmem>>, vector<1x27x4418xbf16>
    %5 = vector.shape_cast %4 : vector<1x27x4418xbf16> to vector<27x4418xbf16>
    %cst_6 = arith.constant dense<0.000000e+00> : vector<16x4418xf32>
    %6 = tpu.matmul %0, %5, %cst_6 {dimension_numbers = #tpu.dot_dimension_numbers<[1], [0], [0], [1], [0, 0, 1, 1], [], []>} : vector<16x27xbf16>, vector<27x4418xbf16>, vector<16x4418xf32> -> vector<16x4418xf32>
    %7 = arith.maximumf %3, %6 : vector<16x4418xf32>
    %c2 = arith.constant 2 : index
    %c0_7 = arith.constant 0 : index
    %c0_8 = arith.constant 0 : index
    %8 = vector.load %arg0[%c2, %c0_7, %c0_8] : memref<4x27x4418xbf16, #tpu.memory_space<vmem>>, vector<1x27x4418xbf16>
    %9 = vector.shape_cast %8 : vector<1x27x4418xbf16> to vector<27x4418xbf16>
    %cst_9 = arith.constant dense<0.000000e+00> : vector<16x4418xf32>
    %10 = tpu.matmul %0, %9, %cst_9 {dimension_numbers = #tpu.dot_dimension_numbers<[1], [0], [0], [1], [0, 0, 1, 1], [], []>} : vector<16x27xbf16>, vector<27x4418xbf16>, vector<16x4418xf32> -> vector<16x4418xf32>
    %11 = arith.maximumf %7, %10 : vector<16x4418xf32>
    %c3 = arith.constant 3 : index
    %c0_10 = arith.constant 0 : index
    %c0_11 = arith.constant 0 : index
    %12 = vector.load %arg0[%c3, %c0_10, %c0_11] : memref<4x27x4418xbf16, #tpu.memory_space<vmem>>, vector<1x27x4418xbf16>
    %13 = vector.shape_cast %12 : vector<1x27x4418xbf16> to vector<27x4418xbf16>
    %cst_12 = arith.constant dense<0.000000e+00> : vector<16x4418xf32>
    %14 = tpu.matmul %0, %13, %cst_12 {dimension_numbers = #tpu.dot_dimension_numbers<[1], [0], [0], [1], [0, 0, 1, 1], [], []>} : vector<16x27xbf16>, vector<27x4418xbf16>, vector<16x4418xf32> -> vector<16x4418xf32>
    %15 = arith.maximumf %11, %14 : vector<16x4418xf32>
    %c0_13 = arith.constant 0 : index
    %c0_14 = arith.constant 0 : index
    %16 = vector.load %arg2[%c0_13, %c0_14] : memref<16x1xf32, #tpu.memory_space<vmem>>, vector<16x1xf32>
    %17 = vector.broadcast %16 : vector<16x1xf32> to vector<16x4418xf32>
    %18 = arith.addf %15, %17 : vector<16x4418xf32>
    %cst_15 = arith.constant 0.000000e+00 : f32
    %19 = vector.broadcast %cst_15 : f32 to vector<16x4418xf32>
    %20 = arith.maximumf %18, %19 : vector<16x4418xf32>
    %21 = arith.truncf %20 : vector<16x4418xf32> to vector<16x4418xbf16>
    %c0_16 = arith.constant 0 : index
    %c0_17 = arith.constant 0 : index
    %22 = vector.load %arg3[%c0_16, %c0_17] : memref<16x4418xbf16, #tpu.memory_space<vmem>>, vector<16x4418xbf16>
    tpu.vector_store %arg3[%c0_16, %c0_17], %21 {strides = array<i32>} : memref<16x4418xbf16, #tpu.memory_space<vmem>>, vector<16x4418xbf16>,
    return
  }
}

module attributes {stable_mosaic.version = 11 : i64} {
  func.func @conv_bn_relu_pool_kernel(%arg0: memref<4x144x242xbf16, #tpu.memory_space<vmem>>, %arg1: memref<32x144xbf16, #tpu.memory_space<vmem>>, %arg2: memref<32x1xf32, #tpu.memory_space<vmem>>, %arg3: memref<32x242xbf16, #tpu.memory_space<vmem>>) attributes {dimension_semantics = [], scalar_prefetch = 0 : i64, scratch_operands = 0 : i64, tpu.core_type = #tpu.core_type<tc>} {
    %c0 = arith.constant 0 : index
    %c0_0 = arith.constant 0 : index
    %0 = vector.load %arg1[%c0, %c0_0] : memref<32x144xbf16, #tpu.memory_space<vmem>>, vector<32x144xbf16>
    %c0_1 = arith.constant 0 : index
    %c0_2 = arith.constant 0 : index
    %c0_3 = arith.constant 0 : index
    %1 = vector.load %arg0[%c0_1, %c0_2, %c0_3] : memref<4x144x242xbf16, #tpu.memory_space<vmem>>, vector<1x144x242xbf16>
    %2 = vector.shape_cast %1 : vector<1x144x242xbf16> to vector<144x242xbf16>
    %cst = arith.constant dense<0.000000e+00> : vector<32x242xf32>
    %3 = tpu.matmul %0, %2, %cst {dimension_numbers = #tpu.dot_dimension_numbers<[1], [0], [0], [1], [0, 0, 1, 1], [], []>} : vector<32x144xbf16>, vector<144x242xbf16>, vector<32x242xf32> -> vector<32x242xf32>
    %c1 = arith.constant 1 : index
    %c0_4 = arith.constant 0 : index
    %c0_5 = arith.constant 0 : index
    %4 = vector.load %arg0[%c1, %c0_4, %c0_5] : memref<4x144x242xbf16, #tpu.memory_space<vmem>>, vector<1x144x242xbf16>
    %5 = vector.shape_cast %4 : vector<1x144x242xbf16> to vector<144x242xbf16>
    %cst_6 = arith.constant dense<0.000000e+00> : vector<32x242xf32>
    %6 = tpu.matmul %0, %5, %cst_6 {dimension_numbers = #tpu.dot_dimension_numbers<[1], [0], [0], [1], [0, 0, 1, 1], [], []>} : vector<32x144xbf16>, vector<144x242xbf16>, vector<32x242xf32> -> vector<32x242xf32>
    %7 = arith.maximumf %3, %6 : vector<32x242xf32>
    %c2 = arith.constant 2 : index
    %c0_7 = arith.constant 0 : index
    %c0_8 = arith.constant 0 : index
    %8 = vector.load %arg0[%c2, %c0_7, %c0_8] : memref<4x144x242xbf16, #tpu.memory_space<vmem>>, vector<1x144x242xbf16>
    %9 = vector.shape_cast %8 : vector<1x144x242xbf16> to vector<144x242xbf16>
    %cst_9 = arith.constant dense<0.000000e+00> : vector<32x242xf32>
    %10 = tpu.matmul %0, %9, %cst_9 {dimension_numbers = #tpu.dot_dimension_numbers<[1], [0], [0], [1], [0, 0, 1, 1], [], []>} : vector<32x144xbf16>, vector<144x242xbf16>, vector<32x242xf32> -> vector<32x242xf32>
    %11 = arith.maximumf %7, %10 : vector<32x242xf32>
    %c3 = arith.constant 3 : index
    %c0_10 = arith.constant 0 : index
    %c0_11 = arith.constant 0 : index
    %12 = vector.load %arg0[%c3, %c0_10, %c0_11] : memref<4x144x242xbf16, #tpu.memory_space<vmem>>, vector<1x144x242xbf16>
    %13 = vector.shape_cast %12 : vector<1x144x242xbf16> to vector<144x242xbf16>
    %cst_12 = arith.constant dense<0.000000e+00> : vector<32x242xf32>
    %14 = tpu.matmul %0, %13, %cst_12 {dimension_numbers = #tpu.dot_dimension_numbers<[1], [0], [0], [1], [0, 0, 1, 1], [], []>} : vector<32x144xbf16>, vector<144x242xbf16>, vector<32x242xf32> -> vector<32x242xf32>
    %15 = arith.maximumf %11, %14 : vector<32x242xf32>
    %c0_13 = arith.constant 0 : index
    %c0_14 = arith.constant 0 : index
    %16 = vector.load %arg2[%c0_13, %c0_14] : memref<32x1xf32, #tpu.memory_space<vmem>>, vector<32x1xf32>
    %17 = vector.broadcast %16 : vector<32x1xf32> to vector<32x242xf32>
    %18 = arith.addf %15, %17 : vector<32x242xf32>
    %cst_15 = arith.constant 0.000000e+00 : f32
    %19 = vector.broadcast %cst_15 : f32 to vector<32x242xf32>
    %20 = arith.maximumf %18, %19 : vector<32x242xf32>
    %21 = arith.truncf %20 : vector<32x242xf32> to vector<32x242xbf16>
    %c0_16 = arith.constant 0 : index
    %c0_17 = arith.constant 0 : index
    %22 = vector.load %arg3[%c0_16, %c0_17] : memref<32x242xbf16, #tpu.memory_space<vmem>>, vector<32x242xbf16>
    tpu.vector_store %arg3[%c0_16, %c0_17], %21 {strides = array<i32>} : memref<32x242xbf16, #tpu.memory_space<vmem>>, vector<32x242xbf16>,
    return
  }
}

module attributes {stable_mosaic.version = 11 : i64} {
  func.func @convc_mlp_head_kernel(%arg0: memref<4x2x1152xbf16, #tpu.memory_space<vmem>>, %arg1: memref<1152x128xbf16, #tpu.memory_space<vmem>>, %arg2: memref<1x128xf32, #tpu.memory_space<vmem>>, %arg3: memref<128x128xbf16, #tpu.memory_space<vmem>>, %arg4: memref<1x128xf32, #tpu.memory_space<vmem>>, %arg5: memref<128x128xbf16, #tpu.memory_space<vmem>>, %arg6: memref<1x128xf32, #tpu.memory_space<vmem>>, %arg7: memref<128x128xbf16, #tpu.memory_space<vmem>>, %arg8: memref<1x128xf32, #tpu.memory_space<vmem>>, %arg9: memref<128x4xbf16, #tpu.memory_space<vmem>>, %arg10: memref<1x4xf32, #tpu.memory_space<vmem>>, %arg11: memref<3x2x128xf32, #tpu.memory_space<vmem>>, %arg12: memref<3x2x128xf32, #tpu.memory_space<vmem>>, %arg13: memref<2x4xf32, #tpu.memory_space<vmem>>, %arg14: memref<2x128xf32, #tpu.memory_space<vmem>>, %arg15: memref<2x128xf32, #tpu.memory_space<vmem>>, %arg16: memref<2x128xf32, #tpu.memory_space<vmem>>) attributes {dimension_semantics = [], scalar_prefetch = 0 : i64, scratch_operands = 0 : i64, tpu.core_type = #tpu.core_type<tc>} {
    %c0 = arith.constant 0 : index
    %c0_0 = arith.constant 0 : index
    %0 = vector.load %arg1[%c0, %c0_0] : memref<1152x128xbf16, #tpu.memory_space<vmem>>, vector<1152x128xbf16>
    %c0_1 = arith.constant 0 : index
    %c0_2 = arith.constant 0 : index
    %c0_3 = arith.constant 0 : index
    %1 = vector.load %arg0[%c0_1, %c0_2, %c0_3] : memref<4x2x1152xbf16, #tpu.memory_space<vmem>>, vector<1x2x1152xbf16>
    %2 = vector.shape_cast %1 : vector<1x2x1152xbf16> to vector<2x1152xbf16>
    %cst = arith.constant dense<0.000000e+00> : vector<2x128xf32>
    %3 = tpu.matmul %2, %0, %cst {dimension_numbers = #tpu.dot_dimension_numbers<[1], [0], [0], [1], [0, 0, 1, 1], [], []>} : vector<2x1152xbf16>, vector<1152x128xbf16>, vector<2x128xf32> -> vector<2x128xf32>
    %c1 = arith.constant 1 : index
    %c0_4 = arith.constant 0 : index
    %c0_5 = arith.constant 0 : index
    %4 = vector.load %arg0[%c1, %c0_4, %c0_5] : memref<4x2x1152xbf16, #tpu.memory_space<vmem>>, vector<1x2x1152xbf16>
    %5 = vector.shape_cast %4 : vector<1x2x1152xbf16> to vector<2x1152xbf16>
    %cst_6 = arith.constant dense<0.000000e+00> : vector<2x128xf32>
    %6 = tpu.matmul %5, %0, %cst_6 {dimension_numbers = #tpu.dot_dimension_numbers<[1], [0], [0], [1], [0, 0, 1, 1], [], []>} : vector<2x1152xbf16>, vector<1152x128xbf16>, vector<2x128xf32> -> vector<2x128xf32>
    %7 = arith.maximumf %3, %6 : vector<2x128xf32>
    %c2 = arith.constant 2 : index
    %c0_7 = arith.constant 0 : index
    %c0_8 = arith.constant 0 : index
    %8 = vector.load %arg0[%c2, %c0_7, %c0_8] : memref<4x2x1152xbf16, #tpu.memory_space<vmem>>, vector<1x2x1152xbf16>
    %9 = vector.shape_cast %8 : vector<1x2x1152xbf16> to vector<2x1152xbf16>
    %cst_9 = arith.constant dense<0.000000e+00> : vector<2x128xf32>
    %10 = tpu.matmul %9, %0, %cst_9 {dimension_numbers = #tpu.dot_dimension_numbers<[1], [0], [0], [1], [0, 0, 1, 1], [], []>} : vector<2x1152xbf16>, vector<1152x128xbf16>, vector<2x128xf32> -> vector<2x128xf32>
    %11 = arith.maximumf %7, %10 : vector<2x128xf32>
    %c3 = arith.constant 3 : index
    %c0_10 = arith.constant 0 : index
    %c0_11 = arith.constant 0 : index
    %12 = vector.load %arg0[%c3, %c0_10, %c0_11] : memref<4x2x1152xbf16, #tpu.memory_space<vmem>>, vector<1x2x1152xbf16>
    %13 = vector.shape_cast %12 : vector<1x2x1152xbf16> to vector<2x1152xbf16>
    %cst_12 = arith.constant dense<0.000000e+00> : vector<2x128xf32>
    %14 = tpu.matmul %13, %0, %cst_12 {dimension_numbers = #tpu.dot_dimension_numbers<[1], [0], [0], [1], [0, 0, 1, 1], [], []>} : vector<2x1152xbf16>, vector<1152x128xbf16>, vector<2x128xf32> -> vector<2x128xf32>
    %15 = arith.maximumf %11, %14 : vector<2x128xf32>
    %c0_13 = arith.constant 0 : index
    %c0_14 = arith.constant 0 : index
    %16 = vector.load %arg2[%c0_13, %c0_14] : memref<1x128xf32, #tpu.memory_space<vmem>>, vector<1x128xf32>
    %17 = vector.broadcast %16 : vector<1x128xf32> to vector<2x128xf32>
    %18 = arith.addf %15, %17 : vector<2x128xf32>
    %cst_15 = arith.constant 0.000000e+00 : f32
    %19 = vector.broadcast %cst_15 : f32 to vector<2x128xf32>
    %20 = arith.maximumf %18, %19 : vector<2x128xf32>
    %21 = arith.truncf %20 : vector<2x128xf32> to vector<2x128xbf16>
    %c0_16 = arith.constant 0 : index
    %c0_17 = arith.constant 0 : index
    %22 = vector.load %arg3[%c0_16, %c0_17] : memref<128x128xbf16, #tpu.memory_space<vmem>>, vector<128x128xbf16>
    %cst_18 = arith.constant dense<0.000000e+00> : vector<2x128xf32>
    %23 = tpu.matmul %21, %22, %cst_18 {dimension_numbers = #tpu.dot_dimension_numbers<[1], [0], [0], [1], [0, 0, 1, 1], [], []>} : vector<2x128xbf16>, vector<128x128xbf16>, vector<2x128xf32> -> vector<2x128xf32>
    %c0_19 = arith.constant 0 : index
    %c0_20 = arith.constant 0 : index
    %24 = vector.load %arg4[%c0_19, %c0_20] : memref<1x128xf32, #tpu.memory_space<vmem>>, vector<1x128xf32>
    %25 = vector.broadcast %24 : vector<1x128xf32> to vector<2x128xf32>
    %26 = arith.addf %23, %25 : vector<2x128xf32>
    %cst_21 = arith.constant 0.000000e+00 : f32
    %27 = vector.broadcast %cst_21 : f32 to vector<2x128xf32>
    %28 = arith.maximumf %26, %27 : vector<2x128xf32>
    %c0_22 = arith.constant 0 : index
    %c0_23 = arith.constant 0 : index
    %29 = vector.load %arg14[%c0_22, %c0_23] : memref<2x128xf32, #tpu.memory_space<vmem>>, vector<2x128xf32>
    tpu.vector_store %arg14[%c0_22, %c0_23], %28 {strides = array<i32>} : memref<2x128xf32, #tpu.memory_space<vmem>>, vector<2x128xf32>,
    %c0_24 = arith.constant 0 : index
    %c0_25 = arith.constant 0 : index
    %c0_26 = arith.constant 0 : index
    %30 = vector.load %arg11[%c0_24, %c0_25, %c0_26] : memref<3x2x128xf32, #tpu.memory_space<vmem>>, vector<1x2x128xf32>
    %31 = vector.shape_cast %30 : vector<1x2x128xf32> to vector<2x128xf32>
    %c0_27 = arith.constant 0 : index
    %c0_28 = arith.constant 0 : index
    %c0_29 = arith.constant 0 : index
    %32 = vector.load %arg12[%c0_27, %c0_28, %c0_29] : memref<3x2x128xf32, #tpu.memory_space<vmem>>, vector<1x2x128xf32>
    %33 = vector.shape_cast %32 : vector<1x2x128xf32> to vector<2x128xf32>
    %34 = arith.subf %31, %33 : vector<2x128xf32>
    %c0_30 = arith.constant 0 : index
    %c0_31 = arith.constant 0 : index
    %c0_32 = arith.constant 0 : index
    %35 = vector.load %arg11[%c0_30, %c0_31, %c0_32] : memref<3x2x128xf32, #tpu.memory_space<vmem>>, vector<1x2x128xf32>
    %36 = vector.shape_cast %35 : vector<1x2x128xf32> to vector<2x128xf32>
    %37 = arith.divf %34, %36 : vector<2x128xf32>
    %cst_33 = arith.constant 0.000000e+00 : f32
    %38 = vector.broadcast %cst_33 : f32 to vector<2x128xf32>
    %39 = arith.maximumf %37, %38 : vector<2x128xf32>
    %40 = arith.mulf %28, %39 : vector<2x128xf32>
    %41 = arith.truncf %40 : vector<2x128xf32> to vector<2x128xbf16>
    %c0_34 = arith.constant 0 : index
    %c0_35 = arith.constant 0 : index
    %42 = vector.load %arg5[%c0_34, %c0_35] : memref<128x128xbf16, #tpu.memory_space<vmem>>, vector<128x128xbf16>
    %cst_36 = arith.constant dense<0.000000e+00> : vector<2x128xf32>
    %43 = tpu.matmul %41, %42, %cst_36 {dimension_numbers = #tpu.dot_dimension_numbers<[1], [0], [0], [1], [0, 0, 1, 1], [], []>} : vector<2x128xbf16>, vector<128x128xbf16>, vector<2x128xf32> -> vector<2x128xf32>
    %c0_37 = arith.constant 0 : index
    %c0_38 = arith.constant 0 : index
    %44 = vector.load %arg6[%c0_37, %c0_38] : memref<1x128xf32, #tpu.memory_space<vmem>>, vector<1x128xf32>
    %45 = vector.broadcast %44 : vector<1x128xf32> to vector<2x128xf32>
    %46 = arith.addf %43, %45 : vector<2x128xf32>
    %cst_39 = arith.constant 0.000000e+00 : f32
    %47 = vector.broadcast %cst_39 : f32 to vector<2x128xf32>
    %48 = arith.maximumf %46, %47 : vector<2x128xf32>
    %c0_40 = arith.constant 0 : index
    %c0_41 = arith.constant 0 : index
    %49 = vector.load %arg15[%c0_40, %c0_41] : memref<2x128xf32, #tpu.memory_space<vmem>>, vector<2x128xf32>
    tpu.vector_store %arg15[%c0_40, %c0_41], %48 {strides = array<i32>} : memref<2x128xf32, #tpu.memory_space<vmem>>, vector<2x128xf32>,
    %c1_42 = arith.constant 1 : index
    %c0_43 = arith.constant 0 : index
    %c0_44 = arith.constant 0 : index
    %50 = vector.load %arg11[%c1_42, %c0_43, %c0_44] : memref<3x2x128xf32, #tpu.memory_space<vmem>>, vector<1x2x128xf32>
    %51 = vector.shape_cast %50 : vector<1x2x128xf32> to vector<2x128xf32>
    %c1_45 = arith.constant 1 : index
    %c0_46 = arith.constant 0 : index
    %c0_47 = arith.constant 0 : index
    %52 = vector.load %arg12[%c1_45, %c0_46, %c0_47] : memref<3x2x128xf32, #tpu.memory_space<vmem>>, vector<1x2x128xf32>
    %53 = vector.shape_cast %52 : vector<1x2x128xf32> to vector<2x128xf32>
    %54 = arith.subf %51, %53 : vector<2x128xf32>
    %c1_48 = arith.constant 1 : index
    %c0_49 = arith.constant 0 : index
    %c0_50 = arith.constant 0 : index
    %55 = vector.load %arg11[%c1_48, %c0_49, %c0_50] : memref<3x2x128xf32, #tpu.memory_space<vmem>>, vector<1x2x128xf32>
    %56 = vector.shape_cast %55 : vector<1x2x128xf32> to vector<2x128xf32>
    %57 = arith.divf %54, %56 : vector<2x128xf32>
    %cst_51 = arith.constant 0.000000e+00 : f32
    %58 = vector.broadcast %cst_51 : f32 to vector<2x128xf32>
    %59 = arith.maximumf %57, %58 : vector<2x128xf32>
    %60 = arith.mulf %48, %59 : vector<2x128xf32>
    %61 = arith.truncf %60 : vector<2x128xf32> to vector<2x128xbf16>
    %c0_52 = arith.constant 0 : index
    %c0_53 = arith.constant 0 : index
    %62 = vector.load %arg7[%c0_52, %c0_53] : memref<128x128xbf16, #tpu.memory_space<vmem>>, vector<128x128xbf16>
    %cst_54 = arith.constant dense<0.000000e+00> : vector<2x128xf32>
    %63 = tpu.matmul %61, %62, %cst_54 {dimension_numbers = #tpu.dot_dimension_numbers<[1], [0], [0], [1], [0, 0, 1, 1], [], []>} : vector<2x128xbf16>, vector<128x128xbf16>, vector<2x128xf32> -> vector<2x128xf32>
    %c0_55 = arith.constant 0 : index
    %c0_56 = arith.constant 0 : index
    %64 = vector.load %arg8[%c0_55, %c0_56] : memref<1x128xf32, #tpu.memory_space<vmem>>, vector<1x128xf32>
    %65 = vector.broadcast %64 : vector<1x128xf32> to vector<2x128xf32>
    %66 = arith.addf %63, %65 : vector<2x128xf32>
    %cst_57 = arith.constant 0.000000e+00 : f32
    %67 = vector.broadcast %cst_57 : f32 to vector<2x128xf32>
    %68 = arith.maximumf %66, %67 : vector<2x128xf32>
    %c0_58 = arith.constant 0 : index
    %c0_59 = arith.constant 0 : index
    %69 = vector.load %arg16[%c0_58, %c0_59] : memref<2x128xf32, #tpu.memory_space<vmem>>, vector<2x128xf32>
    tpu.vector_store %arg16[%c0_58, %c0_59], %68 {strides = array<i32>} : memref<2x128xf32, #tpu.memory_space<vmem>>, vector<2x128xf32>,
    %c2_60 = arith.constant 2 : index
    %c0_61 = arith.constant 0 : index
    %c0_62 = arith.constant 0 : index
    %70 = vector.load %arg11[%c2_60, %c0_61, %c0_62] : memref<3x2x128xf32, #tpu.memory_space<vmem>>, vector<1x2x128xf32>
    %71 = vector.shape_cast %70 : vector<1x2x128xf32> to vector<2x128xf32>
    %c2_63 = arith.constant 2 : index
    %c0_64 = arith.constant 0 : index
    %c0_65 = arith.constant 0 : index
    %72 = vector.load %arg12[%c2_63, %c0_64, %c0_65] : memref<3x2x128xf32, #tpu.memory_space<vmem>>, vector<1x2x128xf32>
    %73 = vector.shape_cast %72 : vector<1x2x128xf32> to vector<2x128xf32>
    %74 = arith.subf %71, %73 : vector<2x128xf32>
    %c2_66 = arith.constant 2 : index
    %c0_67 = arith.constant 0 : index
    %c0_68 = arith.constant 0 : index
    %75 = vector.load %arg11[%c2_66, %c0_67, %c0_68] : memref<3x2x128xf32, #tpu.memory_space<vmem>>, vector<1x2x128xf32>
    %76 = vector.shape_cast %75 : vector<1x2x128xf32> to vector<2x128xf32>
    %77 = arith.divf %74, %76 : vector<2x128xf32>
    %cst_69 = arith.constant 0.000000e+00 : f32
    %78 = vector.broadcast %cst_69 : f32 to vector<2x128xf32>
    %79 = arith.maximumf %77, %78 : vector<2x128xf32>
    %80 = arith.mulf %68, %79 : vector<2x128xf32>
    %81 = arith.truncf %80 : vector<2x128xf32> to vector<2x128xbf16>
    %c0_70 = arith.constant 0 : index
    %c0_71 = arith.constant 0 : index
    %82 = vector.load %arg9[%c0_70, %c0_71] : memref<128x4xbf16, #tpu.memory_space<vmem>>, vector<128x4xbf16>
    %cst_72 = arith.constant dense<0.000000e+00> : vector<2x4xf32>
    %83 = tpu.matmul %81, %82, %cst_72 {dimension_numbers = #tpu.dot_dimension_numbers<[1], [0], [0], [1], [0, 0, 1, 1], [], []>} : vector<2x128xbf16>, vector<128x4xbf16>, vector<2x4xf32> -> vector<2x4xf32>
    %c0_73 = arith.constant 0 : index
    %c0_74 = arith.constant 0 : index
    %84 = vector.load %arg10[%c0_73, %c0_74] : memref<1x4xf32, #tpu.memory_space<vmem>>, vector<1x4xf32>
    %85 = vector.broadcast %84 : vector<1x4xf32> to vector<2x4xf32>
    %86 = arith.addf %83, %85 : vector<2x4xf32>
    %cst_75 = arith.constant dense<0xFF800000> : vector<2xf32>
    %87 = vector.multi_reduction <maximumf>, %86, %cst_75 [1] : vector<2x4xf32> to vector<2xf32>
    %88 = vector.shape_cast %87 : vector<2xf32> to vector<2x1xf32>
    %89 = vector.broadcast %88 : vector<2x1xf32> to vector<2x4xf32>
    %90 = arith.subf %86, %89 : vector<2x4xf32>
    %91 = math.exp %90 : vector<2x4xf32>
    %cst_76 = arith.constant dense<0.000000e+00> : vector<2xf32>
    %92 = vector.multi_reduction <add>, %91, %cst_76 [1] : vector<2x4xf32> to vector<2xf32>
    %93 = vector.shape_cast %92 : vector<2xf32> to vector<2x1xf32>
    %94 = tpu.reciprocal %93 {approx = true} : vector<2x1xf32> -> vector<2x1xf32>
    %95 = vector.broadcast %94 : vector<2x1xf32> to vector<2x4xf32>
    %96 = arith.mulf %91, %95 : vector<2x4xf32>
    %c0_77 = arith.constant 0 : index
    %c0_78 = arith.constant 0 : index
    %97 = vector.load %arg13[%c0_77, %c0_78] : memref<2x4xf32, #tpu.memory_space<vmem>>, vector<2x4xf32>
    tpu.vector_store %arg13[%c0_77, %c0_78], %96 {strides = array<i32>} : memref<2x4xf32, #tpu.memory_space<vmem>>, vector<2x4xf32>,
    return
  }
}

</mosaic_0001>

<llo_original>
// kernel: my_model_forward.3
$region0: #{my_model_forward.3}
  #allocation0 [shape = 'u32[]', space=smem, size = 0x4, offset = 0x4, fixed_abs, tag = 'smem constant byte address 0x4 - core index']
  #allocation1 [shape = 'u32[144,128]{1,0:T(1,128)}', space=vmem, size = 0x12000, scoped, tag = 'internal scratch']
  %s0 = inlined_call_operand.vmem [shape: bf16[4,27,4418], index: 0, kind: input, shape index: {}]
  %s1 = inlined_call_operand.vmem [shape: bf16[16,27], index: 1, kind: input, shape index: {}]
  %s2 = inlined_call_operand.vmem [shape: f32[16,1], index: 2, kind: input, shape index: {}]
  %s3 = inlined_call_operand.vmem [shape: bf16[16,4418], index: 3, kind: output, shape index: {}]
  %s4 = sld [smem:[#allocation0]]
  $region22: #{my_model_forward.3} parent=0
    _
  %s6 = ssub.s32 1, %s4
  %s7 = scalar_select 0, %s6, %s4
  // Predicated region
  $region2: #{my_model_forward.3} parent=0 // pred_check
    _
  $region3: #{my_model_forward.3} parent=0 // pred_check_branch
    %9 = sbr.rel (0) target = $region5
  $region4: #{my_model_forward.3} parent=0 // pred_region
    _
  $region5: #{my_model_forward.3} parent=0 // pred_fallthru
    _
  // Predicated region
  $region6: #{my_model_forward.3} parent=0 // pred_check
    _
  $region7: #{my_model_forward.3} parent=0 // pred_check_branch
    %11 = sbr.rel (0) target = $region9
  $region8: #{my_model_forward.3} parent=0 // pred_region
    _
  $region9: #{my_model_forward.3} parent=0 // pred_fallthru
    _
  // Predicated region
  $region10: #{my_model_forward.3} parent=0 // pred_check
    _
  $region11: #{my_model_forward.3} parent=0 // pred_check_branch
    %13 = sbr.rel (0) target = $region13
  $region12: #{my_model_forward.3} parent=0 // pred_region
    _
  $region13: #{my_model_forward.3} parent=0 // pred_fallthru
    _
  %v15 = vld [vmem:[%s1] sm:$0xf]
  %v16 = vld [vmem:[%s1 + $0x4] sm:$0xf]
  %v17 = vld [vmem:[%s0] sm:$0xff]
  %v18 = vld [vmem:[%s0 + $0x8] sm:$0xff]
  %v19 = vld [vmem:[%s0 + $0x10] sm:$0xff]
  %v20 = vld [vmem:[%s0 + $0x18] sm:$0xff]
  %v21 = vld [vmem:[%s0 + $0x20] sm:$0xff]
  %v22 = vld [vmem:[%s0 + $0x28] sm:$0xff]
  %v23 = vld [vmem:[%s0 + $0x30] sm:$0xff]
  %v24 = vld [vmem:[%s0 + $0x38] sm:$0xff]
  %v25 = vld [vmem:[%s0 + $0x40] sm:$0xff]
  %v26 = vld [vmem:[%s0 + $0x48] sm:$0xff]
  %v27 = vld [vmem:[%s0 + $0x50] sm:$0xff]
  %v28 = vld [vmem:[%s0 + $0x58] sm:$0xff]
  %v29 = vld [vmem:[%s0 + $0x60] sm:$0xff]
  %v30 = vld [vmem:[%s0 + $0x68] sm:$0xff]
  %v31 = vld [vmem:[%s0 + $0x70] sm:$0xff]
  %v32 = vld [vmem:[%s0 + $0x78] sm:$0xff]
  %v33 = vld [vmem:[%s0 + $0x80] sm:$0xff]
  %v34 = vld [vmem:[%s0 + $0x88] sm:$0xf]
  %v35 = vld [vmem:[%s0 + $0x8c] sm:$0xff]
  %v36 = vld [vmem:[%s0 + $0x94] sm:$0xff]
  %v37 = vld [vmem:[%s0 + $0x9c] sm:$0xff]
  %v38 = vld [vmem:[%s0 + $0xa4] sm:$0xff]
  %v39 = vld [vmem:[%s0 + $0xac] sm:$0xff]
  %v40 = vld [vmem:[%s0 + $0xb4] sm:$0xff]
  %v41 = vld [vmem:[%s0 + $0xbc] sm:$0xff]
  %v42 = vld [vmem:[%s0 + $0xc4] sm:$0xff]
  %v43 = vld [vmem:[%s0 + $0xcc] sm:$0xff]
  %v44 = vld [vmem:[%s0 + $0xd4] sm:$0xff]
  %v45 = vld [vmem:[%s0 + $0xdc] sm:$0xff]
  %v46 = vld [vmem:[%s0 + $0xe4] sm:$0xff]
  %v47 = vld [vmem:[%s0 + $0xec] sm:$0xff]
  %v48 = vld [vmem:[%s0 + $0xf4] sm:$0xff]
  %v49 = vld [vmem:[%s0 + $0xfc] sm:$0xff]
  %v50 = vld [vmem:[%s0 + $0x104] sm:$0xff]
  %v51 = vld [vmem:[%s0 + $0x10c] sm:$0xff]
  %v52 = vld [vmem:[%s0 + $0x114] sm:$0xf]
  %v53 = vld [vmem:[%s0 + $0x118] sm:$0xff]
  %v54 = vld [vmem:[%s0 + $0x120] sm:$0xff]
  %v55 = vld [vmem:[%s0 + $0x128] sm:$0xff]
  %v56 = vld [vmem:[%s0 + $0x130] sm:$0xff]
  %v57 = vld [vmem:[%s0 + $0x138] sm:$0xff]
  %v58 = vld [vmem:[%s0 + $0x140] sm:$0xff]
  %v59 = vld [vmem:[%s0 + $0x148] sm:$0xff]
  %v60 = vld [vmem:[%s0 + $0x150] sm:$0xff]
  %v61 = vld [vmem:[%s0 + $0x158] sm:$0xff]
  %v62 = vld [vmem:[%s0 + $0x160] sm:$0xff]
  %v63 = vld [vmem:[%s0 + $0x168] sm:$0xff]
  %v64 = vld [vmem:[%s0 + $0x170] sm:$0xff]
  %v65 = vld [vmem:[%s0 + $0x178] sm:$0xff]
  %v66 = vld [vmem:[%s0 + $0x180] sm:$0xff]
  %v67 = vld [vmem:[%s0 + $0x188] sm:$0xff]
  %v68 = vld [vmem:[%s0 + $0x190] sm:$0xff]
  %v69 = vld [vmem:[%s0 + $0x198] sm:$0xff]
  %v70 = vld [vmem:[%s0 + $0x1a0] sm:$0xf]
  %v71 = vld [vmem:[%s0 + $0x1a4] sm:$0x33]
  %v72 = vld [vmem:[%s0 + $0x1ac] sm:$0x33]
  %v73 = vld [vmem:[%s0 + $0x1b4] sm:$0x33]
  %v74 = vld [vmem:[%s0 + $0x1bc] sm:$0x33]
  %v75 = vld [vmem:[%s0 + $0x1c4] sm:$0x33]
  %v76 = vld [vmem:[%s0 + $0x1cc] sm:$0x33]
  %v77 = vld [vmem:[%s0 + $0x1d4] sm:$0x33]
  %v78 = vld [vmem:[%s0 + $0x1dc] sm:$0x33]
  %v79 = vld [vmem:[%s0 + $0x1e4] sm:$0x33]
  %v80 = vld [vmem:[%s0 + $0x1ec] sm:$0x33]
  %v81 = vld [vmem:[%s0 + $0x1f4] sm:$0x33]
  %v82 = vld [vmem:[%s0 + $0x1fc] sm:$0x33]
  %v83 = vld [vmem:[%s0 + $0x204] sm:$0x33]
  %v84 = vld [vmem:[%s0 + $0x20c] sm:$0x33]
  %v85 = vld [vmem:[%s0 + $0x214] sm:$0x33]
  %v86 = vld [vmem:[%s0 + $0x21c] sm:$0x33]
  %v87 = vld [vmem:[%s0 + $0x224] sm:$0x33]
  %v88 = vld [vmem:[%s0 + $0x22c] sm:$0x3]
  %v91 = vunpack.c.l.b16 %v15
  %v92 = vunpack.c.l.b16 %v16
  %v93 = vpack.c.b16 %v92, %v91
  %v166 = vunpack.c.l.b16 %v17
  %v167 = vunpack.c.h.b16 %v17
  %v168 = vunpack.c.l.b16 %v18
  %v169 = vunpack.c.h.b16 %v18
  %v170 = vunpack.c.l.b16 %v19
  %v171 = vunpack.c.h.b16 %v19
  %v172 = vunpack.c.l.b16 %v20
  %v173 = vunpack.c.h.b16 %v20
  %v174 = vunpack.c.l.b16 %v21
  %v175 = vunpack.c.h.b16 %v21
  %v176 = vunpack.c.l.b16 %v22
  %v177 = vunpack.c.h.b16 %v22
  %v178 = vunpack.c.l.b16 %v23
  %v179 = vunpack.c.h.b16 %v23
  %v180 = vunpack.c.l.b16 %v24
  %v181 = vunpack.c.h.b16 %v24
  %v182 = vunpack.c.l.b16 %v25
  %v183 = vunpack.c.h.b16 %v25
  %v184 = vunpack.c.l.b16 %v26
  %v185 = vunpack.c.h.b16 %v26
  %v186 = vunpack.c.l.b16 %v27
  %v187 = vunpack.c.h.b16 %v27
  %v188 = vunpack.c.l.b16 %v28
  %v189 = vunpack.c.h.b16 %v28
  %v190 = vunpack.c.l.b16 %v29
  %v191 = vunpack.c.h.b16 %v29
  %v192 = vunpack.c.l.b16 %v30
  %v193 = vunpack.c.h.b16 %v30
  %v194 = vunpack.c.l.b16 %v31
  %v195 = vunpack.c.h.b16 %v31
  %v196 = vunpack.c.l.b16 %v32
  %v197 = vunpack.c.h.b16 %v32
  %v198 = vunpack.c.l.b16 %v33
  %v199 = vunpack.c.h.b16 %v33
  %v200 = vunpack.c.l.b16 %v34
  %v201 = vunpack.c.l.b16 %v35
  %v202 = vunpack.c.h.b16 %v35
  %v203 = vunpack.c.l.b16 %v36
  %v204 = vunpack.c.h.b16 %v36
  %v205 = vunpack.c.l.b16 %v37
  %v206 = vunpack.c.h.b16 %v37
  %v207 = vunpack.c.l.b16 %v38
  %v208 = vunpack.c.h.b16 %v38
  %v209 = vunpack.c.l.b16 %v39
  %v210 = vunpack.c.h.b16 %v39
  %v211 = vunpack.c.l.b16 %v40
  %v212 = vunpack.c.h.b16 %v40
  %v213 = vunpack.c.l.b16 %v41
  %v214 = vunpack.c.h.b16 %v41
  %v215 = vunpack.c.l.b16 %v42
  %v216 = vunpack.c.h.b16 %v42
  %v217 = vunpack.c.l.b16 %v43
  %v218 = vunpack.c.h.b16 %v43
  %v219 = vunpack.c.l.b16 %v44
  %v220 = vunpack.c.h.b16 %v44
  %v221 = vunpack.c.l.b16 %v45
  %v222 = vunpack.c.h.b16 %v45
  %v223 = vunpack.c.l.b16 %v46
  %v224 = vunpack.c.h.b16 %v46
  %v225 = vunpack.c.l.b16 %v47
  %v226 = vunpack.c.h.b16 %v47
  %v227 = vunpack.c.l.b16 %v48
  %v228 = vunpack.c.h.b16 %v48
  %v229 = vunpack.c.l.b16 %v49
  %v230 = vunpack.c.h.b16 %v49
  %v231 = vunpack.c.l.b16 %v50
  %v232 = vunpack.c.h.b16 %v50
  %v233 = vunpack.c.l.b16 %v51
  %v234 = vunpack.c.h.b16 %v51
  %v235 = vunpack.c.l.b16 %v52
  %v236 = vunpack.c.l.b16 %v53
  %v237 = vunpack.c.h.b16 %v53
  %v238 = vunpack.c.l.b16 %v54
  %v239 = vunpack.c.h.b16 %v54
  %v240 = vunpack.c.l.b16 %v55
  %v241 = vunpack.c.h.b16 %v55
  %v242 = vunpack.c.l.b16 %v56
  %v243 = vunpack.c.h.b16 %v56
  %v244 = vunpack.c.l.b16 %v57
  %v245 = vunpack.c.h.b16 %v57
  %v246 = vunpack.c.l.b16 %v58
  %v247 = vunpack.c.h.b16 %v58
  %v248 = vunpack.c.l.b16 %v59
  %v249 = vunpack.c.h.b16 %v59
  %v250 = vunpack.c.l.b16 %v60
  %v251 = vunpack.c.h.b16 %v60
  %v252 = vunpack.c.l.b16 %v61
  %v253 = vunpack.c.h.b16 %v61
  %v254 = vunpack.c.l.b16 %v62
  %v255 = vunpack.c.h.b16 %v62
  %v256 = vunpack.c.l.b16 %v63
  %v257 = vunpack.c.h.b16 %v63
  %v258 = vunpack.c.l.b16 %v64
  %v259 = vunpack.c.h.b16 %v64
  %v260 = vunpack.c.l.b16 %v65
  %v261 = vunpack.c.h.b16 %v65
  %v262 = vunpack.c.l.b16 %v66
  %v263 = vunpack.c.h.b16 %v66
  %v264 = vunpack.c.l.b16 %v67
  %v265 = vunpack.c.h.b16 %v67
  %v266 = vunpack.c.l.b16 %v68
  %v267 = vunpack.c.h.b16 %v68
  %v268 = vunpack.c.l.b16 %v69
  %v269 = vunpack.c.h.b16 %v69
  %v270 = vunpack.c.l.b16 %v70
  %v271 = vunpack.c.l.b16 %v71
  %v272 = vunpack.c.h.b16 %v71
  %v273 = vunpack.c.l.b16 %v72
  %v274 = vunpack.c.h.b16 %v72
  %v275 = vunpack.c.l.b16 %v73
  %v276 = vunpack.c.h.b16 %v73
  %v277 = vunpack.c.l.b16 %v74
  %v278 = vunpack.c.h.b16 %v74
  %v279 = vunpack.c.l.b16 %v75
  %v280 = vunpack.c.h.b16 %v75
  %v281 = vunpack.c.l.b16 %v76
  %v282 = vunpack.c.h.b16 %v76
  %v283 = vunpack.c.l.b16 %v77
  %v284 = vunpack.c.h.b16 %v77
  %v285 = vunpack.c.l.b16 %v78
  %v286 = vunpack.c.h.b16 %v78
  %v287 = vunpack.c.l.b16 %v79
  %v288 = vunpack.c.h.b16 %v79
  %v289 = vunpack.c.l.b16 %v80
  %v290 = vunpack.c.h.b16 %v80
  %v291 = vunpack.c.l.b16 %v81
  %v292 = vunpack.c.h.b16 %v81
  %v293 = vunpack.c.l.b16 %v82
  %v294 = vunpack.c.h.b16 %v82
  %v295 = vunpack.c.l.b16 %v83
  %v296 = vunpack.c.h.b16 %v83
  %v297 = vunpack.c.l.b16 %v84
  %v298 = vunpack.c.h.b16 %v84
  %v299 = vunpack.c.l.b16 %v85
  %v300 = vunpack.c.h.b16 %v85
  %v301 = vunpack.c.l.b16 %v86
  %v302 = vunpack.c.h.b16 %v86
  %v303 = vunpack.c.l.b16 %v87
  %v304 = vunpack.c.h.b16 %v87
  %v305 = vunpack.c.l.b16 %v88
  %v306 = vpack.c.b16 %v201, %v166
  %v307 = vpack.c.b16 %v202, %v167
  %v308 = vpack.c.b16 %v203, %v168
  %v309 = vpack.c.b16 %v204, %v169
  %v310 = vpack.c.b16 %v205, %v170
  %v311 = vpack.c.b16 %v206, %v171
  %v312 = vpack.c.b16 %v207, %v172
  %v313 = vpack.c.b16 %v208, %v173
  %v314 = vpack.c.b16 %v209, %v174
  %v315 = vpack.c.b16 %v210, %v175
  %v316 = vpack.c.b16 %v211, %v176
  %v317 = vpack.c.b16 %v212, %v177
  %v318 = vpack.c.b16 %v213, %v178
  %v319 = vpack.c.b16 %v214, %v179
  %v320 = vpack.c.b16 %v215, %v180
  %v321 = vpack.c.b16 %v216, %v181
  %v322 = vpack.c.b16 %v217, %v182
  %v323 = vpack.c.b16 %v218, %v183
  %v324 = vpack.c.b16 %v219, %v184
  %v325 = vpack.c.b16 %v220, %v185
  %v326 = vpack.c.b16 %v221, %v186
  %v327 = vpack.c.b16 %v222, %v187
  %v328 = vpack.c.b16 %v223, %v188
  %v329 = vpack.c.b16 %v224, %v189
  %v330 = vpack.c.b16 %v225, %v190
  %v331 = vpack.c.b16 %v226, %v191
  %v332 = vpack.c.b16 %v227, %v192
  %v333 = vpack.c.b16 %v228, %v193
  %v334 = vpack.c.b16 %v229, %v194
  %v335 = vpack.c.b16 %v230, %v195
  %v336 = vpack.c.b16 %v231, %v196
  %v337 = vpack.c.b16 %v232, %v197
  %v338 = vpack.c.b16 %v233, %v198
  %v339 = vpack.c.b16 %v234, %v199
  %v340 = vpack.c.b16 %v235, %v200
  %v341 = vpack.c.b16 %v271, %v236
  %v342 = vpack.c.b16 %v272, %v237
  %v343 = vpack.c.b16 %v273, %v238
  %v344 = vpack.c.b16 %v274, %v239
  %v345 = vpack.c.b16 %v275, %v240
  %v346 = vpack.c.b16 %v276, %v241
  %v347 = vpack.c.b16 %v277, %v242
  %v348 = vpack.c.b16 %v278, %v243
  %v349 = vpack.c.b16 %v279, %v244
  %v350 = vpack.c.b16 %v280, %v245
  %v351 = vpack.c.b16 %v281, %v246
  %v352 = vpack.c.b16 %v282, %v247
  %v353 = vpack.c.b16 %v283, %v248
  %v354 = vpack.c.b16 %v284, %v249
  %v355 = vpack.c.b16 %v285, %v250
  %v356 = vpack.c.b16 %v286, %v251
  %v357 = vpack.c.b16 %v287, %v252
  %v358 = vpack.c.b16 %v288, %v253
  %v359 = vpack.c.b16 %v289, %v254
  %v360 = vpack.c.b16 %v290, %v255
  %v361 = vpack.c.b16 %v291, %v256
  %v362 = vpack.c.b16 %v292, %v257
  %v363 = vpack.c.b16 %v293, %v258
  %v364 = vpack.c.b16 %v294, %v259
  %v365 = vpack.c.b16 %v295, %v260
  %v366 = vpack.c.b16 %v296, %v261
  %v367 = vpack.c.b16 %v297, %v262
  %v368 = vpack.c.b16 %v298, %v263
  %v369 = vpack.c.b16 %v299, %v264
  %v370 = vpack.c.b16 %v300, %v265
  %v371 = vpack.c.b16 %v301, %v266
  %v372 = vpack.c.b16 %v302, %v267
  %v373 = vpack.c.b16 %v303, %v268
  %v374 = vpack.c.b16 %v304, %v269
  %v375 = vpack.c.b16 %v305, %v270
  %vm411 = vcmask 220160
  %v413 = vsel %vm411, %v93, 0
  %vm415 = vcmask 1044480
  %vm416 = vcmask 1045504
  %v417 = vsel %vm415, 4294967295, 65535
  %v418 = vsel %vm416, %v417, 0
  %v420 = vand.u32 %v341, %v418
  %v423 = vand.u32 %v342, %v418
  %v426 = vand.u32 %v343, %v418
  %v429 = vand.u32 %v344, %v418
  %v432 = vand.u32 %v345, %v418
  %v435 = vand.u32 %v346, %v418
  %v438 = vand.u32 %v347, %v418
  %v441 = vand.u32 %v348, %v418
  %v444 = vand.u32 %v349, %v418
  %v447 = vand.u32 %v350, %v418
  %v450 = vand.u32 %v351, %v418
  %v453 = vand.u32 %v352, %v418
  %v456 = vand.u32 %v353, %v418
  %v459 = vand.u32 %v354, %v418
  %v462 = vand.u32 %v355, %v418
  %v465 = vand.u32 %v356, %v418
  %v468 = vand.u32 %v357, %v418
  %v471 = vand.u32 %v358, %v418
  %v474 = vand.u32 %v359, %v418
  %v477 = vand.u32 %v360, %v418
  %v480 = vand.u32 %v361, %v418
  %v483 = vand.u32 %v362, %v418
  %v486 = vand.u32 %v363, %v418
  %v489 = vand.u32 %v364, %v418
  %v492 = vand.u32 %v365, %v418
  %v495 = vand.u32 %v366, %v418
  %v498 = vand.u32 %v367, %v418
  %v501 = vand.u32 %v368, %v418
  %v504 = vand.u32 %v369, %v418
  %v507 = vand.u32 %v370, %v418
  %v510 = vand.u32 %v371, %v418
  %v513 = vand.u32 %v372, %v418
  %v516 = vand.u32 %v373, %v418
  %v519 = vand.u32 %v374, %v418
  %v522 = vand.u32 %v375, %v418
  %524 = vmatprep.subr.bf16.mxu0 %v307
  %525 = vmatpush1.bf16.msra.mxu0 %v306
  %526 = vmatprep.subr.bf16.mxu0 %v423
  %527 = vmatpush1.bf16.msra.mxu0 %v420
  %528 = vmatprep.subr.bf16.mxu0 0
  %529 = vmatpush1.bf16.msra.mxu0 0
  %530 = vmatprep.subr.bf16.mxu0 0
  %531 = vmatpush1.bf16.msra.mxu0 0
  %532 = vmatprep.subr.bf16.mxu0 0
  %533 = vmatpush1.bf16.msra.mxu0 0
  %534 = vmatprep.subr.bf16.mxu0 0
  %535 = vmatpush1.bf16.msra.mxu0 0
  %536 = vmatprep.subr.bf16.mxu0 0
  %537 = vmatpush1.bf16.msra.mxu0 0
  %538 = vmatprep.subr.bf16.mxu0 0
  %539 = vmatpush1.bf16.msra.mxu0 0
  %540 = vmatprep.subr.bf16.mxu0 0
  %541 = vmatpush1.bf16.msra.mxu0 0
  %542 = vmatprep.subr.bf16.mxu0 0
  %543 = vmatpush1.bf16.msra.mxu0 0
  %544 = vmatprep.subr.bf16.mxu0 0
  %545 = vmatpush1.bf16.msra.mxu0 0
  %546 = vmatprep.subr.bf16.mxu0 0
  %547 = vmatpush1.bf16.msra.mxu0 0
  %548 = vmatprep.subr.bf16.mxu0 0
  %549 = vmatpush1.bf16.msra.mxu0 0
  %550 = vmatprep.subr.bf16.mxu0 0
  %551 = vmatpush1.bf16.msra.mxu0 0
  %552 = vmatprep.subr.bf16.mxu0 0
  %553 = vmatpush1.bf16.msra.mxu0 0
  %554 = vmatprep.subr.bf16.mxu0 0
  %555 = vmatpush1.bf16.msra.mxu0 0
  %556 = vmatprep.mubr.bf16.mxu0 0
  %557 = vmatmul.mubr.bf16.gmra.mrb[0].mxu0 %v413
  %v558 = vpop.f32.mrb[0].mxu0
  %v559 = vadd.f32 0.0, %v558
  %v560 = vpop.f32.mrb[0].mxu0
  %v561 = vadd.f32 0.0, %v560
  %v562 = vpop.f32.mrb[0].mxu0
  %v563 = vadd.f32 0.0, %v562
  %v564 = vpop.f32.mrb[0].mxu0
  %v565 = vadd.f32 0.0, %v564
  %566 = vdwg.mxu0
  %567 = vmatprep.subr.bf16.mxu0 %v309
  %568 = vmatpush1.bf16.msra.mxu0 %v308
  %569 = vmatprep.subr.bf16.mxu0 %v429
  %570 = vmatpush1.bf16.msra.mxu0 %v426
  %571 = vmatprep.subr.bf16.mxu0 0
  %572 = vmatpush1.bf16.msra.mxu0 0
  %573 = vmatprep.subr.bf16.mxu0 0
  %574 = vmatpush1.bf16.msra.mxu0 0
  %575 = vmatprep.subr.bf16.mxu0 0
  %576 = vmatpush1.bf16.msra.mxu0 0
  %577 = vmatprep.subr.bf16.mxu0 0
  %578 = vmatpush1.bf16.msra.mxu0 0
  %579 = vmatprep.subr.bf16.mxu0 0
  %580 = vmatpush1.bf16.msra.mxu0 0
  %581 = vmatprep.subr.bf16.mxu0 0
  %582 = vmatpush1.bf16.msra.mxu0 0
  %583 = vmatprep.subr.bf16.mxu0 0
  %584 = vmatpush1.bf16.msra.mxu0 0
  %585 = vmatprep.subr.bf16.mxu0 0
  %586 = vmatpush1.bf16.msra.mxu0 0
  %587 = vmatprep.subr.bf16.mxu0 0
  %588 = vmatpush1.bf16.msra.mxu0 0
  %589 = vmatprep.subr.bf16.mxu0 0
  %590 = vmatpush1.bf16.msra.mxu0 0
  %591 = vmatprep.subr.bf16.mxu0 0
  %592 = vmatpush1.bf16.msra.mxu0 0
  %593 = vmatprep.subr.bf16.mxu0 0
  %594 = vmatpush1.bf16.msra.mxu0 0
  %595 = vmatprep.subr.bf16.mxu0 0
  %596 = vmatpush1.bf16.msra.mxu0 0
  %597 = vmatprep.subr.bf16.mxu0 0
  %598 = vmatpush1.bf16.msra.mxu0 0
  %599 = vmatprep.mubr.bf16.mxu0 0
  %600 = vmatmul.mubr.bf16.gmra.mrb[0].mxu0 %v413
  %v601 = vpop.f32.mrb[0].mxu0
  %v602 = vadd.f32 0.0, %v601
  %v603 = vpop.f32.mrb[0].mxu0
  %v604 = vadd.f32 0.0, %v603
  %v605 = vpop.f32.mrb[0].mxu0
  %v606 = vadd.f32 0.0, %v605
  %v607 = vpop.f32.mrb[0].mxu0
  %v608 = vadd.f32 0.0, %v607
  %609 = vdwg.mxu0
  %610 = vmatprep.subr.bf16.mxu0 %v311
  %611 = vmatpush1.bf16.msra.mxu0 %v310
  %612 = vmatprep.subr.bf16.mxu0 %v435
  %613 = vmatpush1.bf16.msra.mxu0 %v432
  %614 = vmatprep.subr.bf16.mxu0 0
  %615 = vmatpush1.bf16.msra.mxu0 0
  %616 = vmatprep.subr.bf16.mxu0 0
  %617 = vmatpush1.bf16.msra.mxu0 0
  %618 = vmatprep.subr.bf16.mxu0 0
  %619 = vmatpush1.bf16.msra.mxu0 0
  %620 = vmatprep.subr.bf16.mxu0 0
  %621 = vmatpush1.bf16.msra.mxu0 0
  %622 = vmatprep.subr.bf16.mxu0 0
  %623 = vmatpush1.bf16.msra.mxu0 0
  %624 = vmatprep.subr.bf16.mxu0 0
  %625 = vmatpush1.bf16.msra.mxu0 0
  %626 = vmatprep.subr.bf16.mxu0 0
  %627 = vmatpush1.bf16.msra.mxu0 0
  %628 = vmatprep.subr.bf16.mxu0 0
  %629 = vmatpush1.bf16.msra.mxu0 0
  %630 = vmatprep.subr.bf16.mxu0 0
  %631 = vmatpush1.bf16.msra.mxu0 0
  %632 = vmatprep.subr.bf16.mxu0 0
  %633 = vmatpush1.bf16.msra.mxu0 0
  %634 = vmatprep.subr.bf16.mxu0 0
  %635 = vmatpush1.bf16.msra.mxu0 0
  %636 = vmatprep.subr.bf16.mxu0 0
  %637 = vmatpush1.bf16.msra.mxu0 0
  %638 = vmatprep.subr.bf16.mxu0 0
  %639 = vmatpush1.bf16.msra.mxu0 0
  %640 = vmatprep.subr.bf16.mxu0 0
  %641 = vmatpush1.bf16.msra.mxu0 0
  %642 = vmatprep.mubr.bf16.mxu0 0
  %643 = vmatmul.mubr.bf16.gmra.mrb[0].mxu0 %v413
  %v644 = vpop.f32.mrb[0].mxu0
  %v645 = vadd.f32 0.0, %v644
  %v646 = vpop.f32.mrb[0].mxu0
  %v647 = vadd.f32 0.0, %v646
  %v648 = vpop.f32.mrb[0].mxu0
  %v649 = vadd.f32 0.0, %v648
  %v650 = vpop.f32.mrb[0].mxu0
  %v651 = vadd.f32 0.0, %v650
  %652 = vdwg.mxu0
  %653 = vmatprep.subr.bf16.mxu0 %v313
  %654 = vmatpush1.bf16.msra.mxu0 %v312
  %655 = vmatprep.subr.bf16.mxu0 %v441
  %656 = vmatpush1.bf16.msra.mxu0 %v438
  %657 = vmatprep.subr.bf16.mxu0 0
  %658 = vmatpush1.bf16.msra.mxu0 0
  %659 = vmatprep.subr.bf16.mxu0 0
  %660 = vmatpush1.bf16.msra.mxu0 0
  %661 = vmatprep.subr.bf16.mxu0 0
  %662 = vmatpush1.bf16.msra.mxu0 0
  %663 = vmatprep.subr.bf16.mxu0 0
  %664 = vmatpush1.bf16.msra.mxu0 0
  %665 = vmatprep.subr.bf16.mxu0 0
  %666 = vmatpush1.bf16.msra.mxu0 0
  %667 = vmatprep.subr.bf16.mxu0 0
  %668 = vmatpush1.bf16.msra.mxu0 0
  %669 = vmatprep.subr.bf16.mxu0 0
  %670 = vmatpush1.bf16.msra.mxu0 0
  %671 = vmatprep.subr.bf16.mxu0 0
  %672 = vmatpush1.bf16.msra.mxu0 0
  %673 = vmatprep.subr.bf16.mxu0 0
  %674 = vmatpush1.bf16.msra.mxu0 0
  %675 = vmatprep.subr.bf16.mxu0 0
  %676 = vmatpush1.bf16.msra.mxu0 0
  %677 = vmatprep.subr.bf16.mxu0 0
  %678 = vmatpush1.bf16.msra.mxu0 0
  %679 = vmatprep.subr.bf16.mxu0 0
  %680 = vmatpush1.bf16.msra.mxu0 0
  %681 = vmatprep.subr.bf16.mxu0 0
  %682 = vmatpush1.bf16.msra.mxu0 0
  %683 = vmatprep.subr.bf16.mxu0 0
  %684 = vmatpush1.bf16.msra.mxu0 0
  %685 = vmatprep.mubr.bf16.mxu0 0
  %686 = vmatmul.mubr.bf16.gmra.mrb[0].mxu0 %v413
  %v687 = vpop.f32.mrb[0].mxu0
  %v688 = vadd.f32 0.0, %v687
  %v689 = vpop.f32.mrb[0].mxu0
  %v690 = vadd.f32 0.0, %v689
  %v691 = vpop.f32.mrb[0].mxu0
  %v692 = vadd.f32 0.0, %v691
  %v693 = vpop.f32.mrb[0].mxu0
  %v694 = vadd.f32 0.0, %v693
  %695 = vdwg.mxu0
  %696 = vmatprep.subr.bf16.mxu0 %v315
  %697 = vmatpush1.bf16.msra.mxu0 %v314
  %698 = vmatprep.subr.bf16.mxu0 %v447
  %699 = vmatpush1.bf16.msra.mxu0 %v444
  %700 = vmatprep.subr.bf16.mxu0 0
  %701 = vmatpush1.bf16.msra.mxu0 0
  %702 = vmatprep.subr.bf16.mxu0 0
  %703 = vmatpush1.bf16.msra.mxu0 0
  %704 = vmatprep.subr.bf16.mxu0 0
  %705 = vmatpush1.bf16.msra.mxu0 0
  %706 = vmatprep.subr.bf16.mxu0 0
  %707 = vmatpush1.bf16.msra.mxu0 0
  %708 = vmatprep.subr.bf16.mxu0 0
  %709 = vmatpush1.bf16.msra.mxu0 0
  %710 = vmatprep.subr.bf16.mxu0 0
  %711 = vmatpush1.bf16.msra.mxu0 0
  %712 = vmatprep.subr.bf16.mxu0 0
  %713 = vmatpush1.bf16.msra.mxu0 0
  %714 = vmatprep.subr.bf16.mxu0 0
  %715 = vmatpush1.bf16.msra.mxu0 0
  %716 = vmatprep.subr.bf16.mxu0 0
  %717 = vmatpush1.bf16.msra.mxu0 0
  %718 = vmatprep.subr.bf16.mxu0 0
  %719 = vmatpush1.bf16.msra.mxu0 0
  %720 = vmatprep.subr.bf16.mxu0 0
  %721 = vmatpush1.bf16.msra.mxu0 0
  %722 = vmatprep.subr.bf16.mxu0 0
  %723 = vmatpush1.bf16.msra.mxu0 0
  %724 = vmatprep.subr.bf16.mxu0 0
  %725 = vmatpush1.bf16.msra.mxu0 0
  %726 = vmatprep.subr.bf16.mxu0 0
  %727 = vmatpush1.bf16.msra.mxu0 0
  %728 = vmatprep.mubr.bf16.mxu0 0
  %729 = vmatmul.mubr.bf16.gmra.mrb[0].mxu0 %v413
  %v730 = vpop.f32.mrb[0].mxu0
  %v731 = vadd.f32 0.0, %v730
  %v732 = vpop.f32.mrb[0].mxu0
  %v733 = vadd.f32 0.0, %v732
  %v734 = vpop.f32.mrb[0].mxu0
  %v735 = vadd.f32 0.0, %v734
  %v736 = vpop.f32.mrb[0].mxu0
  %v737 = vadd.f32 0.0, %v736
  %738 = vdwg.mxu0
  %739 = vmatprep.subr.bf16.mxu0 %v317
  %740 = vmatpush1.bf16.msra.mxu0 %v316
  %741 = vmatprep.subr.bf16.mxu0 %v453
  %742 = vmatpush1.bf16.msra.mxu0 %v450
  %743 = vmatprep.subr.bf16.mxu0 0
  %744 = vmatpush1.bf16.msra.mxu0 0
  %745 = vmatprep.subr.bf16.mxu0 0
  %746 = vmatpush1.bf16.msra.mxu0 0
  %747 = vmatprep.subr.bf16.mxu0 0
  %748 = vmatpush1.bf16.msra.mxu0 0
  %749 = vmatprep.subr.bf16.mxu0 0
  %750 = vmatpush1.bf16.msra.mxu0 0
  %751 = vmatprep.subr.bf16.mxu0 0
  %752 = vmatpush1.bf16.msra.mxu0 0
  %753 = vmatprep.subr.bf16.mxu0 0
  %754 = vmatpush1.bf16.msra.mxu0 0
  %755 = vmatprep.subr.bf16.mxu0 0
  %756 = vmatpush1.bf16.msra.mxu0 0
  %757 = vmatprep.subr.bf16.mxu0 0
  %758 = vmatpush1.bf16.msra.mxu0 0
  %759 = vmatprep.subr.bf16.mxu0 0
  %760 = vmatpush1.bf16.msra.mxu0 0
  %761 = vmatprep.subr.bf16.mxu0 0
  %762 = vmatpush1.bf16.msra.mxu0 0
  %763 = vmatprep.subr.bf16.mxu0 0
  %764 = vmatpush1.bf16.msra.mxu0 0
  %765 = vmatprep.subr.bf16.mxu0 0
  %766 = vmatpush1.bf16.msra.mxu0 0
  %767 = vmatprep.subr.bf16.mxu0 0
  %768 = vmatpush1.bf16.msra.mxu0 0
  %769 = vmatprep.subr.bf16.mxu0 0
  %770 = vmatpush1.bf16.msra.mxu0 0
  %771 = vmatprep.mubr.bf16.mxu0 0
  %772 = vmatmul.mubr.bf16.gmra.mrb[0].mxu0 %v413
  %v773 = vpop.f32.mrb[0].mxu0
  %v774 = vadd.f32 0.0, %v773
  %v775 = vpop.f32.mrb[0].mxu0
  %v776 = vadd.f32 0.0, %v775
  %v777 = vpop.f32.mrb[0].mxu0
  %v778 = vadd.f32 0.0, %v777
  %v779 = vpop.f32.mrb[0].mxu0
  %v780 = vadd.f32 0.0, %v779
  %781 = vdwg.mxu0
  %782 = vmatprep.subr.bf16.mxu0 %v319
  %783 = vmatpush1.bf16.msra.mxu0 %v318
  %784 = vmatprep.subr.bf16.mxu0 %v459
  %785 = vmatpush1.bf16.msra.mxu0 %v456
  %786 = vmatprep.subr.bf16.mxu0 0
  %787 = vmatpush1.bf16.msra.mxu0 0
  %788 = vmatprep.subr.bf16.mxu0 0
  %789 = vmatpush1.bf16.msra.mxu0 0
  %790 = vmatprep.subr.bf16.mxu0 0
  %791 = vmatpush1.bf16.msra.mxu0 0
  %792 = vmatprep.subr.bf16.mxu0 0
  %793 = vmatpush1.bf16.msra.mxu0 0
  %794 = vmatprep.subr.bf16.mxu0 0
  %795 = vmatpush1.bf16.msra.mxu0 0
  %796 = vmatprep.subr.bf16.mxu0 0
  %797 = vmatpush1.bf16.msra.mxu0 0
  %798 = vmatprep.subr.bf16.mxu0 0
  %799 = vmatpush1.bf16.msra.mxu0 0
  %800 = vmatprep.subr.bf16.mxu0 0
  %801 = vmatpush1.bf16.msra.mxu0 0
  %802 = vmatprep.subr.bf16.mxu0 0
  %803 = vmatpush1.bf16.msra.mxu0 0
  %804 = vmatprep.subr.bf16.mxu0 0
  %805 = vmatpush1.bf16.msra.mxu0 0
  %806 = vmatprep.subr.bf16.mxu0 0
  %807 = vmatpush1.bf16.msra.mxu0 0
  %808 = vmatprep.subr.bf16.mxu0 0
  %809 = vmatpush1.bf16.msra.mxu0 0
  %810 = vmatprep.subr.bf16.mxu0 0
  %811 = vmatpush1.bf16.msra.mxu0 0
  %812 = vmatprep.subr.bf16.mxu0 0
  %813 = vmatpush1.bf16.msra.mxu0 0
  %814 = vmatprep.mubr.bf16.mxu0 0
  %815 = vmatmul.mubr.bf16.gmra.mrb[0].mxu0 %v413
  %v816 = vpop.f32.mrb[0].mxu0
  %v817 = vadd.f32 0.0, %v816
  %v818 = vpop.f32.mrb[0].mxu0
  %v819 = vadd.f32 0.0, %v818
  %v820 = vpop.f32.mrb[0].mxu0
  %v821 = vadd.f32 0.0, %v820
  %v822 = vpop.f32.mrb[0].mxu0
  %v823 = vadd.f32 0.0, %v822
  %824 = vdwg.mxu0
  %825 = vmatprep.subr.bf16.mxu0 %v321
  %826 = vmatpush1.bf16.msra.mxu0 %v320
  %827 = vmatprep.subr.bf16.mxu0 %v465
  %828 = vmatpush1.bf16.msra.mxu0 %v462
  %829 = vmatprep.subr.bf16.mxu0 0
  %830 = vmatpush1.bf16.msra.mxu0 0
  %831 = vmatprep.subr.bf16.mxu0 0
  %832 = vmatpush1.bf16.msra.mxu0 0
  %833 = vmatprep.subr.bf16.mxu0 0
  %834 = vmatpush1.bf16.msra.mxu0 0
  %835 = vmatprep.subr.bf16.mxu0 0
  %836 = vmatpush1.bf16.msra.mxu0 0
  %837 = vmatprep.subr.bf16.mxu0 0
  %838 = vmatpush1.bf16.msra.mxu0 0
  %839 = vmatprep.subr.bf16.mxu0 0
  %840 = vmatpush1.bf16.msra.mxu0 0
  %841 = vmatprep.subr.bf16.mxu0 0
  %842 = vmatpush1.bf16.msra.mxu0 0
  %843 = vmatprep.subr.bf16.mxu0 0
  %844 = vmatpush1.bf16.msra.mxu0 0
  %845 = vmatprep.subr.bf16.mxu0 0
  %846 = vmatpush1.bf16.msra.mxu0 0
  %847 = vmatprep.subr.bf16.mxu0 0
  %848 = vmatpush1.bf16.msra.mxu0 0
  %849 = vmatprep.subr.bf16.mxu0 0
  %850 = vmatpush1.bf16.msra.mxu0 0
  %851 = vmatprep.subr.bf16.mxu0 0
  %852 = vmatpush1.bf16.msra.mxu0 0
  %853 = vmatprep.subr.bf16.mxu0 0
  %854 = vmatpush1.bf16.msra.mxu0 0
  %855 = vmatprep.subr.bf16.mxu0 0
  %856 = vmatpush1.bf16.msra.mxu0 0
  %857 = vmatprep.mubr.bf16.mxu0 0
  %858 = vmatmul.mubr.bf16.gmra.mrb[0].mxu0 %v413
  %v859 = vpop.f32.mrb[0].mxu0
  %v860 = vadd.f32 0.0, %v859
  %v861 = vpop.f32.mrb[0].mxu0
  %v862 = vadd.f32 0.0, %v861
  %v863 = vpop.f32.mrb[0].mxu0
  %v864 = vadd.f32 0.0, %v863
  %v865 = vpop.f32.mrb[0].mxu0
  %v866 = vadd.f32 0.0, %v865
  %867 = vdwg.mxu0
  %868 = vmatprep.subr.bf16.mxu0 %v323
  %869 = vmatpush1.bf16.msra.mxu0 %v322
  %870 = vmatprep.subr.bf16.mxu0 %v471
  %871 = vmatpush1.bf16.msra.mxu0 %v468
  %872 = vmatprep.subr.bf16.mxu0 0
  %873 = vmatpush1.bf16.msra.mxu0 0
  %874 = vmatprep.subr.bf16.mxu0 0
  %875 = vmatpush1.bf16.msra.mxu0 0
  %876 = vmatprep.subr.bf16.mxu0 0
  %877 = vmatpush1.bf16.msra.mxu0 0
  %878 = vmatprep.subr.bf16.mxu0 0
  %879 = vmatpush1.bf16.msra.mxu0 0
  %880 = vmatprep.subr.bf16.mxu0 0
  %881 = vmatpush1.bf16.msra.mxu0 0
  %882 = vmatprep.subr.bf16.mxu0 0
  %883 = vmatpush1.bf16.msra.mxu0 0
  %884 = vmatprep.subr.bf16.mxu0 0
  %885 = vmatpush1.bf16.msra.mxu0 0
  %886 = vmatprep.subr.bf16.mxu0 0
  %887 = vmatpush1.bf16.msra.mxu0 0
  %888 = vmatprep.subr.bf16.mxu0 0
  %889 = vmatpush1.bf16.msra.mxu0 0
  %890 = vmatprep.subr.bf16.mxu0 0
  %891 = vmatpush1.bf16.msra.mxu0 0
  %892 = vmatprep.subr.bf16.mxu0 0
  %893 = vmatpush1.bf16.msra.mxu0 0
  %894 = vmatprep.subr.bf16.mxu0 0
  %895 = vmatpush1.bf16.msra.mxu0 0
  %896 = vmatprep.subr.bf16.mxu0 0
  %897 = vmatpush1.bf16.msra.mxu0 0
  %898 = vmatprep.subr.bf16.mxu0 0
  %899 = vmatpush1.bf16.msra.mxu0 0
  %900 = vmatprep.mubr.bf16.mxu0 0
  %901 = vmatmul.mubr.bf16.gmra.mrb[0].mxu0 %v413
  %v902 = vpop.f32.mrb[0].mxu0
  %v903 = vadd.f32 0.0, %v902
  %v904 = vpop.f32.mrb[0].mxu0
  %v905 = vadd.f32 0.0, %v904
  %v906 = vpop.f32.mrb[0].mxu0
  %v907 = vadd.f32 0.0, %v906
  %v908 = vpop.f32.mrb[0].mxu0
  %v909 = vadd.f32 0.0, %v908
  %910 = vdwg.mxu0
  %911 = vmatprep.subr.bf16.mxu0 %v325
  %912 = vmatpush1.bf16.msra.mxu0 %v324
  %913 = vmatprep.subr.bf16.mxu0 %v477
  %914 = vmatpush1.bf16.msra.mxu0 %v474
  %915 = vmatprep.subr.bf16.mxu0 0
  %916 = vmatpush1.bf16.msra.mxu0 0
  %917 = vmatprep.subr.bf16.mxu0 0
  %918 = vmatpush1.bf16.msra.mxu0 0
  %919 = vmatprep.subr.bf16.mxu0 0
  %920 = vmatpush1.bf16.msra.mxu0 0
  %921 = vmatprep.subr.bf16.mxu0 0
  %922 = vmatpush1.bf16.msra.mxu0 0
  %923 = vmatprep.subr.bf16.mxu0 0
  %924 = vmatpush1.bf16.msra.mxu0 0
  %925 = vmatprep.subr.bf16.mxu0 0
  %926 = vmatpush1.bf16.msra.mxu0 0
  %927 = vmatprep.subr.bf16.mxu0 0
  %928 = vmatpush1.bf16.msra.mxu0 0
  %929 = vmatprep.subr.bf16.mxu0 0
  %930 = vmatpush1.bf16.msra.mxu0 0
  %931 = vmatprep.subr.bf16.mxu0 0
  %932 = vmatpush1.bf16.msra.mxu0 0
  %933 = vmatprep.subr.bf16.mxu0 0
  %934 = vmatpush1.bf16.msra.mxu0 0
  %935 = vmatprep.subr.bf16.mxu0 0
  %936 = vmatpush1.bf16.msra.mxu0 0
  %937 = vmatprep.subr.bf16.mxu0 0
  %938 = vmatpush1.bf16.msra.mxu0 0
  %939 = vmatprep.subr.bf16.mxu0 0
  %940 = vmatpush1.bf16.msra.mxu0 0
  %941 = vmatprep.subr.bf16.mxu0 0
  %942 = vmatpush1.bf16.msra.mxu0 0
  %943 = vmatprep.mubr.bf16.mxu0 0
  %944 = vmatmul.mubr.bf16.gmra.mrb[0].mxu0 %v413
  %v945 = vpop.f32.mrb[0].mxu0
  %v946 = vadd.f32 0.0, %v945
  %v947 = vpop.f32.mrb[0].mxu0
  %v948 = vadd.f32 0.0, %v947
  %v949 = vpop.f32.mrb[0].mxu0
  %v950 = vadd.f32 0.0, %v949
  %v951 = vpop.f32.mrb[0].mxu0
  %v952 = vadd.f32 0.0, %v951
  %953 = vdwg.mxu0
  %954 = vmatprep.subr.bf16.mxu0 %v327
  %955 = vmatpush1.bf16.msra.mxu0 %v326
  %956 = vmatprep.subr.bf16.mxu0 %v483
  %957 = vmatpush1.bf16.msra.mxu0 %v480
  %958 = vmatprep.subr.bf16.mxu0 0
  %959 = vmatpush1.bf16.msra.mxu0 0
  %960 = vmatprep.subr.bf16.mxu0 0
  %961 = vmatpush1.bf16.msra.mxu0 0
  %962 = vmatprep.subr.bf16.mxu0 0
  %963 = vmatpush1.bf16.msra.mxu0 0
  %964 = vmatprep.subr.bf16.mxu0 0
  %965 = vmatpush1.bf16.msra.mxu0 0
  %966 = vmatprep.subr.bf16.mxu0 0
  %967 = vmatpush1.bf16.msra.mxu0 0
  %968 = vmatprep.subr.bf16.mxu0 0
  %969 = vmatpush1.bf16.msra.mxu0 0
  %970 = vmatprep.subr.bf16.mxu0 0
  %971 = vmatpush1.bf16.msra.mxu0 0
  %972 = vmatprep.subr.bf16.mxu0 0
  %973 = vmatpush1.bf16.msra.mxu0 0
  %974 = vmatprep.subr.bf16.mxu0 0
  %975 = vmatpush1.bf16.msra.mxu0 0
  %976 = vmatprep.subr.bf16.mxu0 0
  %977 = vmatpush1.bf16.msra.mxu0 0
  %978 = vmatprep.subr.bf16.mxu0 0
  %979 = vmatpush1.bf16.msra.mxu0 0
  %980 = vmatprep.subr.bf16.mxu0 0
  %981 = vmatpush1.bf16.msra.mxu0 0
  %982 = vmatprep.subr.bf16.mxu0 0
  %983 = vmatpush1.bf16.msra.mxu0 0
  %984 = vmatprep.subr.bf16.mxu0 0
  %985 = vmatpush1.bf16.msra.mxu0 0
  %986 = vmatprep.mubr.bf16.mxu0 0
  %987 = vmatmul.mubr.bf16.gmra.mrb[0].mxu0 %v413
  %v988 = vpop.f32.mrb[0].mxu0
  %v989 = vadd.f32 0.0, %v988
  %v990 = vpop.f32.mrb[0].mxu0
  %v991 = vadd.f32 0.0, %v990
  %v992 = vpop.f32.mrb[0].mxu0
  %v993 = vadd.f32 0.0, %v992
  %v994 = vpop.f32.mrb[0].mxu0
  %v995 = vadd.f32 0.0, %v994
  %996 = vdwg.mxu0
  %997 = vmatprep.subr.bf16.mxu0 %v329
  %998 = vmatpush1.bf16.msra.mxu0 %v328
  %999 = vmatprep.subr.bf16.mxu0 %v489
  %1000 = vmatpush1.bf16.msra.mxu0 %v486
  %1001 = vmatprep.subr.bf16.mxu0 0
  %1002 = vmatpush1.bf16.msra.mxu0 0
  %1003 = vmatprep.subr.bf16.mxu0 0
  %1004 = vmatpush1.bf16.msra.mxu0 0
  %1005 = vmatprep.subr.bf16.mxu0 0
  %1006 = vmatpush1.bf16.msra.mxu0 0
  %1007 = vmatprep.subr.bf16.mxu0 0
  %1008 = vmatpush1.bf16.msra.mxu0 0
  %1009 = vmatprep.subr.bf16.mxu0 0
  %1010 = vmatpush1.bf16.msra.mxu0 0
  %1011 = vmatprep.subr.bf16.mxu0 0
  %1012 = vmatpush1.bf16.msra.mxu0 0
  %1013 = vmatprep.subr.bf16.mxu0 0
  %1014 = vmatpush1.bf16.msra.mxu0 0
  %1015 = vmatprep.subr.bf16.mxu0 0
  %1016 = vmatpush1.bf16.msra.mxu0 0
  %1017 = vmatprep.subr.bf16.mxu0 0
  %1018 = vmatpush1.bf16.msra.mxu0 0
  %1019 = vmatprep.subr.bf16.mxu0 0
  %1020 = vmatpush1.bf16.msra.mxu0 0
  %1021 = vmatprep.subr.bf16.mxu0 0
  %1022 = vmatpush1.bf16.msra.mxu0 0
  %1023 = vmatprep.subr.bf16.mxu0 0
  %1024 = vmatpush1.bf16.msra.mxu0 0
  %1025 = vmatprep.subr.bf16.mxu0 0
  %1026 = vmatpush1.bf16.msra.mxu0 0
  %1027 = vmatprep.subr.bf16.mxu0 0
  %1028 = vmatpush1.bf16.msra.mxu0 0
  %1029 = vmatprep.mubr.bf16.mxu0 0
  %1030 = vmatmul.mubr.bf16.gmra.mrb[0].mxu0 %v413
  %v1031 = vpop.f32.mrb[0].mxu0
  %v1032 = vadd.f32 0.0, %v1031
  %v1033 = vpop.f32.mrb[0].mxu0
  %v1034 = vadd.f32 0.0, %v1033
  %v1035 = vpop.f32.mrb[0].mxu0
  %v1036 = vadd.f32 0.0, %v1035
  %v1037 = vpop.f32.mrb[0].mxu0
  %v1038 = vadd.f32 0.0, %v1037
  %1039 = vdwg.mxu0
  %1040 = vmatprep.subr.bf16.mxu0 %v331
  %1041 = vmatpush1.bf16.msra.mxu0 %v330
  %1042 = vmatprep.subr.bf16.mxu0 %v495
  %1043 = vmatpush1.bf16.msra.mxu0 %v492
  %1044 = vmatprep.subr.bf16.mxu0 0
  %1045 = vmatpush1.bf16.msra.mxu0 0
  %1046 = vmatprep.subr.bf16.mxu0 0
  %1047 = vmatpush1.bf16.msra.mxu0 0
  %1048 = vmatprep.subr.bf16.mxu0 0
  %1049 = vmatpush1.bf16.msra.mxu0 0
  %1050 = vmatprep.subr.bf16.mxu0 0
  %1051 = vmatpush1.bf16.msra.mxu0 0
  %1052 = vmatprep.subr.bf16.mxu0 0
  %1053 = vmatpush1.bf16.msra.mxu0 0
  %1054 = vmatprep.subr.bf16.mxu0 0
  %1055 = vmatpush1.bf16.msra.mxu0 0
  %1056 = vmatprep.subr.bf16.mxu0 0
  %1057 = vmatpush1.bf16.msra.mxu0 0
  %1058 = vmatprep.subr.bf16.mxu0 0
  %1059 = vmatpush1.bf16.msra.mxu0 0
  %1060 = vmatprep.subr.bf16.mxu0 0
  %1061 = vmatpush1.bf16.msra.mxu0 0
  %1062 = vmatprep.subr.bf16.mxu0 0
  %1063 = vmatpush1.bf16.msra.mxu0 0
  %1064 = vmatprep.subr.bf16.mxu0 0
  %1065 = vmatpush1.bf16.msra.mxu0 0
  %1066 = vmatprep.subr.bf16.mxu0 0
  %1067 = vmatpush1.bf16.msra.mxu0 0
  %1068 = vmatprep.subr.bf16.mxu0 0
  %1069 = vmatpush1.bf16.msra.mxu0 0
  %1070 = vmatprep.subr.bf16.mxu0 0
  %1071 = vmatpush1.bf16.msra.mxu0 0
  %1072 = vmatprep.mubr.bf16.mxu0 0
  %1073 = vmatmul.mubr.bf16.gmra.mrb[0].mxu0 %v413
  %v1074 = vpop.f32.mrb[0].mxu0
  %v1075 = vadd.f32 0.0, %v1074
  %v1076 = vpop.f32.mrb[0].mxu0
  %v1077 = vadd.f32 0.0, %v1076
  %v1078 = vpop.f32.mrb[0].mxu0
  %v1079 = vadd.f32 0.0, %v1078
  %v1080 = vpop.f32.mrb[0].mxu0
  %v1081 = vadd.f32 0.0, %v1080
  %1082 = vdwg.mxu0
  %1083 = vmatprep.subr.bf16.mxu0 %v333
  %1084 = vmatpush1.bf16.msra.mxu0 %v332
  %1085 = vmatprep.subr.bf16.mxu0 %v501
  %1086 = vmatpush1.bf16.msra.mxu0 %v498
  %1087 = vmatprep.subr.bf16.mxu0 0
  %1088 = vmatpush1.bf16.msra.mxu0 0
  %1089 = vmatprep.subr.bf16.mxu0 0
  %1090 = vmatpush1.bf16.msra.mxu0 0
  %1091 = vmatprep.subr.bf16.mxu0 0
  %1092 = vmatpush1.bf16.msra.mxu0 0
  %1093 = vmatprep.subr.bf16.mxu0 0
  %1094 = vmatpush1.bf16.msra.mxu0 0
  %1095 = vmatprep.subr.bf16.mxu0 0
  %1096 = vmatpush1.bf16.msra.mxu0 0
  %1097 = vmatprep.subr.bf16.mxu0 0
  %1098 = vmatpush1.bf16.msra.mxu0 0
  %1099 = vmatprep.subr.bf16.mxu0 0
  %1100 = vmatpush1.bf16.msra.mxu0 0
  %1101 = vmatprep.subr.bf16.mxu0 0
  %1102 = vmatpush1.bf16.msra.mxu0 0
  %1103 = vmatprep.subr.bf16.mxu0 0
  %1104 = vmatpush1.bf16.msra.mxu0 0
  %1105 = vmatprep.subr.bf16.mxu0 0
  %1106 = vmatpush1.bf16.msra.mxu0 0
  %1107 = vmatprep.subr.bf16.mxu0 0
  %1108 = vmatpush1.bf16.msra.mxu0 0
  %1109 = vmatprep.subr.bf16.mxu0 0
  %1110 = vmatpush1.bf16.msra.mxu0 0
  %1111 = vmatprep.subr.bf16.mxu0 0
  %1112 = vmatpush1.bf16.msra.mxu0 0
  %1113 = vmatprep.subr.bf16.mxu0 0
  %1114 = vmatpush1.bf16.msra.mxu0 0
  %1115 = vmatprep.mubr.bf16.mxu0 0
  %1116 = vmatmul.mubr.bf16.gmra.mrb[0].mxu0 %v413
  %v1117 = vpop.f32.mrb[0].mxu0
  %v1118 = vadd.f32 0.0, %v1117
  %v1119 = vpop.f32.mrb[0].mxu0
  %v1120 = vadd.f32 0.0, %v1119
  %v1121 = vpop.f32.mrb[0].mxu0
  %v1122 = vadd.f32 0.0, %v1121
  %v1123 = vpop.f32.mrb[0].mxu0
  %v1124 = vadd.f32 0.0, %v1123
  %1125 = vdwg.mxu0
  %1126 = vmatprep.subr.bf16.mxu0 %v335
  %1127 = vmatpush1.bf16.msra.mxu0 %v334
  %1128 = vmatprep.subr.bf16.mxu0 %v507
  %1129 = vmatpush1.bf16.msra.mxu0 %v504
  %1130 = vmatprep.subr.bf16.mxu0 0
  %1131 = vmatpush1.bf16.msra.mxu0 0
  %1132 = vmatprep.subr.bf16.mxu0 0
  %1133 = vmatpush1.bf16.msra.mxu0 0
  %1134 = vmatprep.subr.bf16.mxu0 0
  %1135 = vmatpush1.bf16.msra.mxu0 0
  %1136 = vmatprep.subr.bf16.mxu0 0
  %1137 = vmatpush1.bf16.msra.mxu0 0
  %1138 = vmatprep.subr.bf16.mxu0 0
  %1139 = vmatpush1.bf16.msra.mxu0 0
  %1140 = vmatprep.subr.bf16.mxu0 0
  %1141 = vmatpush1.bf16.msra.mxu0 0
  %1142 = vmatprep.subr.bf16.mxu0 0
  %1143 = vmatpush1.bf16.msra.mxu0 0
  %1144 = vmatprep.subr.bf16.mxu0 0
  %1145 = vmatpush1.bf16.msra.mxu0 0
  %1146 = vmatprep.subr.bf16.mxu0 0
  %1147 = vmatpush1.bf16.msra.mxu0 0
  %1148 = vmatprep.subr.bf16.mxu0 0
  %1149 = vmatpush1.bf16.msra.mxu0 0
  %1150 = vmatprep.subr.bf16.mxu0 0
  %1151 = vmatpush1.bf16.msra.mxu0 0
  %1152 = vmatprep.subr.bf16.mxu0 0
  %1153 = vmatpush1.bf16.msra.mxu0 0
  %1154 = vmatprep.subr.bf16.mxu0 0
  %1155 = vmatpush1.bf16.msra.mxu0 0
  %1156 = vmatprep.subr.bf16.mxu0 0
  %1157 = vmatpush1.bf16.msra.mxu0 0
  %1158 = vmatprep.mubr.bf16.mxu0 0
  %1159 = vmatmul.mubr.bf16.gmra.mrb[0].mxu0 %v413
  %v1160 = vpop.f32.mrb[0].mxu0
  %v1161 = vadd.f32 0.0, %v1160
  %v1162 = vpop.f32.mrb[0].mxu0
  %v1163 = vadd.f32 0.0, %v1162
  %v1164 = vpop.f32.mrb[0].mxu0
  %v1165 = vadd.f32 0.0, %v1164
  %v1166 = vpop.f32.mrb[0].mxu0
  %v1167 = vadd.f32 0.0, %v1166
  %1168 = vdwg.mxu0
  %1169 = vmatprep.subr.bf16.mxu0 %v337
  %1170 = vmatpush1.bf16.msra.mxu0 %v336
  %1171 = vmatprep.subr.bf16.mxu0 %v513
  %1172 = vmatpush1.bf16.msra.mxu0 %v510
  %1173 = vmatprep.subr.bf16.mxu0 0
  %1174 = vmatpush1.bf16.msra.mxu0 0
  %1175 = vmatprep.subr.bf16.mxu0 0
  %1176 = vmatpush1.bf16.msra.mxu0 0
  %1177 = vmatprep.subr.bf16.mxu0 0
  %1178 = vmatpush1.bf16.msra.mxu0 0
  %1179 = vmatprep.subr.bf16.mxu0 0
  %1180 = vmatpush1.bf16.msra.mxu0 0
  %1181 = vmatprep.subr.bf16.mxu0 0
  %1182 = vmatpush1.bf16.msra.mxu0 0
  %1183 = vmatprep.subr.bf16.mxu0 0
  %1184 = vmatpush1.bf16.msra.mxu0 0
  %1185 = vmatprep.subr.bf16.mxu0 0
  %1186 = vmatpush1.bf16.msra.mxu0 0
  %1187 = vmatprep.subr.bf16.mxu0 0
  %1188 = vmatpush1.bf16.msra.mxu0 0
  %1189 = vmatprep.subr.bf16.mxu0 0
  %1190 = vmatpush1.bf16.msra.mxu0 0
  %1191 = vmatprep.subr.bf16.mxu0 0
  %1192 = vmatpush1.bf16.msra.mxu0 0
  %1193 = vmatprep.subr.bf16.mxu0 0
  %1194 = vmatpush1.bf16.msra.mxu0 0
  %1195 = vmatprep.subr.bf16.mxu0 0
  %1196 = vmatpush1.bf16.msra.mxu0 0
  %1197 = vmatprep.subr.bf16.mxu0 0
  %1198 = vmatpush1.bf16.msra.mxu0 0
  %1199 = vmatprep.subr.bf16.mxu0 0
  %1200 = vmatpush1.bf16.msra.mxu0 0
  %1201 = vmatprep.mubr.bf16.mxu0 0
  %1202 = vmatmul.mubr.bf16.gmra.mrb[0].mxu0 %v413
  %v1203 = vpop.f32.mrb[0].mxu0
  %v1204 = vadd.f32 0.0, %v1203
  %v1205 = vpop.f32.mrb[0].mxu0
  %v1206 = vadd.f32 0.0, %v1205
  %v1207 = vpop.f32.mrb[0].mxu0
  %v1208 = vadd.f32 0.0, %v1207
  %v1209 = vpop.f32.mrb[0].mxu0
  %v1210 = vadd.f32 0.0, %v1209
  %1211 = vdwg.mxu0
  %1212 = vmatprep.subr.bf16.mxu0 %v339
  %1213 = vmatpush1.bf16.msra.mxu0 %v338
  %1214 = vmatprep.subr.bf16.mxu0 %v519
  %1215 = vmatpush1.bf16.msra.mxu0 %v516
  %1216 = vmatprep.subr.bf16.mxu0 0
  %1217 = vmatpush1.bf16.msra.mxu0 0
  %1218 = vmatprep.subr.bf16.mxu0 0
  %1219 = vmatpush1.bf16.msra.mxu0 0
  %1220 = vmatprep.subr.bf16.mxu0 0
  %1221 = vmatpush1.bf16.msra.mxu0 0
  %1222 = vmatprep.subr.bf16.mxu0 0
  %1223 = vmatpush1.bf16.msra.mxu0 0
  %1224 = vmatprep.subr.bf16.mxu0 0
  %1225 = vmatpush1.bf16.msra.mxu0 0
  %1226 = vmatprep.subr.bf16.mxu0 0
  %1227 = vmatpush1.bf16.msra.mxu0 0
  %1228 = vmatprep.subr.bf16.mxu0 0
  %1229 = vmatpush1.bf16.msra.mxu0 0
  %1230 = vmatprep.subr.bf16.mxu0 0
  %1231 = vmatpush1.bf16.msra.mxu0 0
  %1232 = vmatprep.subr.bf16.mxu0 0
  %1233 = vmatpush1.bf16.msra.mxu0 0
  %1234 = vmatprep.subr.bf16.mxu0 0
  %1235 = vmatpush1.bf16.msra.mxu0 0
  %1236 = vmatprep.subr.bf16.mxu0 0
  %1237 = vmatpush1.bf16.msra.mxu0 0
  %1238 = vmatprep.subr.bf16.mxu0 0
  %1239 = vmatpush1.bf16.msra.mxu0 0
  %1240 = vmatprep.subr.bf16.mxu0 0
  %1241 = vmatpush1.bf16.msra.mxu0 0
  %1242 = vmatprep.subr.bf16.mxu0 0
  %1243 = vmatpush1.bf16.msra.mxu0 0
  %1244 = vmatprep.mubr.bf16.mxu0 0
  %1245 = vmatmul.mubr.bf16.gmra.mrb[0].mxu0 %v413
  %v1246 = vpop.f32.mrb[0].mxu0
  %v1247 = vadd.f32 0.0, %v1246
  %v1248 = vpop.f32.mrb[0].mxu0
  %v1249 = vadd.f32 0.0, %v1248
  %v1250 = vpop.f32.mrb[0].mxu0
  %v1251 = vadd.f32 0.0, %v1250
  %v1252 = vpop.f32.mrb[0].mxu0
  %v1253 = vadd.f32 0.0, %v1252
  %1254 = vdwg.mxu0
  %1255 = vmatprep.subr.bf16.mxu0 0
  %1256 = vmatpush1.bf16.msra.mxu0 %v340
  %1257 = vmatprep.subr.bf16.mxu0 0
  %1258 = vmatpush1.bf16.msra.mxu0 %v522
  %1259 = vmatprep.subr.bf16.mxu0 0
  %1260 = vmatpush1.bf16.msra.mxu0 0
  %1261 = vmatprep.subr.bf16.mxu0 0
  %1262 = vmatpush1.bf16.msra.mxu0 0
  %1263 = vmatprep.subr.bf16.mxu0 0
  %1264 = vmatpush1.bf16.msra.mxu0 0
  %1265 = vmatprep.subr.bf16.mxu0 0
  %1266 = vmatpush1.bf16.msra.mxu0 0
  %1267 = vmatprep.subr.bf16.mxu0 0
  %1268 = vmatpush1.bf16.msra.mxu0 0
  %1269 = vmatprep.subr.bf16.mxu0 0
  %1270 = vmatpush1.bf16.msra.mxu0 0
  %1271 = vmatprep.subr.bf16.mxu0 0
  %1272 = vmatpush1.bf16.msra.mxu0 0
  %1273 = vmatprep.subr.bf16.mxu0 0
  %1274 = vmatpush1.bf16.msra.mxu0 0
  %1275 = vmatprep.subr.bf16.mxu0 0
  %1276 = vmatpush1.bf16.msra.mxu0 0
  %1277 = vmatprep.subr.bf16.mxu0 0
  %1278 = vmatpush1.bf16.msra.mxu0 0
  %1279 = vmatprep.subr.bf16.mxu0 0
  %1280 = vmatpush1.bf16.msra.mxu0 0
  %1281 = vmatprep.subr.bf16.mxu0 0
  %1282 = vmatpush1.bf16.msra.mxu0 0
  %1283 = vmatprep.subr.bf16.mxu0 0
  %1284 = vmatpush1.bf16.msra.mxu0 0
  %1285 = vmatprep.subr.bf16.mxu0 0
  %1286 = vmatpush1.bf16.msra.mxu0 0
  %1287 = vmatprep.mubr.bf16.mxu0 0
  %1288 = vmatmul.mubr.bf16.gmra.mrb[0].mxu0 %v413
  %v1289 = vpop.f32.mrb[0].mxu0
  %v1290 = vadd.f32 0.0, %v1289
  %v1291 = vpop.f32.mrb[0].mxu0
  %v1292 = vpop.f32.mrb[0].mxu0
  %v1293 = vadd.f32 0.0, %v1292
  %v1294 = vpop.f32.mrb[0].mxu0
  %1295 = vdwg.mxu0
  %s1296 = scalar_lea.vmem %s0, 560
  %v1297 = vld [vmem:[%s1296] sm:$0xff]
  %v1298 = vld [vmem:[%s1296 + $0x8] sm:$0xff]
  %v1299 = vld [vmem:[%s1296 + $0x10] sm:$0xff]
  %v1300 = vld [vmem:[%s1296 + $0x18] sm:$0xff]
  %v1301 = vld [vmem:[%s1296 + $0x20] sm:$0xff]
  %v1302 = vld [vmem:[%s1296 + $0x28] sm:$0xff]
  %v1303 = vld [vmem:[%s1296 + $0x30] sm:$0xff]
  %v1304 = vld [vmem:[%s1296 + $0x38] sm:$0xff]
  %v1305 = vld [vmem:[%s1296 + $0x40] sm:$0xff]
  %v1306 = vld [vmem:[%s1296 + $0x48] sm:$0xff]
  %v1307 = vld [vmem:[%s1296 + $0x50] sm:$0xff]
  %v1308 = vld [vmem:[%s1296 + $0x58] sm:$0xff]
  %v1309 = vld [vmem:[%s1296 + $0x60] sm:$0xff]
  %v1310 = vld [vmem:[%s1296 + $0x68] sm:$0xff]
  %v1311 = vld [vmem:[%s1296 + $0x70] sm:$0xff]
  %v1312 = vld [vmem:[%s1296 + $0x78] sm:$0xff]
  %v1313 = vld [vmem:[%s1296 + $0x80] sm:$0xff]
  %v1314 = vld [vmem:[%s1296 + $0x88] sm:$0xf]
  %v1315 = vld [vmem:[%s1296 + $0x8c] sm:$0xff]
  %v1316 = vld [vmem:[%s1296 + $0x94] sm:$0xff]
  %v1317 = vld [vmem:[%s1296 + $0x9c] sm:$0xff]
  %v1318 = vld [vmem:[%s1296 + $0xa4] sm:$0xff]
  %v1319 = vld [vmem:[%s1296 + $0xac] sm:$0xff]
  %v1320 = vld [vmem:[%s1296 + $0xb4] sm:$0xff]
  %v1321 = vld [vmem:[%s1296 + $0xbc] sm:$0xff]
  %v1322 = vld [vmem:[%s1296 + $0xc4] sm:$0xff]
  %v1323 = vld [vmem:[%s1296 + $0xcc] sm:$0xff]
  %v1324 = vld [vmem:[%s1296 + $0xd4] sm:$0xff]
  %v1325 = vld [vmem:[%s1296 + $0xdc] sm:$0xff]
  %v1326 = vld [vmem:[%s1296 + $0xe4] sm:$0xff]
  %v1327 = vld [vmem:[%s1296 + $0xec] sm:$0xff]
  %v1328 = vld [vmem:[%s1296 + $0xf4] sm:$0xff]
  %v1329 = vld [vmem:[%s1296 + $0xfc] sm:$0xff]
  %v1330 = vld [vmem:[%s1296 + $0x104] sm:$0xff]
  %v1331 = vld [vmem:[%s1296 + $0x10c] sm:$0xff]
  %v1332 = vld [vmem:[%s1296 + $0x114] sm:$0xf]
  %v1333 = vld [vmem:[%s1296 + $0x118] sm:$0xff]
  %v1334 = vld [vmem:[%s1296 + $0x120] sm:$0xff]
  %v1335 = vld [vmem:[%s1296 + $0x128] sm:$0xff]
  %v1336 = vld [vmem:[%s1296 + $0x130] sm:$0xff]
  %v1337 = vld [vmem:[%s1296 + $0x138] sm:$0xff]
  %v1338 = vld [vmem:[%s1296 + $0x140] sm:$0xff]
  %v1339 = vld [vmem:[%s1296 + $0x148] sm:$0xff]
  %v1340 = vld [vmem:[%s1296 + $0x150] sm:$0xff]
  %v1341 = vld [vmem:[%s1296 + $0x158] sm:$0xff]
  %v1342 = vld [vmem:[%s1296 + $0x160] sm:$0xff]
  %v1343 = vld [vmem:[%s1296 + $0x168] sm:$0xff]
  %v1344 = vld [vmem:[%s1296 + $0x170] sm:$0xff]
  %v1345 = vld [vmem:[%s1296 + $0x178] sm:$0xff]
  %v1346 = vld [vmem:[%s1296 + $0x180] sm:$0xff]
  %v1347 = vld [vmem:[%s1296 + $0x188] sm:$0xff]
  %v1348 = vld [vmem:[%s1296 + $0x190] sm:$0xff]
  %v1349 = vld [vmem:[%s1296 + $0x198] sm:$0xff]
  %v1350 = vld [vmem:[%s1296 + $0x1a0] sm:$0xf]
  %v1351 = vld [vmem:[%s1296 + $0x1a4] sm:$0x33]
  %v1352 = vld [vmem:[%s1296 + $0x1ac] sm:$0x33]
  %v1353 = vld [vmem:[%s1296 + $0x1b4] sm:$0x33]
  %v1354 = vld [vmem:[%s1296 + $0x1bc] sm:$0x33]
  %v1355 = vld [vmem:[%s1296 + $0x1c4] sm:$0x33]
  %v1356 = vld [vmem:[%s1296 + $0x1cc] sm:$0x33]
  %v1357 = vld [vmem:[%s1296 + $0x1d4] sm:$0x33]
  %v1358 = vld [vmem:[%s1296 + $0x1dc] sm:$0x33]
  %v1359 = vld [vmem:[%s1296 + $0x1e4] sm:$0x33]
  %v1360 = vld [vmem:[%s1296 + $0x1ec] sm:$0x33]
  %v1361 = vld [vmem:[%s1296 + $0x1f4] sm:$0x33]
  %v1362 = vld [vmem:[%s1296 + $0x1fc] sm:$0x33]
  %v1363 = vld [vmem:[%s1296 + $0x204] sm:$0x33]
  %v1364 = vld [vmem:[%s1296 + $0x20c] sm:$0x33]
  %v1365 = vld [vmem:[%s1296 + $0x214] sm:$0x33]
  %v1366 = vld [vmem:[%s1296 + $0x21c] sm:$0x33]
  %v1367 = vld [vmem:[%s1296 + $0x224] sm:$0x33]
  %v1368 = vld [vmem:[%s1296 + $0x22c] sm:$0x3]
  %v1441 = vunpack.c.l.b16 %v1297
  %v1442 = vunpack.c.h.b16 %v1297
  %v1443 = vunpack.c.l.b16 %v1298
  %v1444 = vunpack.c.h.b16 %v1298
  %v1445 = vunpack.c.l.b16 %v1299
  %v1446 = vunpack.c.h.b16 %v1299
  %v1447 = vunpack.c.l.b16 %v1300
  %v1448 = vunpack.c.h.b16 %v1300
  %v1449 = vunpack.c.l.b16 %v1301
  %v1450 = vunpack.c.h.b16 %v1301
  %v1451 = vunpack.c.l.b16 %v1302
  %v1452 = vunpack.c.h.b16 %v1302
  %v1453 = vunpack.c.l.b16 %v1303
  %v1454 = vunpack.c.h.b16 %v1303
  %v1455 = vunpack.c.l.b16 %v1304
  %v1456 = vunpack.c.h.b16 %v1304
  %v1457 = vunpack.c.l.b16 %v1305
  %v1458 = vunpack.c.h.b16 %v1305
  %v1459 = vunpack.c.l.b16 %v1306
  %v1460 = vunpack.c.h.b16 %v1306
  %v1461 = vunpack.c.l.b16 %v1307
  %v1462 = vunpack.c.h.b16 %v1307
  %v1463 = vunpack.c.l.b16 %v1308
  %v1464 = vunpack.c.h.b16 %v1308
  %v1465 = vunpack.c.l.b16 %v1309
  %v1466 = vunpack.c.h.b16 %v1309
  %v1467 = vunpack.c.l.b16 %v1310
  %v1468 = vunpack.c.h.b16 %v1310
  %v1469 = vunpack.c.l.b16 %v1311
  %v1470 = vunpack.c.h.b16 %v1311
  %v1471 = vunpack.c.l.b16 %v1312
  %v1472 = vunpack.c.h.b16 %v1312
  %v1473 = vunpack.c.l.b16 %v1313
  %v1474 = vunpack.c.h.b16 %v1313
  %v1475 = vunpack.c.l.b16 %v1314
  %v1476 = vunpack.c.l.b16 %v1315
  %v1477 = vunpack.c.h.b16 %v1315
  %v1478 = vunpack.c.l.b16 %v1316
  %v1479 = vunpack.c.h.b16 %v1316
  %v1480 = vunpack.c.l.b16 %v1317
  %v1481 = vunpack.c.h.b16 %v1317
  %v1482 = vunpack.c.l.b16 %v1318
  %v1483 = vunpack.c.h.b16 %v1318
  %v1484 = vunpack.c.l.b16 %v1319
  %v1485 = vunpack.c.h.b16 %v1319
  %v1486 = vunpack.c.l.b16 %v1320
  %v1487 = vunpack.c.h.b16 %v1320
  %v1488 = vunpack.c.l.b16 %v1321
  %v1489 = vunpack.c.h.b16 %v1321
  %v1490 = vunpack.c.l.b16 %v1322
  %v1491 = vunpack.c.h.b16 %v1322
  %v1492 = vunpack.c.l.b16 %v1323
  %v1493 = vunpack.c.h.b16 %v1323
  %v1494 = vunpack.c.l.b16 %v1324
  %v1495 = vunpack.c.h.b16 %v1324
  %v1496 = vunpack.c.l.b16 %v1325
  %v1497 = vunpack.c.h.b16 %v1325
  %v1498 = vunpack.c.l.b16 %v1326
  %v1499 = vunpack.c.h.b16 %v1326
  %v1500 = vunpack.c.l.b16 %v1327
  %v1501 = vunpack.c.h.b16 %v1327
  %v1502 = vunpack.c.l.b16 %v1328
  %v1503 = vunpack.c.h.b16 %v1328
  %v1504 = vunpack.c.l.b16 %v1329
  %v1505 = vunpack.c.h.b16 %v1329
  %v1506 = vunpack.c.l.b16 %v1330
  %v1507 = vunpack.c.h.b16 %v1330
  %v1508 = vunpack.c.l.b16 %v1331
  %v1509 = vunpack.c.h.b16 %v1331
  %v1510 = vunpack.c.l.b16 %v1332
  %v1511 = vunpack.c.l.b16 %v1333
  %v1512 = vunpack.c.h.b16 %v1333
  %v1513 = vunpack.c.l.b16 %v1334
  %v1514 = vunpack.c.h.b16 %v1334
  %v1515 = vunpack.c.l.b16 %v1335
  %v1516 = vunpack.c.h.b16 %v1335
  %v1517 = vunpack.c.l.b16 %v1336
  %v1518 = vunpack.c.h.b16 %v1336
  %v1519 = vunpack.c.l.b16 %v1337
  %v1520 = vunpack.c.h.b16 %v1337
  %v1521 = vunpack.c.l.b16 %v1338
  %v1522 = vunpack.c.h.b16 %v1338
  %v1523 = vunpack.c.l.b16 %v1339
  %v1524 = vunpack.c.h.b16 %v1339
  %v1525 = vunpack.c.l.b16 %v1340
  %v1526 = vunpack.c.h.b16 %v1340
  %v1527 = vunpack.c.l.b16 %v1341
  %v1528 = vunpack.c.h.b16 %v1341
  %v1529 = vunpack.c.l.b16 %v1342
  %v1530 = vunpack.c.h.b16 %v1342
  %v1531 = vunpack.c.l.b16 %v1343
  %v1532 = vunpack.c.h.b16 %v1343
  %v1533 = vunpack.c.l.b16 %v1344
  %v1534 = vunpack.c.h.b16 %v1344
  %v1535 = vunpack.c.l.b16 %v1345
  %v1536 = vunpack.c.h.b16 %v1345
  %v1537 = vunpack.c.l.b16 %v1346
  %v1538 = vunpack.c.h.b16 %v1346
  %v1539 = vunpack.c.l.b16 %v1347
  %v1540 = vunpack.c.h.b16 %v1347
  %v1541 = vunpack.c.l.b16 %v1348
  %v1542 = vunpack.c.h.b16 %v1348
  %v1543 = vunpack.c.l.b16 %v1349
  %v1544 = vunpack.c.h.b16 %v1349
  %v1545 = vunpack.c.l.b16 %v1350
  %v1546 = vunpack.c.l.b16 %v1351
  %v1547 = vunpack.c.h.b16 %v1351
  %v1548 = vunpack.c.l.b16 %v1352
  %v1549 = vunpack.c.h.b16 %v1352
  %v1550 = vunpack.c.l.b16 %v1353
  %v1551 = vunpack.c.h.b16 %v1353
  %v1552 = vunpack.c.l.b16 %v1354
  %v1553 = vunpack.c.h.b16 %v1354
  %v1554 = vunpack.c.l.b16 %v1355
  %v1555 = vunpack.c.h.b16 %v1355
  %v1556 = vunpack.c.l.b16 %v1356
  %v1557 = vunpack.c.h.b16 %v1356
  %v1558 = vunpack.c.l.b16 %v1357
  %v1559 = vunpack.c.h.b16 %v1357
  %v1560 = vunpack.c.l.b16 %v1358
  %v1561 = vunpack.c.h.b16 %v1358
  %v1562 = vunpack.c.l.b16 %v1359
  %v1563 = vunpack.c.h.b16 %v1359
  %v1564 = vunpack.c.l.b16 %v1360
  %v1565 = vunpack.c.h.b16 %v1360
  %v1566 = vunpack.c.l.b16 %v1361
  %v1567 = vunpack.c.h.b16 %v1361
  %v1568 = vunpack.c.l.b16 %v1362
  %v1569 = vunpack.c.h.b16 %v1362
  %v1570 = vunpack.c.l.b16 %v1363
  %v1571 = vunpack.c.h.b16 %v1363
  %v1572 = vunpack.c.l.b16 %v1364
  %v1573 = vunpack.c.h.b16 %v1364
  %v1574 = vunpack.c.l.b16 %v1365
  %v1575 = vunpack.c.h.b16 %v1365
  %v1576 = vunpack.c.l.b16 %v1366
  %v1577 = vunpack.c.h.b16 %v1366
  %v1578 = vunpack.c.l.b16 %v1367
  %v1579 = vunpack.c.h.b16 %v1367
  %v1580 = vunpack.c.l.b16 %v1368
  %v1581 = vpack.c.b16 %v1476, %v1441
  %v1582 = vpack.c.b16 %v1477, %v1442
  %v1583 = vpack.c.b16 %v1478, %v1443
  %v1584 = vpack.c.b16 %v1479, %v1444
  %v1585 = vpack.c.b16 %v1480, %v1445
  %v1586 = vpack.c.b16 %v1481, %v1446
  %v1587 = vpack.c.b16 %v1482, %v1447
  %v1588 = vpack.c.b16 %v1483, %v1448
  %v1589 = vpack.c.b16 %v1484, %v1449
  %v1590 = vpack.c.b16 %v1485, %v1450
  %v1591 = vpack.c.b16 %v1486, %v1451
  %v1592 = vpack.c.b16 %v1487, %v1452
  %v1593 = vpack.c.b16 %v1488, %v1453
  %v1594 = vpack.c.b16 %v1489, %v1454
  %v1595 = vpack.c.b16 %v1490, %v1455
  %v1596 = vpack.c.b16 %v1491, %v1456
  %v1597 = vpack.c.b16 %v1492, %v1457
  %v1598 = vpack.c.b16 %v1493, %v1458
  %v1599 = vpack.c.b16 %v1494, %v1459
  %v1600 = vpack.c.b16 %v1495, %v1460
  %v1601 = vpack.c.b16 %v1496, %v1461
  %v1602 = vpack.c.b16 %v1497, %v1462
  %v1603 = vpack.c.b16 %v1498, %v1463
  %v1604 = vpack.c.b16 %v1499, %v1464
  %v1605 = vpack.c.b16 %v1500, %v1465
  %v1606 = vpack.c.b16 %v1501, %v1466
  %v1607 = vpack.c.b16 %v1502, %v1467
  %v1608 = vpack.c.b16 %v1503, %v1468
  %v1609 = vpack.c.b16 %v1504, %v1469
  %v1610 = vpack.c.b16 %v1505, %v1470
  %v1611 = vpack.c.b16 %v1506, %v1471
  %v1612 = vpack.c.b16 %v1507, %v1472
  %v1613 = vpack.c.b16 %v1508, %v1473
  %v1614 = vpack.c.b16 %v1509, %v1474
  %v1615 = vpack.c.b16 %v1510, %v1475
  %v1616 = vpack.c.b16 %v1546, %v1511
  %v1617 = vpack.c.b16 %v1547, %v1512
  %v1618 = vpack.c.b16 %v1548, %v1513
  %v1619 = vpack.c.b16 %v1549, %v1514
  %v1620 = vpack.c.b16 %v1550, %v1515
  %v1621 = vpack.c.b16 %v1551, %v1516
  %v1622 = vpack.c.b16 %v1552, %v1517
  %v1623 = vpack.c.b16 %v1553, %v1518
  %v1624 = vpack.c.b16 %v1554, %v1519
  %v1625 = vpack.c.b16 %v1555, %v1520
  %v1626 = vpack.c.b16 %v1556, %v1521
  %v1627 = vpack.c.b16 %v1557, %v1522
  %v1628 = vpack.c.b16 %v1558, %v1523
  %v1629 = vpack.c.b16 %v1559, %v1524
  %v1630 = vpack.c.b16 %v1560, %v1525
  %v1631 = vpack.c.b16 %v1561, %v1526
  %v1632 = vpack.c.b16 %v1562, %v1527
  %v1633 = vpack.c.b16 %v1563, %v1528
  %v1634 = vpack.c.b16 %v1564, %v1529
  %v1635 = vpack.c.b16 %v1565, %v1530
  %v1636 = vpack.c.b16 %v1566, %v1531
  %v1637 = vpack.c.b16 %v1567, %v1532
  %v1638 = vpack.c.b16 %v1568, %v1533
  %v1639 = vpack.c.b16 %v1569, %v1534
  %v1640 = vpack.c.b16 %v1570, %v1535
  %v1641 = vpack.c.b16 %v1571, %v1536
  %v1642 = vpack.c.b16 %v1572, %v1537
  %v1643 = vpack.c.b16 %v1573, %v1538
  %v1644 = vpack.c.b16 %v1574, %v1539
  %v1645 = vpack.c.b16 %v1575, %v1540
  %v1646 = vpack.c.b16 %v1576, %v1541
  %v1647 = vpack.c.b16 %v1577, %v1542
  %v1648 = vpack.c.b16 %v1578, %v1543
  %v1649 = vpack.c.b16 %v1579, %v1544
  %v1650 = vpack.c.b16 %v1580, %v1545
  %v1687 = vand.u32 %v1616, %v418
  %v1690 = vand.u32 %v1617, %v418
  %v1693 = vand.u32 %v1618, %v418
  %v1696 = vand.u32 %v1619, %v418
  %v1699 = vand.u32 %v1620, %v418
  %v1702 = vand.u32 %v1621, %v418
  %v1705 = vand.u32 %v1622, %v418
  %v1708 = vand.u32 %v1623, %v418
  %v1711 = vand.u32 %v1624, %v418
  %v1714 = vand.u32 %v1625, %v418
  %v1717 = vand.u32 %v1626, %v418
  %v1720 = vand.u32 %v1627, %v418
  %v1723 = vand.u32 %v1628, %v418
  %v1726 = vand.u32 %v1629, %v418
  %v1729 = vand.u32 %v1630, %v418
  %v1732 = vand.u32 %v1631, %v418
  %v1735 = vand.u32 %v1632, %v418
  %v1738 = vand.u32 %v1633, %v418
  %v1741 = vand.u32 %v1634, %v418
  %v1744 = vand.u32 %v1635, %v418
  %v1747 = vand.u32 %v1636, %v418
  %v1750 = vand.u32 %v1637, %v418
  %v1753 = vand.u32 %v1638, %v418
  %v1756 = vand.u32 %v1639, %v418
  %v1759 = vand.u32 %v1640, %v418
  %v1762 = vand.u32 %v1641, %v418
  %v1765 = vand.u32 %v1642, %v418
  %v1768 = vand.u32 %v1643, %v418
  %v1771 = vand.u32 %v1644, %v418
  %v1774 = vand.u32 %v1645, %v418
  %v1777 = vand.u32 %v1646, %v418
  %v1780 = vand.u32 %v1647, %v418
  %v1783 = vand.u32 %v1648, %v418
  %v1786 = vand.u32 %v1649, %v418
  %v1789 = vand.u32 %v1650, %v418
  %1791 = vmatprep.subr.bf16.mxu0 %v1582
  %1792 = vmatpush1.bf16.msra.mxu0 %v1581
  %1793 = vmatprep.subr.bf16.mxu0 %v1690
  %1794 = vmatpush1.bf16.msra.mxu0 %v1687
  %1795 = vmatprep.subr.bf16.mxu0 0
  %1796 = vmatpush1.bf16.msra.mxu0 0
  %1797 = vmatprep.subr.bf16.mxu0 0
  %1798 = vmatpush1.bf16.msra.mxu0 0
  %1799 = vmatprep.subr.bf16.mxu0 0
  %1800 = vmatpush1.bf16.msra.mxu0 0
  %1801 = vmatprep.subr.bf16.mxu0 0
  %1802 = vmatpush1.bf16.msra.mxu0 0
  %1803 = vmatprep.subr.bf16.mxu0 0
  %1804 = vmatpush1.bf16.msra.mxu0 0
  %1805 = vmatprep.subr.bf16.mxu0 0
  %1806 = vmatpush1.bf16.msra.mxu0 0
  %1807 = vmatprep.subr.bf16.mxu0 0
  %1808 = vmatpush1.bf16.msra.mxu0 0
  %1809 = vmatprep.subr.bf16.mxu0 0
  %1810 = vmatpush1.bf16.msra.mxu0 0
  %1811 = vmatprep.subr.bf16.mxu0 0
  %1812 = vmatpush1.bf16.msra.mxu0 0
  %1813 = vmatprep.subr.bf16.mxu0 0
  %1814 = vmatpush1.bf16.msra.mxu0 0
  %1815 = vmatprep.subr.bf16.mxu0 0
  %1816 = vmatpush1.bf16.msra.mxu0 0
  %1817 = vmatprep.subr.bf16.mxu0 0
  %1818 = vmatpush1.bf16.msra.mxu0 0
  %1819 = vmatprep.subr.bf16.mxu0 0
  %1820 = vmatpush1.bf16.msra.mxu0 0
  %1821 = vmatprep.subr.bf16.mxu0 0
  %1822 = vmatpush1.bf16.msra.mxu0 0
  %1823 = vmatprep.mubr.bf16.mxu0 0
  %1824 = vmatmul.mubr.bf16.gmra.mrb[0].mxu0 %v413
  %v1825 = vpop.f32.mrb[0].mxu0
  %v1826 = vadd.f32 0.0, %v1825
  %v1827 = vpop.f32.mrb[0].mxu0
  %v1828 = vadd.f32 0.0, %v1827
  %v1829 = vpop.f32.mrb[0].mxu0
  %v1830 = vadd.f32 0.0, %v1829
  %v1831 = vpop.f32.mrb[0].mxu0
  %v1832 = vadd.f32 0.0, %v1831
  %1833 = vdwg.mxu0
  %1834 = vmatprep.subr.bf16.mxu0 %v1584
  %1835 = vmatpush1.bf16.msra.mxu0 %v1583
  %1836 = vmatprep.subr.bf16.mxu0 %v1696
  %1837 = vmatpush1.bf16.msra.mxu0 %v1693
  %1838 = vmatprep.subr.bf16.mxu0 0
  %1839 = vmatpush1.bf16.msra.mxu0 0
  %1840 = vmatprep.subr.bf16.mxu0 0
  %1841 = vmatpush1.bf16.msra.mxu0 0
  %1842 = vmatprep.subr.bf16.mxu0 0
  %1843 = vmatpush1.bf16.msra.mxu0 0
  %1844 = vmatprep.subr.bf16.mxu0 0
  %1845 = vmatpush1.bf16.msra.mxu0 0
  %1846 = vmatprep.subr.bf16.mxu0 0
  %1847 = vmatpush1.bf16.msra.mxu0 0
  %1848 = vmatprep.subr.bf16.mxu0 0
  %1849 = vmatpush1.bf16.msra.mxu0 0
  %1850 = vmatprep.subr.bf16.mxu0 0
  %1851 = vmatpush1.bf16.msra.mxu0 0
  %1852 = vmatprep.subr.bf16.mxu0 0
  %1853 = vmatpush1.bf16.msra.mxu0 0
  %1854 = vmatprep.subr.bf16.mxu0 0
  %1855 = vmatpush1.bf16.msra.mxu0 0
  %1856 = vmatprep.subr.bf16.mxu0 0
  %1857 = vmatpush1.bf16.msra.mxu0 0
  %1858 = vmatprep.subr.bf16.mxu0 0
  %1859 = vmatpush1.bf16.msra.mxu0 0
  %1860 = vmatprep.subr.bf16.mxu0 0
  %1861 = vmatpush1.bf16.msra.mxu0 0
  %1862 = vmatprep.subr.bf16.mxu0 0
  %1863 = vmatpush1.bf16.msra.mxu0 0
  %1864 = vmatprep.subr.bf16.mxu0 0
  %1865 = vmatpush1.bf16.msra.mxu0 0
  %1866 = vmatprep.mubr.bf16.mxu0 0
  %1867 = vmatmul.mubr.bf16.gmra.mrb[0].mxu0 %v413
  %v1868 = vpop.f32.mrb[0].mxu0
  %v1869 = vadd.f32 0.0, %v1868
  %v1870 = vpop.f32.mrb[0].mxu0
  %v1871 = vadd.f32 0.0, %v1870
  %v1872 = vpop.f32.mrb[0].mxu0
  %v1873 = vadd.f32 0.0, %v1872
  %v1874 = vpop.f32.mrb[0].mxu0
  %v1875 = vadd.f32 0.0, %v1874
  %1876 = vdwg.mxu0
  %1877 = vmatprep.subr.bf16.mxu0 %v1586
  %1878 = vmatpush1.bf16.msra.mxu0 %v1585
  %1879 = vmatprep.subr.bf16.mxu0 %v1702
  %1880 = vmatpush1.bf16.msra.mxu0 %v1699
  %1881 = vmatprep.subr.bf16.mxu0 0
  %1882 = vmatpush1.bf16.msra.mxu0 0
  %1883 = vmatprep.subr.bf16.mxu0 0
  %1884 = vmatpush1.bf16.msra.mxu0 0
  %1885 = vmatprep.subr.bf16.mxu0 0
  %1886 = vmatpush1.bf16.msra.mxu0 0
  %1887 = vmatprep.subr.bf16.mxu0 0
  %1888 = vmatpush1.bf16.msra.mxu0 0
  %1889 = vmatprep.subr.bf16.mxu0 0
  %1890 = vmatpush1.bf16.msra.mxu0 0
  %1891 = vmatprep.subr.bf16.mxu0 0
  %1892 = vmatpush1.bf16.msra.mxu0 0
  %1893 = vmatprep.subr.bf16.mxu0 0
  %1894 = vmatpush1.bf16.msra.mxu0 0
  %1895 = vmatprep.subr.bf16.mxu0 0
  %1896 = vmatpush1.bf16.msra.mxu0 0
  %1897 = vmatprep.subr.bf16.mxu0 0
  %1898 = vmatpush1.bf16.msra.mxu0 0
  %1899 = vmatprep.subr.bf16.mxu0 0
  %1900 = vmatpush1.bf16.msra.mxu0 0
  %1901 = vmatprep.subr.bf16.mxu0 0
  %1902 = vmatpush1.bf16.msra.mxu0 0
  %1903 = vmatprep.subr.bf16.mxu0 0
  %1904 = vmatpush1.bf16.msra.mxu0 0
  %1905 = vmatprep.subr.bf16.mxu0 0
  %1906 = vmatpush1.bf16.msra.mxu0 0
  %1907 = vmatprep.subr.bf16.mxu0 0
  %1908 = vmatpush1.bf16.msra.mxu0 0
  %1909 = vmatprep.mubr.bf16.mxu0 0
  %1910 = vmatmul.mubr.bf16.gmra.mrb[0].mxu0 %v413
  %v1911 = vpop.f32.mrb[0].mxu0
  %v1912 = vadd.f32 0.0, %v1911
  %v1913 = vpop.f32.mrb[0].mxu0
  %v1914 = vadd.f32 0.0, %v1913
  %v1915 = vpop.f32.mrb[0].mxu0
  %v1916 = vadd.f32 0.0, %v1915
  %v1917 = vpop.f32.mrb[0].mxu0
  %v1918 = vadd.f32 0.0, %v1917
  %1919 = vdwg.mxu0
  %1920 = vmatprep.subr.bf16.mxu0 %v1588
  %1921 = vmatpush1.bf16.msra.mxu0 %v1587
  %1922 = vmatprep.subr.bf16.mxu0 %v1708
  %1923 = vmatpush1.bf16.msra.mxu0 %v1705
  %1924 = vmatprep.subr.bf16.mxu0 0
  %1925 = vmatpush1.bf16.msra.mxu0 0
  %1926 = vmatprep.subr.bf16.mxu0 0
  %1927 = vmatpush1.bf16.msra.mxu0 0
  %1928 = vmatprep.subr.bf16.mxu0 0
  %1929 = vmatpush1.bf16.msra.mxu0 0
  %1930 = vmatprep.subr.bf16.mxu0 0
  %1931 = vmatpush1.bf16.msra.mxu0 0
  %1932 = vmatprep.subr.bf16.mxu0 0
  %1933 = vmatpush1.bf16.msra.mxu0 0
  %1934 = vmatprep.subr.bf16.mxu0 0
  %1935 = vmatpush1.bf16.msra.mxu0 0
  %1936 = vmatprep.subr.bf16.mxu0 0
  %1937 = vmatpush1.bf16.msra.mxu0 0
  %1938 = vmatprep.subr.bf16.mxu0 0
  %1939 = vmatpush1.bf16.msra.mxu0 0
  %1940 = vmatprep.subr.bf16.mxu0 0
  %1941 = vmatpush1.bf16.msra.mxu0 0
  %1942 = vmatprep.subr.bf16.mxu0 0
  %1943 = vmatpush1.bf16.msra.mxu0 0
  %1944 = vmatprep.subr.bf16.mxu0 0
  %1945 = vmatpush1.bf16.msra.mxu0 0
  %1946 = vmatprep.subr.bf16.mxu0 0
  %1947 = vmatpush1.bf16.msra.mxu0 0
  %1948 = vmatprep.subr.bf16.mxu0 0
  %1949 = vmatpush1.bf16.msra.mxu0 0
  %1950 = vmatprep.subr.bf16.mxu0 0
  %1951 = vmatpush1.bf16.msra.mxu0 0
  %1952 = vmatprep.mubr.bf16.mxu0 0
  %1953 = vmatmul.mubr.bf16.gmra.mrb[0].mxu0 %v413
  %v1954 = vpop.f32.mrb[0].mxu0
  %v1955 = vadd.f32 0.0, %v1954
  %v1956 = vpop.f32.mrb[0].mxu0
  %v1957 = vadd.f32 0.0, %v1956
  %v1958 = vpop.f32.mrb[0].mxu0
  %v1959 = vadd.f32 0.0, %v1958
  %v1960 = vpop.f32.mrb[0].mxu0
  %v1961 = vadd.f32 0.0, %v1960
  %1962 = vdwg.mxu0
  %1963 = vmatprep.subr.bf16.mxu0 %v1590
  %1964 = vmatpush1.bf16.msra.mxu0 %v1589
  %1965 = vmatprep.subr.bf16.mxu0 %v1714
  %1966 = vmatpush1.bf16.msra.mxu0 %v1711
  %1967 = vmatprep.subr.bf16.mxu0 0
  %1968 = vmatpush1.bf16.msra.mxu0 0
  %1969 = vmatprep.subr.bf16.mxu0 0
  %1970 = vmatpush1.bf16.msra.mxu0 0
  %1971 = vmatprep.subr.bf16.mxu0 0
  %1972 = vmatpush1.bf16.msra.mxu0 0
  %1973 = vmatprep.subr.bf16.mxu0 0
  %1974 = vmatpush1.bf16.msra.mxu0 0
  %1975 = vmatprep.subr.bf16.mxu0 0
  %1976 = vmatpush1.bf16.msra.mxu0 0
  %1977 = vmatprep.subr.bf16.mxu0 0
  %1978 = vmatpush1.bf16.msra.mxu0 0
  %1979 = vmatprep.subr.bf16.mxu0 0
  %1980 = vmatpush1.bf16.msra.mxu0 0
  %1981 = vmatprep.subr.bf16.mxu0 0
  %1982 = vmatpush1.bf16.msra.mxu0 0
  %1983 = vmatprep.subr.bf16.mxu0 0
  %1984 = vmatpush1.bf16.msra.mxu0 0
  %1985 = vmatprep.subr.bf16.mxu0 0
  %1986 = vmatpush1.bf16.msra.mxu0 0
  %1987 = vmatprep.subr.bf16.mxu0 0
  %1988 = vmatpush1.bf16.msra.mxu0 0
  %1989 = vmatprep.subr.bf16.mxu0 0
  %1990 = vmatpush1.bf16.msra.mxu0 0
  %1991 = vmatprep.subr.bf16.mxu0 0
  %1992 = vmatpush1.bf16.msra.mxu0 0
  %1993 = vmatprep.subr.bf16.mxu0 0
  %1994 = vmatpush1.bf16.msra.mxu0 0
  %1995 = vmatprep.mubr.bf16.mxu0 0
  %1996 = vmatmul.mubr.bf16.gmra.mrb[0].mxu0 %v413
  %v1997 = vpop.f32.mrb[0].mxu0
  %v1998 = vadd.f32 0.0, %v1997
  %v1999 = vpop.f32.mrb[0].mxu0
  %v2000 = vadd.f32 0.0, %v1999
  %v2001 = vpop.f32.mrb[0].mxu0
  %v2002 = vadd.f32 0.0, %v2001
  %v2003 = vpop.f32.mrb[0].mxu0
  %v2004 = vadd.f32 0.0, %v2003
  %2005 = vdwg.mxu0
  %2006 = vmatprep.subr.bf16.mxu0 %v1592
  %2007 = vmatpush1.bf16.msra.mxu0 %v1591
  %2008 = vmatprep.subr.bf16.mxu0 %v1720
  %2009 = vmatpush1.bf16.msra.mxu0 %v1717
  %2010 = vmatprep.subr.bf16.mxu0 0
  %2011 = vmatpush1.bf16.msra.mxu0 0
  %2012 = vmatprep.subr.bf16.mxu0 0
  %2013 = vmatpush1.bf16.msra.mxu0 0
  %2014 = vmatprep.subr.bf16.mxu0 0
  %2015 = vmatpush1.bf16.msra.mxu0 0
  %2016 = vmatprep.subr.bf16.mxu0 0
  %2017 = vmatpush1.bf16.msra.mxu0 0
  %2018 = vmatprep.subr.bf16.mxu0 0
  %2019 = vmatpush1.bf16.msra.mxu0 0
  %2020 = vmatprep.subr.bf16.mxu0 0
  %2021 = vmatpush1.bf16.msra.mxu0 0
  %2022 = vmatprep.subr.bf16.mxu0 0
  %2023 = vmatpush1.bf16.msra.mxu0 0
  %2024 = vmatprep.subr.bf16.mxu0 0
  %2025 = vmatpush1.bf16.msra.mxu0 0
  %2026 = vmatprep.subr.bf16.mxu0 0
  %2027 = vmatpush1.bf16.msra.mxu0 0
  %2028 = vmatprep.subr.bf16.mxu0 0
  %2029 = vmatpush1.bf16.msra.mxu0 0
  %2030 = vmatprep.subr.bf16.mxu0 0
  %2031 = vmatpush1.bf16.msra.mxu0 0
  %2032 = vmatprep.subr.bf16.mxu0 0
  %2033 = vmatpush1.bf16.msra.mxu0 0
  %2034 = vmatprep.subr.bf16.mxu0 0
  %2035 = vmatpush1.bf16.msra.mxu0 0
  %2036 = vmatprep.subr.bf16.mxu0 0
  %2037 = vmatpush1.bf16.msra.mxu0 0
  %2038 = vmatprep.mubr.bf16.mxu0 0
  %2039 = vmatmul.mubr.bf16.gmra.mrb[0].mxu0 %v413
  %v2040 = vpop.f32.mrb[0].mxu0
  %v2041 = vadd.f32 0.0, %v2040
  %v2042 = vpop.f32.mrb[0].mxu0
  %v2043 = vadd.f32 0.0, %v2042
  %v2044 = vpop.f32.mrb[0].mxu0
  %v2045 = vadd.f32 0.0, %v2044
  %v2046 = vpop.f32.mrb[0].mxu0
  %v2047 = vadd.f32 0.0, %v2046
  %2048 = vdwg.mxu0
  %2049 = vmatprep.subr.bf16.mxu0 %v1594
  %2050 = vmatpush1.bf16.msra.mxu0 %v1593
  %2051 = vmatprep.subr.bf16.mxu0 %v1726
  %2052 = vmatpush1.bf16.msra.mxu0 %v1723
  %2053 = vmatprep.subr.bf16.mxu0 0
  %2054 = vmatpush1.bf16.msra.mxu0 0
  %2055 = vmatprep.subr.bf16.mxu0 0
  %2056 = vmatpush1.bf16.msra.mxu0 0
  %2057 = vmatprep.subr.bf16.mxu0 0
  %2058 = vmatpush1.bf16.msra.mxu0 0
  %2059 = vmatprep.subr.bf16.mxu0 0
  %2060 = vmatpush1.bf16.msra.mxu0 0
  %2061 = vmatprep.subr.bf16.mxu0 0
  %2062 = vmatpush1.bf16.msra.mxu0 0
  %2063 = vmatprep.subr.bf16.mxu0 0
  %2064 = vmatpush1.bf16.msra.mxu0 0
  %2065 = vmatprep.subr.bf16.mxu0 0
  %2066 = vmatpush1.bf16.msra.mxu0 0
  %2067 = vmatprep.subr.bf16.mxu0 0
  %2068 = vmatpush1.bf16.msra.mxu0 0
  %2069 = vmatprep.subr.bf16.mxu0 0
  %2070 = vmatpush1.bf16.msra.mxu0 0
  %2071 = vmatprep.subr.bf16.mxu0 0
  %2072 = vmatpush1.bf16.msra.mxu0 0
  %2073 = vmatprep.subr.bf16.mxu0 0
  %2074 = vmatpush1.bf16.msra.mxu0 0
  %2075 = vmatprep.subr.bf16.mxu0 0
  %2076 = vmatpush1.bf16.msra.mxu0 0
  %2077 = vmatprep.subr.bf16.mxu0 0
  %2078 = vmatpush1.bf16.msra.mxu0 0
  %2079 = vmatprep.subr.bf16.mxu0 0
  %2080 = vmatpush1.bf16.msra.mxu0 0
  %2081 = vmatprep.mubr.bf16.mxu0 0
  %2082 = vmatmul.mubr.bf16.gmra.mrb[0].mxu0 %v413
  %v2083 = vpop.f32.mrb[0].mxu0
  %v2084 = vadd.f32 0.0, %v2083
  %v2085 = vpop.f32.mrb[0].mxu0
  %v2086 = vadd.f32 0.0, %v2085
  %v2087 = vpop.f32.mrb[0].mxu0
  %v2088 = vadd.f32 0.0, %v2087
  %v2089 = vpop.f32.mrb[0].mxu0
  %v2090 = vadd.f32 0.0, %v2089
  %2091 = vdwg.mxu0
  %2092 = vmatprep.subr.bf16.mxu0 %v1596
  %2093 = vmatpush1.bf16.msra.mxu0 %v1595
  %2094 = vmatprep.subr.bf16.mxu0 %v1732
  %2095 = vmatpush1.bf16.msra.mxu0 %v1729
  %2096 = vmatprep.subr.bf16.mxu0 0
  %2097 = vmatpush1.bf16.msra.mxu0 0
  %2098 = vmatprep.subr.bf16.mxu0 0
  %2099 = vmatpush1.bf16.msra.mxu0 0
  %2100 = vmatprep.subr.bf16.mxu0 0
  %2101 = vmatpush1.bf16.msra.mxu0 0
  %2102 = vmatprep.subr.bf16.mxu0 0
  %2103 = vmatpush1.bf16.msra.mxu0 0
  %2104 = vmatprep.subr.bf16.mxu0 0
  %2105 = vmatpush1.bf16.msra.mxu0 0
  %2106 = vmatprep.subr.bf16.mxu0 0
  %2107 = vmatpush1.bf16.msra.mxu0 0
  %2108 = vmatprep.subr.bf16.mxu0 0
  %2109 = vmatpush1.bf16.msra.mxu0 0
  %2110 = vmatprep.subr.bf16.mxu0 0
  %2111 = vmatpush1.bf16.msra.mxu0 0
  %2112 = vmatprep.subr.bf16.mxu0 0
  %2113 = vmatpush1.bf16.msra.mxu0 0
  %2114 = vmatprep.subr.bf16.mxu0 0
  %2115 = vmatpush1.bf16.msra.mxu0 0
  %2116 = vmatprep.subr.bf16.mxu0 0
  %2117 = vmatpush1.bf16.msra.mxu0 0
  %2118 = vmatprep.subr.bf16.mxu0 0
  %2119 = vmatpush1.bf16.msra.mxu0 0
  %2120 = vmatprep.subr.bf16.mxu0 0
  %2121 = vmatpush1.bf16.msra.mxu0 0
  %2122 = vmatprep.subr.bf16.mxu0 0
  %2123 = vmatpush1.bf16.msra.mxu0 0
  %2124 = vmatprep.mubr.bf16.mxu0 0
  %2125 = vmatmul.mubr.bf16.gmra.mrb[0].mxu0 %v413
  %v2126 = vpop.f32.mrb[0].mxu0
  %v2127 = vadd.f32 0.0, %v2126
  %v2128 = vpop.f32.mrb[0].mxu0
  %v2129 = vadd.f32 0.0, %v2128
  %v2130 = vpop.f32.mrb[0].mxu0
  %v2131 = vadd.f32 0.0, %v2130
  %v2132 = vpop.f32.mrb[0].mxu0
  %v2133 = vadd.f32 0.0, %v2132
  %2134 = vdwg.mxu0
  %2135 = vmatprep.subr.bf16.mxu0 %v1598
  %2136 = vmatpush1.bf16.msra.mxu0 %v1597
  %2137 = vmatprep.subr.bf16.mxu0 %v1738
  %2138 = vmatpush1.bf16.msra.mxu0 %v1735
  %2139 = vmatprep.subr.bf16.mxu0 0
  %2140 = vmatpush1.bf16.msra.mxu0 0
  %2141 = vmatprep.subr.bf16.mxu0 0
  %2142 = vmatpush1.bf16.msra.mxu0 0
  %2143 = vmatprep.subr.bf16.mxu0 0
  %2144 = vmatpush1.bf16.msra.mxu0 0
  %2145 = vmatprep.subr.bf16.mxu0 0
  %2146 = vmatpush1.bf16.msra.mxu0 0
  %2147 = vmatprep.subr.bf16.mxu0 0
  %2148 = vmatpush1.bf16.msra.mxu0 0
  %2149 = vmatprep.subr.bf16.mxu0 0
  %2150 = vmatpush1.bf16.msra.mxu0 0
  %2151 = vmatprep.subr.bf16.mxu0 0
  %2152 = vmatpush1.bf16.msra.mxu0 0
  %2153 = vmatprep.subr.bf16.mxu0 0
  %2154 = vmatpush1.bf16.msra.mxu0 0
  %2155 = vmatprep.subr.bf16.mxu0 0
  %2156 = vmatpush1.bf16.msra.mxu0 0
  %2157 = vmatprep.subr.bf16.mxu0 0
  %2158 = vmatpush1.bf16.msra.mxu0 0
  %2159 = vmatprep.subr.bf16.mxu0 0
  %2160 = vmatpush1.bf16.msra.mxu0 0
  %2161 = vmatprep.subr.bf16.mxu0 0
  %2162 = vmatpush1.bf16.msra.mxu0 0
  %2163 = vmatprep.subr.bf16.mxu0 0
  %2164 = vmatpush1.bf16.msra.mxu0 0
  %2165 = vmatprep.subr.bf16.mxu0 0
  %2166 = vmatpush1.bf16.msra.mxu0 0
  %2167 = vmatprep.mubr.bf16.mxu0 0
  %2168 = vmatmul.mubr.bf16.gmra.mrb[0].mxu0 %v413
  %v2169 = vpop.f32.mrb[0].mxu0
  %v2170 = vadd.f32 0.0, %v2169
  %v2171 = vpop.f32.mrb[0].mxu0
  %v2172 = vadd.f32 0.0, %v2171
  %v2173 = vpop.f32.mrb[0].mxu0
  %v2174 = vadd.f32 0.0, %v2173
  %v2175 = vpop.f32.mrb[0].mxu0
  %v2176 = vadd.f32 0.0, %v2175
  %2177 = vdwg.mxu0
  %2178 = vmatprep.subr.bf16.mxu0 %v1600
  %2179 = vmatpush1.bf16.msra.mxu0 %v1599
  %2180 = vmatprep.subr.bf16.mxu0 %v1744
  %2181 = vmatpush1.bf16.msra.mxu0 %v1741
  %2182 = vmatprep.subr.bf16.mxu0 0
  %2183 = vmatpush1.bf16.msra.mxu0 0
  %2184 = vmatprep.subr.bf16.mxu0 0
  %2185 = vmatpush1.bf16.msra.mxu0 0
  %2186 = vmatprep.subr.bf16.mxu0 0
  %2187 = vmatpush1.bf16.msra.mxu0 0
  %2188 = vmatprep.subr.bf16.mxu0 0
  %2189 = vmatpush1.bf16.msra.mxu0 0
  %2190 = vmatprep.subr.bf16.mxu0 0
  %2191 = vmatpush1.bf16.msra.mxu0 0
  %2192 = vmatprep.subr.bf16.mxu0 0
  %2193 = vmatpush1.bf16.msra.mxu0 0
  %2194 = vmatprep.subr.bf16.mxu0 0
  %2195 = vmatpush1.bf16.msra.mxu0 0
  %2196 = vmatprep.subr.bf16.mxu0 0
  %2197 = vmatpush1.bf16.msra.mxu0 0
  %2198 = vmatprep.subr.bf16.mxu0 0
  %2199 = vmatpush1.bf16.msra.mxu0 0
  %2200 = vmatprep.subr.bf16.mxu0 0
  %2201 = vmatpush1.bf16.msra.mxu0 0
  %2202 = vmatprep.subr.bf16.mxu0 0
  %2203 = vmatpush1.bf16.msra.mxu0 0
  %2204 = vmatprep.subr.bf16.mxu0 0
  %2205 = vmatpush1.bf16.msra.mxu0 0
  %2206 = vmatprep.subr.bf16.mxu0 0
  %2207 = vmatpush1.bf16.msra.mxu0 0
  %2208 = vmatprep.subr.bf16.mxu0 0
  %2209 = vmatpush1.bf16.msra.mxu0 0
  %2210 = vmatprep.mubr.bf16.mxu0 0
  %2211 = vmatmul.mubr.bf16.gmra.mrb[0].mxu0 %v413
  %v2212 = vpop.f32.mrb[0].mxu0
  %v2213 = vadd.f32 0.0, %v2212
  %v2214 = vpop.f32.mrb[0].mxu0
  %v2215 = vadd.f32 0.0, %v2214
  %v2216 = vpop.f32.mrb[0].mxu0
  %v2217 = vadd.f32 0.0, %v2216
  %v2218 = vpop.f32.mrb[0].mxu0
  %v2219 = vadd.f32 0.0, %v2218
  %2220 = vdwg.mxu0
  %2221 = vmatprep.subr.bf16.mxu0 %v1602
  %2222 = vmatpush1.bf16.msra.mxu0 %v1601
  %2223 = vmatprep.subr.bf16.mxu0 %v1750
  %2224 = vmatpush1.bf16.msra.mxu0 %v1747
  %2225 = vmatprep.subr.bf16.mxu0 0
  %2226 = vmatpush1.bf16.msra.mxu0 0
  %2227 = vmatprep.subr.bf16.mxu0 0
  %2228 = vmatpush1.bf16.msra.mxu0 0
  %2229 = vmatprep.subr.bf16.mxu0 0
  %2230 = vmatpush1.bf16.msra.mxu0 0
  %2231 = vmatprep.subr.bf16.mxu0 0
  %2232 = vmatpush1.bf16.msra.mxu0 0
  %2233 = vmatprep.subr.bf16.mxu0 0
  %2234 = vmatpush1.bf16.msra.mxu0 0
  %2235 = vmatprep.subr.bf16.mxu0 0
  %2236 = vmatpush1.bf16.msra.mxu0 0
  %2237 = vmatprep.subr.bf16.mxu0 0
  %2238 = vmatpush1.bf16.msra.mxu0 0
  %2239 = vmatprep.subr.bf16.mxu0 0
  %2240 = vmatpush1.bf16.msra.mxu0 0
  %2241 = vmatprep.subr.bf16.mxu0 0
  %2242 = vmatpush1.bf16.msra.mxu0 0
  %2243 = vmatprep.subr.bf16.mxu0 0
  %2244 = vmatpush1.bf16.msra.mxu0 0
  %2245 = vmatprep.subr.bf16.mxu0 0
  %2246 = vmatpush1.bf16.msra.mxu0 0
  %2247 = vmatprep.subr.bf16.mxu0 0
  %2248 = vmatpush1.bf16.msra.mxu0 0
  %2249 = vmatprep.subr.bf16.mxu0 0
  %2250 = vmatpush1.bf16.msra.mxu0 0
  %2251 = vmatprep.subr.bf16.mxu0 0
  %2252 = vmatpush1.bf16.msra.mxu0 0
  %2253 = vmatprep.mubr.bf16.mxu0 0
  %2254 = vmatmul.mubr.bf16.gmra.mrb[0].mxu0 %v413
  %v2255 = vpop.f32.mrb[0].mxu0
  %v2256 = vadd.f32 0.0, %v2255
  %v2257 = vpop.f32.mrb[0].mxu0
  %v2258 = vadd.f32 0.0, %v2257
  %v2259 = vpop.f32.mrb[0].mxu0
  %v2260 = vadd.f32 0.0, %v2259
  %v2261 = vpop.f32.mrb[0].mxu0
  %v2262 = vadd.f32 0.0, %v2261
  %2263 = vdwg.mxu0
  %2264 = vmatprep.subr.bf16.mxu0 %v1604
  %2265 = vmatpush1.bf16.msra.mxu0 %v1603
  %2266 = vmatprep.subr.bf16.mxu0 %v1756
  %2267 = vmatpush1.bf16.msra.mxu0 %v1753
  %2268 = vmatprep.subr.bf16.mxu0 0
  %2269 = vmatpush1.bf16.msra.mxu0 0
  %2270 = vmatprep.subr.bf16.mxu0 0
  %2271 = vmatpush1.bf16.msra.mxu0 0
  %2272 = vmatprep.subr.bf16.mxu0 0
  %2273 = vmatpush1.bf16.msra.mxu0 0
  %2274 = vmatprep.subr.bf16.mxu0 0
  %2275 = vmatpush1.bf16.msra.mxu0 0
  %2276 = vmatprep.subr.bf16.mxu0 0
  %2277 = vmatpush1.bf16.msra.mxu0 0
  %2278 = vmatprep.subr.bf16.mxu0 0
  %2279 = vmatpush1.bf16.msra.mxu0 0
  %2280 = vmatprep.subr.bf16.mxu0 0
  %2281 = vmatpush1.bf16.msra.mxu0 0
  %2282 = vmatprep.subr.bf16.mxu0 0
  %2283 = vmatpush1.bf16.msra.mxu0 0
  %2284 = vmatprep.subr.bf16.mxu0 0
  %2285 = vmatpush1.bf16.msra.mxu0 0
  %2286 = vmatprep.subr.bf16.mxu0 0
  %2287 = vmatpush1.bf16.msra.mxu0 0
  %2288 = vmatprep.subr.bf16.mxu0 0
  %2289 = vmatpush1.bf16.msra.mxu0 0
  %2290 = vmatprep.subr.bf16.mxu0 0
  %2291 = vmatpush1.bf16.msra.mxu0 0
  %2292 = vmatprep.subr.bf16.mxu0 0
  %2293 = vmatpush1.bf16.msra.mxu0 0
  %2294 = vmatprep.subr.bf16.mxu0 0
  %2295 = vmatpush1.bf16.msra.mxu0 0
  %2296 = vmatprep.mubr.bf16.mxu0 0
  %2297 = vmatmul.mubr.bf16.gmra.mrb[0].mxu0 %v413
  %v2298 = vpop.f32.mrb[0].mxu0
  %v2299 = vadd.f32 0.0, %v2298
  %v2300 = vpop.f32.mrb[0].mxu0
  %v2301 = vadd.f32 0.0, %v2300
  %v2302 = vpop.f32.mrb[0].mxu0
  %v2303 = vadd.f32 0.0, %v2302
  %v2304 = vpop.f32.mrb[0].mxu0
  %v2305 = vadd.f32 0.0, %v2304
  %2306 = vdwg.mxu0
  %2307 = vmatprep.subr.bf16.mxu0 %v1606
  %2308 = vmatpush1.bf16.msra.mxu0 %v1605
  %2309 = vmatprep.subr.bf16.mxu0 %v1762
  %2310 = vmatpush1.bf16.msra.mxu0 %v1759
  %2311 = vmatprep.subr.bf16.mxu0 0
  %2312 = vmatpush1.bf16.msra.mxu0 0
  %2313 = vmatprep.subr.bf16.mxu0 0
  %2314 = vmatpush1.bf16.msra.mxu0 0
  %2315 = vmatprep.subr.bf16.mxu0 0
  %2316 = vmatpush1.bf16.msra.mxu0 0
  %2317 = vmatprep.subr.bf16.mxu0 0
  %2318 = vmatpush1.bf16.msra.mxu0 0
  %2319 = vmatprep.subr.bf16.mxu0 0
  %2320 = vmatpush1.bf16.msra.mxu0 0
  %2321 = vmatprep.subr.bf16.mxu0 0
  %2322 = vmatpush1.bf16.msra.mxu0 0
  %2323 = vmatprep.subr.bf16.mxu0 0
  %2324 = vmatpush1.bf16.msra.mxu0 0
  %2325 = vmatprep.subr.bf16.mxu0 0
  %2326 = vmatpush1.bf16.msra.mxu0 0
  %2327 = vmatprep.subr.bf16.mxu0 0
  %2328 = vmatpush1.bf16.msra.mxu0 0
  %2329 = vmatprep.subr.bf16.mxu0 0
  %2330 = vmatpush1.bf16.msra.mxu0 0
  %2331 = vmatprep.subr.bf16.mxu0 0
  %2332 = vmatpush1.bf16.msra.mxu0 0
  %2333 = vmatprep.subr.bf16.mxu0 0
  %2334 = vmatpush1.bf16.msra.mxu0 0
  %2335 = vmatprep.subr.bf16.mxu0 0
  %2336 = vmatpush1.bf16.msra.mxu0 0
  %2337 = vmatprep.subr.bf16.mxu0 0
  %2338 = vmatpush1.bf16.msra.mxu0 0
  %2339 = vmatprep.mubr.bf16.mxu0 0
  %2340 = vmatmul.mubr.bf16.gmra.mrb[0].mxu0 %v413
  %v2341 = vpop.f32.mrb[0].mxu0
  %v2342 = vadd.f32 0.0, %v2341
  %v2343 = vpop.f32.mrb[0].mxu0
  %v2344 = vadd.f32 0.0, %v2343
  %v2345 = vpop.f32.mrb[0].mxu0
  %v2346 = vadd.f32 0.0, %v2345
  %v2347 = vpop.f32.mrb[0].mxu0
  %v2348 = vadd.f32 0.0, %v2347
  %2349 = vdwg.mxu0
  %2350 = vmatprep.subr.bf16.mxu0 %v1608
  %2351 = vmatpush1.bf16.msra.mxu0 %v1607
  %2352 = vmatprep.subr.bf16.mxu0 %v1768
  %2353 = vmatpush1.bf16.msra.mxu0 %v1765
  %2354 = vmatprep.subr.bf16.mxu0 0
  %2355 = vmatpush1.bf16.msra.mxu0 0
  %2356 = vmatprep.subr.bf16.mxu0 0
  %2357 = vmatpush1.bf16.msra.mxu0 0
  %2358 = vmatprep.subr.bf16.mxu0 0
  %2359 = vmatpush1.bf16.msra.mxu0 0
  %2360 = vmatprep.subr.bf16.mxu0 0
  %2361 = vmatpush1.bf16.msra.mxu0 0
  %2362 = vmatprep.subr.bf16.mxu0 0
  %2363 = vmatpush1.bf16.msra.mxu0 0
  %2364 = vmatprep.subr.bf16.mxu0 0
  %2365 = vmatpush1.bf16.msra.mxu0 0
  %2366 = vmatprep.subr.bf16.mxu0 0
  %2367 = vmatpush1.bf16.msra.mxu0 0
  %2368 = vmatprep.subr.bf16.mxu0 0
  %2369 = vmatpush1.bf16.msra.mxu0 0
  %2370 = vmatprep.subr.bf16.mxu0 0
  %2371 = vmatpush1.bf16.msra.mxu0 0
  %2372 = vmatprep.subr.bf16.mxu0 0
  %2373 = vmatpush1.bf16.msra.mxu0 0
  %2374 = vmatprep.subr.bf16.mxu0 0
  %2375 = vmatpush1.bf16.msra.mxu0 0
  %2376 = vmatprep.subr.bf16.mxu0 0
  %2377 = vmatpush1.bf16.msra.mxu0 0
  %2378 = vmatprep.subr.bf16.mxu0 0
  %2379 = vmatpush1.bf16.msra.mxu0 0
  %2380 = vmatprep.subr.bf16.mxu0 0
  %2381 = vmatpush1.bf16.msra.mxu0 0
  %2382 = vmatprep.mubr.bf16.mxu0 0
  %2383 = vmatmul.mubr.bf16.gmra.mrb[0].mxu0 %v413
  %v2384 = vpop.f32.mrb[0].mxu0
  %v2385 = vadd.f32 0.0, %v2384
  %v2386 = vpop.f32.mrb[0].mxu0
  %v2387 = vadd.f32 0.0, %v2386
  %v2388 = vpop.f32.mrb[0].mxu0
  %v2389 = vadd.f32 0.0, %v2388
  %v2390 = vpop.f32.mrb[0].mxu0
  %v2391 = vadd.f32 0.0, %v2390
  %2392 = vdwg.mxu0
  %2393 = vmatprep.subr.bf16.mxu0 %v1610
  %2394 = vmatpush1.bf16.msra.mxu0 %v1609
  %2395 = vmatprep.subr.bf16.mxu0 %v1774
  %2396 = vmatpush1.bf16.msra.mxu0 %v1771
  %2397 = vmatprep.subr.bf16.mxu0 0
  %2398 = vmatpush1.bf16.msra.mxu0 0
  %2399 = vmatprep.subr.bf16.mxu0 0
  %2400 = vmatpush1.bf16.msra.mxu0 0
  %2401 = vmatprep.subr.bf16.mxu0 0
  %2402 = vmatpush1.bf16.msra.mxu0 0
  %2403 = vmatprep.subr.bf16.mxu0 0
  %2404 = vmatpush1.bf16.msra.mxu0 0
  %2405 = vmatprep.subr.bf16.mxu0 0
  %2406 = vmatpush1.bf16.msra.mxu0 0
  %2407 = vmatprep.subr.bf16.mxu0 0
  %2408 = vmatpush1.bf16.msra.mxu0 0
  %2409 = vmatprep.subr.bf16.mxu0 0
  %2410 = vmatpush1.bf16.msra.mxu0 0
  %2411 = vmatprep.subr.bf16.mxu0 0
  %2412 = vmatpush1.bf16.msra.mxu0 0
  %2413 = vmatprep.subr.bf16.mxu0 0
  %2414 = vmatpush1.bf16.msra.mxu0 0
  %2415 = vmatprep.subr.bf16.mxu0 0
  %2416 = vmatpush1.bf16.msra.mxu0 0
  %2417 = vmatprep.subr.bf16.mxu0 0
  %2418 = vmatpush1.bf16.msra.mxu0 0
  %2419 = vmatprep.subr.bf16.mxu0 0
  %2420 = vmatpush1.bf16.msra.mxu0 0
  %2421 = vmatprep.subr.bf16.mxu0 0
  %2422 = vmatpush1.bf16.msra.mxu0 0
  %2423 = vmatprep.subr.bf16.mxu0 0
  %2424 = vmatpush1.bf16.msra.mxu0 0
  %2425 = vmatprep.mubr.bf16.mxu0 0
  %2426 = vmatmul.mubr.bf16.gmra.mrb[0].mxu0 %v413
  %v2427 = vpop.f32.mrb[0].mxu0
  %v2428 = vadd.f32 0.0, %v2427
  %v2429 = vpop.f32.mrb[0].mxu0
  %v2430 = vadd.f32 0.0, %v2429
  %v2431 = vpop.f32.mrb[0].mxu0
  %v2432 = vadd.f32 0.0, %v2431
  %v2433 = vpop.f32.mrb[0].mxu0
  %v2434 = vadd.f32 0.0, %v2433
  %2435 = vdwg.mxu0
  %2436 = vmatprep.subr.bf16.mxu0 %v1612
  %2437 = vmatpush1.bf16.msra.mxu0 %v1611
  %2438 = vmatprep.subr.bf16.mxu0 %v1780
  %2439 = vmatpush1.bf16.msra.mxu0 %v1777
  %2440 = vmatprep.subr.bf16.mxu0 0
  %2441 = vmatpush1.bf16.msra.mxu0 0
  %2442 = vmatprep.subr.bf16.mxu0 0
  %2443 = vmatpush1.bf16.msra.mxu0 0
  %2444 = vmatprep.subr.bf16.mxu0 0
  %2445 = vmatpush1.bf16.msra.mxu0 0
  %2446 = vmatprep.subr.bf16.mxu0 0
  %2447 = vmatpush1.bf16.msra.mxu0 0
  %2448 = vmatprep.subr.bf16.mxu0 0
  %2449 = vmatpush1.bf16.msra.mxu0 0
  %2450 = vmatprep.subr.bf16.mxu0 0
  %2451 = vmatpush1.bf16.msra.mxu0 0
  %2452 = vmatprep.subr.bf16.mxu0 0
  %2453 = vmatpush1.bf16.msra.mxu0 0
  %2454 = vmatprep.subr.bf16.mxu0 0
  %2455 = vmatpush1.bf16.msra.mxu0 0
  %2456 = vmatprep.subr.bf16.mxu0 0
  %2457 = vmatpush1.bf16.msra.mxu0 0
  %2458 = vmatprep.subr.bf16.mxu0 0
  %2459 = vmatpush1.bf16.msra.mxu0 0
  %2460 = vmatprep.subr.bf16.mxu0 0
  %2461 = vmatpush1.bf16.msra.mxu0 0
  %2462 = vmatprep.subr.bf16.mxu0 0
  %2463 = vmatpush1.bf16.msra.mxu0 0
  %2464 = vmatprep.subr.bf16.mxu0 0
  %2465 = vmatpush1.bf16.msra.mxu0 0
  %2466 = vmatprep.subr.bf16.mxu0 0
  %2467 = vmatpush1.bf16.msra.mxu0 0
  %2468 = vmatprep.mubr.bf16.mxu0 0
  %2469 = vmatmul.mubr.bf16.gmra.mrb[0].mxu0 %v413
  %v2470 = vpop.f32.mrb[0].mxu0
  %v2471 = vadd.f32 0.0, %v2470
  %v2472 = vpop.f32.mrb[0].mxu0
  %v2473 = vadd.f32 0.0, %v2472
  %v2474 = vpop.f32.mrb[0].mxu0
  %v2475 = vadd.f32 0.0, %v2474
  %v2476 = vpop.f32.mrb[0].mxu0
  %v2477 = vadd.f32 0.0, %v2476
  %2478 = vdwg.mxu0
  %2479 = vmatprep.subr.bf16.mxu0 %v1614
  %2480 = vmatpush1.bf16.msra.mxu0 %v1613
  %2481 = vmatprep.subr.bf16.mxu0 %v1786
  %2482 = vmatpush1.bf16.msra.mxu0 %v1783
  %2483 = vmatprep.subr.bf16.mxu0 0
  %2484 = vmatpush1.bf16.msra.mxu0 0
  %2485 = vmatprep.subr.bf16.mxu0 0
  %2486 = vmatpush1.bf16.msra.mxu0 0
  %2487 = vmatprep.subr.bf16.mxu0 0
  %2488 = vmatpush1.bf16.msra.mxu0 0
  %2489 = vmatprep.subr.bf16.mxu0 0
  %2490 = vmatpush1.bf16.msra.mxu0 0
  %2491 = vmatprep.subr.bf16.mxu0 0
  %2492 = vmatpush1.bf16.msra.mxu0 0
  %2493 = vmatprep.subr.bf16.mxu0 0
  %2494 = vmatpush1.bf16.msra.mxu0 0
  %2495 = vmatprep.subr.bf16.mxu0 0
  %2496 = vmatpush1.bf16.msra.mxu0 0
  %2497 = vmatprep.subr.bf16.mxu0 0
  %2498 = vmatpush1.bf16.msra.mxu0 0
  %2499 = vmatprep.subr.bf16.mxu0 0
  %2500 = vmatpush1.bf16.msra.mxu0 0
  %2501 = vmatprep.subr.bf16.mxu0 0
  %2502 = vmatpush1.bf16.msra.mxu0 0
  %2503 = vmatprep.subr.bf16.mxu0 0
  %2504 = vmatpush1.bf16.msra.mxu0 0
  %2505 = vmatprep.subr.bf16.mxu0 0
  %2506 = vmatpush1.bf16.msra.mxu0 0
  %2507 = vmatprep.subr.bf16.mxu0 0
  %2508 = vmatpush1.bf16.msra.mxu0 0
  %2509 = vmatprep.subr.bf16.mxu0 0
  %2510 = vmatpush1.bf16.msra.mxu0 0
  %2511 = vmatprep.mubr.bf16.mxu0 0
  %2512 = vmatmul.mubr.bf16.gmra.mrb[0].mxu0 %v413
  %v2513 = vpop.f32.mrb[0].mxu0
  %v2514 = vadd.f32 0.0, %v2513
  %v2515 = vpop.f32.mrb[0].mxu0
  %v2516 = vadd.f32 0.0, %v2515
  %v2517 = vpop.f32.mrb[0].mxu0
  %v2518 = vadd.f32 0.0, %v2517
  %v2519 = vpop.f32.mrb[0].mxu0
  %v2520 = vadd.f32 0.0, %v2519
  %2521 = vdwg.mxu0
  %2522 = vmatprep.subr.bf16.mxu0 0
  %2523 = vmatpush1.bf16.msra.mxu0 %v1615
  %2524 = vmatprep.subr.bf16.mxu0 0
  %2525 = vmatpush1.bf16.msra.mxu0 %v1789
  %2526 = vmatprep.subr.bf16.mxu0 0
  %2527 = vmatpush1.bf16.msra.mxu0 0
  %2528 = vmatprep.subr.bf16.mxu0 0
  %2529 = vmatpush1.bf16.msra.mxu0 0
  %2530 = vmatprep.subr.bf16.mxu0 0
  %2531 = vmatpush1.bf16.msra.mxu0 0
  %2532 = vmatprep.subr.bf16.mxu0 0
  %2533 = vmatpush1.bf16.msra.mxu0 0
  %2534 = vmatprep.subr.bf16.mxu0 0
  %2535 = vmatpush1.bf16.msra.mxu0 0
  %2536 = vmatprep.subr.bf16.mxu0 0
  %2537 = vmatpush1.bf16.msra.mxu0 0
  %2538 = vmatprep.subr.bf16.mxu0 0
  %2539 = vmatpush1.bf16.msra.mxu0 0
  %2540 = vmatprep.subr.bf16.mxu0 0
  %2541 = vmatpush1.bf16.msra.mxu0 0
  %2542 = vmatprep.subr.bf16.mxu0 0
  %2543 = vmatpush1.bf16.msra.mxu0 0
  %2544 = vmatprep.subr.bf16.mxu0 0
  %2545 = vmatpush1.bf16.msra.mxu0 0
  %2546 = vmatprep.subr.bf16.mxu0 0
  %2547 = vmatpush1.bf16.msra.mxu0 0
  %2548 = vmatprep.subr.bf16.mxu0 0
  %2549 = vmatpush1.bf16.msra.mxu0 0
  %2550 = vmatprep.subr.bf16.mxu0 0
  %2551 = vmatpush1.bf16.msra.mxu0 0
  %2552 = vmatprep.subr.bf16.mxu0 0
  %2553 = vmatpush1.bf16.msra.mxu0 0
  %2554 = vmatprep.mubr.bf16.mxu0 0
  %2555 = vmatmul.mubr.bf16.gmra.mrb[0].mxu0 %v413
  %v2556 = vpop.f32.mrb[0].mxu0
  %v2557 = vadd.f32 0.0, %v2556
  %v2558 = vpop.f32.mrb[0].mxu0
  %v2559 = vpop.f32.mrb[0].mxu0
  %v2560 = vadd.f32 0.0, %v2559
  %v2561 = vpop.f32.mrb[0].mxu0
  %2562 = vdwg.mxu0
  %v2563 = vmax.f32 %v559, %v1826
  %v2564 = vmax.f32 %v561, %v1828
  %v2565 = vmax.f32 %v602, %v1869
  %v2566 = vmax.f32 %v604, %v1871
  %v2567 = vmax.f32 %v645, %v1912
  %v2568 = vmax.f32 %v647, %v1914
  %v2569 = vmax.f32 %v688, %v1955
  %v2570 = vmax.f32 %v690, %v1957
  %v2571 = vmax.f32 %v731, %v1998
  %v2572 = vmax.f32 %v733, %v2000
  %v2573 = vmax.f32 %v774, %v2041
  %v2574 = vmax.f32 %v776, %v2043
  %v2575 = vmax.f32 %v817, %v2084
  %v2576 = vmax.f32 %v819, %v2086
  %v2577 = vmax.f32 %v860, %v2127
  %v2578 = vmax.f32 %v862, %v2129
  %v2579 = vmax.f32 %v903, %v2170
  %v2580 = vmax.f32 %v905, %v2172
  %v2581 = vmax.f32 %v946, %v2213
  %v2582 = vmax.f32 %v948, %v2215
  %v2583 = vmax.f32 %v989, %v2256
  %v2584 = vmax.f32 %v991, %v2258
  %v2585 = vmax.f32 %v1032, %v2299
  %v2586 = vmax.f32 %v1034, %v2301
  %v2587 = vmax.f32 %v1075, %v2342
  %v2588 = vmax.f32 %v1077, %v2344
  %v2589 = vmax.f32 %v1118, %v2385
  %v2590 = vmax.f32 %v1120, %v2387
  %v2591 = vmax.f32 %v1161, %v2428
  %v2592 = vmax.f32 %v1163, %v2430
  %v2593 = vmax.f32 %v1204, %v2471
  %v2594 = vmax.f32 %v1206, %v2473
  %v2595 = vmax.f32 %v1247, %v2514
  %v2596 = vmax.f32 %v1249, %v2516
  %v2597 = vmax.f32 %v1290, %v2557
  %v2598 = vmax.f32 %v563, %v1830
  %v2599 = vmax.f32 %v565, %v1832
  %v2600 = vmax.f32 %v606, %v1873
  %v2601 = vmax.f32 %v608, %v1875
  %v2602 = vmax.f32 %v649, %v1916
  %v2603 = vmax.f32 %v651, %v1918
  %v2604 = vmax.f32 %v692, %v1959
  %v2605 = vmax.f32 %v694, %v1961
  %v2606 = vmax.f32 %v735, %v2002
  %v2607 = vmax.f32 %v737, %v2004
  %v2608 = vmax.f32 %v778, %v2045
  %v2609 = vmax.f32 %v780, %v2047
  %v2610 = vmax.f32 %v821, %v2088
  %v2611 = vmax.f32 %v823, %v2090
  %v2612 = vmax.f32 %v864, %v2131
  %v2613 = vmax.f32 %v866, %v2133
  %v2614 = vmax.f32 %v907, %v2174
  %v2615 = vmax.f32 %v909, %v2176
  %v2616 = vmax.f32 %v950, %v2217
  %v2617 = vmax.f32 %v952, %v2219
  %v2618 = vmax.f32 %v993, %v2260
  %v2619 = vmax.f32 %v995, %v2262
  %v2620 = vmax.f32 %v1036, %v2303
  %v2621 = vmax.f32 %v1038, %v2305
  %v2622 = vmax.f32 %v1079, %v2346
  %v2623 = vmax.f32 %v1081, %v2348
  %v2624 = vmax.f32 %v1122, %v2389
  %v2625 = vmax.f32 %v1124, %v2391
  %v2626 = vmax.f32 %v1165, %v2432
  %v2627 = vmax.f32 %v1167, %v2434
  %v2628 = vmax.f32 %v1208, %v2475
  %v2629 = vmax.f32 %v1210, %v2477
  %v2630 = vmax.f32 %v1251, %v2518
  %v2631 = vmax.f32 %v1253, %v2520
  %v2632 = vmax.f32 %v1293, %v2560
  %s2633 = scalar_lea.vmem %s0, 1120
  %v2634 = vld [vmem:[%s2633] sm:$0xff]
  %v2635 = vld [vmem:[%s2633 + $0x8] sm:$0xff]
  %v2636 = vld [vmem:[%s2633 + $0x10] sm:$0xff]
  %v2637 = vld [vmem:[%s2633 + $0x18] sm:$0xff]
  %v2638 = vld [vmem:[%s2633 + $0x20] sm:$0xff]
  %v2639 = vld [vmem:[%s2633 + $0x28] sm:$0xff]
  %v2640 = vld [vmem:[%s2633 + $0x30] sm:$0xff]
  %v2641 = vld [vmem:[%s2633 + $0x38] sm:$0xff]
  %v2642 = vld [vmem:[%s2633 + $0x40] sm:$0xff]
  %v2643 = vld [vmem:[%s2633 + $0x48] sm:$0xff]
  %v2644 = vld [vmem:[%s2633 + $0x50] sm:$0xff]
  %v2645 = vld [vmem:[%s2633 + $0x58] sm:$0xff]
  %v2646 = vld [vmem:[%s2633 + $0x60] sm:$0xff]
  %v2647 = vld [vmem:[%s2633 + $0x68] sm:$0xff]
  %v2648 = vld [vmem:[%s2633 + $0x70] sm:$0xff]
  %v2649 = vld [vmem:[%s2633 + $0x78] sm:$0xff]
  %v2650 = vld [vmem:[%s2633 + $0x80] sm:$0xff]
  %v2651 = vld [vmem:[%s2633 + $0x88] sm:$0xf]
  %v2652 = vld [vmem:[%s2633 + $0x8c] sm:$0xff]
  %v2653 = vld [vmem:[%s2633 + $0x94] sm:$0xff]
  %v2654 = vld [vmem:[%s2633 + $0x9c] sm:$0xff]
  %v2655 = vld [vmem:[%s2633 + $0xa4] sm:$0xff]
  %v2656 = vld [vmem:[%s2633 + $0xac] sm:$0xff]
  %v2657 = vld [vmem:[%s2633 + $0xb4] sm:$0xff]
  %v2658 = vld [vmem:[%s2633 + $0xbc] sm:$0xff]
  %v2659 = vld [vmem:[%s2633 + $0xc4] sm:$0xff]
  %v2660 = vld [vmem:[%s2633 + $0xcc] sm:$0xff]
  %v2661 = vld [vmem:[%s2633 + $0xd4] sm:$0xff]
  %v2662 = vld [vmem:[%s2633 + $0xdc] sm:$0xff]
  %v2663 = vld [vmem:[%s2633 + $0xe4] sm:$0xff]
  %v2664 = vld [vmem:[%s2633 + $0xec] sm:$0xff]
  %v2665 = vld [vmem:[%s2633 + $0xf4] sm:$0xff]
  %v2666 = vld [vmem:[%s2633 + $0xfc] sm:$0xff]
  %v2667 = vld [vmem:[%s2633 + $0x104] sm:$0xff]
  %v2668 = vld [vmem:[%s2633 + $0x10c] sm:$0xff]
  %v2669 = vld [vmem:[%s2633 + $0x114] sm:$0xf]
  %v2670 = vld [vmem:[%s2633 + $0x118] sm:$0xff]
  %v2671 = vld [vmem:[%s2633 + $0x120] sm:$0xff]
  %v2672 = vld [vmem:[%s2633 + $0x128] sm:$0xff]
  %v2673 = vld [vmem:[%s2633 + $0x130] sm:$0xff]
  %v2674 = vld [vmem:[%s2633 + $0x138] sm:$0xff]
  %v2675 = vld [vmem:[%s2633 + $0x140] sm:$0xff]
  %v2676 = vld [vmem:[%s2633 + $0x148] sm:$0xff]
  %v2677 = vld [vmem:[%s2633 + $0x150] sm:$0xff]
  %v2678 = vld [vmem:[%s2633 + $0x158] sm:$0xff]
  %v2679 = vld [vmem:[%s2633 + $0x160] sm:$0xff]
  %v2680 = vld [vmem:[%s2633 + $0x168] sm:$0xff]
  %v2681 = vld [vmem:[%s2633 + $0x170] sm:$0xff]
  %v2682 = vld [vmem:[%s2633 + $0x178] sm:$0xff]
  %v2683 = vld [vmem:[%s2633 + $0x180] sm:$0xff]
  %v2684 = vld [vmem:[%s2633 + $0x188] sm:$0xff]
  %v2685 = vld [vmem:[%s2633 + $0x190] sm:$0xff]
  %v2686 = vld [vmem:[%s2633 + $0x198] sm:$0xff]
  %v2687 = vld [vmem:[%s2633 + $0x1a0] sm:$0xf]
  %v2688 = vld [vmem:[%s2633 + $0x1a4] sm:$0x33]
  %v2689 = vld [vmem:[%s2633 + $0x1ac] sm:$0x33]
  %v2690 = vld [vmem:[%s2633 + $0x1b4] sm:$0x33]
  %v2691 = vld [vmem:[%s2633 + $0x1bc] sm:$0x33]
  %v2692 = vld [vmem:[%s2633 + $0x1c4] sm:$0x33]
  %v2693 = vld [vmem:[%s2633 + $0x1cc] sm:$0x33]
  %v2694 = vld [vmem:[%s2633 + $0x1d4] sm:$0x33]
  %v2695 = vld [vmem:[%s2633 + $0x1dc] sm:$0x33]
  %v2696 = vld [vmem:[%s2633 + $0x1e4] sm:$0x33]
  %v2697 = vld [vmem:[%s2633 + $0x1ec] sm:$0x33]
  %v2698 = vld [vmem:[%s2633 + $0x1f4] sm:$0x33]
  %v2699 = vld [vmem:[%s2633 + $0x1fc] sm:$0x33]
  %v2700 = vld [vmem:[%s2633 + $0x204] sm:$0x33]
  %v2701 = vld [vmem:[%s2633 + $0x20c] sm:$0x33]
  %v2702 = vld [vmem:[%s2633 + $0x214] sm:$0x33]
  %v2703 = vld [vmem:[%s2633 + $0x21c] sm:$0x33]
  %v2704 = vld [vmem:[%s2633 + $0x224] sm:$0x33]
  %v2705 = vld [vmem:[%s2633 + $0x22c] sm:$0x3]
  %v2778 = vunpack.c.l.b16 %v2634
  %v2779 = vunpack.c.h.b16 %v2634
  %v2780 = vunpack.c.l.b16 %v2635
  %v2781 = vunpack.c.h.b16 %v2635
  %v2782 = vunpack.c.l.b16 %v2636
  %v2783 = vunpack.c.h.b16 %v2636
  %v2784 = vunpack.c.l.b16 %v2637
  %v2785 = vunpack.c.h.b16 %v2637
  %v2786 = vunpack.c.l.b16 %v2638
  %v2787 = vunpack.c.h.b16 %v2638
  %v2788 = vunpack.c.l.b16 %v2639
  %v2789 = vunpack.c.h.b16 %v2639
  %v2790 = vunpack.c.l.b16 %v2640
  %v2791 = vunpack.c.h.b16 %v2640
  %v2792 = vunpack.c.l.b16 %v2641
  %v2793 = vunpack.c.h.b16 %v2641
  %v2794 = vunpack.c.l.b16 %v2642
  %v2795 = vunpack.c.h.b16 %v2642
  %v2796 = vunpack.c.l.b16 %v2643
  %v2797 = vunpack.c.h.b16 %v2643
  %v2798 = vunpack.c.l.b16 %v2644
  %v2799 = vunpack.c.h.b16 %v2644
  %v2800 = vunpack.c.l.b16 %v2645
  %v2801 = vunpack.c.h.b16 %v2645
  %v2802 = vunpack.c.l.b16 %v2646
  %v2803 = vunpack.c.h.b16 %v2646
  %v2804 = vunpack.c.l.b16 %v2647
  %v2805 = vunpack.c.h.b16 %v2647
  %v2806 = vunpack.c.l.b16 %v2648
  %v2807 = vunpack.c.h.b16 %v2648
  %v2808 = vunpack.c.l.b16 %v2649
  %v2809 = vunpack.c.h.b16 %v2649
  %v2810 = vunpack.c.l.b16 %v2650
  %v2811 = vunpack.c.h.b16 %v2650
  %v2812 = vunpack.c.l.b16 %v2651
  %v2813 = vunpack.c.l.b16 %v2652
  %v2814 = vunpack.c.h.b16 %v2652
  %v2815 = vunpack.c.l.b16 %v2653
  %v2816 = vunpack.c.h.b16 %v2653
  %v2817 = vunpack.c.l.b16 %v2654
  %v2818 = vunpack.c.h.b16 %v2654
  %v2819 = vunpack.c.l.b16 %v2655
  %v2820 = vunpack.c.h.b16 %v2655
  %v2821 = vunpack.c.l.b16 %v2656
  %v2822 = vunpack.c.h.b16 %v2656
  %v2823 = vunpack.c.l.b16 %v2657
  %v2824 = vunpack.c.h.b16 %v2657
  %v2825 = vunpack.c.l.b16 %v2658
  %v2826 = vunpack.c.h.b16 %v2658
  %v2827 = vunpack.c.l.b16 %v2659
  %v2828 = vunpack.c.h.b16 %v2659
  %v2829 = vunpack.c.l.b16 %v2660
  %v2830 = vunpack.c.h.b16 %v2660
  %v2831 = vunpack.c.l.b16 %v2661
  %v2832 = vunpack.c.h.b16 %v2661
  %v2833 = vunpack.c.l.b16 %v2662
  %v2834 = vunpack.c.h.b16 %v2662
  %v2835 = vunpack.c.l.b16 %v2663
  %v2836 = vunpack.c.h.b16 %v2663
  %v2837 = vunpack.c.l.b16 %v2664
  %v2838 = vunpack.c.h.b16 %v2664
  %v2839 = vunpack.c.l.b16 %v2665
  %v2840 = vunpack.c.h.b16 %v2665
  %v2841 = vunpack.c.l.b16 %v2666
  %v2842 = vunpack.c.h.b16 %v2666
  %v2843 = vunpack.c.l.b16 %v2667
  %v2844 = vunpack.c.h.b16 %v2667
  %v2845 = vunpack.c.l.b16 %v2668
  %v2846 = vunpack.c.h.b16 %v2668
  %v2847 = vunpack.c.l.b16 %v2669
  %v2848 = vunpack.c.l.b16 %v2670
  %v2849 = vunpack.c.h.b16 %v2670
  %v2850 = vunpack.c.l.b16 %v2671
  %v2851 = vunpack.c.h.b16 %v2671
  %v2852 = vunpack.c.l.b16 %v2672
  %v2853 = vunpack.c.h.b16 %v2672
  %v2854 = vunpack.c.l.b16 %v2673
  %v2855 = vunpack.c.h.b16 %v2673
  %v2856 = vunpack.c.l.b16 %v2674
  %v2857 = vunpack.c.h.b16 %v2674
  %v2858 = vunpack.c.l.b16 %v2675
  %v2859 = vunpack.c.h.b16 %v2675
  %v2860 = vunpack.c.l.b16 %v2676
  %v2861 = vunpack.c.h.b16 %v2676
  %v2862 = vunpack.c.l.b16 %v2677
  %v2863 = vunpack.c.h.b16 %v2677
  %v2864 = vunpack.c.l.b16 %v2678
  %v2865 = vunpack.c.h.b16 %v2678
  %v2866 = vunpack.c.l.b16 %v2679
  %v2867 = vunpack.c.h.b16 %v2679
  %v2868 = vunpack.c.l.b16 %v2680
  %v2869 = vunpack.c.h.b16 %v2680
  %v2870 = vunpack.c.l.b16 %v2681
  %v2871 = vunpack.c.h.b16 %v2681
  %v2872 = vunpack.c.l.b16 %v2682
  %v2873 = vunpack.c.h.b16 %v2682
  %v2874 = vunpack.c.l.b16 %v2683
  %v2875 = vunpack.c.h.b16 %v2683
  %v2876 = vunpack.c.l.b16 %v2684
  %v2877 = vunpack.c.h.b16 %v2684
  %v2878 = vunpack.c.l.b16 %v2685
  %v2879 = vunpack.c.h.b16 %v2685
  %v2880 = vunpack.c.l.b16 %v2686
  %v2881 = vunpack.c.h.b16 %v2686
  %v2882 = vunpack.c.l.b16 %v2687
  %v2883 = vunpack.c.l.b16 %v2688
  %v2884 = vunpack.c.h.b16 %v2688
  %v2885 = vunpack.c.l.b16 %v2689
  %v2886 = vunpack.c.h.b16 %v2689
  %v2887 = vunpack.c.l.b16 %v2690
  %v2888 = vunpack.c.h.b16 %v2690
  %v2889 = vunpack.c.l.b16 %v2691
  %v2890 = vunpack.c.h.b16 %v2691
  %v2891 = vunpack.c.l.b16 %v2692
  %v2892 = vunpack.c.h.b16 %v2692
  %v2893 = vunpack.c.l.b16 %v2693
  %v2894 = vunpack.c.h.b16 %v2693
  %v2895 = vunpack.c.l.b16 %v2694
  %v2896 = vunpack.c.h.b16 %v2694
  %v2897 = vunpack.c.l.b16 %v2695
  %v2898 = vunpack.c.h.b16 %v2695
  %v2899 = vunpack.c.l.b16 %v2696
  %v2900 = vunpack.c.h.b16 %v2696
  %v2901 = vunpack.c.l.b16 %v2697
  %v2902 = vunpack.c.h.b16 %v2697
  %v2903 = vunpack.c.l.b16 %v2698
  %v2904 = vunpack.c.h.b16 %v2698
  %v2905 = vunpack.c.l.b16 %v2699
  %v2906 = vunpack.c.h.b16 %v2699
  %v2907 = vunpack.c.l.b16 %v2700
  %v2908 = vunpack.c.h.b16 %v2700
  %v2909 = vunpack.c.l.b16 %v2701
  %v2910 = vunpack.c.h.b16 %v2701
  %v2911 = vunpack.c.l.b16 %v2702
  %v2912 = vunpack.c.h.b16 %v2702
  %v2913 = vunpack.c.l.b16 %v2703
  %v2914 = vunpack.c.h.b16 %v2703
  %v2915 = vunpack.c.l.b16 %v2704
  %v2916 = vunpack.c.h.b16 %v2704
  %v2917 = vunpack.c.l.b16 %v2705
  %v2918 = vpack.c.b16 %v2813, %v2778
  %v2919 = vpack.c.b16 %v2814, %v2779
  %v2920 = vpack.c.b16 %v2815, %v2780
  %v2921 = vpack.c.b16 %v2816, %v2781
  %v2922 = vpack.c.b16 %v2817, %v2782
  %v2923 = vpack.c.b16 %v2818, %v2783
  %v2924 = vpack.c.b16 %v2819, %v2784
  %v2925 = vpack.c.b16 %v2820, %v2785
  %v2926 = vpack.c.b16 %v2821, %v2786
  %v2927 = vpack.c.b16 %v2822, %v2787
  %v2928 = vpack.c.b16 %v2823, %v2788
  %v2929 = vpack.c.b16 %v2824, %v2789
  %v2930 = vpack.c.b16 %v2825, %v2790
  %v2931 = vpack.c.b16 %v2826, %v2791
  %v2932 = vpack.c.b16 %v2827, %v2792
  %v2933 = vpack.c.b16 %v2828, %v2793
  %v2934 = vpack.c.b16 %v2829, %v2794
  %v2935 = vpack.c.b16 %v2830, %v2795
  %v2936 = vpack.c.b16 %v2831, %v2796
  %v2937 = vpack.c.b16 %v2832, %v2797
  %v2938 = vpack.c.b16 %v2833, %v2798
  %v2939 = vpack.c.b16 %v2834, %v2799
  %v2940 = vpack.c.b16 %v2835, %v2800
  %v2941 = vpack.c.b16 %v2836, %v2801
  %v2942 = vpack.c.b16 %v2837, %v2802
  %v2943 = vpack.c.b16 %v2838, %v2803
  %v2944 = vpack.c.b16 %v2839, %v2804
  %v2945 = vpack.c.b16 %v2840, %v2805
  %v2946 = vpack.c.b16 %v2841, %v2806
  %v2947 = vpack.c.b16 %v2842, %v2807
  %v2948 = vpack.c.b16 %v2843, %v2808
  %v2949 = vpack.c.b16 %v2844, %v2809
  %v2950 = vpack.c.b16 %v2845, %v2810
  %v2951 = vpack.c.b16 %v2846, %v2811
  %v2952 = vpack.c.b16 %v2847, %v2812
  %v2953 = vpack.c.b16 %v2883, %v2848
  %v2954 = vpack.c.b16 %v2884, %v2849
  %v2955 = vpack.c.b16 %v2885, %v2850
  %v2956 = vpack.c.b16 %v2886, %v2851
  %v2957 = vpack.c.b16 %v2887, %v2852
  %v2958 = vpack.c.b16 %v2888, %v2853
  %v2959 = vpack.c.b16 %v2889, %v2854
  %v2960 = vpack.c.b16 %v2890, %v2855
  %v2961 = vpack.c.b16 %v2891, %v2856
  %v2962 = vpack.c.b16 %v2892, %v2857
  %v2963 = vpack.c.b16 %v2893, %v2858
  %v2964 = vpack.c.b16 %v2894, %v2859
  %v2965 = vpack.c.b16 %v2895, %v2860
  %v2966 = vpack.c.b16 %v2896, %v2861
  %v2967 = vpack.c.b16 %v2897, %v2862
  %v2968 = vpack.c.b16 %v2898, %v2863
  %v2969 = vpack.c.b16 %v2899, %v2864
  %v2970 = vpack.c.b16 %v2900, %v2865
  %v2971 = vpack.c.b16 %v2901, %v2866
  %v2972 = vpack.c.b16 %v2902, %v2867
  %v2973 = vpack.c.b16 %v2903, %v2868
  %v2974 = vpack.c.b16 %v2904, %v2869
  %v2975 = vpack.c.b16 %v2905, %v2870
  %v2976 = vpack.c.b16 %v2906, %v2871
  %v2977 = vpack.c.b16 %v2907, %v2872
  %v2978 = vpack.c.b16 %v2908, %v2873
  %v2979 = vpack.c.b16 %v2909, %v2874
  %v2980 = vpack.c.b16 %v2910, %v2875
  %v2981 = vpack.c.b16 %v2911, %v2876
  %v2982 = vpack.c.b16 %v2912, %v2877
  %v2983 = vpack.c.b16 %v2913, %v2878
  %v2984 = vpack.c.b16 %v2914, %v2879
  %v2985 = vpack.c.b16 %v2915, %v2880
  %v2986 = vpack.c.b16 %v2916, %v2881
  %v2987 = vpack.c.b16 %v2917, %v2882
  %v3024 = vand.u32 %v2953, %v418
  %v3027 = vand.u32 %v2954, %v418
  %v3030 = vand.u32 %v2955, %v418
  %v3033 = vand.u32 %v2956, %v418
  %v3036 = vand.u32 %v2957, %v418
  %v3039 = vand.u32 %v2958, %v418
  %v3042 = vand.u32 %v2959, %v418
  %v3045 = vand.u32 %v2960, %v418
  %v3048 = vand.u32 %v2961, %v418
  %v3051 = vand.u32 %v2962, %v418
  %v3054 = vand.u32 %v2963, %v418
  %v3057 = vand.u32 %v2964, %v418
  %v3060 = vand.u32 %v2965, %v418
  %v3063 = vand.u32 %v2966, %v418
  %v3066 = vand.u32 %v2967, %v418
  %v3069 = vand.u32 %v2968, %v418
  %v3072 = vand.u32 %v2969, %v418
  %v3075 = vand.u32 %v2970, %v418
  %v3078 = vand.u32 %v2971, %v418
  %v3081 = vand.u32 %v2972, %v418
  %v3084 = vand.u32 %v2973, %v418
  %v3087 = vand.u32 %v2974, %v418
  %v3090 = vand.u32 %v2975, %v418
  %v3093 = vand.u32 %v2976, %v418
  %v3096 = vand.u32 %v2977, %v418
  %v3099 = vand.u32 %v2978, %v418
  %v3102 = vand.u32 %v2979, %v418
  %v3105 = vand.u32 %v2980, %v418
  %v3108 = vand.u32 %v2981, %v418
  %v3111 = vand.u32 %v2982, %v418
  %v3114 = vand.u32 %v2983, %v418
  %v3117 = vand.u32 %v2984, %v418
  %v3120 = vand.u32 %v2985, %v418
  %v3123 = vand.u32 %v2986, %v418
  %v3126 = vand.u32 %v2987, %v418
  %3128 = vmatprep.subr.bf16.mxu0 %v2919
  %3129 = vmatpush1.bf16.msra.mxu0 %v2918
  %3130 = vmatprep.subr.bf16.mxu0 %v3027
  %3131 = vmatpush1.bf16.msra.mxu0 %v3024
  %3132 = vmatprep.subr.bf16.mxu0 0
  %3133 = vmatpush1.bf16.msra.mxu0 0
  %3134 = vmatprep.subr.bf16.mxu0 0
  %3135 = vmatpush1.bf16.msra.mxu0 0
  %3136 = vmatprep.subr.bf16.mxu0 0
  %3137 = vmatpush1.bf16.msra.mxu0 0
  %3138 = vmatprep.subr.bf16.mxu0 0
  %3139 = vmatpush1.bf16.msra.mxu0 0
  %3140 = vmatprep.subr.bf16.mxu0 0
  %3141 = vmatpush1.bf16.msra.mxu0 0
  %3142 = vmatprep.subr.bf16.mxu0 0
  %3143 = vmatpush1.bf16.msra.mxu0 0
  %3144 = vmatprep.subr.bf16.mxu0 0
  %3145 = vmatpush1.bf16.msra.mxu0 0
  %3146 = vmatprep.subr.bf16.mxu0 0
  %3147 = vmatpush1.bf16.msra.mxu0 0
  %3148 = vmatprep.subr.bf16.mxu0 0
  %3149 = vmatpush1.bf16.msra.mxu0 0
  %3150 = vmatprep.subr.bf16.mxu0 0
  %3151 = vmatpush1.bf16.msra.mxu0 0
  %3152 = vmatprep.subr.bf16.mxu0 0
  %3153 = vmatpush1.bf16.msra.mxu0 0
  %3154 = vmatprep.subr.bf16.mxu0 0
  %3155 = vmatpush1.bf16.msra.mxu0 0
  %3156 = vmatprep.subr.bf16.mxu0 0
  %3157 = vmatpush1.bf16.msra.mxu0 0
  %3158 = vmatprep.subr.bf16.mxu0 0
  %3159 = vmatpush1.bf16.msra.mxu0 0
  %3160 = vmatprep.mubr.bf16.mxu0 0
  %3161 = vmatmul.mubr.bf16.gmra.mrb[0].mxu0 %v413
  %v3162 = vpop.f32.mrb[0].mxu0
  %v3163 = vadd.f32 0.0, %v3162
  %v3164 = vpop.f32.mrb[0].mxu0
  %v3165 = vadd.f32 0.0, %v3164
  %v3166 = vpop.f32.mrb[0].mxu0
  %v3167 = vadd.f32 0.0, %v3166
  %v3168 = vpop.f32.mrb[0].mxu0
  %v3169 = vadd.f32 0.0, %v3168
  %3170 = vdwg.mxu0
  %3171 = vmatprep.subr.bf16.mxu0 %v2921
  %3172 = vmatpush1.bf16.msra.mxu0 %v2920
  %3173 = vmatprep.subr.bf16.mxu0 %v3033
  %3174 = vmatpush1.bf16.msra.mxu0 %v3030
  %3175 = vmatprep.subr.bf16.mxu0 0
  %3176 = vmatpush1.bf16.msra.mxu0 0
  %3177 = vmatprep.subr.bf16.mxu0 0
  %3178 = vmatpush1.bf16.msra.mxu0 0
  %3179 = vmatprep.subr.bf16.mxu0 0
  %3180 = vmatpush1.bf16.msra.mxu0 0
  %3181 = vmatprep.subr.bf16.mxu0 0
  %3182 = vmatpush1.bf16.msra.mxu0 0
  %3183 = vmatprep.subr.bf16.mxu0 0
  %3184 = vmatpush1.bf16.msra.mxu0 0
  %3185 = vmatprep.subr.bf16.mxu0 0
  %3186 = vmatpush1.bf16.msra.mxu0 0
  %3187 = vmatprep.subr.bf16.mxu0 0
  %3188 = vmatpush1.bf16.msra.mxu0 0
  %3189 = vmatprep.subr.bf16.mxu0 0
  %3190 = vmatpush1.bf16.msra.mxu0 0
  %3191 = vmatprep.subr.bf16.mxu0 0
  %3192 = vmatpush1.bf16.msra.mxu0 0
  %3193 = vmatprep.subr.bf16.mxu0 0
  %3194 = vmatpush1.bf16.msra.mxu0 0
  %3195 = vmatprep.subr.bf16.mxu0 0
  %3196 = vmatpush1.bf16.msra.mxu0 0
  %3197 = vmatprep.subr.bf16.mxu0 0
  %3198 = vmatpush1.bf16.msra.mxu0 0
  %3199 = vmatprep.subr.bf16.mxu0 0
  %3200 = vmatpush1.bf16.msra.mxu0 0
  %3201 = vmatprep.subr.bf16.mxu0 0
  %3202 = vmatpush1.bf16.msra.mxu0 0
  %3203 = vmatprep.mubr.bf16.mxu0 0
  %3204 = vmatmul.mubr.bf16.gmra.mrb[0].mxu0 %v413
  %v3205 = vpop.f32.mrb[0].mxu0
  %v3206 = vadd.f32 0.0, %v3205
  %v3207 = vpop.f32.mrb[0].mxu0
  %v3208 = vadd.f32 0.0, %v3207
  %v3209 = vpop.f32.mrb[0].mxu0
  %v3210 = vadd.f32 0.0, %v3209
  %v3211 = vpop.f32.mrb[0].mxu0
  %v3212 = vadd.f32 0.0, %v3211
  %3213 = vdwg.mxu0
  %3214 = vmatprep.subr.bf16.mxu0 %v2923
  %3215 = vmatpush1.bf16.msra.mxu0 %v2922
  %3216 = vmatprep.subr.bf16.mxu0 %v3039
  %3217 = vmatpush1.bf16.msra.mxu0 %v3036
  %3218 = vmatprep.subr.bf16.mxu0 0
  %3219 = vmatpush1.bf16.msra.mxu0 0
  %3220 = vmatprep.subr.bf16.mxu0 0
  %3221 = vmatpush1.bf16.msra.mxu0 0
  %3222 = vmatprep.subr.bf16.mxu0 0
  %3223 = vmatpush1.bf16.msra.mxu0 0
  %3224 = vmatprep.subr.bf16.mxu0 0
  %3225 = vmatpush1.bf16.msra.mxu0 0
  %3226 = vmatprep.subr.bf16.mxu0 0
  %3227 = vmatpush1.bf16.msra.mxu0 0
  %3228 = vmatprep.subr.bf16.mxu0 0
  %3229 = vmatpush1.bf16.msra.mxu0 0
  %3230 = vmatprep.subr.bf16.mxu0 0
  %3231 = vmatpush1.bf16.msra.mxu0 0
  %3232 = vmatprep.subr.bf16.mxu0 0
  %3233 = vmatpush1.bf16.msra.mxu0 0
  %3234 = vmatprep.subr.bf16.mxu0 0
  %3235 = vmatpush1.bf16.msra.mxu0 0
  %3236 = vmatprep.subr.bf16.mxu0 0
  %3237 = vmatpush1.bf16.msra.mxu0 0
  %3238 = vmatprep.subr.bf16.mxu0 0
  %3239 = vmatpush1.bf16.msra.mxu0 0
  %3240 = vmatprep.subr.bf16.mxu0 0
  %3241 = vmatpush1.bf16.msra.mxu0 0
  %3242 = vmatprep.subr.bf16.mxu0 0
  %3243 = vmatpush1.bf16.msra.mxu0 0
  %3244 = vmatprep.subr.bf16.mxu0 0
  %3245 = vmatpush1.bf16.msra.mxu0 0
  %3246 = vmatprep.mubr.bf16.mxu0 0
  %3247 = vmatmul.mubr.bf16.gmra.mrb[0].mxu0 %v413
  %v3248 = vpop.f32.mrb[0].mxu0
  %v3249 = vadd.f32 0.0, %v3248
  %v3250 = vpop.f32.mrb[0].mxu0
  %v3251 = vadd.f32 0.0, %v3250
  %v3252 = vpop.f32.mrb[0].mxu0
  %v3253 = vadd.f32 0.0, %v3252
  %v3254 = vpop.f32.mrb[0].mxu0
  %v3255 = vadd.f32 0.0, %v3254
  %3256 = vdwg.mxu0
  %3257 = vmatprep.subr.bf16.mxu0 %v2925
  %3258 = vmatpush1.bf16.msra.mxu0 %v2924
  %3259 = vmatprep.subr.bf16.mxu0 %v3045
  %3260 = vmatpush1.bf16.msra.mxu0 %v3042
  %3261 = vmatprep.subr.bf16.mxu0 0
  %3262 = vmatpush1.bf16.msra.mxu0 0
  %3263 = vmatprep.subr.bf16.mxu0 0
  %3264 = vmatpush1.bf16.msra.mxu0 0
  %3265 = vmatprep.subr.bf16.mxu0 0
  %3266 = vmatpush1.bf16.msra.mxu0 0
  %3267 = vmatprep.subr.bf16.mxu0 0
  %3268 = vmatpush1.bf16.msra.mxu0 0
  %3269 = vmatprep.subr.bf16.mxu0 0
  %3270 = vmatpush1.bf16.msra.mxu0 0
  %3271 = vmatprep.subr.bf16.mxu0 0
  %3272 = vmatpush1.bf16.msra.mxu0 0
  %3273 = vmatprep.subr.bf16.mxu0 0
  %3274 = vmatpush1.bf16.msra.mxu0 0
  %3275 = vmatprep.subr.bf16.mxu0 0
  %3276 = vmatpush1.bf16.msra.mxu0 0
  %3277 = vmatprep.subr.bf16.mxu0 0
  %3278 = vmatpush1.bf16.msra.mxu0 0
  %3279 = vmatprep.subr.bf16.mxu0 0
  %3280 = vmatpush1.bf16.msra.mxu0 0
  %3281 = vmatprep.subr.bf16.mxu0 0
  %3282 = vmatpush1.bf16.msra.mxu0 0
  %3283 = vmatprep.subr.bf16.mxu0 0
  %3284 = vmatpush1.bf16.msra.mxu0 0
  %3285 = vmatprep.subr.bf16.mxu0 0
  %3286 = vmatpush1.bf16.msra.mxu0 0
  %3287 = vmatprep.subr.bf16.mxu0 0
  %3288 = vmatpush1.bf16.msra.mxu0 0
  %3289 = vmatprep.mubr.bf16.mxu0 0
  %3290 = vmatmul.mubr.bf16.gmra.mrb[0].mxu0 %v413
  %v3291 = vpop.f32.mrb[0].mxu0
  %v3292 = vadd.f32 0.0, %v3291
  %v3293 = vpop.f32.mrb[0].mxu0
  %v3294 = vadd.f32 0.0, %v3293
  %v3295 = vpop.f32.mrb[0].mxu0
  %v3296 = vadd.f32 0.0, %v3295
  %v3297 = vpop.f32.mrb[0].mxu0
  %v3298 = vadd.f32 0.0, %v3297
  %3299 = vdwg.mxu0
  %3300 = vmatprep.subr.bf16.mxu0 %v2927
  %3301 = vmatpush1.bf16.msra.mxu0 %v2926
  %3302 = vmatprep.subr.bf16.mxu0 %v3051
  %3303 = vmatpush1.bf16.msra.mxu0 %v3048
  %3304 = vmatprep.subr.bf16.mxu0 0
  %3305 = vmatpush1.bf16.msra.mxu0 0
  %3306 = vmatprep.subr.bf16.mxu0 0
  %3307 = vmatpush1.bf16.msra.mxu0 0
  %3308 = vmatprep.subr.bf16.mxu0 0
  %3309 = vmatpush1.bf16.msra.mxu0 0
  %3310 = vmatprep.subr.bf16.mxu0 0
  %3311 = vmatpush1.bf16.msra.mxu0 0
  %3312 = vmatprep.subr.bf16.mxu0 0
  %3313 = vmatpush1.bf16.msra.mxu0 0
  %3314 = vmatprep.subr.bf16.mxu0 0
  %3315 = vmatpush1.bf16.msra.mxu0 0
  %3316 = vmatprep.subr.bf16.mxu0 0
  %3317 = vmatpush1.bf16.msra.mxu0 0
  %3318 = vmatprep.subr.bf16.mxu0 0
  %3319 = vmatpush1.bf16.msra.mxu0 0
  %3320 = vmatprep.subr.bf16.mxu0 0
  %3321 = vmatpush1.bf16.msra.mxu0 0
  %3322 = vmatprep.subr.bf16.mxu0 0
  %3323 = vmatpush1.bf16.msra.mxu0 0
  %3324 = vmatprep.subr.bf16.mxu0 0
  %3325 = vmatpush1.bf16.msra.mxu0 0
  %3326 = vmatprep.subr.bf16.mxu0 0
  %3327 = vmatpush1.bf16.msra.mxu0 0
  %3328 = vmatprep.subr.bf16.mxu0 0
  %3329 = vmatpush1.bf16.msra.mxu0 0
  %3330 = vmatprep.subr.bf16.mxu0 0
  %3331 = vmatpush1.bf16.msra.mxu0 0
  %3332 = vmatprep.mubr.bf16.mxu0 0
  %3333 = vmatmul.mubr.bf16.gmra.mrb[0].mxu0 %v413
  %v3334 = vpop.f32.mrb[0].mxu0
  %v3335 = vadd.f32 0.0, %v3334
  %v3336 = vpop.f32.mrb[0].mxu0
  %v3337 = vadd.f32 0.0, %v3336
  %v3338 = vpop.f32.mrb[0].mxu0
  %v3339 = vadd.f32 0.0, %v3338
  %v3340 = vpop.f32.mrb[0].mxu0
  %v3341 = vadd.f32 0.0, %v3340
  %3342 = vdwg.mxu0
  %3343 = vmatprep.subr.bf16.mxu0 %v2929
  %3344 = vmatpush1.bf16.msra.mxu0 %v2928
  %3345 = vmatprep.subr.bf16.mxu0 %v3057
  %3346 = vmatpush1.bf16.msra.mxu0 %v3054
  %3347 = vmatprep.subr.bf16.mxu0 0
  %3348 = vmatpush1.bf16.msra.mxu0 0
  %3349 = vmatprep.subr.bf16.mxu0 0
  %3350 = vmatpush1.bf16.msra.mxu0 0
  %3351 = vmatprep.subr.bf16.mxu0 0
  %3352 = vmatpush1.bf16.msra.mxu0 0
  %3353 = vmatprep.subr.bf16.mxu0 0
  %3354 = vmatpush1.bf16.msra.mxu0 0
  %3355 = vmatprep.subr.bf16.mxu0 0
  %3356 = vmatpush1.bf16.msra.mxu0 0
  %3357 = vmatprep.subr.bf16.mxu0 0
  %3358 = vmatpush1.bf16.msra.mxu0 0
  %3359 = vmatprep.subr.bf16.mxu0 0
  %3360 = vmatpush1.bf16.msra.mxu0 0
  %3361 = vmatprep.subr.bf16.mxu0 0
  %3362 = vmatpush1.bf16.msra.mxu0 0
  %3363 = vmatprep.subr.bf16.mxu0 0
  %3364 = vmatpush1.bf16.msra.mxu0 0
  %3365 = vmatprep.subr.bf16.mxu0 0
  %3366 = vmatpush1.bf16.msra.mxu0 0
  %3367 = vmatprep.subr.bf16.mxu0 0
  %3368 = vmatpush1.bf16.msra.mxu0 0
  %3369 = vmatprep.subr.bf16.mxu0 0
  %3370 = vmatpush1.bf16.msra.mxu0 0
  %3371 = vmatprep.subr.bf16.mxu0 0
  %3372 = vmatpush1.bf16.msra.mxu0 0
  %3373 = vmatprep.subr.bf16.mxu0 0
  %3374 = vmatpush1.bf16.msra.mxu0 0
  %3375 = vmatprep.mubr.bf16.mxu0 0
  %3376 = vmatmul.mubr.bf16.gmra.mrb[0].mxu0 %v413
  %v3377 = vpop.f32.mrb[0].mxu0
  %v3378 = vadd.f32 0.0, %v3377
  %v3379 = vpop.f32.mrb[0].mxu0
  %v3380 = vadd.f32 0.0, %v3379
  %v3381 = vpop.f32.mrb[0].mxu0
  %v3382 = vadd.f32 0.0, %v3381
  %v3383 = vpop.f32.mrb[0].mxu0
  %v3384 = vadd.f32 0.0, %v3383
  %3385 = vdwg.mxu0
  %3386 = vmatprep.subr.bf16.mxu0 %v2931
  %3387 = vmatpush1.bf16.msra.mxu0 %v2930
  %3388 = vmatprep.subr.bf16.mxu0 %v3063
  %3389 = vmatpush1.bf16.msra.mxu0 %v3060
  %3390 = vmatprep.subr.bf16.mxu0 0
  %3391 = vmatpush1.bf16.msra.mxu0 0
  %3392 = vmatprep.subr.bf16.mxu0 0
  %3393 = vmatpush1.bf16.msra.mxu0 0
  %3394 = vmatprep.subr.bf16.mxu0 0
  %3395 = vmatpush1.bf16.msra.mxu0 0
  %3396 = vmatprep.subr.bf16.mxu0 0
  %3397 = vmatpush1.bf16.msra.mxu0 0
  %3398 = vmatprep.subr.bf16.mxu0 0
  %3399 = vmatpush1.bf16.msra.mxu0 0
  %3400 = vmatprep.subr.bf16.mxu0 0
  %3401 = vmatpush1.bf16.msra.mxu0 0
  %3402 = vmatprep.subr.bf16.mxu0 0
  %3403 = vmatpush1.bf16.msra.mxu0 0
  %3404 = vmatprep.subr.bf16.mxu0 0
  %3405 = vmatpush1.bf16.msra.mxu0 0
  %3406 = vmatprep.subr.bf16.mxu0 0
  %3407 = vmatpush1.bf16.msra.mxu0 0
  %3408 = vmatprep.subr.bf16.mxu0 0
  %3409 = vmatpush1.bf16.msra.mxu0 0
  %3410 = vmatprep.subr.bf16.mxu0 0
  %3411 = vmatpush1.bf16.msra.mxu0 0
  %3412 = vmatprep.subr.bf16.mxu0 0
  %3413 = vmatpush1.bf16.msra.mxu0 0
  %3414 = vmatprep.subr.bf16.mxu0 0
  %3415 = vmatpush1.bf16.msra.mxu0 0
  %3416 = vmatprep.subr.bf16.mxu0 0
  %3417 = vmatpush1.bf16.msra.mxu0 0
  %3418 = vmatprep.mubr.bf16.mxu0 0
  %3419 = vmatmul.mubr.bf16.gmra.mrb[0].mxu0 %v413
  %v3420 = vpop.f32.mrb[0].mxu0
  %v3421 = vadd.f32 0.0, %v3420
  %v3422 = vpop.f32.mrb[0].mxu0
  %v3423 = vadd.f32 0.0, %v3422
  %v3424 = vpop.f32.mrb[0].mxu0
  %v3425 = vadd.f32 0.0, %v3424
  %v3426 = vpop.f32.mrb[0].mxu0
  %v3427 = vadd.f32 0.0, %v3426
  %3428 = vdwg.mxu0
  %3429 = vmatprep.subr.bf16.mxu0 %v2933
  %3430 = vmatpush1.bf16.msra.mxu0 %v2932
  %3431 = vmatprep.subr.bf16.mxu0 %v3069
  %3432 = vmatpush1.bf16.msra.mxu0 %v3066
  %3433 = vmatprep.subr.bf16.mxu0 0
  %3434 = vmatpush1.bf16.msra.mxu0 0
  %3435 = vmatprep.subr.bf16.mxu0 0
  %3436 = vmatpush1.bf16.msra.mxu0 0
  %3437 = vmatprep.subr.bf16.mxu0 0
  %3438 = vmatpush1.bf16.msra.mxu0 0
  %3439 = vmatprep.subr.bf16.mxu0 0
  %3440 = vmatpush1.bf16.msra.mxu0 0
  %3441 = vmatprep.subr.bf16.mxu0 0
  %3442 = vmatpush1.bf16.msra.mxu0 0
  %3443 = vmatprep.subr.bf16.mxu0 0
  %3444 = vmatpush1.bf16.msra.mxu0 0
  %3445 = vmatprep.subr.bf16.mxu0 0
  %3446 = vmatpush1.bf16.msra.mxu0 0
  %3447 = vmatprep.subr.bf16.mxu0 0
  %3448 = vmatpush1.bf16.msra.mxu0 0
  %3449 = vmatprep.subr.bf16.mxu0 0
  %3450 = vmatpush1.bf16.msra.mxu0 0
  %3451 = vmatprep.subr.bf16.mxu0 0
  %3452 = vmatpush1.bf16.msra.mxu0 0
  %3453 = vmatprep.subr.bf16.mxu0 0
  %3454 = vmatpush1.bf16.msra.mxu0 0
  %3455 = vmatprep.subr.bf16.mxu0 0
  %3456 = vmatpush1.bf16.msra.mxu0 0
  %3457 = vmatprep.subr.bf16.mxu0 0
  %3458 = vmatpush1.bf16.msra.mxu0 0
  %3459 = vmatprep.subr.bf16.mxu0 0
  %3460 = vmatpush1.bf16.msra.mxu0 0
  %3461 = vmatprep.mubr.bf16.mxu0 0
  %3462 = vmatmul.mubr.bf16.gmra.mrb[0].mxu0 %v413
  %v3463 = vpop.f32.mrb[0].mxu0
  %v3464 = vadd.f32 0.0, %v3463
  %v3465 = vpop.f32.mrb[0].mxu0
  %v3466 = vadd.f32 0.0, %v3465
  %v3467 = vpop.f32.mrb[0].mxu0
  %v3468 = vadd.f32 0.0, %v3467
  %v3469 = vpop.f32.mrb[0].mxu0
  %v3470 = vadd.f32 0.0, %v3469
  %3471 = vdwg.mxu0
  %3472 = vmatprep.subr.bf16.mxu0 %v2935
  %3473 = vmatpush1.bf16.msra.mxu0 %v2934
  %3474 = vmatprep.subr.bf16.mxu0 %v3075
  %3475 = vmatpush1.bf16.msra.mxu0 %v3072
  %3476 = vmatprep.subr.bf16.mxu0 0
  %3477 = vmatpush1.bf16.msra.mxu0 0
  %3478 = vmatprep.subr.bf16.mxu0 0
  %3479 = vmatpush1.bf16.msra.mxu0 0
  %3480 = vmatprep.subr.bf16.mxu0 0
  %3481 = vmatpush1.bf16.msra.mxu0 0
  %3482 = vmatprep.subr.bf16.mxu0 0
  %3483 = vmatpush1.bf16.msra.mxu0 0
  %3484 = vmatprep.subr.bf16.mxu0 0
  %3485 = vmatpush1.bf16.msra.mxu0 0
  %3486 = vmatprep.subr.bf16.mxu0 0
  %3487 = vmatpush1.bf16.msra.mxu0 0
  %3488 = vmatprep.subr.bf16.mxu0 0
  %3489 = vmatpush1.bf16.msra.mxu0 0
  %3490 = vmatprep.subr.bf16.mxu0 0
  %3491 = vmatpush1.bf16.msra.mxu0 0
  %3492 = vmatprep.subr.bf16.mxu0 0
  %3493 = vmatpush1.bf16.msra.mxu0 0
  %3494 = vmatprep.subr.bf16.mxu0 0
  %3495 = vmatpush1.bf16.msra.mxu0 0
  %3496 = vmatprep.subr.bf16.mxu0 0
  %3497 = vmatpush1.bf16.msra.mxu0 0
  %3498 = vmatprep.subr.bf16.mxu0 0
  %3499 = vmatpush1.bf16.msra.mxu0 0
  %3500 = vmatprep.subr.bf16.mxu0 0
  %3501 = vmatpush1.bf16.msra.mxu0 0
  %3502 = vmatprep.subr.bf16.mxu0 0
  %3503 = vmatpush1.bf16.msra.mxu0 0
  %3504 = vmatprep.mubr.bf16.mxu0 0
  %3505 = vmatmul.mubr.bf16.gmra.mrb[0].mxu0 %v413
  %v3506 = vpop.f32.mrb[0].mxu0
  %v3507 = vadd.f32 0.0, %v3506
  %v3508 = vpop.f32.mrb[0].mxu0
  %v3509 = vadd.f32 0.0, %v3508
  %v3510 = vpop.f32.mrb[0].mxu0
  %v3511 = vadd.f32 0.0, %v3510
  %v3512 = vpop.f32.mrb[0].mxu0
  %v3513 = vadd.f32 0.0, %v3512
  %3514 = vdwg.mxu0
  %3515 = vmatprep.subr.bf16.mxu0 %v2937
  %3516 = vmatpush1.bf16.msra.mxu0 %v2936
  %3517 = vmatprep.subr.bf16.mxu0 %v3081
  %3518 = vmatpush1.bf16.msra.mxu0 %v3078
  %3519 = vmatprep.subr.bf16.mxu0 0
  %3520 = vmatpush1.bf16.msra.mxu0 0
  %3521 = vmatprep.subr.bf16.mxu0 0
  %3522 = vmatpush1.bf16.msra.mxu0 0
  %3523 = vmatprep.subr.bf16.mxu0 0
  %3524 = vmatpush1.bf16.msra.mxu0 0
  %3525 = vmatprep.subr.bf16.mxu0 0
  %3526 = vmatpush1.bf16.msra.mxu0 0
  %3527 = vmatprep.subr.bf16.mxu0 0
  %3528 = vmatpush1.bf16.msra.mxu0 0
  %3529 = vmatprep.subr.bf16.mxu0 0
  %3530 = vmatpush1.bf16.msra.mxu0 0
  %3531 = vmatprep.subr.bf16.mxu0 0
  %3532 = vmatpush1.bf16.msra.mxu0 0
  %3533 = vmatprep.subr.bf16.mxu0 0
  %3534 = vmatpush1.bf16.msra.mxu0 0
  %3535 = vmatprep.subr.bf16.mxu0 0
  %3536 = vmatpush1.bf16.msra.mxu0 0
  %3537 = vmatprep.subr.bf16.mxu0 0
  %3538 = vmatpush1.bf16.msra.mxu0 0
  %3539 = vmatprep.subr.bf16.mxu0 0
  %3540 = vmatpush1.bf16.msra.mxu0 0
  %3541 = vmatprep.subr.bf16.mxu0 0
  %3542 = vmatpush1.bf16.msra.mxu0 0
  %3543 = vmatprep.subr.bf16.mxu0 0
  %3544 = vmatpush1.bf16.msra.mxu0 0
  %3545 = vmatprep.subr.bf16.mxu0 0
  %3546 = vmatpush1.bf16.msra.mxu0 0
  %3547 = vmatprep.mubr.bf16.mxu0 0
  %3548 = vmatmul.mubr.bf16.gmra.mrb[0].mxu0 %v413
  %v3549 = vpop.f32.mrb[0].mxu0
  %v3550 = vadd.f32 0.0, %v3549
  %v3551 = vpop.f32.mrb[0].mxu0
  %v3552 = vadd.f32 0.0, %v3551
  %v3553 = vpop.f32.mrb[0].mxu0
  %v3554 = vadd.f32 0.0, %v3553
  %v3555 = vpop.f32.mrb[0].mxu0
  %v3556 = vadd.f32 0.0, %v3555
  %3557 = vdwg.mxu0
  %3558 = vmatprep.subr.bf16.mxu0 %v2939
  %3559 = vmatpush1.bf16.msra.mxu0 %v2938
  %3560 = vmatprep.subr.bf16.mxu0 %v3087
  %3561 = vmatpush1.bf16.msra.mxu0 %v3084
  %3562 = vmatprep.subr.bf16.mxu0 0
  %3563 = vmatpush1.bf16.msra.mxu0 0
  %3564 = vmatprep.subr.bf16.mxu0 0
  %3565 = vmatpush1.bf16.msra.mxu0 0
  %3566 = vmatprep.subr.bf16.mxu0 0
  %3567 = vmatpush1.bf16.msra.mxu0 0
  %3568 = vmatprep.subr.bf16.mxu0 0
  %3569 = vmatpush1.bf16.msra.mxu0 0
  %3570 = vmatprep.subr.bf16.mxu0 0
  %3571 = vmatpush1.bf16.msra.mxu0 0
  %3572 = vmatprep.subr.bf16.mxu0 0
  %3573 = vmatpush1.bf16.msra.mxu0 0
  %3574 = vmatprep.subr.bf16.mxu0 0
  %3575 = vmatpush1.bf16.msra.mxu0 0
  %3576 = vmatprep.subr.bf16.mxu0 0
  %3577 = vmatpush1.bf16.msra.mxu0 0
  %3578 = vmatprep.subr.bf16.mxu0 0
  %3579 = vmatpush1.bf16.msra.mxu0 0
  %3580 = vmatprep.subr.bf16.mxu0 0
  %3581 = vmatpush1.bf16.msra.mxu0 0
  %3582 = vmatprep.subr.bf16.mxu0 0
  %3583 = vmatpush1.bf16.msra.mxu0 0
  %3584 = vmatprep.subr.bf16.mxu0 0
  %3585 = vmatpush1.bf16.msra.mxu0 0
  %3586 = vmatprep.subr.bf16.mxu0 0
  %3587 = vmatpush1.bf16.msra.mxu0 0
  %3588 = vmatprep.subr.bf16.mxu0 0
  %3589 = vmatpush1.bf16.msra.mxu0 0
  %3590 = vmatprep.mubr.bf16.mxu0 0
  %3591 = vmatmul.mubr.bf16.gmra.mrb[0].mxu0 %v413
  %v3592 = vpop.f32.mrb[0].mxu0
  %v3593 = vadd.f32 0.0, %v3592
  %v3594 = vpop.f32.mrb[0].mxu0
  %v3595 = vadd.f32 0.0, %v3594
  %v3596 = vpop.f32.mrb[0].mxu0
  %v3597 = vadd.f32 0.0, %v3596
  %v3598 = vpop.f32.mrb[0].mxu0
  %v3599 = vadd.f32 0.0, %v3598
  %3600 = vdwg.mxu0
  %3601 = vmatprep.subr.bf16.mxu0 %v2941
  %3602 = vmatpush1.bf16.msra.mxu0 %v2940
  %3603 = vmatprep.subr.bf16.mxu0 %v3093
  %3604 = vmatpush1.bf16.msra.mxu0 %v3090
  %3605 = vmatprep.subr.bf16.mxu0 0
  %3606 = vmatpush1.bf16.msra.mxu0 0
  %3607 = vmatprep.subr.bf16.mxu0 0
  %3608 = vmatpush1.bf16.msra.mxu0 0
  %3609 = vmatprep.subr.bf16.mxu0 0
  %3610 = vmatpush1.bf16.msra.mxu0 0
  %3611 = vmatprep.subr.bf16.mxu0 0
  %3612 = vmatpush1.bf16.msra.mxu0 0
  %3613 = vmatprep.subr.bf16.mxu0 0
  %3614 = vmatpush1.bf16.msra.mxu0 0
  %3615 = vmatprep.subr.bf16.mxu0 0
  %3616 = vmatpush1.bf16.msra.mxu0 0
  %3617 = vmatprep.subr.bf16.mxu0 0
  %3618 = vmatpush1.bf16.msra.mxu0 0
  %3619 = vmatprep.subr.bf16.mxu0 0
  %3620 = vmatpush1.bf16.msra.mxu0 0
  %3621 = vmatprep.subr.bf16.mxu0 0
  %3622 = vmatpush1.bf16.msra.mxu0 0
  %3623 = vmatprep.subr.bf16.mxu0 0
  %3624 = vmatpush1.bf16.msra.mxu0 0
  %3625 = vmatprep.subr.bf16.mxu0 0
  %3626 = vmatpush1.bf16.msra.mxu0 0
  %3627 = vmatprep.subr.bf16.mxu0 0
  %3628 = vmatpush1.bf16.msra.mxu0 0
  %3629 = vmatprep.subr.bf16.mxu0 0
  %3630 = vmatpush1.bf16.msra.mxu0 0
  %3631 = vmatprep.subr.bf16.mxu0 0
  %3632 = vmatpush1.bf16.msra.mxu0 0
  %3633 = vmatprep.mubr.bf16.mxu0 0
  %3634 = vmatmul.mubr.bf16.gmra.mrb[0].mxu0 %v413
  %v3635 = vpop.f32.mrb[0].mxu0
  %v3636 = vadd.f32 0.0, %v3635
  %v3637 = vpop.f32.mrb[0].mxu0
  %v3638 = vadd.f32 0.0, %v3637
  %v3639 = vpop.f32.mrb[0].mxu0
  %v3640 = vadd.f32 0.0, %v3639
  %v3641 = vpop.f32.mrb[0].mxu0
  %v3642 = vadd.f32 0.0, %v3641
  %3643 = vdwg.mxu0
  %3644 = vmatprep.subr.bf16.mxu0 %v2943
  %3645 = vmatpush1.bf16.msra.mxu0 %v2942
  %3646 = vmatprep.subr.bf16.mxu0 %v3099
  %3647 = vmatpush1.bf16.msra.mxu0 %v3096
  %3648 = vmatprep.subr.bf16.mxu0 0
  %3649 = vmatpush1.bf16.msra.mxu0 0
  %3650 = vmatprep.subr.bf16.mxu0 0
  %3651 = vmatpush1.bf16.msra.mxu0 0
  %3652 = vmatprep.subr.bf16.mxu0 0
  %3653 = vmatpush1.bf16.msra.mxu0 0
  %3654 = vmatprep.subr.bf16.mxu0 0
  %3655 = vmatpush1.bf16.msra.mxu0 0
  %3656 = vmatprep.subr.bf16.mxu0 0
  %3657 = vmatpush1.bf16.msra.mxu0 0
  %3658 = vmatprep.subr.bf16.mxu0 0
  %3659 = vmatpush1.bf16.msra.mxu0 0
  %3660 = vmatprep.subr.bf16.mxu0 0
  %3661 = vmatpush1.bf16.msra.mxu0 0
  %3662 = vmatprep.subr.bf16.mxu0 0
  %3663 = vmatpush1.bf16.msra.mxu0 0
  %3664 = vmatprep.subr.bf16.mxu0 0
  %3665 = vmatpush1.bf16.msra.mxu0 0
  %3666 = vmatprep.subr.bf16.mxu0 0
  %3667 = vmatpush1.bf16.msra.mxu0 0
  %3668 = vmatprep.subr.bf16.mxu0 0
  %3669 = vmatpush1.bf16.msra.mxu0 0
  %3670 = vmatprep.subr.bf16.mxu0 0
  %3671 = vmatpush1.bf16.msra.mxu0 0
  %3672 = vmatprep.subr.bf16.mxu0 0
  %3673 = vmatpush1.bf16.msra.mxu0 0
  %3674 = vmatprep.subr.bf16.mxu0 0
  %3675 = vmatpush1.bf16.msra.mxu0 0
  %3676 = vmatprep.mubr.bf16.mxu0 0
  %3677 = vmatmul.mubr.bf16.gmra.mrb[0].mxu0 %v413
  %v3678 = vpop.f32.mrb[0].mxu0
  %v3679 = vadd.f32 0.0, %v3678
  %v3680 = vpop.f32.mrb[0].mxu0
  %v3681 = vadd.f32 0.0, %v3680
  %v3682 = vpop.f32.mrb[0].mxu0
  %v3683 = vadd.f32 0.0, %v3682
  %v3684 = vpop.f32.mrb[0].mxu0
  %v3685 = vadd.f32 0.0, %v3684
  %3686 = vdwg.mxu0
  %3687 = vmatprep.subr.bf16.mxu0 %v2945
  %3688 = vmatpush1.bf16.msra.mxu0 %v2944
  %3689 = vmatprep.subr.bf16.mxu0 %v3105
  %3690 = vmatpush1.bf16.msra.mxu0 %v3102
  %3691 = vmatprep.subr.bf16.mxu0 0
  %3692 = vmatpush1.bf16.msra.mxu0 0
  %3693 = vmatprep.subr.bf16.mxu0 0
  %3694 = vmatpush1.bf16.msra.mxu0 0
  %3695 = vmatprep.subr.bf16.mxu0 0
  %3696 = vmatpush1.bf16.msra.mxu0 0
  %3697 = vmatprep.subr.bf16.mxu0 0
  %3698 = vmatpush1.bf16.msra.mxu0 0
  %3699 = vmatprep.subr.bf16.mxu0 0
  %3700 = vmatpush1.bf16.msra.mxu0 0
  %3701 = vmatprep.subr.bf16.mxu0 0
  %3702 = vmatpush1.bf16.msra.mxu0 0
  %3703 = vmatprep.subr.bf16.mxu0 0
  %3704 = vmatpush1.bf16.msra.mxu0 0
  %3705 = vmatprep.subr.bf16.mxu0 0
  %3706 = vmatpush1.bf16.msra.mxu0 0
  %3707 = vmatprep.subr.bf16.mxu0 0
  %3708 = vmatpush1.bf16.msra.mxu0 0
  %3709 = vmatprep.subr.bf16.mxu0 0
  %3710 = vmatpush1.bf16.msra.mxu0 0
  %3711 = vmatprep.subr.bf16.mxu0 0
  %3712 = vmatpush1.bf16.msra.mxu0 0
  %3713 = vmatprep.subr.bf16.mxu0 0
  %3714 = vmatpush1.bf16.msra.mxu0 0
  %3715 = vmatprep.subr.bf16.mxu0 0
  %3716 = vmatpush1.bf16.msra.mxu0 0
  %3717 = vmatprep.subr.bf16.mxu0 0
  %3718 = vmatpush1.bf16.msra.mxu0 0
  %3719 = vmatprep.mubr.bf16.mxu0 0
  %3720 = vmatmul.mubr.bf16.gmra.mrb[0].mxu0 %v413
  %v3721 = vpop.f32.mrb[0].mxu0
  %v3722 = vadd.f32 0.0, %v3721
  %v3723 = vpop.f32.mrb[0].mxu0
  %v3724 = vadd.f32 0.0, %v3723
  %v3725 = vpop.f32.mrb[0].mxu0
  %v3726 = vadd.f32 0.0, %v3725
  %v3727 = vpop.f32.mrb[0].mxu0
  %v3728 = vadd.f32 0.0, %v3727
  %3729 = vdwg.mxu0
  %3730 = vmatprep.subr.bf16.mxu0 %v2947
  %3731 = vmatpush1.bf16.msra.mxu0 %v2946
  %3732 = vmatprep.subr.bf16.mxu0 %v3111
  %3733 = vmatpush1.bf16.msra.mxu0 %v3108
  %3734 = vmatprep.subr.bf16.mxu0 0
  %3735 = vmatpush1.bf16.msra.mxu0 0
  %3736 = vmatprep.subr.bf16.mxu0 0
  %3737 = vmatpush1.bf16.msra.mxu0 0
  %3738 = vmatprep.subr.bf16.mxu0 0
  %3739 = vmatpush1.bf16.msra.mxu0 0
  %3740 = vmatprep.subr.bf16.mxu0 0
  %3741 = vmatpush1.bf16.msra.mxu0 0
  %3742 = vmatprep.subr.bf16.mxu0 0
  %3743 = vmatpush1.bf16.msra.mxu0 0
  %3744 = vmatprep.subr.bf16.mxu0 0
  %3745 = vmatpush1.bf16.msra.mxu0 0
  %3746 = vmatprep.subr.bf16.mxu0 0
  %3747 = vmatpush1.bf16.msra.mxu0 0
  %3748 = vmatprep.subr.bf16.mxu0 0
  %3749 = vmatpush1.bf16.msra.mxu0 0
  %3750 = vmatprep.subr.bf16.mxu0 0
  %3751 = vmatpush1.bf16.msra.mxu0 0
  %3752 = vmatprep.subr.bf16.mxu0 0
  %3753 = vmatpush1.bf16.msra.mxu0 0
  %3754 = vmatprep.subr.bf16.mxu0 0
  %3755 = vmatpush1.bf16.msra.mxu0 0
  %3756 = vmatprep.subr.bf16.mxu0 0
  %3757 = vmatpush1.bf16.msra.mxu0 0
  %3758 = vmatprep.subr.bf16.mxu0 0
  %3759 = vmatpush1.bf16.msra.mxu0 0
  %3760 = vmatprep.subr.bf16.mxu0 0
  %3761 = vmatpush1.bf16.msra.mxu0 0
  %3762 = vmatprep.mubr.bf16.mxu0 0
  %3763 = vmatmul.mubr.bf16.gmra.mrb[0].mxu0 %v413
  %v3764 = vpop.f32.mrb[0].mxu0
  %v3765 = vadd.f32 0.0, %v3764
  %v3766 = vpop.f32.mrb[0].mxu0
  %v3767 = vadd.f32 0.0, %v3766
  %v3768 = vpop.f32.mrb[0].mxu0
  %v3769 = vadd.f32 0.0, %v3768
  %v3770 = vpop.f32.mrb[0].mxu0
  %v3771 = vadd.f32 0.0, %v3770
  %3772 = vdwg.mxu0
  %3773 = vmatprep.subr.bf16.mxu0 %v2949
  %3774 = vmatpush1.bf16.msra.mxu0 %v2948
  %3775 = vmatprep.subr.bf16.mxu0 %v3117
  %3776 = vmatpush1.bf16.msra.mxu0 %v3114
  %3777 = vmatprep.subr.bf16.mxu0 0
  %3778 = vmatpush1.bf16.msra.mxu0 0
  %3779 = vmatprep.subr.bf16.mxu0 0
  %3780 = vmatpush1.bf16.msra.mxu0 0
  %3781 = vmatprep.subr.bf16.mxu0 0
  %3782 = vmatpush1.bf16.msra.mxu0 0
  %3783 = vmatprep.subr.bf16.mxu0 0
  %3784 = vmatpush1.bf16.msra.mxu0 0
  %3785 = vmatprep.subr.bf16.mxu0 0
  %3786 = vmatpush1.bf16.msra.mxu0 0
  %3787 = vmatprep.subr.bf16.mxu0 0
  %3788 = vmatpush1.bf16.msra.mxu0 0
  %3789 = vmatprep.subr.bf16.mxu0 0
  %3790 = vmatpush1.bf16.msra.mxu0 0
  %3791 = vmatprep.subr.bf16.mxu0 0
  %3792 = vmatpush1.bf16.msra.mxu0 0
  %3793 = vmatprep.subr.bf16.mxu0 0
  %3794 = vmatpush1.bf16.msra.mxu0 0
  %3795 = vmatprep.subr.bf16.mxu0 0
  %3796 = vmatpush1.bf16.msra.mxu0 0
  %3797 = vmatprep.subr.bf16.mxu0 0
  %3798 = vmatpush1.bf16.msra.mxu0 0
  %3799 = vmatprep.subr.bf16.mxu0 0
  %3800 = vmatpush1.bf16.msra.mxu0 0
  %3801 = vmatprep.subr.bf16.mxu0 0
  %3802 = vmatpush1.bf16.msra.mxu0 0
  %3803 = vmatprep.subr.bf16.mxu0 0
  %3804 = vmatpush1.bf16.msra.mxu0 0
  %3805 = vmatprep.mubr.bf16.mxu0 0
  %3806 = vmatmul.mubr.bf16.gmra.mrb[0].mxu0 %v413
  %v3807 = vpop.f32.mrb[0].mxu0
  %v3808 = vadd.f32 0.0, %v3807
  %v3809 = vpop.f32.mrb[0].mxu0
  %v3810 = vadd.f32 0.0, %v3809
  %v3811 = vpop.f32.mrb[0].mxu0
  %v3812 = vadd.f32 0.0, %v3811
  %v3813 = vpop.f32.mrb[0].mxu0
  %v3814 = vadd.f32 0.0, %v3813
  %3815 = vdwg.mxu0
  %3816 = vmatprep.subr.bf16.mxu0 %v2951
  %3817 = vmatpush1.bf16.msra.mxu0 %v2950
  %3818 = vmatprep.subr.bf16.mxu0 %v3123
  %3819 = vmatpush1.bf16.msra.mxu0 %v3120
  %3820 = vmatprep.subr.bf16.mxu0 0
  %3821 = vmatpush1.bf16.msra.mxu0 0
  %3822 = vmatprep.subr.bf16.mxu0 0
  %3823 = vmatpush1.bf16.msra.mxu0 0
  %3824 = vmatprep.subr.bf16.mxu0 0
  %3825 = vmatpush1.bf16.msra.mxu0 0
  %3826 = vmatprep.subr.bf16.mxu0 0
  %3827 = vmatpush1.bf16.msra.mxu0 0
  %3828 = vmatprep.subr.bf16.mxu0 0
  %3829 = vmatpush1.bf16.msra.mxu0 0
  %3830 = vmatprep.subr.bf16.mxu0 0
  %3831 = vmatpush1.bf16.msra.mxu0 0
  %3832 = vmatprep.subr.bf16.mxu0 0
  %3833 = vmatpush1.bf16.msra.mxu0 0
  %3834 = vmatprep.subr.bf16.mxu0 0
  %3835 = vmatpush1.bf16.msra.mxu0 0
  %3836 = vmatprep.subr.bf16.mxu0 0
  %3837 = vmatpush1.bf16.msra.mxu0 0
  %3838 = vmatprep.subr.bf16.mxu0 0
  %3839 = vmatpush1.bf16.msra.mxu0 0
  %3840 = vmatprep.subr.bf16.mxu0 0
  %3841 = vmatpush1.bf16.msra.mxu0 0
  %3842 = vmatprep.subr.bf16.mxu0 0
  %3843 = vmatpush1.bf16.msra.mxu0 0
  %3844 = vmatprep.subr.bf16.mxu0 0
  %3845 = vmatpush1.bf16.msra.mxu0 0
  %3846 = vmatprep.subr.bf16.mxu0 0
  %3847 = vmatpush1.bf16.msra.mxu0 0
  %3848 = vmatprep.mubr.bf16.mxu0 0
  %3849 = vmatmul.mubr.bf16.gmra.mrb[0].mxu0 %v413
  %v3850 = vpop.f32.mrb[0].mxu0
  %v3851 = vadd.f32 0.0, %v3850
  %v3852 = vpop.f32.mrb[0].mxu0
  %v3853 = vadd.f32 0.0, %v3852
  %v3854 = vpop.f32.mrb[0].mxu0
  %v3855 = vadd.f32 0.0, %v3854
  %v3856 = vpop.f32.mrb[0].mxu0
  %v3857 = vadd.f32 0.0, %v3856
  %3858 = vdwg.mxu0
  %3859 = vmatprep.subr.bf16.mxu0 0
  %3860 = vmatpush1.bf16.msra.mxu0 %v2952
  %3861 = vmatprep.subr.bf16.mxu0 0
  %3862 = vmatpush1.bf16.msra.mxu0 %v3126
  %3863 = vmatprep.subr.bf16.mxu0 0
  %3864 = vmatpush1.bf16.msra.mxu0 0
  %3865 = vmatprep.subr.bf16.mxu0 0
  %3866 = vmatpush1.bf16.msra.mxu0 0
  %3867 = vmatprep.subr.bf16.mxu0 0
  %3868 = vmatpush1.bf16.msra.mxu0 0
  %3869 = vmatprep.subr.bf16.mxu0 0
  %3870 = vmatpush1.bf16.msra.mxu0 0
  %3871 = vmatprep.subr.bf16.mxu0 0
  %3872 = vmatpush1.bf16.msra.mxu0 0
  %3873 = vmatprep.subr.bf16.mxu0 0
  %3874 = vmatpush1.bf16.msra.mxu0 0
  %3875 = vmatprep.subr.bf16.mxu0 0
  %3876 = vmatpush1.bf16.msra.mxu0 0
  %3877 = vmatprep.subr.bf16.mxu0 0
  %3878 = vmatpush1.bf16.msra.mxu0 0
  %3879 = vmatprep.subr.bf16.mxu0 0
  %3880 = vmatpush1.bf16.msra.mxu0 0
  %3881 = vmatprep.subr.bf16.mxu0 0
  %3882 = vmatpush1.bf16.msra.mxu0 0
  %3883 = vmatprep.subr.bf16.mxu0 0
  %3884 = vmatpush1.bf16.msra.mxu0 0
  %3885 = vmatprep.subr.bf16.mxu0 0
  %3886 = vmatpush1.bf16.msra.mxu0 0
  %3887 = vmatprep.subr.bf16.mxu0 0
  %3888 = vmatpush1.bf16.msra.mxu0 0
  %3889 = vmatprep.subr.bf16.mxu0 0
  %3890 = vmatpush1.bf16.msra.mxu0 0
  %3891 = vmatprep.mubr.bf16.mxu0 0
  %3892 = vmatmul.mubr.bf16.gmra.mrb[0].mxu0 %v413
  %v3893 = vpop.f32.mrb[0].mxu0
  %v3894 = vadd.f32 0.0, %v3893
  %v3895 = vpop.f32.mrb[0].mxu0
  %v3896 = vpop.f32.mrb[0].mxu0
  %v3897 = vadd.f32 0.0, %v3896
  %v3898 = vpop.f32.mrb[0].mxu0
  %3899 = vdwg.mxu0
  %v3900 = vmax.f32 %v2563, %v3163
  %v3901 = vmax.f32 %v2564, %v3165
  %v3902 = vmax.f32 %v2565, %v3206
  %v3903 = vmax.f32 %v2566, %v3208
  %v3904 = vmax.f32 %v2567, %v3249
  %v3905 = vmax.f32 %v2568, %v3251
  %v3906 = vmax.f32 %v2569, %v3292
  %v3907 = vmax.f32 %v2570, %v3294
  %v3908 = vmax.f32 %v2571, %v3335
  %v3909 = vmax.f32 %v2572, %v3337
  %v3910 = vmax.f32 %v2573, %v3378
  %v3911 = vmax.f32 %v2574, %v3380
  %v3912 = vmax.f32 %v2575, %v3421
  %v3913 = vmax.f32 %v2576, %v3423
  %v3914 = vmax.f32 %v2577, %v3464
  %v3915 = vmax.f32 %v2578, %v3466
  %v3916 = vmax.f32 %v2579, %v3507
  %v3917 = vmax.f32 %v2580, %v3509
  %v3918 = vmax.f32 %v2581, %v3550
  %v3919 = vmax.f32 %v2582, %v3552
  %v3920 = vmax.f32 %v2583, %v3593
  %v3921 = vmax.f32 %v2584, %v3595
  %v3922 = vmax.f32 %v2585, %v3636
  %v3923 = vmax.f32 %v2586, %v3638
  %v3924 = vmax.f32 %v2587, %v3679
  %v3925 = vmax.f32 %v2588, %v3681
  %v3926 = vmax.f32 %v2589, %v3722
  %v3927 = vmax.f32 %v2590, %v3724
  %v3928 = vmax.f32 %v2591, %v3765
  %v3929 = vmax.f32 %v2592, %v3767
  %v3930 = vmax.f32 %v2593, %v3808
  %v3931 = vmax.f32 %v2594, %v3810
  %v3932 = vmax.f32 %v2595, %v3851
  %v3933 = vmax.f32 %v2596, %v3853
  %v3934 = vmax.f32 %v2597, %v3894
  %v3935 = vmax.f32 %v2598, %v3167
  %v3936 = vmax.f32 %v2599, %v3169
  %v3937 = vmax.f32 %v2600, %v3210
  %v3938 = vmax.f32 %v2601, %v3212
  %v3939 = vmax.f32 %v2602, %v3253
  %v3940 = vmax.f32 %v2603, %v3255
  %v3941 = vmax.f32 %v2604, %v3296
  %v3942 = vmax.f32 %v2605, %v3298
  %v3943 = vmax.f32 %v2606, %v3339
  %v3944 = vmax.f32 %v2607, %v3341
  %v3945 = vmax.f32 %v2608, %v3382
  %v3946 = vmax.f32 %v2609, %v3384
  %v3947 = vmax.f32 %v2610, %v3425
  %v3948 = vmax.f32 %v2611, %v3427
  %v3949 = vmax.f32 %v2612, %v3468
  %v3950 = vmax.f32 %v2613, %v3470
  %v3951 = vmax.f32 %v2614, %v3511
  %v3952 = vmax.f32 %v2615, %v3513
  %v3953 = vmax.f32 %v2616, %v3554
  %v3954 = vmax.f32 %v2617, %v3556
  %v3955 = vmax.f32 %v2618, %v3597
  %v3956 = vmax.f32 %v2619, %v3599
  %v3957 = vmax.f32 %v2620, %v3640
  %v3958 = vmax.f32 %v2621, %v3642
  %v3959 = vmax.f32 %v2622, %v3683
  %v3960 = vmax.f32 %v2623, %v3685
  %v3961 = vmax.f32 %v2624, %v3726
  %v3962 = vmax.f32 %v2625, %v3728
  %v3963 = vmax.f32 %v2626, %v3769
  %v3964 = vmax.f32 %v2627, %v3771
  %v3965 = vmax.f32 %v2628, %v3812
  %v3966 = vmax.f32 %v2629, %v3814
  %v3967 = vmax.f32 %v2630, %v3855
  %v3968 = vmax.f32 %v2631, %v3857
  %v3969 = vmax.f32 %v2632, %v3897
  %s3970 = scalar_lea.vmem %s0, 1680
  %v3971 = vld [vmem:[%s3970] sm:$0xff]
  %v3972 = vld [vmem:[%s3970 + $0x8] sm:$0xff]
  %v3973 = vld [vmem:[%s3970 + $0x10] sm:$0xff]
  %v3974 = vld [vmem:[%s3970 + $0x18] sm:$0xff]
  %v3975 = vld [vmem:[%s3970 + $0x20] sm:$0xff]
  %v3976 = vld [vmem:[%s3970 + $0x28] sm:$0xff]
  %v3977 = vld [vmem:[%s3970 + $0x30] sm:$0xff]
  %v3978 = vld [vmem:[%s3970 + $0x38] sm:$0xff]
  %v3979 = vld [vmem:[%s3970 + $0x40] sm:$0xff]
  %v3980 = vld [vmem:[%s3970 + $0x48] sm:$0xff]
  %v3981 = vld [vmem:[%s3970 + $0x50] sm:$0xff]
  %v3982 = vld [vmem:[%s3970 + $0x58] sm:$0xff]
  %v3983 = vld [vmem:[%s3970 + $0x60] sm:$0xff]
  %v3984 = vld [vmem:[%s3970 + $0x68] sm:$0xff]
  %v3985 = vld [vmem:[%s3970 + $0x70] sm:$0xff]
  %v3986 = vld [vmem:[%s3970 + $0x78] sm:$0xff]
  %v3987 = vld [vmem:[%s3970 + $0x80] sm:$0xff]
  %v3988 = vld [vmem:[%s3970 + $0x88] sm:$0xf]
  %v3989 = vld [vmem:[%s3970 + $0x8c] sm:$0xff]
  %v3990 = vld [vmem:[%s3970 + $0x94] sm:$0xff]
  %v3991 = vld [vmem:[%s3970 + $0x9c] sm:$0xff]
  %v3992 = vld [vmem:[%s3970 + $0xa4] sm:$0xff]
  %v3993 = vld [vmem:[%s3970 + $0xac] sm:$0xff]
  %v3994 = vld [vmem:[%s3970 + $0xb4] sm:$0xff]
  %v3995 = vld [vmem:[%s3970 + $0xbc] sm:$0xff]
  %v3996 = vld [vmem:[%s3970 + $0xc4] sm:$0xff]
  %v3997 = vld [vmem:[%s3970 + $0xcc] sm:$0xff]
  %v3998 = vld [vmem:[%s3970 + $0xd4] sm:$0xff]
  %v3999 = vld [vmem:[%s3970 + $0xdc] sm:$0xff]
  %v4000 = vld [vmem:[%s3970 + $0xe4] sm:$0xff]
  %v4001 = vld [vmem:[%s3970 + $0xec] sm:$0xff]
  %v4002 = vld [vmem:[%s3970 + $0xf4] sm:$0xff]
  %v4003 = vld [vmem:[%s3970 + $0xfc] sm:$0xff]
  %v4004 = vld [vmem:[%s3970 + $0x104] sm:$0xff]
  %v4005 = vld [vmem:[%s3970 + $0x10c] sm:$0xff]
  %v4006 = vld [vmem:[%s3970 + $0x114] sm:$0xf]
  %v4007 = vld [vmem:[%s3970 + $0x118] sm:$0xff]
  %v4008 = vld [vmem:[%s3970 + $0x120] sm:$0xff]
  %v4009 = vld [vmem:[%s3970 + $0x128] sm:$0xff]
  %v4010 = vld [vmem:[%s3970 + $0x130] sm:$0xff]
  %v4011 = vld [vmem:[%s3970 + $0x138] sm:$0xff]
  %v4012 = vld [vmem:[%s3970 + $0x140] sm:$0xff]
  %v4013 = vld [vmem:[%s3970 + $0x148] sm:$0xff]
  %v4014 = vld [vmem:[%s3970 + $0x150] sm:$0xff]
  %v4015 = vld [vmem:[%s3970 + $0x158] sm:$0xff]
  %v4016 = vld [vmem:[%s3970 + $0x160] sm:$0xff]
  %v4017 = vld [vmem:[%s3970 + $0x168] sm:$0xff]
  %v4018 = vld [vmem:[%s3970 + $0x170] sm:$0xff]
  %v4019 = vld [vmem:[%s3970 + $0x178] sm:$0xff]
  %v4020 = vld [vmem:[%s3970 + $0x180] sm:$0xff]
  %v4021 = vld [vmem:[%s3970 + $0x188] sm:$0xff]
  %v4022 = vld [vmem:[%s3970 + $0x190] sm:$0xff]
  %v4023 = vld [vmem:[%s3970 + $0x198] sm:$0xff]
  %v4024 = vld [vmem:[%s3970 + $0x1a0] sm:$0xf]
  %v4025 = vld [vmem:[%s3970 + $0x1a4] sm:$0x33]
  %v4026 = vld [vmem:[%s3970 + $0x1ac] sm:$0x33]
  %v4027 = vld [vmem:[%s3970 + $0x1b4] sm:$0x33]
  %v4028 = vld [vmem:[%s3970 + $0x1bc] sm:$0x33]
  %v4029 = vld [vmem:[%s3970 + $0x1c4] sm:$0x33]
  %v4030 = vld [vmem:[%s3970 + $0x1cc] sm:$0x33]
  %v4031 = vld [vmem:[%s3970 + $0x1d4] sm:$0x33]
  %v4032 = vld [vmem:[%s3970 + $0x1dc] sm:$0x33]
  %v4033 = vld [vmem:[%s3970 + $0x1e4] sm:$0x33]
  %v4034 = vld [vmem:[%s3970 + $0x1ec] sm:$0x33]
  %v4035 = vld [vmem:[%s3970 + $0x1f4] sm:$0x33]
  %v4036 = vld [vmem:[%s3970 + $0x1fc] sm:$0x33]
  %v4037 = vld [vmem:[%s3970 + $0x204] sm:$0x33]
  %v4038 = vld [vmem:[%s3970 + $0x20c] sm:$0x33]
  %v4039 = vld [vmem:[%s3970 + $0x214] sm:$0x33]
  %v4040 = vld [vmem:[%s3970 + $0x21c] sm:$0x33]
  %v4041 = vld [vmem:[%s3970 + $0x224] sm:$0x33]
  %v4042 = vld [vmem:[%s3970 + $0x22c] sm:$0x3]
  %v4115 = vunpack.c.l.b16 %v3971
  %v4116 = vunpack.c.h.b16 %v3971
  %v4117 = vunpack.c.l.b16 %v3972
  %v4118 = vunpack.c.h.b16 %v3972
  %v4119 = vunpack.c.l.b16 %v3973
  %v4120 = vunpack.c.h.b16 %v3973
  %v4121 = vunpack.c.l.b16 %v3974
  %v4122 = vunpack.c.h.b16 %v3974
  %v4123 = vunpack.c.l.b16 %v3975
  %v4124 = vunpack.c.h.b16 %v3975
  %v4125 = vunpack.c.l.b16 %v3976
  %v4126 = vunpack.c.h.b16 %v3976
  %v4127 = vunpack.c.l.b16 %v3977
  %v4128 = vunpack.c.h.b16 %v3977
  %v4129 = vunpack.c.l.b16 %v3978
  %v4130 = vunpack.c.h.b16 %v3978
  %v4131 = vunpack.c.l.b16 %v3979
  %v4132 = vunpack.c.h.b16 %v3979
  %v4133 = vunpack.c.l.b16 %v3980
  %v4134 = vunpack.c.h.b16 %v3980
  %v4135 = vunpack.c.l.b16 %v3981
  %v4136 = vunpack.c.h.b16 %v3981
  %v4137 = vunpack.c.l.b16 %v3982
  %v4138 = vunpack.c.h.b16 %v3982
  %v4139 = vunpack.c.l.b16 %v3983
  %v4140 = vunpack.c.h.b16 %v3983
  %v4141 = vunpack.c.l.b16 %v3984
  %v4142 = vunpack.c.h.b16 %v3984
  %v4143 = vunpack.c.l.b16 %v3985
  %v4144 = vunpack.c.h.b16 %v3985
  %v4145 = vunpack.c.l.b16 %v3986
  %v4146 = vunpack.c.h.b16 %v3986
  %v4147 = vunpack.c.l.b16 %v3987
  %v4148 = vunpack.c.h.b16 %v3987
  %v4149 = vunpack.c.l.b16 %v3988
  %v4150 = vunpack.c.l.b16 %v3989
  %v4151 = vunpack.c.h.b16 %v3989
  %v4152 = vunpack.c.l.b16 %v3990
  %v4153 = vunpack.c.h.b16 %v3990
  %v4154 = vunpack.c.l.b16 %v3991
  %v4155 = vunpack.c.h.b16 %v3991
  %v4156 = vunpack.c.l.b16 %v3992
  %v4157 = vunpack.c.h.b16 %v3992
  %v4158 = vunpack.c.l.b16 %v3993
  %v4159 = vunpack.c.h.b16 %v3993
  %v4160 = vunpack.c.l.b16 %v3994
  %v4161 = vunpack.c.h.b16 %v3994
  %v4162 = vunpack.c.l.b16 %v3995
  %v4163 = vunpack.c.h.b16 %v3995
  %v4164 = vunpack.c.l.b16 %v3996
  %v4165 = vunpack.c.h.b16 %v3996
  %v4166 = vunpack.c.l.b16 %v3997
  %v4167 = vunpack.c.h.b16 %v3997
  %v4168 = vunpack.c.l.b16 %v3998
  %v4169 = vunpack.c.h.b16 %v3998
  %v4170 = vunpack.c.l.b16 %v3999
  %v4171 = vunpack.c.h.b16 %v3999
  %v4172 = vunpack.c.l.b16 %v4000
  %v4173 = vunpack.c.h.b16 %v4000
  %v4174 = vunpack.c.l.b16 %v4001
  %v4175 = vunpack.c.h.b16 %v4001
  %v4176 = vunpack.c.l.b16 %v4002
  %v4177 = vunpack.c.h.b16 %v4002
  %v4178 = vunpack.c.l.b16 %v4003
  %v4179 = vunpack.c.h.b16 %v4003
  %v4180 = vunpack.c.l.b16 %v4004
  %v4181 = vunpack.c.h.b16 %v4004
  %v4182 = vunpack.c.l.b16 %v4005
  %v4183 = vunpack.c.h.b16 %v4005
  %v4184 = vunpack.c.l.b16 %v4006
  %v4185 = vunpack.c.l.b16 %v4007
  %v4186 = vunpack.c.h.b16 %v4007
  %v4187 = vunpack.c.l.b16 %v4008
  %v4188 = vunpack.c.h.b16 %v4008
  %v4189 = vunpack.c.l.b16 %v4009
  %v4190 = vunpack.c.h.b16 %v4009
  %v4191 = vunpack.c.l.b16 %v4010
  %v4192 = vunpack.c.h.b16 %v4010
  %v4193 = vunpack.c.l.b16 %v4011
  %v4194 = vunpack.c.h.b16 %v4011
  %v4195 = vunpack.c.l.b16 %v4012
  %v4196 = vunpack.c.h.b16 %v4012
  %v4197 = vunpack.c.l.b16 %v4013
  %v4198 = vunpack.c.h.b16 %v4013
  %v4199 = vunpack.c.l.b16 %v4014
  %v4200 = vunpack.c.h.b16 %v4014
  %v4201 = vunpack.c.l.b16 %v4015
  %v4202 = vunpack.c.h.b16 %v4015
  %v4203 = vunpack.c.l.b16 %v4016
  %v4204 = vunpack.c.h.b16 %v4016
  %v4205 = vunpack.c.l.b16 %v4017
  %v4206 = vunpack.c.h.b16 %v4017
  %v4207 = vunpack.c.l.b16 %v4018
  %v4208 = vunpack.c.h.b16 %v4018
  %v4209 = vunpack.c.l.b16 %v4019
  %v4210 = vunpack.c.h.b16 %v4019
  %v4211 = vunpack.c.l.b16 %v4020
  %v4212 = vunpack.c.h.b16 %v4020
  %v4213 = vunpack.c.l.b16 %v4021
  %v4214 = vunpack.c.h.b16 %v4021
  %v4215 = vunpack.c.l.b16 %v4022
  %v4216 = vunpack.c.h.b16 %v4022
  %v4217 = vunpack.c.l.b16 %v4023
  %v4218 = vunpack.c.h.b16 %v4023
  %v4219 = vunpack.c.l.b16 %v4024
  %v4220 = vunpack.c.l.b16 %v4025
  %v4221 = vunpack.c.h.b16 %v4025
  %v4222 = vunpack.c.l.b16 %v4026
  %v4223 = vunpack.c.h.b16 %v4026
  %v4224 = vunpack.c.l.b16 %v4027
  %v4225 = vunpack.c.h.b16 %v4027
  %v4226 = vunpack.c.l.b16 %v4028
  %v4227 = vunpack.c.h.b16 %v4028
  %v4228 = vunpack.c.l.b16 %v4029
  %v4229 = vunpack.c.h.b16 %v4029
  %v4230 = vunpack.c.l.b16 %v4030
  %v4231 = vunpack.c.h.b16 %v4030
  %v4232 = vunpack.c.l.b16 %v4031
  %v4233 = vunpack.c.h.b16 %v4031
  %v4234 = vunpack.c.l.b16 %v4032
  %v4235 = vunpack.c.h.b16 %v4032
  %v4236 = vunpack.c.l.b16 %v4033
  %v4237 = vunpack.c.h.b16 %v4033
  %v4238 = vunpack.c.l.b16 %v4034
  %v4239 = vunpack.c.h.b16 %v4034
  %v4240 = vunpack.c.l.b16 %v4035
  %v4241 = vunpack.c.h.b16 %v4035
  %v4242 = vunpack.c.l.b16 %v4036
  %v4243 = vunpack.c.h.b16 %v4036
  %v4244 = vunpack.c.l.b16 %v4037
  %v4245 = vunpack.c.h.b16 %v4037
  %v4246 = vunpack.c.l.b16 %v4038
  %v4247 = vunpack.c.h.b16 %v4038
  %v4248 = vunpack.c.l.b16 %v4039
  %v4249 = vunpack.c.h.b16 %v4039
  %v4250 = vunpack.c.l.b16 %v4040
  %v4251 = vunpack.c.h.b16 %v4040
  %v4252 = vunpack.c.l.b16 %v4041
  %v4253 = vunpack.c.h.b16 %v4041
  %v4254 = vunpack.c.l.b16 %v4042
  %v4255 = vpack.c.b16 %v4150, %v4115
  %v4256 = vpack.c.b16 %v4151, %v4116
  %v4257 = vpack.c.b16 %v4152, %v4117
  %v4258 = vpack.c.b16 %v4153, %v4118
  %v4259 = vpack.c.b16 %v4154, %v4119
  %v4260 = vpack.c.b16 %v4155, %v4120
  %v4261 = vpack.c.b16 %v4156, %v4121
  %v4262 = vpack.c.b16 %v4157, %v4122
  %v4263 = vpack.c.b16 %v4158, %v4123
  %v4264 = vpack.c.b16 %v4159, %v4124
  %v4265 = vpack.c.b16 %v4160, %v4125
  %v4266 = vpack.c.b16 %v4161, %v4126
  %v4267 = vpack.c.b16 %v4162, %v4127
  %v4268 = vpack.c.b16 %v4163, %v4128
  %v4269 = vpack.c.b16 %v4164, %v4129
  %v4270 = vpack.c.b16 %v4165, %v4130
  %v4271 = vpack.c.b16 %v4166, %v4131
  %v4272 = vpack.c.b16 %v4167, %v4132
  %v4273 = vpack.c.b16 %v4168, %v4133
  %v4274 = vpack.c.b16 %v4169, %v4134
  %v4275 = vpack.c.b16 %v4170, %v4135
  %v4276 = vpack.c.b16 %v4171, %v4136
  %v4277 = vpack.c.b16 %v4172, %v4137
  %v4278 = vpack.c.b16 %v4173, %v4138
  %v4279 = vpack.c.b16 %v4174, %v4139
  %v4280 = vpack.c.b16 %v4175, %v4140
  %v4281 = vpack.c.b16 %v4176, %v4141
  %v4282 = vpack.c.b16 %v4177, %v4142
  %v4283 = vpack.c.b16 %v4178, %v4143
  %v4284 = vpack.c.b16 %v4179, %v4144
  %v4285 = vpack.c.b16 %v4180, %v4145
  %v4286 = vpack.c.b16 %v4181, %v4146
  %v4287 = vpack.c.b16 %v4182, %v4147
  %v4288 = vpack.c.b16 %v4183, %v4148
  %v4289 = vpack.c.b16 %v4184, %v4149
  %v4290 = vpack.c.b16 %v4220, %v4185
  %v4291 = vpack.c.b16 %v4221, %v4186
  %v4292 = vpack.c.b16 %v4222, %v4187
  %v4293 = vpack.c.b16 %v4223, %v4188
  %v4294 = vpack.c.b16 %v4224, %v4189
  %v4295 = vpack.c.b16 %v4225, %v4190
  %v4296 = vpack.c.b16 %v4226, %v4191
  %v4297 = vpack.c.b16 %v4227, %v4192
  %v4298 = vpack.c.b16 %v4228, %v4193
  %v4299 = vpack.c.b16 %v4229, %v4194
  %v4300 = vpack.c.b16 %v4230, %v4195
  %v4301 = vpack.c.b16 %v4231, %v4196
  %v4302 = vpack.c.b16 %v4232, %v4197
  %v4303 = vpack.c.b16 %v4233, %v4198
  %v4304 = vpack.c.b16 %v4234, %v4199
  %v4305 = vpack.c.b16 %v4235, %v4200
  %v4306 = vpack.c.b16 %v4236, %v4201
  %v4307 = vpack.c.b16 %v4237, %v4202
  %v4308 = vpack.c.b16 %v4238, %v4203
  %v4309 = vpack.c.b16 %v4239, %v4204
  %v4310 = vpack.c.b16 %v4240, %v4205
  %v4311 = vpack.c.b16 %v4241, %v4206
  %v4312 = vpack.c.b16 %v4242, %v4207
  %v4313 = vpack.c.b16 %v4243, %v4208
  %v4314 = vpack.c.b16 %v4244, %v4209
  %v4315 = vpack.c.b16 %v4245, %v4210
  %v4316 = vpack.c.b16 %v4246, %v4211
  %v4317 = vpack.c.b16 %v4247, %v4212
  %v4318 = vpack.c.b16 %v4248, %v4213
  %v4319 = vpack.c.b16 %v4249, %v4214
  %v4320 = vpack.c.b16 %v4250, %v4215
  %v4321 = vpack.c.b16 %v4251, %v4216
  %v4322 = vpack.c.b16 %v4252, %v4217
  %v4323 = vpack.c.b16 %v4253, %v4218
  %v4324 = vpack.c.b16 %v4254, %v4219
  %v4361 = vand.u32 %v4290, %v418
  %v4364 = vand.u32 %v4291, %v418
  %v4367 = vand.u32 %v4292, %v418
  %v4370 = vand.u32 %v4293, %v418
  %v4373 = vand.u32 %v4294, %v418
  %v4376 = vand.u32 %v4295, %v418
  %v4379 = vand.u32 %v4296, %v418
  %v4382 = vand.u32 %v4297, %v418
  %v4385 = vand.u32 %v4298, %v418
  %v4388 = vand.u32 %v4299, %v418
  %v4391 = vand.u32 %v4300, %v418
  %v4394 = vand.u32 %v4301, %v418
  %v4397 = vand.u32 %v4302, %v418
  %v4400 = vand.u32 %v4303, %v418
  %v4403 = vand.u32 %v4304, %v418
  %v4406 = vand.u32 %v4305, %v418
  %v4409 = vand.u32 %v4306, %v418
  %v4412 = vand.u32 %v4307, %v418
  %v4415 = vand.u32 %v4308, %v418
  %v4418 = vand.u32 %v4309, %v418
  %v4421 = vand.u32 %v4310, %v418
  %v4424 = vand.u32 %v4311, %v418
  %v4427 = vand.u32 %v4312, %v418
  %v4430 = vand.u32 %v4313, %v418
  %v4433 = vand.u32 %v4314, %v418
  %v4436 = vand.u32 %v4315, %v418
  %v4439 = vand.u32 %v4316, %v418
  %v4442 = vand.u32 %v4317, %v418
  %v4445 = vand.u32 %v4318, %v418
  %v4448 = vand.u32 %v4319, %v418
  %v4451 = vand.u32 %v4320, %v418
  %v4454 = vand.u32 %v4321, %v418
  %v4457 = vand.u32 %v4322, %v418
  %v4460 = vand.u32 %v4323, %v418
  %v4463 = vand.u32 %v4324, %v418
  %4465 = vmatprep.subr.bf16.mxu0 %v4256
  %4466 = vmatpush1.bf16.msra.mxu0 %v4255
  %4467 = vmatprep.subr.bf16.mxu0 %v4364
  %4468 = vmatpush1.bf16.msra.mxu0 %v4361
  %4469 = vmatprep.subr.bf16.mxu0 0
  %4470 = vmatpush1.bf16.msra.mxu0 0
  %4471 = vmatprep.subr.bf16.mxu0 0
  %4472 = vmatpush1.bf16.msra.mxu0 0
  %4473 = vmatprep.subr.bf16.mxu0 0
  %4474 = vmatpush1.bf16.msra.mxu0 0
  %4475 = vmatprep.subr.bf16.mxu0 0
  %4476 = vmatpush1.bf16.msra.mxu0 0
  %4477 = vmatprep.subr.bf16.mxu0 0
  %4478 = vmatpush1.bf16.msra.mxu0 0
  %4479 = vmatprep.subr.bf16.mxu0 0
  %4480 = vmatpush1.bf16.msra.mxu0 0
  %4481 = vmatprep.subr.bf16.mxu0 0
  %4482 = vmatpush1.bf16.msra.mxu0 0
  %4483 = vmatprep.subr.bf16.mxu0 0
  %4484 = vmatpush1.bf16.msra.mxu0 0
  %4485 = vmatprep.subr.bf16.mxu0 0
  %4486 = vmatpush1.bf16.msra.mxu0 0
  %4487 = vmatprep.subr.bf16.mxu0 0
  %4488 = vmatpush1.bf16.msra.mxu0 0
  %4489 = vmatprep.subr.bf16.mxu0 0
  %4490 = vmatpush1.bf16.msra.mxu0 0
  %4491 = vmatprep.subr.bf16.mxu0 0
  %4492 = vmatpush1.bf16.msra.mxu0 0
  %4493 = vmatprep.subr.bf16.mxu0 0
  %4494 = vmatpush1.bf16.msra.mxu0 0
  %4495 = vmatprep.subr.bf16.mxu0 0
  %4496 = vmatpush1.bf16.msra.mxu0 0
  %4497 = vmatprep.mubr.bf16.mxu0 0
  %4498 = vmatmul.mubr.bf16.gmra.mrb[0].mxu0 %v413
  %v4499 = vpop.f32.mrb[0].mxu0
  %v4500 = vadd.f32 0.0, %v4499
  %v4501 = vpop.f32.mrb[0].mxu0
  %v4502 = vadd.f32 0.0, %v4501
  %v4503 = vpop.f32.mrb[0].mxu0
  %v4504 = vadd.f32 0.0, %v4503
  %v4505 = vpop.f32.mrb[0].mxu0
  %v4506 = vadd.f32 0.0, %v4505
  %4507 = vdwg.mxu0
  %4508 = vmatprep.subr.bf16.mxu0 %v4258
  %4509 = vmatpush1.bf16.msra.mxu0 %v4257
  %4510 = vmatprep.subr.bf16.mxu0 %v4370
  %4511 = vmatpush1.bf16.msra.mxu0 %v4367
  %4512 = vmatprep.subr.bf16.mxu0 0
  %4513 = vmatpush1.bf16.msra.mxu0 0
  %4514 = vmatprep.subr.bf16.mxu0 0
  %4515 = vmatpush1.bf16.msra.mxu0 0
  %4516 = vmatprep.subr.bf16.mxu0 0
  %4517 = vmatpush1.bf16.msra.mxu0 0
  %4518 = vmatprep.subr.bf16.mxu0 0
  %4519 = vmatpush1.bf16.msra.mxu0 0
  %4520 = vmatprep.subr.bf16.mxu0 0
  %4521 = vmatpush1.bf16.msra.mxu0 0
  %4522 = vmatprep.subr.bf16.mxu0 0
  %4523 = vmatpush1.bf16.msra.mxu0 0
  %4524 = vmatprep.subr.bf16.mxu0 0
  %4525 = vmatpush1.bf16.msra.mxu0 0
  %4526 = vmatprep.subr.bf16.mxu0 0
  %4527 = vmatpush1.bf16.msra.mxu0 0
  %4528 = vmatprep.subr.bf16.mxu0 0
  %4529 = vmatpush1.bf16.msra.mxu0 0
  %4530 = vmatprep.subr.bf16.mxu0 0
  %4531 = vmatpush1.bf16.msra.mxu0 0
  %4532 = vmatprep.subr.bf16.mxu0 0
  %4533 = vmatpush1.bf16.msra.mxu0 0
  %4534 = vmatprep.subr.bf16.mxu0 0
  %4535 = vmatpush1.bf16.msra.mxu0 0
  %4536 = vmatprep.subr.bf16.mxu0 0
  %4537 = vmatpush1.bf16.msra.mxu0 0
  %4538 = vmatprep.subr.bf16.mxu0 0
  %4539 = vmatpush1.bf16.msra.mxu0 0
  %4540 = vmatprep.mubr.bf16.mxu0 0
  %4541 = vmatmul.mubr.bf16.gmra.mrb[0].mxu0 %v413
  %v4542 = vpop.f32.mrb[0].mxu0
  %v4543 = vadd.f32 0.0, %v4542
  %v4544 = vpop.f32.mrb[0].mxu0
  %v4545 = vadd.f32 0.0, %v4544
  %v4546 = vpop.f32.mrb[0].mxu0
  %v4547 = vadd.f32 0.0, %v4546
  %v4548 = vpop.f32.mrb[0].mxu0
  %v4549 = vadd.f32 0.0, %v4548
  %4550 = vdwg.mxu0
  %4551 = vmatprep.subr.bf16.mxu0 %v4260
  %4552 = vmatpush1.bf16.msra.mxu0 %v4259
  %4553 = vmatprep.subr.bf16.mxu0 %v4376
  %4554 = vmatpush1.bf16.msra.mxu0 %v4373
  %4555 = vmatprep.subr.bf16.mxu0 0
  %4556 = vmatpush1.bf16.msra.mxu0 0
  %4557 = vmatprep.subr.bf16.mxu0 0
  %4558 = vmatpush1.bf16.msra.mxu0 0
  %4559 = vmatprep.subr.bf16.mxu0 0
  %4560 = vmatpush1.bf16.msra.mxu0 0
  %4561 = vmatprep.subr.bf16.mxu0 0
  %4562 = vmatpush1.bf16.msra.mxu0 0
  %4563 = vmatprep.subr.bf16.mxu0 0
  %4564 = vmatpush1.bf16.msra.mxu0 0
  %4565 = vmatprep.subr.bf16.mxu0 0
  %4566 = vmatpush1.bf16.msra.mxu0 0
  %4567 = vmatprep.subr.bf16.mxu0 0
  %4568 = vmatpush1.bf16.msra.mxu0 0
  %4569 = vmatprep.subr.bf16.mxu0 0
  %4570 = vmatpush1.bf16.msra.mxu0 0
  %4571 = vmatprep.subr.bf16.mxu0 0
  %4572 = vmatpush1.bf16.msra.mxu0 0
  %4573 = vmatprep.subr.bf16.mxu0 0
  %4574 = vmatpush1.bf16.msra.mxu0 0
  %4575 = vmatprep.subr.bf16.mxu0 0
  %4576 = vmatpush1.bf16.msra.mxu0 0
  %4577 = vmatprep.subr.bf16.mxu0 0
  %4578 = vmatpush1.bf16.msra.mxu0 0
  %4579 = vmatprep.subr.bf16.mxu0 0
  %4580 = vmatpush1.bf16.msra.mxu0 0
  %4581 = vmatprep.subr.bf16.mxu0 0
  %4582 = vmatpush1.bf16.msra.mxu0 0
  %4583 = vmatprep.mubr.bf16.mxu0 0
  %4584 = vmatmul.mubr.bf16.gmra.mrb[0].mxu0 %v413
  %v4585 = vpop.f32.mrb[0].mxu0
  %v4586 = vadd.f32 0.0, %v4585
  %v4587 = vpop.f32.mrb[0].mxu0
  %v4588 = vadd.f32 0.0, %v4587
  %v4589 = vpop.f32.mrb[0].mxu0
  %v4590 = vadd.f32 0.0, %v4589
  %v4591 = vpop.f32.mrb[0].mxu0
  %v4592 = vadd.f32 0.0, %v4591
  %4593 = vdwg.mxu0
  %4594 = vmatprep.subr.bf16.mxu0 %v4262
  %4595 = vmatpush1.bf16.msra.mxu0 %v4261
  %4596 = vmatprep.subr.bf16.mxu0 %v4382
  %4597 = vmatpush1.bf16.msra.mxu0 %v4379
  %4598 = vmatprep.subr.bf16.mxu0 0
  %4599 = vmatpush1.bf16.msra.mxu0 0
  %4600 = vmatprep.subr.bf16.mxu0 0
  %4601 = vmatpush1.bf16.msra.mxu0 0
  %4602 = vmatprep.subr.bf16.mxu0 0
  %4603 = vmatpush1.bf16.msra.mxu0 0
  %4604 = vmatprep.subr.bf16.mxu0 0
  %4605 = vmatpush1.bf16.msra.mxu0 0
  %4606 = vmatprep.subr.bf16.mxu0 0
  %4607 = vmatpush1.bf16.msra.mxu0 0
  %4608 = vmatprep.subr.bf16.mxu0 0
  %4609 = vmatpush1.bf16.msra.mxu0 0
  %4610 = vmatprep.subr.bf16.mxu0 0
  %4611 = vmatpush1.bf16.msra.mxu0 0
  %4612 = vmatprep.subr.bf16.mxu0 0
  %4613 = vmatpush1.bf16.msra.mxu0 0
  %4614 = vmatprep.subr.bf16.mxu0 0
  %4615 = vmatpush1.bf16.msra.mxu0 0
  %4616 = vmatprep.subr.bf16.mxu0 0
  %4617 = vmatpush1.bf16.msra.mxu0 0
  %4618 = vmatprep.subr.bf16.mxu0 0
  %4619 = vmatpush1.bf16.msra.mxu0 0
  %4620 = vmatprep.subr.bf16.mxu0 0
  %4621 = vmatpush1.bf16.msra.mxu0 0
  %4622 = vmatprep.subr.bf16.mxu0 0
  %4623 = vmatpush1.bf16.msra.mxu0 0
  %4624 = vmatprep.subr.bf16.mxu0 0
  %4625 = vmatpush1.bf16.msra.mxu0 0
  %4626 = vmatprep.mubr.bf16.mxu0 0
  %4627 = vmatmul.mubr.bf16.gmra.mrb[0].mxu0 %v413
  %v4628 = vpop.f32.mrb[0].mxu0
  %v4629 = vadd.f32 0.0, %v4628
  %v4630 = vpop.f32.mrb[0].mxu0
  %v4631 = vadd.f32 0.0, %v4630
  %v4632 = vpop.f32.mrb[0].mxu0
  %v4633 = vadd.f32 0.0, %v4632
  %v4634 = vpop.f32.mrb[0].mxu0
  %v4635 = vadd.f32 0.0, %v4634
  %4636 = vdwg.mxu0
  %4637 = vmatprep.subr.bf16.mxu0 %v4264
  %4638 = vmatpush1.bf16.msra.mxu0 %v4263
  %4639 = vmatprep.subr.bf16.mxu0 %v4388
  %4640 = vmatpush1.bf16.msra.mxu0 %v4385
  %4641 = vmatprep.subr.bf16.mxu0 0
  %4642 = vmatpush1.bf16.msra.mxu0 0
  %4643 = vmatprep.subr.bf16.mxu0 0
  %4644 = vmatpush1.bf16.msra.mxu0 0
  %4645 = vmatprep.subr.bf16.mxu0 0
  %4646 = vmatpush1.bf16.msra.mxu0 0
  %4647 = vmatprep.subr.bf16.mxu0 0
  %4648 = vmatpush1.bf16.msra.mxu0 0
  %4649 = vmatprep.subr.bf16.mxu0 0
  %4650 = vmatpush1.bf16.msra.mxu0 0
  %4651 = vmatprep.subr.bf16.mxu0 0
  %4652 = vmatpush1.bf16.msra.mxu0 0
  %4653 = vmatprep.subr.bf16.mxu0 0
  %4654 = vmatpush1.bf16.msra.mxu0 0
  %4655 = vmatprep.subr.bf16.mxu0 0
  %4656 = vmatpush1.bf16.msra.mxu0 0
  %4657 = vmatprep.subr.bf16.mxu0 0
  %4658 = vmatpush1.bf16.msra.mxu0 0
  %4659 = vmatprep.subr.bf16.mxu0 0
  %4660 = vmatpush1.bf16.msra.mxu0 0
  %4661 = vmatprep.subr.bf16.mxu0 0
  %4662 = vmatpush1.bf16.msra.mxu0 0
  %4663 = vmatprep.subr.bf16.mxu0 0
  %4664 = vmatpush1.bf16.msra.mxu0 0
  %4665 = vmatprep.subr.bf16.mxu0 0
  %4666 = vmatpush1.bf16.msra.mxu0 0
  %4667 = vmatprep.subr.bf16.mxu0 0
  %4668 = vmatpush1.bf16.msra.mxu0 0
  %4669 = vmatprep.mubr.bf16.mxu0 0
  %4670 = vmatmul.mubr.bf16.gmra.mrb[0].mxu0 %v413
  %v4671 = vpop.f32.mrb[0].mxu0
  %v4672 = vadd.f32 0.0, %v4671
  %v4673 = vpop.f32.mrb[0].mxu0
  %v4674 = vadd.f32 0.0, %v4673
  %v4675 = vpop.f32.mrb[0].mxu0
  %v4676 = vadd.f32 0.0, %v4675
  %v4677 = vpop.f32.mrb[0].mxu0
  %v4678 = vadd.f32 0.0, %v4677
  %4679 = vdwg.mxu0
  %4680 = vmatprep.subr.bf16.mxu0 %v4266
  %4681 = vmatpush1.bf16.msra.mxu0 %v4265
  %4682 = vmatprep.subr.bf16.mxu0 %v4394
  %4683 = vmatpush1.bf16.msra.mxu0 %v4391
  %4684 = vmatprep.subr.bf16.mxu0 0
  %4685 = vmatpush1.bf16.msra.mxu0 0
  %4686 = vmatprep.subr.bf16.mxu0 0
  %4687 = vmatpush1.bf16.msra.mxu0 0
  %4688 = vmatprep.subr.bf16.mxu0 0
  %4689 = vmatpush1.bf16.msra.mxu0 0
  %4690 = vmatprep.subr.bf16.mxu0 0
  %4691 = vmatpush1.bf16.msra.mxu0 0
  %4692 = vmatprep.subr.bf16.mxu0 0
  %4693 = vmatpush1.bf16.msra.mxu0 0
  %4694 = vmatprep.subr.bf16.mxu0 0
  %4695 = vmatpush1.bf16.msra.mxu0 0
  %4696 = vmatprep.subr.bf16.mxu0 0
  %4697 = vmatpush1.bf16.msra.mxu0 0
  %4698 = vmatprep.subr.bf16.mxu0 0
  %4699 = vmatpush1.bf16.msra.mxu0 0
  %4700 = vmatprep.subr.bf16.mxu0 0
  %4701 = vmatpush1.bf16.msra.mxu0 0
  %4702 = vmatprep.subr.bf16.mxu0 0
  %4703 = vmatpush1.bf16.msra.mxu0 0
  %4704 = vmatprep.subr.bf16.mxu0 0
  %4705 = vmatpush1.bf16.msra.mxu0 0
  %4706 = vmatprep.subr.bf16.mxu0 0
  %4707 = vmatpush1.bf16.msra.mxu0 0
  %4708 = vmatprep.subr.bf16.mxu0 0
  %4709 = vmatpush1.bf16.msra.mxu0 0
  %4710 = vmatprep.subr.bf16.mxu0 0
  %4711 = vmatpush1.bf16.msra.mxu0 0
  %4712 = vmatprep.mubr.bf16.mxu0 0
  %4713 = vmatmul.mubr.bf16.gmra.mrb[0].mxu0 %v413
  %v4714 = vpop.f32.mrb[0].mxu0
  %v4715 = vadd.f32 0.0, %v4714
  %v4716 = vpop.f32.mrb[0].mxu0
  %v4717 = vadd.f32 0.0, %v4716
  %v4718 = vpop.f32.mrb[0].mxu0
  %v4719 = vadd.f32 0.0, %v4718
  %v4720 = vpop.f32.mrb[0].mxu0
  %v4721 = vadd.f32 0.0, %v4720
  %4722 = vdwg.mxu0
  %4723 = vmatprep.subr.bf16.mxu0 %v4268
  %4724 = vmatpush1.bf16.msra.mxu0 %v4267
  %4725 = vmatprep.subr.bf16.mxu0 %v4400
  %4726 = vmatpush1.bf16.msra.mxu0 %v4397
  %4727 = vmatprep.subr.bf16.mxu0 0
  %4728 = vmatpush1.bf16.msra.mxu0 0
  %4729 = vmatprep.subr.bf16.mxu0 0
  %4730 = vmatpush1.bf16.msra.mxu0 0
  %4731 = vmatprep.subr.bf16.mxu0 0
  %4732 = vmatpush1.bf16.msra.mxu0 0
  %4733 = vmatprep.subr.bf16.mxu0 0
  %4734 = vmatpush1.bf16.msra.mxu0 0
  %4735 = vmatprep.subr.bf16.mxu0 0
  %4736 = vmatpush1.bf16.msra.mxu0 0
  %4737 = vmatprep.subr.bf16.mxu0 0
  %4738 = vmatpush1.bf16.msra.mxu0 0
  %4739 = vmatprep.subr.bf16.mxu0 0
  %4740 = vmatpush1.bf16.msra.mxu0 0
  %4741 = vmatprep.subr.bf16.mxu0 0
  %4742 = vmatpush1.bf16.msra.mxu0 0
  %4743 = vmatprep.subr.bf16.mxu0 0
  %4744 = vmatpush1.bf16.msra.mxu0 0
  %4745 = vmatprep.subr.bf16.mxu0 0
  %4746 = vmatpush1.bf16.msra.mxu0 0
  %4747 = vmatprep.subr.bf16.mxu0 0
  %4748 = vmatpush1.bf16.msra.mxu0 0
  %4749 = vmatprep.subr.bf16.mxu0 0
  %4750 = vmatpush1.bf16.msra.mxu0 0
  %4751 = vmatprep.subr.bf16.mxu0 0
  %4752 = vmatpush1.bf16.msra.mxu0 0
  %4753 = vmatprep.subr.bf16.mxu0 0
  %4754 = vmatpush1.bf16.msra.mxu0 0
  %4755 = vmatprep.mubr.bf16.mxu0 0
  %4756 = vmatmul.mubr.bf16.gmra.mrb[0].mxu0 %v413
  %v4757 = vpop.f32.mrb[0].mxu0
  %v4758 = vadd.f32 0.0, %v4757
  %v4759 = vpop.f32.mrb[0].mxu0
  %v4760 = vadd.f32 0.0, %v4759
  %v4761 = vpop.f32.mrb[0].mxu0
  %v4762 = vadd.f32 0.0, %v4761
  %v4763 = vpop.f32.mrb[0].mxu0
  %v4764 = vadd.f32 0.0, %v4763
  %4765 = vdwg.mxu0
  %4766 = vmatprep.subr.bf16.mxu0 %v4270
  %4767 = vmatpush1.bf16.msra.mxu0 %v4269
  %4768 = vmatprep.subr.bf16.mxu0 %v4406
  %4769 = vmatpush1.bf16.msra.mxu0 %v4403
  %4770 = vmatprep.subr.bf16.mxu0 0
  %4771 = vmatpush1.bf16.msra.mxu0 0
  %4772 = vmatprep.subr.bf16.mxu0 0
  %4773 = vmatpush1.bf16.msra.mxu0 0
  %4774 = vmatprep.subr.bf16.mxu0 0
  %4775 = vmatpush1.bf16.msra.mxu0 0
  %4776 = vmatprep.subr.bf16.mxu0 0
  %4777 = vmatpush1.bf16.msra.mxu0 0
  %4778 = vmatprep.subr.bf16.mxu0 0
  %4779 = vmatpush1.bf16.msra.mxu0 0
  %4780 = vmatprep.subr.bf16.mxu0 0
  %4781 = vmatpush1.bf16.msra.mxu0 0
  %4782 = vmatprep.subr.bf16.mxu0 0
  %4783 = vmatpush1.bf16.msra.mxu0 0
  %4784 = vmatprep.subr.bf16.mxu0 0
  %4785 = vmatpush1.bf16.msra.mxu0 0
  %4786 = vmatprep.subr.bf16.mxu0 0
  %4787 = vmatpush1.bf16.msra.mxu0 0
  %4788 = vmatprep.subr.bf16.mxu0 0
  %4789 = vmatpush1.bf16.msra.mxu0 0
  %4790 = vmatprep.subr.bf16.mxu0 0
  %4791 = vmatpush1.bf16.msra.mxu0 0
  %4792 = vmatprep.subr.bf16.mxu0 0
  %4793 = vmatpush1.bf16.msra.mxu0 0
  %4794 = vmatprep.subr.bf16.mxu0 0
  %4795 = vmatpush1.bf16.msra.mxu0 0
  %4796 = vmatprep.subr.bf16.mxu0 0
  %4797 = vmatpush1.bf16.msra.mxu0 0
  %4798 = vmatprep.mubr.bf16.mxu0 0
  %4799 = vmatmul.mubr.bf16.gmra.mrb[0].mxu0 %v413
  %v4800 = vpop.f32.mrb[0].mxu0
  %v4801 = vadd.f32 0.0, %v4800
  %v4802 = vpop.f32.mrb[0].mxu0
  %v4803 = vadd.f32 0.0, %v4802
  %v4804 = vpop.f32.mrb[0].mxu0
  %v4805 = vadd.f32 0.0, %v4804
  %v4806 = vpop.f32.mrb[0].mxu0
  %v4807 = vadd.f32 0.0, %v4806
  %4808 = vdwg.mxu0
  %4809 = vmatprep.subr.bf16.mxu0 %v4272
  %4810 = vmatpush1.bf16.msra.mxu0 %v4271
  %4811 = vmatprep.subr.bf16.mxu0 %v4412
  %4812 = vmatpush1.bf16.msra.mxu0 %v4409
  %4813 = vmatprep.subr.bf16.mxu0 0
  %4814 = vmatpush1.bf16.msra.mxu0 0
  %4815 = vmatprep.subr.bf16.mxu0 0
  %4816 = vmatpush1.bf16.msra.mxu0 0
  %4817 = vmatprep.subr.bf16.mxu0 0
  %4818 = vmatpush1.bf16.msra.mxu0 0
  %4819 = vmatprep.subr.bf16.mxu0 0
  %4820 = vmatpush1.bf16.msra.mxu0 0
  %4821 = vmatprep.subr.bf16.mxu0 0
  %4822 = vmatpush1.bf16.msra.mxu0 0
  %4823 = vmatprep.subr.bf16.mxu0 0
  %4824 = vmatpush1.bf16.msra.mxu0 0
  %4825 = vmatprep.subr.bf16.mxu0 0
  %4826 = vmatpush1.bf16.msra.mxu0 0
  %4827 = vmatprep.subr.bf16.mxu0 0
  %4828 = vmatpush1.bf16.msra.mxu0 0
  %4829 = vmatprep.subr.bf16.mxu0 0
  %4830 = vmatpush1.bf16.msra.mxu0 0
  %4831 = vmatprep.subr.bf16.mxu0 0
  %4832 = vmatpush1.bf16.msra.mxu0 0
  %4833 = vmatprep.subr.bf16.mxu0 0
  %4834 = vmatpush1.bf16.msra.mxu0 0
  %4835 = vmatprep.subr.bf16.mxu0 0
  %4836 = vmatpush1.bf16.msra.mxu0 0
  %4837 = vmatprep.subr.bf16.mxu0 0
  %4838 = vmatpush1.bf16.msra.mxu0 0
  %4839 = vmatprep.subr.bf16.mxu0 0
  %4840 = vmatpush1.bf16.msra.mxu0 0
  %4841 = vmatprep.mubr.bf16.mxu0 0
  %4842 = vmatmul.mubr.bf16.gmra.mrb[0].mxu0 %v413
  %v4843 = vpop.f32.mrb[0].mxu0
  %v4844 = vadd.f32 0.0, %v4843
  %v4845 = vpop.f32.mrb[0].mxu0
  %v4846 = vadd.f32 0.0, %v4845
  %v4847 = vpop.f32.mrb[0].mxu0
  %v4848 = vadd.f32 0.0, %v4847
  %v4849 = vpop.f32.mrb[0].mxu0
  %v4850 = vadd.f32 0.0, %v4849
  %4851 = vdwg.mxu0
  %4852 = vmatprep.subr.bf16.mxu0 %v4274
  %4853 = vmatpush1.bf16.msra.mxu0 %v4273
  %4854 = vmatprep.subr.bf16.mxu0 %v4418
  %4855 = vmatpush1.bf16.msra.mxu0 %v4415
  %4856 = vmatprep.subr.bf16.mxu0 0
  %4857 = vmatpush1.bf16.msra.mxu0 0
  %4858 = vmatprep.subr.bf16.mxu0 0
  %4859 = vmatpush1.bf16.msra.mxu0 0
  %4860 = vmatprep.subr.bf16.mxu0 0
  %4861 = vmatpush1.bf16.msra.mxu0 0
  %4862 = vmatprep.subr.bf16.mxu0 0
  %4863 = vmatpush1.bf16.msra.mxu0 0
  %4864 = vmatprep.subr.bf16.mxu0 0
  %4865 = vmatpush1.bf16.msra.mxu0 0
  %4866 = vmatprep.subr.bf16.mxu0 0
  %4867 = vmatpush1.bf16.msra.mxu0 0
  %4868 = vmatprep.subr.bf16.mxu0 0
  %4869 = vmatpush1.bf16.msra.mxu0 0
  %4870 = vmatprep.subr.bf16.mxu0 0
  %4871 = vmatpush1.bf16.msra.mxu0 0
  %4872 = vmatprep.subr.bf16.mxu0 0
  %4873 = vmatpush1.bf16.msra.mxu0 0
  %4874 = vmatprep.subr.bf16.mxu0 0
  %4875 = vmatpush1.bf16.msra.mxu0 0
  %4876 = vmatprep.subr.bf16.mxu0 0
  %4877 = vmatpush1.bf16.msra.mxu0 0
  %4878 = vmatprep.subr.bf16.mxu0 0
  %4879 = vmatpush1.bf16.msra.mxu0 0
  %4880 = vmatprep.subr.bf16.mxu0 0
  %4881 = vmatpush1.bf16.msra.mxu0 0
  %4882 = vmatprep.subr.bf16.mxu0 0
  %4883 = vmatpush1.bf16.msra.mxu0 0
  %4884 = vmatprep.mubr.bf16.mxu0 0
  %4885 = vmatmul.mubr.bf16.gmra.mrb[0].mxu0 %v413
  %v4886 = vpop.f32.mrb[0].mxu0
  %v4887 = vadd.f32 0.0, %v4886
  %v4888 = vpop.f32.mrb[0].mxu0
  %v4889 = vadd.f32 0.0, %v4888
  %v4890 = vpop.f32.mrb[0].mxu0
  %v4891 = vadd.f32 0.0, %v4890
  %v4892 = vpop.f32.mrb[0].mxu0
  %v4893 = vadd.f32 0.0, %v4892
  %4894 = vdwg.mxu0
  %4895 = vmatprep.subr.bf16.mxu0 %v4276
  %4896 = vmatpush1.bf16.msra.mxu0 %v4275
  %4897 = vmatprep.subr.bf16.mxu0 %v4424
  %4898 = vmatpush1.bf16.msra.mxu0 %v4421
  %4899 = vmatprep.subr.bf16.mxu0 0
  %4900 = vmatpush1.bf16.msra.mxu0 0
  %4901 = vmatprep.subr.bf16.mxu0 0
  %4902 = vmatpush1.bf16.msra.mxu0 0
  %4903 = vmatprep.subr.bf16.mxu0 0
  %4904 = vmatpush1.bf16.msra.mxu0 0
  %4905 = vmatprep.subr.bf16.mxu0 0
  %4906 = vmatpush1.bf16.msra.mxu0 0
  %4907 = vmatprep.subr.bf16.mxu0 0
  %4908 = vmatpush1.bf16.msra.mxu0 0
  %4909 = vmatprep.subr.bf16.mxu0 0
  %4910 = vmatpush1.bf16.msra.mxu0 0
  %4911 = vmatprep.subr.bf16.mxu0 0
  %4912 = vmatpush1.bf16.msra.mxu0 0
  %4913 = vmatprep.subr.bf16.mxu0 0
  %4914 = vmatpush1.bf16.msra.mxu0 0
  %4915 = vmatprep.subr.bf16.mxu0 0
  %4916 = vmatpush1.bf16.msra.mxu0 0
  %4917 = vmatprep.subr.bf16.mxu0 0
  %4918 = vmatpush1.bf16.msra.mxu0 0
  %4919 = vmatprep.subr.bf16.mxu0 0
  %4920 = vmatpush1.bf16.msra.mxu0 0
  %4921 = vmatprep.subr.bf16.mxu0 0
  %4922 = vmatpush1.bf16.msra.mxu0 0
  %4923 = vmatprep.subr.bf16.mxu0 0
  %4924 = vmatpush1.bf16.msra.mxu0 0
  %4925 = vmatprep.subr.bf16.mxu0 0
  %4926 = vmatpush1.bf16.msra.mxu0 0
  %4927 = vmatprep.mubr.bf16.mxu0 0
  %4928 = vmatmul.mubr.bf16.gmra.mrb[0].mxu0 %v413
  %v4929 = vpop.f32.mrb[0].mxu0
  %v4930 = vadd.f32 0.0, %v4929
  %v4931 = vpop.f32.mrb[0].mxu0
  %v4932 = vadd.f32 0.0, %v4931
  %v4933 = vpop.f32.mrb[0].mxu0
  %v4934 = vadd.f32 0.0, %v4933
  %v4935 = vpop.f32.mrb[0].mxu0
  %v4936 = vadd.f32 0.0, %v4935
  %4937 = vdwg.mxu0
  %4938 = vmatprep.subr.bf16.mxu0 %v4278
  %4939 = vmatpush1.bf16.msra.mxu0 %v4277
  %4940 = vmatprep.subr.bf16.mxu0 %v4430
  %4941 = vmatpush1.bf16.msra.mxu0 %v4427
  %4942 = vmatprep.subr.bf16.mxu0 0
  %4943 = vmatpush1.bf16.msra.mxu0 0
  %4944 = vmatprep.subr.bf16.mxu0 0
  %4945 = vmatpush1.bf16.msra.mxu0 0
  %4946 = vmatprep.subr.bf16.mxu0 0
  %4947 = vmatpush1.bf16.msra.mxu0 0
  %4948 = vmatprep.subr.bf16.mxu0 0
  %4949 = vmatpush1.bf16.msra.mxu0 0
  %4950 = vmatprep.subr.bf16.mxu0 0
  %4951 = vmatpush1.bf16.msra.mxu0 0
  %4952 = vmatprep.subr.bf16.mxu0 0
  %4953 = vmatpush1.bf16.msra.mxu0 0
  %4954 = vmatprep.subr.bf16.mxu0 0
  %4955 = vmatpush1.bf16.msra.mxu0 0
  %4956 = vmatprep.subr.bf16.mxu0 0
  %4957 = vmatpush1.bf16.msra.mxu0 0
  %4958 = vmatprep.subr.bf16.mxu0 0
  %4959 = vmatpush1.bf16.msra.mxu0 0
  %4960 = vmatprep.subr.bf16.mxu0 0
  %4961 = vmatpush1.bf16.msra.mxu0 0
  %4962 = vmatprep.subr.bf16.mxu0 0
  %4963 = vmatpush1.bf16.msra.mxu0 0
  %4964 = vmatprep.subr.bf16.mxu0 0
  %4965 = vmatpush1.bf16.msra.mxu0 0
  %4966 = vmatprep.subr.bf16.mxu0 0
  %4967 = vmatpush1.bf16.msra.mxu0 0
  %4968 = vmatprep.subr.bf16.mxu0 0
  %4969 = vmatpush1.bf16.msra.mxu0 0
  %4970 = vmatprep.mubr.bf16.mxu0 0
  %4971 = vmatmul.mubr.bf16.gmra.mrb[0].mxu0 %v413
  %v4972 = vpop.f32.mrb[0].mxu0
  %v4973 = vadd.f32 0.0, %v4972
  %v4974 = vpop.f32.mrb[0].mxu0
  %v4975 = vadd.f32 0.0, %v4974
  %v4976 = vpop.f32.mrb[0].mxu0
  %v4977 = vadd.f32 0.0, %v4976
  %v4978 = vpop.f32.mrb[0].mxu0
  %v4979 = vadd.f32 0.0, %v4978
  %4980 = vdwg.mxu0
  %4981 = vmatprep.subr.bf16.mxu0 %v4280
  %4982 = vmatpush1.bf16.msra.mxu0 %v4279
  %4983 = vmatprep.subr.bf16.mxu0 %v4436
  %4984 = vmatpush1.bf16.msra.mxu0 %v4433
  %4985 = vmatprep.subr.bf16.mxu0 0
  %4986 = vmatpush1.bf16.msra.mxu0 0
  %4987 = vmatprep.subr.bf16.mxu0 0
  %4988 = vmatpush1.bf16.msra.mxu0 0
  %4989 = vmatprep.subr.bf16.mxu0 0
  %4990 = vmatpush1.bf16.msra.mxu0 0
  %4991 = vmatprep.subr.bf16.mxu0 0
  %4992 = vmatpush1.bf16.msra.mxu0 0
  %4993 = vmatprep.subr.bf16.mxu0 0
  %4994 = vmatpush1.bf16.msra.mxu0 0
  %4995 = vmatprep.subr.bf16.mxu0 0
  %4996 = vmatpush1.bf16.msra.mxu0 0
  %4997 = vmatprep.subr.bf16.mxu0 0
  %4998 = vmatpush1.bf16.msra.mxu0 0
  %4999 = vmatprep.subr.bf16.mxu0 0
  %5000 = vmatpush1.bf16.msra.mxu0 0
  %5001 = vmatprep.subr.bf16.mxu0 0
  %5002 = vmatpush1.bf16.msra.mxu0 0
  %5003 = vmatprep.subr.bf16.mxu0 0
  %5004 = vmatpush1.bf16.msra.mxu0 0
  %5005 = vmatprep.subr.bf16.mxu0 0
  %5006 = vmatpush1.bf16.msra.mxu0 0
  %5007 = vmatprep.subr.bf16.mxu0 0
  %5008 = vmatpush1.bf16.msra.mxu0 0
  %5009 = vmatprep.subr.bf16.mxu0 0
  %5010 = vmatpush1.bf16.msra.mxu0 0
  %5011 = vmatprep.subr.bf16.mxu0 0
  %5012 = vmatpush1.bf16.msra.mxu0 0
  %5013 = vmatprep.mubr.bf16.mxu0 0
  %5014 = vmatmul.mubr.bf16.gmra.mrb[0].mxu0 %v413
  %v5015 = vpop.f32.mrb[0].mxu0
  %v5016 = vadd.f32 0.0, %v5015
  %v5017 = vpop.f32.mrb[0].mxu0
  %v5018 = vadd.f32 0.0, %v5017
  %v5019 = vpop.f32.mrb[0].mxu0
  %v5020 = vadd.f32 0.0, %v5019
  %v5021 = vpop.f32.mrb[0].mxu0
  %v5022 = vadd.f32 0.0, %v5021
  %5023 = vdwg.mxu0
  %5024 = vmatprep.subr.bf16.mxu0 %v4282
  %5025 = vmatpush1.bf16.msra.mxu0 %v4281
  %5026 = vmatprep.subr.bf16.mxu0 %v4442
  %5027 = vmatpush1.bf16.msra.mxu0 %v4439
  %5028 = vmatprep.subr.bf16.mxu0 0
  %5029 = vmatpush1.bf16.msra.mxu0 0
  %5030 = vmatprep.subr.bf16.mxu0 0
  %5031 = vmatpush1.bf16.msra.mxu0 0
  %5032 = vmatprep.subr.bf16.mxu0 0
  %5033 = vmatpush1.bf16.msra.mxu0 0
  %5034 = vmatprep.subr.bf16.mxu0 0
  %5035 = vmatpush1.bf16.msra.mxu0 0
  %5036 = vmatprep.subr.bf16.mxu0 0
  %5037 = vmatpush1.bf16.msra.mxu0 0
  %5038 = vmatprep.subr.bf16.mxu0 0
  %5039 = vmatpush1.bf16.msra.mxu0 0
  %5040 = vmatprep.subr.bf16.mxu0 0
  %5041 = vmatpush1.bf16.msra.mxu0 0
  %5042 = vmatprep.subr.bf16.mxu0 0
  %5043 = vmatpush1.bf16.msra.mxu0 0
  %5044 = vmatprep.subr.bf16.mxu0 0
  %5045 = vmatpush1.bf16.msra.mxu0 0
  %5046 = vmatprep.subr.bf16.mxu0 0
  %5047 = vmatpush1.bf16.msra.mxu0 0
  %5048 = vmatprep.subr.bf16.mxu0 0
  %5049 = vmatpush1.bf16.msra.mxu0 0
  %5050 = vmatprep.subr.bf16.mxu0 0
  %5051 = vmatpush1.bf16.msra.mxu0 0
  %5052 = vmatprep.subr.bf16.mxu0 0
  %5053 = vmatpush1.bf16.msra.mxu0 0
  %5054 = vmatprep.subr.bf16.mxu0 0
  %5055 = vmatpush1.bf16.msra.mxu0 0
  %5056 = vmatprep.mubr.bf16.mxu0 0
  %5057 = vmatmul.mubr.bf16.gmra.mrb[0].mxu0 %v413
  %v5058 = vpop.f32.mrb[0].mxu0
  %v5059 = vadd.f32 0.0, %v5058
  %v5060 = vpop.f32.mrb[0].mxu0
  %v5061 = vadd.f32 0.0, %v5060
  %v5062 = vpop.f32.mrb[0].mxu0
  %v5063 = vadd.f32 0.0, %v5062
  %v5064 = vpop.f32.mrb[0].mxu0
  %v5065 = vadd.f32 0.0, %v5064
  %5066 = vdwg.mxu0
  %5067 = vmatprep.subr.bf16.mxu0 %v4284
  %5068 = vmatpush1.bf16.msra.mxu0 %v4283
  %5069 = vmatprep.subr.bf16.mxu0 %v4448
  %5070 = vmatpush1.bf16.msra.mxu0 %v4445
  %5071 = vmatprep.subr.bf16.mxu0 0
  %5072 = vmatpush1.bf16.msra.mxu0 0
  %5073 = vmatprep.subr.bf16.mxu0 0
  %5074 = vmatpush1.bf16.msra.mxu0 0
  %5075 = vmatprep.subr.bf16.mxu0 0
  %5076 = vmatpush1.bf16.msra.mxu0 0
  %5077 = vmatprep.subr.bf16.mxu0 0
  %5078 = vmatpush1.bf16.msra.mxu0 0
  %5079 = vmatprep.subr.bf16.mxu0 0
  %5080 = vmatpush1.bf16.msra.mxu0 0
  %5081 = vmatprep.subr.bf16.mxu0 0
  %5082 = vmatpush1.bf16.msra.mxu0 0
  %5083 = vmatprep.subr.bf16.mxu0 0
  %5084 = vmatpush1.bf16.msra.mxu0 0
  %5085 = vmatprep.subr.bf16.mxu0 0
  %5086 = vmatpush1.bf16.msra.mxu0 0
  %5087 = vmatprep.subr.bf16.mxu0 0
  %5088 = vmatpush1.bf16.msra.mxu0 0
  %5089 = vmatprep.subr.bf16.mxu0 0
  %5090 = vmatpush1.bf16.msra.mxu0 0
  %5091 = vmatprep.subr.bf16.mxu0 0
  %5092 = vmatpush1.bf16.msra.mxu0 0
  %5093 = vmatprep.subr.bf16.mxu0 0
  %5094 = vmatpush1.bf16.msra.mxu0 0
  %5095 = vmatprep.subr.bf16.mxu0 0
  %5096 = vmatpush1.bf16.msra.mxu0 0
  %5097 = vmatprep.subr.bf16.mxu0 0
  %5098 = vmatpush1.bf16.msra.mxu0 0
  %5099 = vmatprep.mubr.bf16.mxu0 0
  %5100 = vmatmul.mubr.bf16.gmra.mrb[0].mxu0 %v413
  %v5101 = vpop.f32.mrb[0].mxu0
  %v5102 = vadd.f32 0.0, %v5101
  %v5103 = vpop.f32.mrb[0].mxu0
  %v5104 = vadd.f32 0.0, %v5103
  %v5105 = vpop.f32.mrb[0].mxu0
  %v5106 = vadd.f32 0.0, %v5105
  %v5107 = vpop.f32.mrb[0].mxu0
  %v5108 = vadd.f32 0.0, %v5107
  %5109 = vdwg.mxu0
  %5110 = vmatprep.subr.bf16.mxu0 %v4286
  %5111 = vmatpush1.bf16.msra.mxu0 %v4285
  %5112 = vmatprep.subr.bf16.mxu0 %v4454
  %5113 = vmatpush1.bf16.msra.mxu0 %v4451
  %5114 = vmatprep.subr.bf16.mxu0 0
  %5115 = vmatpush1.bf16.msra.mxu0 0
  %5116 = vmatprep.subr.bf16.mxu0 0
  %5117 = vmatpush1.bf16.msra.mxu0 0
  %5118 = vmatprep.subr.bf16.mxu0 0
  %5119 = vmatpush1.bf16.msra.mxu0 0
  %5120 = vmatprep.subr.bf16.mxu0 0
  %5121 = vmatpush1.bf16.msra.mxu0 0
  %5122 = vmatprep.subr.bf16.mxu0 0
  %5123 = vmatpush1.bf16.msra.mxu0 0
  %5124 = vmatprep.subr.bf16.mxu0 0
  %5125 = vmatpush1.bf16.msra.mxu0 0
  %5126 = vmatprep.subr.bf16.mxu0 0
  %5127 = vmatpush1.bf16.msra.mxu0 0
  %5128 = vmatprep.subr.bf16.mxu0 0
  %5129 = vmatpush1.bf16.msra.mxu0 0
  %5130 = vmatprep.subr.bf16.mxu0 0
  %5131 = vmatpush1.bf16.msra.mxu0 0
  %5132 = vmatprep.subr.bf16.mxu0 0
  %5133 = vmatpush1.bf16.msra.mxu0 0
  %5134 = vmatprep.subr.bf16.mxu0 0
  %5135 = vmatpush1.bf16.msra.mxu0 0
  %5136 = vmatprep.subr.bf16.mxu0 0
  %5137 = vmatpush1.bf16.msra.mxu0 0
  %5138 = vmatprep.subr.bf16.mxu0 0
  %5139 = vmatpush1.bf16.msra.mxu0 0
  %5140 = vmatprep.subr.bf16.mxu0 0
  %5141 = vmatpush1.bf16.msra.mxu0 0
  %5142 = vmatprep.mubr.bf16.mxu0 0
  %5143 = vmatmul.mubr.bf16.gmra.mrb[0].mxu0 %v413
  %v5144 = vpop.f32.mrb[0].mxu0
  %v5145 = vadd.f32 0.0, %v5144
  %v5146 = vpop.f32.mrb[0].mxu0
  %v5147 = vadd.f32 0.0, %v5146
  %v5148 = vpop.f32.mrb[0].mxu0
  %v5149 = vadd.f32 0.0, %v5148
  %v5150 = vpop.f32.mrb[0].mxu0
  %v5151 = vadd.f32 0.0, %v5150
  %5152 = vdwg.mxu0
  %5153 = vmatprep.subr.bf16.mxu0 %v4288
  %5154 = vmatpush1.bf16.msra.mxu0 %v4287
  %5155 = vmatprep.subr.bf16.mxu0 %v4460
  %5156 = vmatpush1.bf16.msra.mxu0 %v4457
  %5157 = vmatprep.subr.bf16.mxu0 0
  %5158 = vmatpush1.bf16.msra.mxu0 0
  %5159 = vmatprep.subr.bf16.mxu0 0
  %5160 = vmatpush1.bf16.msra.mxu0 0
  %5161 = vmatprep.subr.bf16.mxu0 0
  %5162 = vmatpush1.bf16.msra.mxu0 0
  %5163 = vmatprep.subr.bf16.mxu0 0
  %5164 = vmatpush1.bf16.msra.mxu0 0
  %5165 = vmatprep.subr.bf16.mxu0 0
  %5166 = vmatpush1.bf16.msra.mxu0 0
  %5167 = vmatprep.subr.bf16.mxu0 0
  %5168 = vmatpush1.bf16.msra.mxu0 0
  %5169 = vmatprep.subr.bf16.mxu0 0
  %5170 = vmatpush1.bf16.msra.mxu0 0
  %5171 = vmatprep.subr.bf16.mxu0 0
  %5172 = vmatpush1.bf16.msra.mxu0 0
  %5173 = vmatprep.subr.bf16.mxu0 0
  %5174 = vmatpush1.bf16.msra.mxu0 0
  %5175 = vmatprep.subr.bf16.mxu0 0
  %5176 = vmatpush1.bf16.msra.mxu0 0
  %5177 = vmatprep.subr.bf16.mxu0 0
  %5178 = vmatpush1.bf16.msra.mxu0 0
  %5179 = vmatprep.subr.bf16.mxu0 0
  %5180 = vmatpush1.bf16.msra.mxu0 0
  %5181 = vmatprep.subr.bf16.mxu0 0
  %5182 = vmatpush1.bf16.msra.mxu0 0
  %5183 = vmatprep.subr.bf16.mxu0 0
  %5184 = vmatpush1.bf16.msra.mxu0 0
  %5185 = vmatprep.mubr.bf16.mxu0 0
  %5186 = vmatmul.mubr.bf16.gmra.mrb[0].mxu0 %v413
  %v5187 = vpop.f32.mrb[0].mxu0
  %v5188 = vadd.f32 0.0, %v5187
  %v5189 = vpop.f32.mrb[0].mxu0
  %v5190 = vadd.f32 0.0, %v5189
  %v5191 = vpop.f32.mrb[0].mxu0
  %v5192 = vadd.f32 0.0, %v5191
  %v5193 = vpop.f32.mrb[0].mxu0
  %v5194 = vadd.f32 0.0, %v5193
  %5195 = vdwg.mxu0
  %5196 = vmatprep.subr.bf16.mxu0 0
  %5197 = vmatpush1.bf16.msra.mxu0 %v4289
  %5198 = vmatprep.subr.bf16.mxu0 0
  %5199 = vmatpush1.bf16.msra.mxu0 %v4463
  %5200 = vmatprep.subr.bf16.mxu0 0
  %5201 = vmatpush1.bf16.msra.mxu0 0
  %5202 = vmatprep.subr.bf16.mxu0 0
  %5203 = vmatpush1.bf16.msra.mxu0 0
  %5204 = vmatprep.subr.bf16.mxu0 0
  %5205 = vmatpush1.bf16.msra.mxu0 0
  %5206 = vmatprep.subr.bf16.mxu0 0
  %5207 = vmatpush1.bf16.msra.mxu0 0
  %5208 = vmatprep.subr.bf16.mxu0 0
  %5209 = vmatpush1.bf16.msra.mxu0 0
  %5210 = vmatprep.subr.bf16.mxu0 0
  %5211 = vmatpush1.bf16.msra.mxu0 0
  %5212 = vmatprep.subr.bf16.mxu0 0
  %5213 = vmatpush1.bf16.msra.mxu0 0
  %5214 = vmatprep.subr.bf16.mxu0 0
  %5215 = vmatpush1.bf16.msra.mxu0 0
  %5216 = vmatprep.subr.bf16.mxu0 0
  %5217 = vmatpush1.bf16.msra.mxu0 0
  %5218 = vmatprep.subr.bf16.mxu0 0
  %5219 = vmatpush1.bf16.msra.mxu0 0
  %5220 = vmatprep.subr.bf16.mxu0 0
  %5221 = vmatpush1.bf16.msra.mxu0 0
  %5222 = vmatprep.subr.bf16.mxu0 0
  %5223 = vmatpush1.bf16.msra.mxu0 0
  %5224 = vmatprep.subr.bf16.mxu0 0
  %5225 = vmatpush1.bf16.msra.mxu0 0
  %5226 = vmatprep.subr.bf16.mxu0 0
  %5227 = vmatpush1.bf16.msra.mxu0 0
  %5228 = vmatprep.mubr.bf16.mxu0 0
  %5229 = vmatmul.mubr.bf16.gmra.mrb[0].mxu0 %v413
  %v5230 = vpop.f32.mrb[0].mxu0
  %v5231 = vadd.f32 0.0, %v5230
  %v5232 = vpop.f32.mrb[0].mxu0
  %v5233 = vpop.f32.mrb[0].mxu0
  %v5234 = vadd.f32 0.0, %v5233
  %v5235 = vpop.f32.mrb[0].mxu0
  %5236 = vdwg.mxu0
  %v5237 = vmax.f32 %v3900, %v4500
  %v5238 = vmax.f32 %v3901, %v4502
  %v5239 = vmax.f32 %v3902, %v4543
  %v5240 = vmax.f32 %v3903, %v4545
  %v5241 = vmax.f32 %v3904, %v4586
  %v5242 = vmax.f32 %v3905, %v4588
  %v5243 = vmax.f32 %v3906, %v4629
  %v5244 = vmax.f32 %v3907, %v4631
  %v5245 = vmax.f32 %v3908, %v4672
  %v5246 = vmax.f32 %v3909, %v4674
  %v5247 = vmax.f32 %v3910, %v4715
  %v5248 = vmax.f32 %v3911, %v4717
  %v5249 = vmax.f32 %v3912, %v4758
  %v5250 = vmax.f32 %v3913, %v4760
  %v5251 = vmax.f32 %v3914, %v4801
  %v5252 = vmax.f32 %v3915, %v4803
  %v5253 = vmax.f32 %v3916, %v4844
  %v5254 = vmax.f32 %v3917, %v4846
  %v5255 = vmax.f32 %v3918, %v4887
  %v5256 = vmax.f32 %v3919, %v4889
  %v5257 = vmax.f32 %v3920, %v4930
  %v5258 = vmax.f32 %v3921, %v4932
  %v5259 = vmax.f32 %v3922, %v4973
  %v5260 = vmax.f32 %v3923, %v4975
  %v5261 = vmax.f32 %v3924, %v5016
  %v5262 = vmax.f32 %v3925, %v5018
  %v5263 = vmax.f32 %v3926, %v5059
  %v5264 = vmax.f32 %v3927, %v5061
  %v5265 = vmax.f32 %v3928, %v5102
  %v5266 = vmax.f32 %v3929, %v5104
  %v5267 = vmax.f32 %v3930, %v5145
  %v5268 = vmax.f32 %v3931, %v5147
  %v5269 = vmax.f32 %v3932, %v5188
  %v5270 = vmax.f32 %v3933, %v5190
  %v5271 = vmax.f32 %v3934, %v5231
  %v5272 = vmax.f32 %v3935, %v4504
  %v5273 = vmax.f32 %v3936, %v4506
  %v5274 = vmax.f32 %v3937, %v4547
  %v5275 = vmax.f32 %v3938, %v4549
  %v5276 = vmax.f32 %v3939, %v4590
  %v5277 = vmax.f32 %v3940, %v4592
  %v5278 = vmax.f32 %v3941, %v4633
  %v5279 = vmax.f32 %v3942, %v4635
  %v5280 = vmax.f32 %v3943, %v4676
  %v5281 = vmax.f32 %v3944, %v4678
  %v5282 = vmax.f32 %v3945, %v4719
  %v5283 = vmax.f32 %v3946, %v4721
  %v5284 = vmax.f32 %v3947, %v4762
  %v5285 = vmax.f32 %v3948, %v4764
  %v5286 = vmax.f32 %v3949, %v4805
  %v5287 = vmax.f32 %v3950, %v4807
  %v5288 = vmax.f32 %v3951, %v4848
  %v5289 = vmax.f32 %v3952, %v4850
  %v5290 = vmax.f32 %v3953, %v4891
  %v5291 = vmax.f32 %v3954, %v4893
  %v5292 = vmax.f32 %v3955, %v4934
  %v5293 = vmax.f32 %v3956, %v4936
  %v5294 = vmax.f32 %v3957, %v4977
  %v5295 = vmax.f32 %v3958, %v4979
  %v5296 = vmax.f32 %v3959, %v5020
  %v5297 = vmax.f32 %v3960, %v5022
  %v5298 = vmax.f32 %v3961, %v5063
  %v5299 = vmax.f32 %v3962, %v5065
  %v5300 = vmax.f32 %v3963, %v5106
  %v5301 = vmax.f32 %v3964, %v5108
  %v5302 = vmax.f32 %v3965, %v5149
  %v5303 = vmax.f32 %v3966, %v5151
  %v5304 = vmax.f32 %v3967, %v5192
  %v5305 = vmax.f32 %v3968, %v5194
  %v5306 = vmax.f32 %v3969, %v5234
  %v5307 = vld [vmem:[%s2] sm:$0xff]
  %v5308 = vld [vmem:[%s2 + $0x8] sm:$0xff]
  %5310 = vset.pattern.permute.xlu0 0
  %5311 = vperm.xlu0 %5310, %v5307
  %v5312 = vpop.permute.xlu0 %5311
  %5315 = vset.pattern.permute.xlu0 0
  %5316 = vperm.xlu0 %5315, %v5308
  %v5317 = vpop.permute.xlu0 %5316
  %v5319 = vadd.f32 %v5237, %v5312
  %v5320 = vadd.f32 %v5238, %v5312
  %v5321 = vadd.f32 %v5239, %v5312
  %v5322 = vadd.f32 %v5240, %v5312
  %v5323 = vadd.f32 %v5241, %v5312
  %v5324 = vadd.f32 %v5242, %v5312
  %v5325 = vadd.f32 %v5243, %v5312
  %v5326 = vadd.f32 %v5244, %v5312
  %v5327 = vadd.f32 %v5245, %v5312
  %v5328 = vadd.f32 %v5246, %v5312
  %v5329 = vadd.f32 %v5247, %v5312
  %v5330 = vadd.f32 %v5248, %v5312
  %v5331 = vadd.f32 %v5249, %v5312
  %v5332 = vadd.f32 %v5250, %v5312
  %v5333 = vadd.f32 %v5251, %v5312
  %v5334 = vadd.f32 %v5252, %v5312
  %v5335 = vadd.f32 %v5253, %v5312
  %v5336 = vadd.f32 %v5254, %v5312
  %v5337 = vadd.f32 %v5255, %v5312
  %v5338 = vadd.f32 %v5256, %v5312
  %v5339 = vadd.f32 %v5257, %v5312
  %v5340 = vadd.f32 %v5258, %v5312
  %v5341 = vadd.f32 %v5259, %v5312
  %v5342 = vadd.f32 %v5260, %v5312
  %v5343 = vadd.f32 %v5261, %v5312
  %v5344 = vadd.f32 %v5262, %v5312
  %v5345 = vadd.f32 %v5263, %v5312
  %v5346 = vadd.f32 %v5264, %v5312
  %v5347 = vadd.f32 %v5265, %v5312
  %v5348 = vadd.f32 %v5266, %v5312
  %v5349 = vadd.f32 %v5267, %v5312
  %v5350 = vadd.f32 %v5268, %v5312
  %v5351 = vadd.f32 %v5269, %v5312
  %v5352 = vadd.f32 %v5270, %v5312
  %v5353 = vadd.f32 %v5271, %v5312
  %v5354 = vadd.f32 %v5272, %v5317
  %v5355 = vadd.f32 %v5273, %v5317
  %v5356 = vadd.f32 %v5274, %v5317
  %v5357 = vadd.f32 %v5275, %v5317
  %v5358 = vadd.f32 %v5276, %v5317
  %v5359 = vadd.f32 %v5277, %v5317
  %v5360 = vadd.f32 %v5278, %v5317
  %v5361 = vadd.f32 %v5279, %v5317
  %v5362 = vadd.f32 %v5280, %v5317
  %v5363 = vadd.f32 %v5281, %v5317
  %v5364 = vadd.f32 %v5282, %v5317
  %v5365 = vadd.f32 %v5283, %v5317
  %v5366 = vadd.f32 %v5284, %v5317
  %v5367 = vadd.f32 %v5285, %v5317
  %v5368 = vadd.f32 %v5286, %v5317
  %v5369 = vadd.f32 %v5287, %v5317
  %v5370 = vadd.f32 %v5288, %v5317
  %v5371 = vadd.f32 %v5289, %v5317
  %v5372 = vadd.f32 %v5290, %v5317
  %v5373 = vadd.f32 %v5291, %v5317
  %v5374 = vadd.f32 %v5292, %v5317
  %v5375 = vadd.f32 %v5293, %v5317
  %v5376 = vadd.f32 %v5294, %v5317
  %v5377 = vadd.f32 %v5295, %v5317
  %v5378 = vadd.f32 %v5296, %v5317
  %v5379 = vadd.f32 %v5297, %v5317
  %v5380 = vadd.f32 %v5298, %v5317
  %v5381 = vadd.f32 %v5299, %v5317
  %v5382 = vadd.f32 %v5300, %v5317
  %v5383 = vadd.f32 %v5301, %v5317
  %v5384 = vadd.f32 %v5302, %v5317
  %v5385 = vadd.f32 %v5303, %v5317
  %v5386 = vadd.f32 %v5304, %v5317
  %v5387 = vadd.f32 %v5305, %v5317
  %v5388 = vadd.f32 %v5306, %v5317
  %v5389 = vmax.f32 %v5319, 0.0
  %v5390 = vmax.f32 %v5320, 0.0
  %v5391 = vmax.f32 %v5321, 0.0
  %v5392 = vmax.f32 %v5322, 0.0
  %v5393 = vmax.f32 %v5323, 0.0
  %v5394 = vmax.f32 %v5324, 0.0
  %v5395 = vmax.f32 %v5325, 0.0
  %v5396 = vmax.f32 %v5326, 0.0
  %v5397 = vmax.f32 %v5327, 0.0
  %v5398 = vmax.f32 %v5328, 0.0
  %v5399 = vmax.f32 %v5329, 0.0
  %v5400 = vmax.f32 %v5330, 0.0
  %v5401 = vmax.f32 %v5331, 0.0
  %v5402 = vmax.f32 %v5332, 0.0
  %v5403 = vmax.f32 %v5333, 0.0
  %v5404 = vmax.f32 %v5334, 0.0
  %v5405 = vmax.f32 %v5335, 0.0
  %v5406 = vmax.f32 %v5336, 0.0
  %v5407 = vmax.f32 %v5337, 0.0
  %v5408 = vmax.f32 %v5338, 0.0
  %v5409 = vmax.f32 %v5339, 0.0
  %v5410 = vmax.f32 %v5340, 0.0
  %v5411 = vmax.f32 %v5341, 0.0
  %v5412 = vmax.f32 %v5342, 0.0
  %v5413 = vmax.f32 %v5343, 0.0
  %v5414 = vmax.f32 %v5344, 0.0
  %v5415 = vmax.f32 %v5345, 0.0
  %v5416 = vmax.f32 %v5346, 0.0
  %v5417 = vmax.f32 %v5347, 0.0
  %v5418 = vmax.f32 %v5348, 0.0
  %v5419 = vmax.f32 %v5349, 0.0
  %v5420 = vmax.f32 %v5350, 0.0
  %v5421 = vmax.f32 %v5351, 0.0
  %v5422 = vmax.f32 %v5352, 0.0
  %v5423 = vmax.f32 %v5353, 0.0
  %v5424 = vmax.f32 %v5354, 0.0
  %v5425 = vmax.f32 %v5355, 0.0
  %v5426 = vmax.f32 %v5356, 0.0
  %v5427 = vmax.f32 %v5357, 0.0
  %v5428 = vmax.f32 %v5358, 0.0
  %v5429 = vmax.f32 %v5359, 0.0
  %v5430 = vmax.f32 %v5360, 0.0
  %v5431 = vmax.f32 %v5361, 0.0
  %v5432 = vmax.f32 %v5362, 0.0
  %v5433 = vmax.f32 %v5363, 0.0
  %v5434 = vmax.f32 %v5364, 0.0
  %v5435 = vmax.f32 %v5365, 0.0
  %v5436 = vmax.f32 %v5366, 0.0
  %v5437 = vmax.f32 %v5367, 0.0
  %v5438 = vmax.f32 %v5368, 0.0
  %v5439 = vmax.f32 %v5369, 0.0
  %v5440 = vmax.f32 %v5370, 0.0
  %v5441 = vmax.f32 %v5371, 0.0
  %v5442 = vmax.f32 %v5372, 0.0
  %v5443 = vmax.f32 %v5373, 0.0
  %v5444 = vmax.f32 %v5374, 0.0
  %v5445 = vmax.f32 %v5375, 0.0
  %v5446 = vmax.f32 %v5376, 0.0
  %v5447 = vmax.f32 %v5377, 0.0
  %v5448 = vmax.f32 %v5378, 0.0
  %v5449 = vmax.f32 %v5379, 0.0
  %v5450 = vmax.f32 %v5380, 0.0
  %v5451 = vmax.f32 %v5381, 0.0
  %v5452 = vmax.f32 %v5382, 0.0
  %v5453 = vmax.f32 %v5383, 0.0
  %v5454 = vmax.f32 %v5384, 0.0
  %v5455 = vmax.f32 %v5385, 0.0
  %v5456 = vmax.f32 %v5386, 0.0
  %v5457 = vmax.f32 %v5387, 0.0
  %v5458 = vmax.f32 %v5388, 0.0
  %v5459 = vpack.c.bf16 %v5424, %v5389
  %v5460 = vpack.c.bf16 %v5425, %v5390
  %v5461 = vpack.c.bf16 %v5426, %v5391
  %v5462 = vpack.c.bf16 %v5427, %v5392
  %v5463 = vpack.c.bf16 %v5428, %v5393
  %v5464 = vpack.c.bf16 %v5429, %v5394
  %v5465 = vpack.c.bf16 %v5430, %v5395
  %v5466 = vpack.c.bf16 %v5431, %v5396
  %v5467 = vpack.c.bf16 %v5432, %v5397
  %v5468 = vpack.c.bf16 %v5433, %v5398
  %v5469 = vpack.c.bf16 %v5434, %v5399
  %v5470 = vpack.c.bf16 %v5435, %v5400
  %v5471 = vpack.c.bf16 %v5436, %v5401
  %v5472 = vpack.c.bf16 %v5437, %v5402
  %v5473 = vpack.c.bf16 %v5438, %v5403
  %v5474 = vpack.c.bf16 %v5439, %v5404
  %v5475 = vpack.c.bf16 %v5440, %v5405
  %v5476 = vpack.c.bf16 %v5441, %v5406
  %v5477 = vpack.c.bf16 %v5442, %v5407
  %v5478 = vpack.c.bf16 %v5443, %v5408
  %v5479 = vpack.c.bf16 %v5444, %v5409
  %v5480 = vpack.c.bf16 %v5445, %v5410
  %v5481 = vpack.c.bf16 %v5446, %v5411
  %v5482 = vpack.c.bf16 %v5447, %v5412
  %v5483 = vpack.c.bf16 %v5448, %v5413
  %v5484 = vpack.c.bf16 %v5449, %v5414
  %v5485 = vpack.c.bf16 %v5450, %v5415
  %v5486 = vpack.c.bf16 %v5451, %v5416
  %v5487 = vpack.c.bf16 %v5452, %v5417
  %v5488 = vpack.c.bf16 %v5453, %v5418
  %v5489 = vpack.c.bf16 %v5454, %v5419
  %v5490 = vpack.c.bf16 %v5455, %v5420
  %v5491 = vpack.c.bf16 %v5456, %v5421
  %v5492 = vpack.c.bf16 %v5457, %v5422
  %v5493 = vpack.c.bf16 %v5458, %v5423
  %v5529 = vunpack.c.l.b16 %v5459
  %v5530 = vunpack.c.l.b16 %v5460
  %v5531 = vunpack.c.l.b16 %v5461
  %v5532 = vunpack.c.l.b16 %v5462
  %v5533 = vunpack.c.l.b16 %v5463
  %v5534 = vunpack.c.l.b16 %v5464
  %v5535 = vunpack.c.l.b16 %v5465
  %v5536 = vunpack.c.l.b16 %v5466
  %v5537 = vunpack.c.l.b16 %v5467
  %v5538 = vunpack.c.l.b16 %v5468
  %v5539 = vunpack.c.l.b16 %v5469
  %v5540 = vunpack.c.l.b16 %v5470
  %v5541 = vunpack.c.l.b16 %v5471
  %v5542 = vunpack.c.l.b16 %v5472
  %v5543 = vunpack.c.l.b16 %v5473
  %v5544 = vunpack.c.l.b16 %v5474
  %v5545 = vunpack.c.l.b16 %v5475
  %v5546 = vunpack.c.l.b16 %v5476
  %v5547 = vunpack.c.l.b16 %v5477
  %v5548 = vunpack.c.l.b16 %v5478
  %v5549 = vunpack.c.l.b16 %v5479
  %v5550 = vunpack.c.l.b16 %v5480
  %v5551 = vunpack.c.l.b16 %v5481
  %v5552 = vunpack.c.l.b16 %v5482
  %v5553 = vunpack.c.l.b16 %v5483
  %v5554 = vunpack.c.l.b16 %v5484
  %v5555 = vunpack.c.l.b16 %v5485
  %v5556 = vunpack.c.l.b16 %v5486
  %v5557 = vunpack.c.l.b16 %v5487
  %v5558 = vunpack.c.l.b16 %v5488
  %v5559 = vunpack.c.l.b16 %v5489
  %v5560 = vunpack.c.l.b16 %v5490
  %v5561 = vunpack.c.l.b16 %v5491
  %v5562 = vunpack.c.l.b16 %v5492
  %v5563 = vunpack.c.l.b16 %v5493
  %v5564 = vunpack.c.h.b16 %v5459
  %v5565 = vunpack.c.h.b16 %v5460
  %v5566 = vunpack.c.h.b16 %v5461
  %v5567 = vunpack.c.h.b16 %v5462
  %v5568 = vunpack.c.h.b16 %v5463
  %v5569 = vunpack.c.h.b16 %v5464
  %v5570 = vunpack.c.h.b16 %v5465
  %v5571 = vunpack.c.h.b16 %v5466
  %v5572 = vunpack.c.h.b16 %v5467
  %v5573 = vunpack.c.h.b16 %v5468
  %v5574 = vunpack.c.h.b16 %v5469
  %v5575 = vunpack.c.h.b16 %v5470
  %v5576 = vunpack.c.h.b16 %v5471
  %v5577 = vunpack.c.h.b16 %v5472
  %v5578 = vunpack.c.h.b16 %v5473
  %v5579 = vunpack.c.h.b16 %v5474
  %v5580 = vunpack.c.h.b16 %v5475
  %v5581 = vunpack.c.h.b16 %v5476
  %v5582 = vunpack.c.h.b16 %v5477
  %v5583 = vunpack.c.h.b16 %v5478
  %v5584 = vunpack.c.h.b16 %v5479
  %v5585 = vunpack.c.h.b16 %v5480
  %v5586 = vunpack.c.h.b16 %v5481
  %v5587 = vunpack.c.h.b16 %v5482
  %v5588 = vunpack.c.h.b16 %v5483
  %v5589 = vunpack.c.h.b16 %v5484
  %v5590 = vunpack.c.h.b16 %v5485
  %v5591 = vunpack.c.h.b16 %v5486
  %v5592 = vunpack.c.h.b16 %v5487
  %v5593 = vunpack.c.h.b16 %v5488
  %v5594 = vunpack.c.h.b16 %v5489
  %v5595 = vunpack.c.h.b16 %v5490
  %v5596 = vunpack.c.h.b16 %v5491
  %v5597 = vunpack.c.h.b16 %v5492
  %v5598 = vunpack.c.h.b16 %v5493
  %v5599 = vpack.c.b16 %v5530, %v5529
  %v5600 = vpack.c.b16 %v5532, %v5531
  %v5601 = vpack.c.b16 %v5534, %v5533
  %v5602 = vpack.c.b16 %v5536, %v5535
  %v5603 = vpack.c.b16 %v5538, %v5537
  %v5604 = vpack.c.b16 %v5540, %v5539
  %v5605 = vpack.c.b16 %v5542, %v5541
  %v5606 = vpack.c.b16 %v5544, %v5543
  %v5607 = vpack.c.b16 %v5546, %v5545
  %v5608 = vpack.c.b16 %v5548, %v5547
  %v5609 = vpack.c.b16 %v5550, %v5549
  %v5610 = vpack.c.b16 %v5552, %v5551
  %v5611 = vpack.c.b16 %v5554, %v5553
  %v5612 = vpack.c.b16 %v5556, %v5555
  %v5613 = vpack.c.b16 %v5558, %v5557
  %v5614 = vpack.c.b16 %v5560, %v5559
  %v5615 = vpack.c.b16 %v5562, %v5561
  %v5616 = vpack.c.b16 %v5563, %v5563
  %v5617 = vpack.c.b16 %v5565, %v5564
  %v5618 = vpack.c.b16 %v5567, %v5566
  %v5619 = vpack.c.b16 %v5569, %v5568
  %v5620 = vpack.c.b16 %v5571, %v5570
  %v5621 = vpack.c.b16 %v5573, %v5572
  %v5622 = vpack.c.b16 %v5575, %v5574
  %v5623 = vpack.c.b16 %v5577, %v5576
  %v5624 = vpack.c.b16 %v5579, %v5578
  %v5625 = vpack.c.b16 %v5581, %v5580
  %v5626 = vpack.c.b16 %v5583, %v5582
  %v5627 = vpack.c.b16 %v5585, %v5584
  %v5628 = vpack.c.b16 %v5587, %v5586
  %v5629 = vpack.c.b16 %v5589, %v5588
  %v5630 = vpack.c.b16 %v5591, %v5590
  %v5631 = vpack.c.b16 %v5593, %v5592
  %v5632 = vpack.c.b16 %v5595, %v5594
  %v5633 = vpack.c.b16 %v5597, %v5596
  %v5634 = vpack.c.b16 %v5598, %v5598
  %5671 = vst [vmem:[%s3] sm:$0xff] %v5599
  %5672 = vst [vmem:[%s3 + $0x8] sm:$0xff] %v5600
  %5673 = vst [vmem:[%s3 + $0x10] sm:$0xff] %v5601
  %5674 = vst [vmem:[%s3 + $0x18] sm:$0xff] %v5602
  %5675 = vst [vmem:[%s3 + $0x20] sm:$0xff] %v5603
  %5676 = vst [vmem:[%s3 + $0x28] sm:$0xff] %v5604
  %5677 = vst [vmem:[%s3 + $0x30] sm:$0xff] %v5605
  %5678 = vst [vmem:[%s3 + $0x38] sm:$0xff] %v5606
  %5679 = vst [vmem:[%s3 + $0x40] sm:$0xff] %v5607
  %5680 = vst [vmem:[%s3 + $0x48] sm:$0xff] %v5608
  %5681 = vst [vmem:[%s3 + $0x50] sm:$0xff] %v5609
  %5682 = vst [vmem:[%s3 + $0x58] sm:$0xff] %v5610
  %5683 = vst [vmem:[%s3 + $0x60] sm:$0xff] %v5611
  %5684 = vst [vmem:[%s3 + $0x68] sm:$0xff] %v5612
  %5685 = vst [vmem:[%s3 + $0x70] sm:$0xff] %v5613
  %5686 = vst [vmem:[%s3 + $0x78] sm:$0xff] %v5614
  %5687 = vst [vmem:[%s3 + $0x80] sm:$0xff] %v5615
  %vm5688 = vcmask 535552
  %5689 = vst.msk [vmem:[%s3 + $0x88] sm:$0xf] %vm5688, %v5616
  %5690 = vst [vmem:[%s3 + $0x8c] sm:$0xff] %v5617
  %5691 = vst [vmem:[%s3 + $0x94] sm:$0xff] %v5618
  %5692 = vst [vmem:[%s3 + $0x9c] sm:$0xff] %v5619
  %5693 = vst [vmem:[%s3 + $0xa4] sm:$0xff] %v5620
  %5694 = vst [vmem:[%s3 + $0xac] sm:$0xff] %v5621
  %5695 = vst [vmem:[%s3 + $0xb4] sm:$0xff] %v5622
  %5696 = vst [vmem:[%s3 + $0xbc] sm:$0xff] %v5623
  %5697 = vst [vmem:[%s3 + $0xc4] sm:$0xff] %v5624
  %5698 = vst [vmem:[%s3 + $0xcc] sm:$0xff] %v5625
  %5699 = vst [vmem:[%s3 + $0xd4] sm:$0xff] %v5626
  %5700 = vst [vmem:[%s3 + $0xdc] sm:$0xff] %v5627
  %5701 = vst [vmem:[%s3 + $0xe4] sm:$0xff] %v5628
  %5702 = vst [vmem:[%s3 + $0xec] sm:$0xff] %v5629
  %5703 = vst [vmem:[%s3 + $0xf4] sm:$0xff] %v5630
  %5704 = vst [vmem:[%s3 + $0xfc] sm:$0xff] %v5631
  %5705 = vst [vmem:[%s3 + $0x104] sm:$0xff] %v5632
  %5706 = vst [vmem:[%s3 + $0x10c] sm:$0xff] %v5633
  %5707 = vst.msk [vmem:[%s3 + $0x114] sm:$0xf] %vm5688, %v5634
  // Predicated region
  $region14: #{my_model_forward.3} parent=0 // pred_check
    _
  $region15: #{my_model_forward.3} parent=0 // pred_check_branch
    %5709 = sbr.rel (0) target = $region17
  $region16: #{my_model_forward.3} parent=0 // pred_region
    _
  $region17: #{my_model_forward.3} parent=0 // pred_fallthru
    _
  // Predicated region
  $region18: #{my_model_forward.3} parent=0 // pred_check
    _
  $region19: #{my_model_forward.3} parent=0 // pred_check_branch
    %5711 = sbr.rel (0) target = $region21
  $region20: #{my_model_forward.3} parent=0 // pred_region
    _
  $region21: #{my_model_forward.3} parent=0 // pred_fallthru
    _

// kernel: my_model_forward.4
$region0: #{my_model_forward.4}
  #allocation0 [shape = 'u32[]', space=smem, size = 0x4, offset = 0x4, fixed_abs, tag = 'smem constant byte address 0x4 - core index']
  #allocation1 [shape = 'u32[144,128]{1,0:T(1,128)}', space=vmem, size = 0x12000, scoped, tag = 'internal scratch']
  %s0 = inlined_call_operand.vmem [shape: bf16[4,144,242], index: 0, kind: input, shape index: {}]
  %s1 = inlined_call_operand.vmem [shape: bf16[32,144], index: 1, kind: input, shape index: {}]
  %s2 = inlined_call_operand.vmem [shape: f32[32,1], index: 2, kind: input, shape index: {}]
  %s3 = inlined_call_operand.vmem [shape: bf16[32,242], index: 3, kind: output, shape index: {}]
  %s4 = sld [smem:[#allocation0]]
  $region22: #{my_model_forward.4} parent=0
    _
  %s6 = ssub.s32 1, %s4
  %s7 = scalar_select 0, %s6, %s4
  // Predicated region
  $region2: #{my_model_forward.4} parent=0 // pred_check
    _
  $region3: #{my_model_forward.4} parent=0 // pred_check_branch
    %9 = sbr.rel (0) target = $region5
  $region4: #{my_model_forward.4} parent=0 // pred_region
    _
  $region5: #{my_model_forward.4} parent=0 // pred_fallthru
    _
  // Predicated region
  $region6: #{my_model_forward.4} parent=0 // pred_check
    _
  $region7: #{my_model_forward.4} parent=0 // pred_check_branch
    %11 = sbr.rel (0) target = $region9
  $region8: #{my_model_forward.4} parent=0 // pred_region
    _
  $region9: #{my_model_forward.4} parent=0 // pred_fallthru
    _
  // Predicated region
  $region10: #{my_model_forward.4} parent=0 // pred_check
    _
  $region11: #{my_model_forward.4} parent=0 // pred_check_branch
    %13 = sbr.rel (0) target = $region13
  $region12: #{my_model_forward.4} parent=0 // pred_region
    _
  $region13: #{my_model_forward.4} parent=0 // pred_fallthru
    _
  %v15 = vld [vmem:[%s1] sm:$0xff]
  %v16 = vld [vmem:[%s1 + $0x8] sm:$0xff]
  %v17 = vld [vmem:[%s1 + $0x10] sm:$0xff]
  %v18 = vld [vmem:[%s1 + $0x18] sm:$0xff]
  %v19 = vld [vmem:[%s0] sm:$0xff]
  %v20 = vld [vmem:[%s0 + $0x8] sm:$0xff]
  %v21 = vld [vmem:[%s0 + $0x10] sm:$0xff]
  %v22 = vld [vmem:[%s0 + $0x18] sm:$0xff]
  %v23 = vld [vmem:[%s0 + $0x20] sm:$0xff]
  %v24 = vld [vmem:[%s0 + $0x28] sm:$0xff]
  %v25 = vld [vmem:[%s0 + $0x30] sm:$0xff]
  %v26 = vld [vmem:[%s0 + $0x38] sm:$0xff]
  %v27 = vld [vmem:[%s0 + $0x40] sm:$0xff]
  %v28 = vld [vmem:[%s0 + $0x48] sm:$0xff]
  %v29 = vld [vmem:[%s0 + $0x50] sm:$0xff]
  %v30 = vld [vmem:[%s0 + $0x58] sm:$0xff]
  %v31 = vld [vmem:[%s0 + $0x60] sm:$0xff]
  %v32 = vld [vmem:[%s0 + $0x68] sm:$0xff]
  %v33 = vld [vmem:[%s0 + $0x70] sm:$0xff]
  %v34 = vld [vmem:[%s0 + $0x78] sm:$0xff]
  %v35 = vld [vmem:[%s0 + $0x80] sm:$0xff]
  %v36 = vld [vmem:[%s0 + $0x88] sm:$0xff]
  %v41 = vunpack.c.l.b16 %v15
  %v42 = vunpack.c.h.b16 %v15
  %v43 = vunpack.c.l.b16 %v16
  %v44 = vunpack.c.h.b16 %v16
  %v45 = vunpack.c.l.b16 %v17
  %v46 = vunpack.c.h.b16 %v17
  %v47 = vunpack.c.l.b16 %v18
  %v48 = vunpack.c.h.b16 %v18
  %v49 = vpack.c.b16 %v43, %v41
  %v50 = vpack.c.b16 %v44, %v42
  %v51 = vpack.c.b16 %v47, %v45
  %v52 = vpack.c.b16 %v48, %v46
  %v73 = vunpack.c.l.b16 %v19
  %v74 = vunpack.c.h.b16 %v19
  %v75 = vunpack.c.l.b16 %v20
  %v76 = vunpack.c.h.b16 %v20
  %v77 = vunpack.c.l.b16 %v21
  %v78 = vunpack.c.h.b16 %v21
  %v79 = vunpack.c.l.b16 %v22
  %v80 = vunpack.c.h.b16 %v22
  %v81 = vunpack.c.l.b16 %v23
  %v82 = vunpack.c.h.b16 %v23
  %v83 = vunpack.c.l.b16 %v24
  %v84 = vunpack.c.h.b16 %v24
  %v85 = vunpack.c.l.b16 %v25
  %v86 = vunpack.c.h.b16 %v25
  %v87 = vunpack.c.l.b16 %v26
  %v88 = vunpack.c.h.b16 %v26
  %v89 = vunpack.c.l.b16 %v27
  %v90 = vunpack.c.h.b16 %v27
  %v91 = vunpack.c.l.b16 %v28
  %v92 = vunpack.c.h.b16 %v28
  %v93 = vunpack.c.l.b16 %v29
  %v94 = vunpack.c.h.b16 %v29
  %v95 = vunpack.c.l.b16 %v30
  %v96 = vunpack.c.h.b16 %v30
  %v97 = vunpack.c.l.b16 %v31
  %v98 = vunpack.c.h.b16 %v31
  %v99 = vunpack.c.l.b16 %v32
  %v100 = vunpack.c.h.b16 %v32
  %v101 = vunpack.c.l.b16 %v33
  %v102 = vunpack.c.h.b16 %v33
  %v103 = vunpack.c.l.b16 %v34
  %v104 = vunpack.c.h.b16 %v34
  %v105 = vunpack.c.l.b16 %v35
  %v106 = vunpack.c.h.b16 %v35
  %v107 = vunpack.c.l.b16 %v36
  %v108 = vunpack.c.h.b16 %v36
  %v109 = vpack.c.b16 %v75, %v73
  %v110 = vpack.c.b16 %v76, %v74
  %v111 = vpack.c.b16 %v79, %v77
  %v112 = vpack.c.b16 %v80, %v78
  %v113 = vpack.c.b16 %v83, %v81
  %v114 = vpack.c.b16 %v84, %v82
  %v115 = vpack.c.b16 %v87, %v85
  %v116 = vpack.c.b16 %v88, %v86
  %v117 = vpack.c.b16 %v91, %v89
  %v118 = vpack.c.b16 %v92, %v90
  %v119 = vpack.c.b16 %v95, %v93
  %v120 = vpack.c.b16 %v96, %v94
  %v121 = vpack.c.b16 %v99, %v97
  %v122 = vpack.c.b16 %v100, %v98
  %v123 = vpack.c.b16 %v103, %v101
  %v124 = vpack.c.b16 %v104, %v102
  %v125 = vpack.c.b16 %v107, %v105
  %v126 = vpack.c.b16 %v108, %v106
  %vm145 = vcmask 130048
  %v147 = vsel %vm145, %v50, 0
  %v150 = vsel %vm145, %v52, 0
  %152 = vmatprep.subr.bf16.mxu0 %v110
  %153 = vmatpush1.bf16.msra.mxu0 %v109
  %154 = vmatprep.subr.bf16.mxu0 %v112
  %155 = vmatpush1.bf16.msra.mxu0 %v111
  %156 = vmatprep.subr.bf16.mxu0 %v114
  %157 = vmatpush1.bf16.msra.mxu0 %v113
  %158 = vmatprep.subr.bf16.mxu0 %v116
  %159 = vmatpush1.bf16.msra.mxu0 %v115
  %160 = vmatprep.subr.bf16.mxu0 %v118
  %161 = vmatpush1.bf16.msra.mxu0 %v117
  %162 = vmatprep.subr.bf16.mxu0 %v120
  %163 = vmatpush1.bf16.msra.mxu0 %v119
  %164 = vmatprep.subr.bf16.mxu0 %v122
  %165 = vmatpush1.bf16.msra.mxu0 %v121
  %166 = vmatprep.subr.bf16.mxu0 %v124
  %167 = vmatpush1.bf16.msra.mxu0 %v123
  %168 = vmatprep.subr.bf16.mxu0 %v126
  %169 = vmatpush1.bf16.msra.mxu0 %v125
  %170 = vmatprep.subr.bf16.mxu0 0
  %171 = vmatpush1.bf16.msra.mxu0 0
  %172 = vmatprep.subr.bf16.mxu0 0
  %173 = vmatpush1.bf16.msra.mxu0 0
  %174 = vmatprep.subr.bf16.mxu0 0
  %175 = vmatpush1.bf16.msra.mxu0 0
  %176 = vmatprep.subr.bf16.mxu0 0
  %177 = vmatpush1.bf16.msra.mxu0 0
  %178 = vmatprep.subr.bf16.mxu0 0
  %179 = vmatpush1.bf16.msra.mxu0 0
  %180 = vmatprep.subr.bf16.mxu0 0
  %181 = vmatpush1.bf16.msra.mxu0 0
  %182 = vmatprep.subr.bf16.mxu0 0
  %183 = vmatpush1.bf16.msra.mxu0 0
  %184 = vmatprep.mubr.bf16.mxu0 %v147
  %185 = vmatmul.mubr.bf16.gmra.mrb[0].mxu0 %v49
  %v186 = vpop.f32.mrb[0].mxu0
  %v187 = vadd.f32 0.0, %v186
  %v188 = vpop.f32.mrb[0].mxu0
  %v189 = vadd.f32 0.0, %v188
  %v190 = vpop.f32.mrb[0].mxu0
  %v191 = vadd.f32 0.0, %v190
  %v192 = vpop.f32.mrb[0].mxu0
  %v193 = vadd.f32 0.0, %v192
  %194 = vmatprep.mubr.bf16.mxu0 %v150
  %195 = vmatmul.mubr.bf16.gmra.mrb[0].mxu0 %v51
  %v196 = vpop.f32.mrb[0].mxu0
  %v197 = vadd.f32 0.0, %v196
  %v198 = vpop.f32.mrb[0].mxu0
  %v199 = vadd.f32 0.0, %v198
  %v200 = vpop.f32.mrb[0].mxu0
  %v201 = vadd.f32 0.0, %v200
  %v202 = vpop.f32.mrb[0].mxu0
  %v203 = vadd.f32 0.0, %v202
  %204 = vdwg.mxu0
  %s205 = scalar_lea.vmem %s0, 144
  %v206 = vld [vmem:[%s205] sm:$0xff]
  %v207 = vld [vmem:[%s205 + $0x8] sm:$0xff]
  %v208 = vld [vmem:[%s205 + $0x10] sm:$0xff]
  %v209 = vld [vmem:[%s205 + $0x18] sm:$0xff]
  %v210 = vld [vmem:[%s205 + $0x20] sm:$0xff]
  %v211 = vld [vmem:[%s205 + $0x28] sm:$0xff]
  %v212 = vld [vmem:[%s205 + $0x30] sm:$0xff]
  %v213 = vld [vmem:[%s205 + $0x38] sm:$0xff]
  %v214 = vld [vmem:[%s205 + $0x40] sm:$0xff]
  %v215 = vld [vmem:[%s205 + $0x48] sm:$0xff]
  %v216 = vld [vmem:[%s205 + $0x50] sm:$0xff]
  %v217 = vld [vmem:[%s205 + $0x58] sm:$0xff]
  %v218 = vld [vmem:[%s205 + $0x60] sm:$0xff]
  %v219 = vld [vmem:[%s205 + $0x68] sm:$0xff]
  %v220 = vld [vmem:[%s205 + $0x70] sm:$0xff]
  %v221 = vld [vmem:[%s205 + $0x78] sm:$0xff]
  %v222 = vld [vmem:[%s205 + $0x80] sm:$0xff]
  %v223 = vld [vmem:[%s205 + $0x88] sm:$0xff]
  %v242 = vunpack.c.l.b16 %v206
  %v243 = vunpack.c.h.b16 %v206
  %v244 = vunpack.c.l.b16 %v207
  %v245 = vunpack.c.h.b16 %v207
  %v246 = vunpack.c.l.b16 %v208
  %v247 = vunpack.c.h.b16 %v208
  %v248 = vunpack.c.l.b16 %v209
  %v249 = vunpack.c.h.b16 %v209
  %v250 = vunpack.c.l.b16 %v210
  %v251 = vunpack.c.h.b16 %v210
  %v252 = vunpack.c.l.b16 %v211
  %v253 = vunpack.c.h.b16 %v211
  %v254 = vunpack.c.l.b16 %v212
  %v255 = vunpack.c.h.b16 %v212
  %v256 = vunpack.c.l.b16 %v213
  %v257 = vunpack.c.h.b16 %v213
  %v258 = vunpack.c.l.b16 %v214
  %v259 = vunpack.c.h.b16 %v214
  %v260 = vunpack.c.l.b16 %v215
  %v261 = vunpack.c.h.b16 %v215
  %v262 = vunpack.c.l.b16 %v216
  %v263 = vunpack.c.h.b16 %v216
  %v264 = vunpack.c.l.b16 %v217
  %v265 = vunpack.c.h.b16 %v217
  %v266 = vunpack.c.l.b16 %v218
  %v267 = vunpack.c.h.b16 %v218
  %v268 = vunpack.c.l.b16 %v219
  %v269 = vunpack.c.h.b16 %v219
  %v270 = vunpack.c.l.b16 %v220
  %v271 = vunpack.c.h.b16 %v220
  %v272 = vunpack.c.l.b16 %v221
  %v273 = vunpack.c.h.b16 %v221
  %v274 = vunpack.c.l.b16 %v222
  %v275 = vunpack.c.h.b16 %v222
  %v276 = vunpack.c.l.b16 %v223
  %v277 = vunpack.c.h.b16 %v223
  %v278 = vpack.c.b16 %v244, %v242
  %v279 = vpack.c.b16 %v245, %v243
  %v280 = vpack.c.b16 %v248, %v246
  %v281 = vpack.c.b16 %v249, %v247
  %v282 = vpack.c.b16 %v252, %v250
  %v283 = vpack.c.b16 %v253, %v251
  %v284 = vpack.c.b16 %v256, %v254
  %v285 = vpack.c.b16 %v257, %v255
  %v286 = vpack.c.b16 %v260, %v258
  %v287 = vpack.c.b16 %v261, %v259
  %v288 = vpack.c.b16 %v264, %v262
  %v289 = vpack.c.b16 %v265, %v263
  %v290 = vpack.c.b16 %v268, %v266
  %v291 = vpack.c.b16 %v269, %v267
  %v292 = vpack.c.b16 %v272, %v270
  %v293 = vpack.c.b16 %v273, %v271
  %v294 = vpack.c.b16 %v276, %v274
  %v295 = vpack.c.b16 %v277, %v275
  %314 = vmatprep.subr.bf16.mxu0 %v279
  %315 = vmatpush1.bf16.msra.mxu0 %v278
  %316 = vmatprep.subr.bf16.mxu0 %v281
  %317 = vmatpush1.bf16.msra.mxu0 %v280
  %318 = vmatprep.subr.bf16.mxu0 %v283
  %319 = vmatpush1.bf16.msra.mxu0 %v282
  %320 = vmatprep.subr.bf16.mxu0 %v285
  %321 = vmatpush1.bf16.msra.mxu0 %v284
  %322 = vmatprep.subr.bf16.mxu0 %v287
  %323 = vmatpush1.bf16.msra.mxu0 %v286
  %324 = vmatprep.subr.bf16.mxu0 %v289
  %325 = vmatpush1.bf16.msra.mxu0 %v288
  %326 = vmatprep.subr.bf16.mxu0 %v291
  %327 = vmatpush1.bf16.msra.mxu0 %v290
  %328 = vmatprep.subr.bf16.mxu0 %v293
  %329 = vmatpush1.bf16.msra.mxu0 %v292
  %330 = vmatprep.subr.bf16.mxu0 %v295
  %331 = vmatpush1.bf16.msra.mxu0 %v294
  %332 = vmatprep.subr.bf16.mxu0 0
  %333 = vmatpush1.bf16.msra.mxu0 0
  %334 = vmatprep.subr.bf16.mxu0 0
  %335 = vmatpush1.bf16.msra.mxu0 0
  %336 = vmatprep.subr.bf16.mxu0 0
  %337 = vmatpush1.bf16.msra.mxu0 0
  %338 = vmatprep.subr.bf16.mxu0 0
  %339 = vmatpush1.bf16.msra.mxu0 0
  %340 = vmatprep.subr.bf16.mxu0 0
  %341 = vmatpush1.bf16.msra.mxu0 0
  %342 = vmatprep.subr.bf16.mxu0 0
  %343 = vmatpush1.bf16.msra.mxu0 0
  %344 = vmatprep.subr.bf16.mxu0 0
  %345 = vmatpush1.bf16.msra.mxu0 0
  %346 = vmatprep.mubr.bf16.mxu0 %v147
  %347 = vmatmul.mubr.bf16.gmra.mrb[0].mxu0 %v49
  %v348 = vpop.f32.mrb[0].mxu0
  %v349 = vadd.f32 0.0, %v348
  %v350 = vpop.f32.mrb[0].mxu0
  %v351 = vadd.f32 0.0, %v350
  %v352 = vpop.f32.mrb[0].mxu0
  %v353 = vadd.f32 0.0, %v352
  %v354 = vpop.f32.mrb[0].mxu0
  %v355 = vadd.f32 0.0, %v354
  %356 = vmatprep.mubr.bf16.mxu0 %v150
  %357 = vmatmul.mubr.bf16.gmra.mrb[0].mxu0 %v51
  %v358 = vpop.f32.mrb[0].mxu0
  %v359 = vadd.f32 0.0, %v358
  %v360 = vpop.f32.mrb[0].mxu0
  %v361 = vadd.f32 0.0, %v360
  %v362 = vpop.f32.mrb[0].mxu0
  %v363 = vadd.f32 0.0, %v362
  %v364 = vpop.f32.mrb[0].mxu0
  %v365 = vadd.f32 0.0, %v364
  %366 = vdwg.mxu0
  %v367 = vmax.f32 %v187, %v349
  %v368 = vmax.f32 %v189, %v351
  %v369 = vmax.f32 %v191, %v353
  %v370 = vmax.f32 %v193, %v355
  %v371 = vmax.f32 %v197, %v359
  %v372 = vmax.f32 %v199, %v361
  %v373 = vmax.f32 %v201, %v363
  %v374 = vmax.f32 %v203, %v365
  %s375 = scalar_lea.vmem %s0, 288
  %v376 = vld [vmem:[%s375] sm:$0xff]
  %v377 = vld [vmem:[%s375 + $0x8] sm:$0xff]
  %v378 = vld [vmem:[%s375 + $0x10] sm:$0xff]
  %v379 = vld [vmem:[%s375 + $0x18] sm:$0xff]
  %v380 = vld [vmem:[%s375 + $0x20] sm:$0xff]
  %v381 = vld [vmem:[%s375 + $0x28] sm:$0xff]
  %v382 = vld [vmem:[%s375 + $0x30] sm:$0xff]
  %v383 = vld [vmem:[%s375 + $0x38] sm:$0xff]
  %v384 = vld [vmem:[%s375 + $0x40] sm:$0xff]
  %v385 = vld [vmem:[%s375 + $0x48] sm:$0xff]
  %v386 = vld [vmem:[%s375 + $0x50] sm:$0xff]
  %v387 = vld [vmem:[%s375 + $0x58] sm:$0xff]
  %v388 = vld [vmem:[%s375 + $0x60] sm:$0xff]
  %v389 = vld [vmem:[%s375 + $0x68] sm:$0xff]
  %v390 = vld [vmem:[%s375 + $0x70] sm:$0xff]
  %v391 = vld [vmem:[%s375 + $0x78] sm:$0xff]
  %v392 = vld [vmem:[%s375 + $0x80] sm:$0xff]
  %v393 = vld [vmem:[%s375 + $0x88] sm:$0xff]
  %v412 = vunpack.c.l.b16 %v376
  %v413 = vunpack.c.h.b16 %v376
  %v414 = vunpack.c.l.b16 %v377
  %v415 = vunpack.c.h.b16 %v377
  %v416 = vunpack.c.l.b16 %v378
  %v417 = vunpack.c.h.b16 %v378
  %v418 = vunpack.c.l.b16 %v379
  %v419 = vunpack.c.h.b16 %v379
  %v420 = vunpack.c.l.b16 %v380
  %v421 = vunpack.c.h.b16 %v380
  %v422 = vunpack.c.l.b16 %v381
  %v423 = vunpack.c.h.b16 %v381
  %v424 = vunpack.c.l.b16 %v382
  %v425 = vunpack.c.h.b16 %v382
  %v426 = vunpack.c.l.b16 %v383
  %v427 = vunpack.c.h.b16 %v383
  %v428 = vunpack.c.l.b16 %v384
  %v429 = vunpack.c.h.b16 %v384
  %v430 = vunpack.c.l.b16 %v385
  %v431 = vunpack.c.h.b16 %v385
  %v432 = vunpack.c.l.b16 %v386
  %v433 = vunpack.c.h.b16 %v386
  %v434 = vunpack.c.l.b16 %v387
  %v435 = vunpack.c.h.b16 %v387
  %v436 = vunpack.c.l.b16 %v388
  %v437 = vunpack.c.h.b16 %v388
  %v438 = vunpack.c.l.b16 %v389
  %v439 = vunpack.c.h.b16 %v389
  %v440 = vunpack.c.l.b16 %v390
  %v441 = vunpack.c.h.b16 %v390
  %v442 = vunpack.c.l.b16 %v391
  %v443 = vunpack.c.h.b16 %v391
  %v444 = vunpack.c.l.b16 %v392
  %v445 = vunpack.c.h.b16 %v392
  %v446 = vunpack.c.l.b16 %v393
  %v447 = vunpack.c.h.b16 %v393
  %v448 = vpack.c.b16 %v414, %v412
  %v449 = vpack.c.b16 %v415, %v413
  %v450 = vpack.c.b16 %v418, %v416
  %v451 = vpack.c.b16 %v419, %v417
  %v452 = vpack.c.b16 %v422, %v420
  %v453 = vpack.c.b16 %v423, %v421
  %v454 = vpack.c.b16 %v426, %v424
  %v455 = vpack.c.b16 %v427, %v425
  %v456 = vpack.c.b16 %v430, %v428
  %v457 = vpack.c.b16 %v431, %v429
  %v458 = vpack.c.b16 %v434, %v432
  %v459 = vpack.c.b16 %v435, %v433
  %v460 = vpack.c.b16 %v438, %v436
  %v461 = vpack.c.b16 %v439, %v437
  %v462 = vpack.c.b16 %v442, %v440
  %v463 = vpack.c.b16 %v443, %v441
  %v464 = vpack.c.b16 %v446, %v444
  %v465 = vpack.c.b16 %v447, %v445
  %484 = vmatprep.subr.bf16.mxu0 %v449
  %485 = vmatpush1.bf16.msra.mxu0 %v448
  %486 = vmatprep.subr.bf16.mxu0 %v451
  %487 = vmatpush1.bf16.msra.mxu0 %v450
  %488 = vmatprep.subr.bf16.mxu0 %v453
  %489 = vmatpush1.bf16.msra.mxu0 %v452
  %490 = vmatprep.subr.bf16.mxu0 %v455
  %491 = vmatpush1.bf16.msra.mxu0 %v454
  %492 = vmatprep.subr.bf16.mxu0 %v457
  %493 = vmatpush1.bf16.msra.mxu0 %v456
  %494 = vmatprep.subr.bf16.mxu0 %v459
  %495 = vmatpush1.bf16.msra.mxu0 %v458
  %496 = vmatprep.subr.bf16.mxu0 %v461
  %497 = vmatpush1.bf16.msra.mxu0 %v460
  %498 = vmatprep.subr.bf16.mxu0 %v463
  %499 = vmatpush1.bf16.msra.mxu0 %v462
  %500 = vmatprep.subr.bf16.mxu0 %v465
  %501 = vmatpush1.bf16.msra.mxu0 %v464
  %502 = vmatprep.subr.bf16.mxu0 0
  %503 = vmatpush1.bf16.msra.mxu0 0
  %504 = vmatprep.subr.bf16.mxu0 0
  %505 = vmatpush1.bf16.msra.mxu0 0
  %506 = vmatprep.subr.bf16.mxu0 0
  %507 = vmatpush1.bf16.msra.mxu0 0
  %508 = vmatprep.subr.bf16.mxu0 0
  %509 = vmatpush1.bf16.msra.mxu0 0
  %510 = vmatprep.subr.bf16.mxu0 0
  %511 = vmatpush1.bf16.msra.mxu0 0
  %512 = vmatprep.subr.bf16.mxu0 0
  %513 = vmatpush1.bf16.msra.mxu0 0
  %514 = vmatprep.subr.bf16.mxu0 0
  %515 = vmatpush1.bf16.msra.mxu0 0
  %516 = vmatprep.mubr.bf16.mxu0 %v147
  %517 = vmatmul.mubr.bf16.gmra.mrb[0].mxu0 %v49
  %v518 = vpop.f32.mrb[0].mxu0
  %v519 = vadd.f32 0.0, %v518
  %v520 = vpop.f32.mrb[0].mxu0
  %v521 = vadd.f32 0.0, %v520
  %v522 = vpop.f32.mrb[0].mxu0
  %v523 = vadd.f32 0.0, %v522
  %v524 = vpop.f32.mrb[0].mxu0
  %v525 = vadd.f32 0.0, %v524
  %526 = vmatprep.mubr.bf16.mxu0 %v150
  %527 = vmatmul.mubr.bf16.gmra.mrb[0].mxu0 %v51
  %v528 = vpop.f32.mrb[0].mxu0
  %v529 = vadd.f32 0.0, %v528
  %v530 = vpop.f32.mrb[0].mxu0
  %v531 = vadd.f32 0.0, %v530
  %v532 = vpop.f32.mrb[0].mxu0
  %v533 = vadd.f32 0.0, %v532
  %v534 = vpop.f32.mrb[0].mxu0
  %v535 = vadd.f32 0.0, %v534
  %536 = vdwg.mxu0
  %v537 = vmax.f32 %v367, %v519
  %v538 = vmax.f32 %v368, %v521
  %v539 = vmax.f32 %v369, %v523
  %v540 = vmax.f32 %v370, %v525
  %v541 = vmax.f32 %v371, %v529
  %v542 = vmax.f32 %v372, %v531
  %v543 = vmax.f32 %v373, %v533
  %v544 = vmax.f32 %v374, %v535
  %s545 = scalar_lea.vmem %s0, 432
  %v546 = vld [vmem:[%s545] sm:$0xff]
  %v547 = vld [vmem:[%s545 + $0x8] sm:$0xff]
  %v548 = vld [vmem:[%s545 + $0x10] sm:$0xff]
  %v549 = vld [vmem:[%s545 + $0x18] sm:$0xff]
  %v550 = vld [vmem:[%s545 + $0x20] sm:$0xff]
  %v551 = vld [vmem:[%s545 + $0x28] sm:$0xff]
  %v552 = vld [vmem:[%s545 + $0x30] sm:$0xff]
  %v553 = vld [vmem:[%s545 + $0x38] sm:$0xff]
  %v554 = vld [vmem:[%s545 + $0x40] sm:$0xff]
  %v555 = vld [vmem:[%s545 + $0x48] sm:$0xff]
  %v556 = vld [vmem:[%s545 + $0x50] sm:$0xff]
  %v557 = vld [vmem:[%s545 + $0x58] sm:$0xff]
  %v558 = vld [vmem:[%s545 + $0x60] sm:$0xff]
  %v559 = vld [vmem:[%s545 + $0x68] sm:$0xff]
  %v560 = vld [vmem:[%s545 + $0x70] sm:$0xff]
  %v561 = vld [vmem:[%s545 + $0x78] sm:$0xff]
  %v562 = vld [vmem:[%s545 + $0x80] sm:$0xff]
  %v563 = vld [vmem:[%s545 + $0x88] sm:$0xff]
  %v582 = vunpack.c.l.b16 %v546
  %v583 = vunpack.c.h.b16 %v546
  %v584 = vunpack.c.l.b16 %v547
  %v585 = vunpack.c.h.b16 %v547
  %v586 = vunpack.c.l.b16 %v548
  %v587 = vunpack.c.h.b16 %v548
  %v588 = vunpack.c.l.b16 %v549
  %v589 = vunpack.c.h.b16 %v549
  %v590 = vunpack.c.l.b16 %v550
  %v591 = vunpack.c.h.b16 %v550
  %v592 = vunpack.c.l.b16 %v551
  %v593 = vunpack.c.h.b16 %v551
  %v594 = vunpack.c.l.b16 %v552
  %v595 = vunpack.c.h.b16 %v552
  %v596 = vunpack.c.l.b16 %v553
  %v597 = vunpack.c.h.b16 %v553
  %v598 = vunpack.c.l.b16 %v554
  %v599 = vunpack.c.h.b16 %v554
  %v600 = vunpack.c.l.b16 %v555
  %v601 = vunpack.c.h.b16 %v555
  %v602 = vunpack.c.l.b16 %v556
  %v603 = vunpack.c.h.b16 %v556
  %v604 = vunpack.c.l.b16 %v557
  %v605 = vunpack.c.h.b16 %v557
  %v606 = vunpack.c.l.b16 %v558
  %v607 = vunpack.c.h.b16 %v558
  %v608 = vunpack.c.l.b16 %v559
  %v609 = vunpack.c.h.b16 %v559
  %v610 = vunpack.c.l.b16 %v560
  %v611 = vunpack.c.h.b16 %v560
  %v612 = vunpack.c.l.b16 %v561
  %v613 = vunpack.c.h.b16 %v561
  %v614 = vunpack.c.l.b16 %v562
  %v615 = vunpack.c.h.b16 %v562
  %v616 = vunpack.c.l.b16 %v563
  %v617 = vunpack.c.h.b16 %v563
  %v618 = vpack.c.b16 %v584, %v582
  %v619 = vpack.c.b16 %v585, %v583
  %v620 = vpack.c.b16 %v588, %v586
  %v621 = vpack.c.b16 %v589, %v587
  %v622 = vpack.c.b16 %v592, %v590
  %v623 = vpack.c.b16 %v593, %v591
  %v624 = vpack.c.b16 %v596, %v594
  %v625 = vpack.c.b16 %v597, %v595
  %v626 = vpack.c.b16 %v600, %v598
  %v627 = vpack.c.b16 %v601, %v599
  %v628 = vpack.c.b16 %v604, %v602
  %v629 = vpack.c.b16 %v605, %v603
  %v630 = vpack.c.b16 %v608, %v606
  %v631 = vpack.c.b16 %v609, %v607
  %v632 = vpack.c.b16 %v612, %v610
  %v633 = vpack.c.b16 %v613, %v611
  %v634 = vpack.c.b16 %v616, %v614
  %v635 = vpack.c.b16 %v617, %v615
  %654 = vmatprep.subr.bf16.mxu0 %v619
  %655 = vmatpush1.bf16.msra.mxu0 %v618
  %656 = vmatprep.subr.bf16.mxu0 %v621
  %657 = vmatpush1.bf16.msra.mxu0 %v620
  %658 = vmatprep.subr.bf16.mxu0 %v623
  %659 = vmatpush1.bf16.msra.mxu0 %v622
  %660 = vmatprep.subr.bf16.mxu0 %v625
  %661 = vmatpush1.bf16.msra.mxu0 %v624
  %662 = vmatprep.subr.bf16.mxu0 %v627
  %663 = vmatpush1.bf16.msra.mxu0 %v626
  %664 = vmatprep.subr.bf16.mxu0 %v629
  %665 = vmatpush1.bf16.msra.mxu0 %v628
  %666 = vmatprep.subr.bf16.mxu0 %v631
  %667 = vmatpush1.bf16.msra.mxu0 %v630
  %668 = vmatprep.subr.bf16.mxu0 %v633
  %669 = vmatpush1.bf16.msra.mxu0 %v632
  %670 = vmatprep.subr.bf16.mxu0 %v635
  %671 = vmatpush1.bf16.msra.mxu0 %v634
  %672 = vmatprep.subr.bf16.mxu0 0
  %673 = vmatpush1.bf16.msra.mxu0 0
  %674 = vmatprep.subr.bf16.mxu0 0
  %675 = vmatpush1.bf16.msra.mxu0 0
  %676 = vmatprep.subr.bf16.mxu0 0
  %677 = vmatpush1.bf16.msra.mxu0 0
  %678 = vmatprep.subr.bf16.mxu0 0
  %679 = vmatpush1.bf16.msra.mxu0 0
  %680 = vmatprep.subr.bf16.mxu0 0
  %681 = vmatpush1.bf16.msra.mxu0 0
  %682 = vmatprep.subr.bf16.mxu0 0
  %683 = vmatpush1.bf16.msra.mxu0 0
  %684 = vmatprep.subr.bf16.mxu0 0
  %685 = vmatpush1.bf16.msra.mxu0 0
  %686 = vmatprep.mubr.bf16.mxu0 %v147
  %687 = vmatmul.mubr.bf16.gmra.mrb[0].mxu0 %v49
  %v688 = vpop.f32.mrb[0].mxu0
  %v689 = vadd.f32 0.0, %v688
  %v690 = vpop.f32.mrb[0].mxu0
  %v691 = vadd.f32 0.0, %v690
  %v692 = vpop.f32.mrb[0].mxu0
  %v693 = vadd.f32 0.0, %v692
  %v694 = vpop.f32.mrb[0].mxu0
  %v695 = vadd.f32 0.0, %v694
  %696 = vmatprep.mubr.bf16.mxu0 %v150
  %697 = vmatmul.mubr.bf16.gmra.mrb[0].mxu0 %v51
  %v698 = vpop.f32.mrb[0].mxu0
  %v699 = vadd.f32 0.0, %v698
  %v700 = vpop.f32.mrb[0].mxu0
  %v701 = vadd.f32 0.0, %v700
  %v702 = vpop.f32.mrb[0].mxu0
  %v703 = vadd.f32 0.0, %v702
  %v704 = vpop.f32.mrb[0].mxu0
  %v705 = vadd.f32 0.0, %v704
  %706 = vdwg.mxu0
  %v707 = vmax.f32 %v537, %v689
  %v708 = vmax.f32 %v538, %v691
  %v709 = vmax.f32 %v539, %v693
  %v710 = vmax.f32 %v540, %v695
  %v711 = vmax.f32 %v541, %v699
  %v712 = vmax.f32 %v542, %v701
  %v713 = vmax.f32 %v543, %v703
  %v714 = vmax.f32 %v544, %v705
  %v715 = vld [vmem:[%s2] sm:$0xff]
  %v716 = vld [vmem:[%s2 + $0x8] sm:$0xff]
  %v717 = vld [vmem:[%s2 + $0x10] sm:$0xff]
  %v718 = vld [vmem:[%s2 + $0x18] sm:$0xff]
  %720 = vset.pattern.permute.xlu0 0
  %721 = vperm.xlu0 %720, %v715
  %v722 = vpop.permute.xlu0 %721
  %725 = vset.pattern.permute.xlu0 0
  %726 = vperm.xlu0 %725, %v716
  %v727 = vpop.permute.xlu0 %726
  %730 = vset.pattern.permute.xlu0 0
  %731 = vperm.xlu0 %730, %v717
  %v732 = vpop.permute.xlu0 %731
  %735 = vset.pattern.permute.xlu0 0
  %736 = vperm.xlu0 %735, %v718
  %v737 = vpop.permute.xlu0 %736
  %v739 = vadd.f32 %v707, %v722
  %v740 = vadd.f32 %v708, %v722
  %v741 = vadd.f32 %v709, %v727
  %v742 = vadd.f32 %v710, %v727
  %v743 = vadd.f32 %v711, %v732
  %v744 = vadd.f32 %v712, %v732
  %v745 = vadd.f32 %v713, %v737
  %v746 = vadd.f32 %v714, %v737
  %v747 = vmax.f32 %v739, 0.0
  %v748 = vmax.f32 %v740, 0.0
  %v749 = vmax.f32 %v741, 0.0
  %v750 = vmax.f32 %v742, 0.0
  %v751 = vmax.f32 %v743, 0.0
  %v752 = vmax.f32 %v744, 0.0
  %v753 = vmax.f32 %v745, 0.0
  %v754 = vmax.f32 %v746, 0.0
  %v755 = vpack.c.bf16 %v749, %v747
  %v756 = vpack.c.bf16 %v750, %v748
  %v757 = vpack.c.bf16 %v753, %v751
  %v758 = vpack.c.bf16 %v754, %v752
  %v763 = vunpack.c.l.b16 %v755
  %v764 = vunpack.c.l.b16 %v756
  %v765 = vunpack.c.h.b16 %v755
  %v766 = vunpack.c.h.b16 %v756
  %v767 = vunpack.c.l.b16 %v757
  %v768 = vunpack.c.l.b16 %v758
  %v769 = vunpack.c.h.b16 %v757
  %v770 = vunpack.c.h.b16 %v758
  %v771 = vpack.c.b16 %v764, %v763
  %v772 = vpack.c.b16 %v766, %v765
  %v773 = vpack.c.b16 %v768, %v767
  %v774 = vpack.c.b16 %v770, %v769
  %vm779 = vcmask 1043456
  %vm780 = vcmask 932868
  %vm781 = vmor %vm780, %vm779
  %782 = vst.msk [vmem:[%s3] sm:$0xff] %vm781, %v771
  %783 = vst.msk [vmem:[%s3 + $0x8] sm:$0xff] %vm781, %v772
  %784 = vst.msk [vmem:[%s3 + $0x10] sm:$0xff] %vm781, %v773
  %785 = vst.msk [vmem:[%s3 + $0x18] sm:$0xff] %vm781, %v774
  // Predicated region
  $region14: #{my_model_forward.4} parent=0 // pred_check
    _
  $region15: #{my_model_forward.4} parent=0 // pred_check_branch
    %787 = sbr.rel (0) target = $region17
  $region16: #{my_model_forward.4} parent=0 // pred_region
    _
  $region17: #{my_model_forward.4} parent=0 // pred_fallthru
    _
  // Predicated region
  $region18: #{my_model_forward.4} parent=0 // pred_check
    _
  $region19: #{my_model_forward.4} parent=0 // pred_check_branch
    %789 = sbr.rel (0) target = $region21
  $region20: #{my_model_forward.4} parent=0 // pred_region
    _
  $region21: #{my_model_forward.4} parent=0 // pred_fallthru
    _

// kernel: my_model_forward.5
$region0: #{my_model_forward.5}
  #allocation0 [shape = 'u32[]', space=smem, size = 0x4, offset = 0x4, fixed_abs, tag = 'smem constant byte address 0x4 - core index']
  #allocation1 [shape = 'u32[144,128]{1,0:T(1,128)}', space=vmem, size = 0x12000, scoped, tag = 'internal scratch']
  %s0 = inlined_call_operand.vmem [shape: bf16[4,2,1152], index: 0, kind: input, shape index: {}]
  %s1 = inlined_call_operand.vmem [shape: bf16[1152,128], index: 1, kind: input, shape index: {}]
  %s2 = inlined_call_operand.vmem [shape: f32[1,128], index: 2, kind: input, shape index: {}]
  %s3 = inlined_call_operand.vmem [shape: bf16[128,128], index: 3, kind: input, shape index: {}]
  %s4 = inlined_call_operand.vmem [shape: f32[1,128], index: 4, kind: input, shape index: {}]
  %s5 = inlined_call_operand.vmem [shape: bf16[128,128], index: 5, kind: input, shape index: {}]
  %s6 = inlined_call_operand.vmem [shape: f32[1,128], index: 6, kind: input, shape index: {}]
  %s7 = inlined_call_operand.vmem [shape: bf16[128,128], index: 7, kind: input, shape index: {}]
  %s8 = inlined_call_operand.vmem [shape: f32[1,128], index: 8, kind: input, shape index: {}]
  %s9 = inlined_call_operand.vmem [shape: bf16[128,4], index: 9, kind: input, shape index: {}]
  %s10 = inlined_call_operand.vmem [shape: f32[1,4], index: 10, kind: input, shape index: {}]
  %s11 = inlined_call_operand.vmem [shape: f32[3,2,128], index: 11, kind: input, shape index: {}]
  %s12 = inlined_call_operand.vmem [shape: f32[3,2,128], index: 12, kind: input, shape index: {}]
  %s13 = inlined_call_operand.hbm [shape: f32[2,4], index: 13, kind: output, shape index: {0}]
  %s14 = inlined_call_operand.hbm [shape: f32[2,128], index: 14, kind: output, shape index: {1}]
  %s15 = inlined_call_operand.hbm [shape: f32[2,128], index: 15, kind: output, shape index: {2}]
  %s16 = inlined_call_operand.hbm [shape: f32[2,128], index: 16, kind: output, shape index: {3}]
  %17 = xla_tuple %s13, %s14, %s15, %s16
  %s18 = sld [smem:[#allocation0]]
  $region86: #{my_model_forward.5} parent=0
    _
  %s20 = ssub.s32 1, %s18
  %s21 = scalar_select 0, %s20, %s18
  $region1: #{my_model_forward.5} parent=0
    #allocation2 [shape = 'u8[1024]{0}', space=vmem, size = 0x400, scoped, tag = 'output window, operand 0, single buffered']
    #allocation3 [shape = 's32[1]{0}', space=sflag, size = 0x4, scoped, tag = 'scoped memory for my_model_forward.5']
    #allocation4 [shape = 'u8[1024]{0}', space=vmem, size = 0x400, scoped, tag = 'output window, operand 1, single buffered']
    #allocation5 [shape = 's32[1]{0}', space=sflag, size = 0x4, scoped, tag = 'scoped memory for my_model_forward.5']
    #allocation6 [shape = 'u8[1024]{0}', space=vmem, size = 0x400, scoped, tag = 'output window, operand 2, single buffered']
    #allocation7 [shape = 'u8[1024]{0}', space=vmem, size = 0x400, scoped, tag = 'output window, operand 3, single buffered']
    #allocation8 [shape = 's32[1]{0}', space=sflag, size = 0x4, scoped, tag = 'scoped memory for my_model_forward.5']
    %22 = vsyncpa [#allocation3], 0
    %23 = vsyncpa [#allocation5], 0
    %24 = vsyncpa [#allocation8], 0
    // Predicated region
    $region2: #{my_model_forward.5} parent=1 // pred_check
      _
    $region3: #{my_model_forward.5} parent=1 // pred_check_branch
      %26 = sbr.rel (0) target = $region5
    $region4: #{my_model_forward.5} parent=1 // pred_region
      _
    $region5: #{my_model_forward.5} parent=1 // pred_fallthru
      _
    // Predicated region
    $region6: #{my_model_forward.5} parent=1 // pred_check
      _
    $region7: #{my_model_forward.5} parent=1 // pred_check_branch
      %28 = sbr.rel (0) target = $region9
    $region8: #{my_model_forward.5} parent=1 // pred_region
      _
    $region9: #{my_model_forward.5} parent=1 // pred_fallthru
      _
    // Predicated region
    $region10: #{my_model_forward.5} parent=1 // pred_check
      _
    $region11: #{my_model_forward.5} parent=1 // pred_check_branch
      %30 = sbr.rel (0) target = $region13
    $region12: #{my_model_forward.5} parent=1 // pred_region
      _
    $region13: #{my_model_forward.5} parent=1 // pred_fallthru
      _
    // Predicated region
    $region14: #{my_model_forward.5} parent=1 // pred_check
      _
    $region15: #{my_model_forward.5} parent=1 // pred_check_branch
      %32 = sbr.rel (0) target = $region17
    $region16: #{my_model_forward.5} parent=1 // pred_region
      _
    $region17: #{my_model_forward.5} parent=1 // pred_fallthru
      _
    // Predicated region
    $region18: #{my_model_forward.5} parent=1 // pred_check
      _
    $region19: #{my_model_forward.5} parent=1 // pred_check_branch
      %34 = sbr.rel (0) target = $region21
    $region20: #{my_model_forward.5} parent=1 // pred_region
      _
    $region21: #{my_model_forward.5} parent=1 // pred_fallthru
      _
    // Predicated region
    $region22: #{my_model_forward.5} parent=1 // pred_check
      _
    $region23: #{my_model_forward.5} parent=1 // pred_check_branch
      %36 = sbr.rel (0) target = $region25
    $region24: #{my_model_forward.5} parent=1 // pred_region
      _
    $region25: #{my_model_forward.5} parent=1 // pred_fallthru
      _
    // Predicated region
    $region26: #{my_model_forward.5} parent=1 // pred_check
      _
    $region27: #{my_model_forward.5} parent=1 // pred_check_branch
      %38 = sbr.rel (0) target = $region29
    $region28: #{my_model_forward.5} parent=1 // pred_region
      _
    $region29: #{my_model_forward.5} parent=1 // pred_fallthru
      _
    // Predicated region
    $region30: #{my_model_forward.5} parent=1 // pred_check
      _
    $region31: #{my_model_forward.5} parent=1 // pred_check_branch
      %40 = sbr.rel (0) target = $region33
    $region32: #{my_model_forward.5} parent=1 // pred_region
      _
    $region33: #{my_model_forward.5} parent=1 // pred_fallthru
      _
    // Predicated region
    $region34: #{my_model_forward.5} parent=1 // pred_check
      _
    $region35: #{my_model_forward.5} parent=1 // pred_check_branch
      %42 = sbr.rel (0) target = $region37
    $region36: #{my_model_forward.5} parent=1 // pred_region
      _
    $region37: #{my_model_forward.5} parent=1 // pred_fallthru
      _
    // Predicated region
    $region38: #{my_model_forward.5} parent=1 // pred_check
      _
    $region39: #{my_model_forward.5} parent=1 // pred_check_branch
      %44 = sbr.rel (0) target = $region41
    $region40: #{my_model_forward.5} parent=1 // pred_region
      _
    $region41: #{my_model_forward.5} parent=1 // pred_fallthru
      _
    // Predicated region
    $region42: #{my_model_forward.5} parent=1 // pred_check
      _
    $region43: #{my_model_forward.5} parent=1 // pred_check_branch
      %46 = sbr.rel (0) target = $region45
    $region44: #{my_model_forward.5} parent=1 // pred_region
      _
    $region45: #{my_model_forward.5} parent=1 // pred_fallthru
      _
    // Predicated region
    $region46: #{my_model_forward.5} parent=1 // pred_check
      _
    $region47: #{my_model_forward.5} parent=1 // pred_check_branch
      %48 = sbr.rel (0) target = $region49
    $region48: #{my_model_forward.5} parent=1 // pred_region
      _
    $region49: #{my_model_forward.5} parent=1 // pred_fallthru
      _
    // Predicated region
    $region50: #{my_model_forward.5} parent=1 // pred_check
      _
    $region51: #{my_model_forward.5} parent=1 // pred_check_branch
      %50 = sbr.rel (0) target = $region53
    $region52: #{my_model_forward.5} parent=1 // pred_region
      _
    $region53: #{my_model_forward.5} parent=1 // pred_fallthru
      _
    %v52 = vld [vmem:[%s1] sm:$0xf]
    %v53 = vld [vmem:[%s1 + $0x4] sm:$0xf]
    %v54 = vld [vmem:[%s1 + $0x8] sm:$0xf]
    %v55 = vld [vmem:[%s1 + $0xc] sm:$0xf]
    %v56 = vld [vmem:[%s1 + $0x10] sm:$0xf]
    %v57 = vld [vmem:[%s1 + $0x14] sm:$0xf]
    %v58 = vld [vmem:[%s1 + $0x18] sm:$0xf]
    %v59 = vld [vmem:[%s1 + $0x1c] sm:$0xf]
    %v60 = vld [vmem:[%s1 + $0x20] sm:$0xf]
    %v61 = vld [vmem:[%s1 + $0x24] sm:$0xf]
    %v62 = vld [vmem:[%s1 + $0x28] sm:$0xf]
    %v63 = vld [vmem:[%s1 + $0x2c] sm:$0xf]
    %v64 = vld [vmem:[%s1 + $0x30] sm:$0xf]
    %v65 = vld [vmem:[%s1 + $0x34] sm:$0xf]
    %v66 = vld [vmem:[%s1 + $0x38] sm:$0xf]
    %v67 = vld [vmem:[%s1 + $0x3c] sm:$0xf]
    %v68 = vld [vmem:[%s1 + $0x40] sm:$0xf]
    %v69 = vld [vmem:[%s1 + $0x44] sm:$0xf]
    %v70 = vld [vmem:[%s1 + $0x48] sm:$0xf]
    %v71 = vld [vmem:[%s1 + $0x4c] sm:$0xf]
    %v72 = vld [vmem:[%s1 + $0x50] sm:$0xf]
    %v73 = vld [vmem:[%s1 + $0x54] sm:$0xf]
    %v74 = vld [vmem:[%s1 + $0x58] sm:$0xf]
    %v75 = vld [vmem:[%s1 + $0x5c] sm:$0xf]
    %v76 = vld [vmem:[%s1 + $0x60] sm:$0xf]
    %v77 = vld [vmem:[%s1 + $0x64] sm:$0xf]
    %v78 = vld [vmem:[%s1 + $0x68] sm:$0xf]
    %v79 = vld [vmem:[%s1 + $0x6c] sm:$0xf]
    %v80 = vld [vmem:[%s1 + $0x70] sm:$0xf]
    %v81 = vld [vmem:[%s1 + $0x74] sm:$0xf]
    %v82 = vld [vmem:[%s1 + $0x78] sm:$0xf]
    %v83 = vld [vmem:[%s1 + $0x7c] sm:$0xf]
    %v84 = vld [vmem:[%s1 + $0x80] sm:$0xf]
    %v85 = vld [vmem:[%s1 + $0x84] sm:$0xf]
    %v86 = vld [vmem:[%s1 + $0x88] sm:$0xf]
    %v87 = vld [vmem:[%s1 + $0x8c] sm:$0xf]
    %v88 = vld [vmem:[%s1 + $0x90] sm:$0xf]
    %v89 = vld [vmem:[%s1 + $0x94] sm:$0xf]
    %v90 = vld [vmem:[%s1 + $0x98] sm:$0xf]
    %v91 = vld [vmem:[%s1 + $0x9c] sm:$0xf]
    %v92 = vld [vmem:[%s1 + $0xa0] sm:$0xf]
    %v93 = vld [vmem:[%s1 + $0xa4] sm:$0xf]
    %v94 = vld [vmem:[%s1 + $0xa8] sm:$0xf]
    %v95 = vld [vmem:[%s1 + $0xac] sm:$0xf]
    %v96 = vld [vmem:[%s1 + $0xb0] sm:$0xf]
    %v97 = vld [vmem:[%s1 + $0xb4] sm:$0xf]
    %v98 = vld [vmem:[%s1 + $0xb8] sm:$0xf]
    %v99 = vld [vmem:[%s1 + $0xbc] sm:$0xf]
    %v100 = vld [vmem:[%s1 + $0xc0] sm:$0xf]
    %v101 = vld [vmem:[%s1 + $0xc4] sm:$0xf]
    %v102 = vld [vmem:[%s1 + $0xc8] sm:$0xf]
    %v103 = vld [vmem:[%s1 + $0xcc] sm:$0xf]
    %v104 = vld [vmem:[%s1 + $0xd0] sm:$0xf]
    %v105 = vld [vmem:[%s1 + $0xd4] sm:$0xf]
    %v106 = vld [vmem:[%s1 + $0xd8] sm:$0xf]
    %v107 = vld [vmem:[%s1 + $0xdc] sm:$0xf]
    %v108 = vld [vmem:[%s1 + $0xe0] sm:$0xf]
    %v109 = vld [vmem:[%s1 + $0xe4] sm:$0xf]
    %v110 = vld [vmem:[%s1 + $0xe8] sm:$0xf]
    %v111 = vld [vmem:[%s1 + $0xec] sm:$0xf]
    %v112 = vld [vmem:[%s1 + $0xf0] sm:$0xf]
    %v113 = vld [vmem:[%s1 + $0xf4] sm:$0xf]
    %v114 = vld [vmem:[%s1 + $0xf8] sm:$0xf]
    %v115 = vld [vmem:[%s1 + $0xfc] sm:$0xf]
    %v116 = vld [vmem:[%s1 + $0x100] sm:$0xf]
    %v117 = vld [vmem:[%s1 + $0x104] sm:$0xf]
    %v118 = vld [vmem:[%s1 + $0x108] sm:$0xf]
    %v119 = vld [vmem:[%s1 + $0x10c] sm:$0xf]
    %v120 = vld [vmem:[%s1 + $0x110] sm:$0xf]
    %v121 = vld [vmem:[%s1 + $0x114] sm:$0xf]
    %v122 = vld [vmem:[%s1 + $0x118] sm:$0xf]
    %v123 = vld [vmem:[%s1 + $0x11c] sm:$0xf]
    %v124 = vld [vmem:[%s1 + $0x120] sm:$0xf]
    %v125 = vld [vmem:[%s1 + $0x124] sm:$0xf]
    %v126 = vld [vmem:[%s1 + $0x128] sm:$0xf]
    %v127 = vld [vmem:[%s1 + $0x12c] sm:$0xf]
    %v128 = vld [vmem:[%s1 + $0x130] sm:$0xf]
    %v129 = vld [vmem:[%s1 + $0x134] sm:$0xf]
    %v130 = vld [vmem:[%s1 + $0x138] sm:$0xf]
    %v131 = vld [vmem:[%s1 + $0x13c] sm:$0xf]
    %v132 = vld [vmem:[%s1 + $0x140] sm:$0xf]
    %v133 = vld [vmem:[%s1 + $0x144] sm:$0xf]
    %v134 = vld [vmem:[%s1 + $0x148] sm:$0xf]
    %v135 = vld [vmem:[%s1 + $0x14c] sm:$0xf]
    %v136 = vld [vmem:[%s1 + $0x150] sm:$0xf]
    %v137 = vld [vmem:[%s1 + $0x154] sm:$0xf]
    %v138 = vld [vmem:[%s1 + $0x158] sm:$0xf]
    %v139 = vld [vmem:[%s1 + $0x15c] sm:$0xf]
    %v140 = vld [vmem:[%s1 + $0x160] sm:$0xf]
    %v141 = vld [vmem:[%s1 + $0x164] sm:$0xf]
    %v142 = vld [vmem:[%s1 + $0x168] sm:$0xf]
    %v143 = vld [vmem:[%s1 + $0x16c] sm:$0xf]
    %v144 = vld [vmem:[%s1 + $0x170] sm:$0xf]
    %v145 = vld [vmem:[%s1 + $0x174] sm:$0xf]
    %v146 = vld [vmem:[%s1 + $0x178] sm:$0xf]
    %v147 = vld [vmem:[%s1 + $0x17c] sm:$0xf]
    %v148 = vld [vmem:[%s1 + $0x180] sm:$0xf]
    %v149 = vld [vmem:[%s1 + $0x184] sm:$0xf]
    %v150 = vld [vmem:[%s1 + $0x188] sm:$0xf]
    %v151 = vld [vmem:[%s1 + $0x18c] sm:$0xf]
    %v152 = vld [vmem:[%s1 + $0x190] sm:$0xf]
    %v153 = vld [vmem:[%s1 + $0x194] sm:$0xf]
    %v154 = vld [vmem:[%s1 + $0x198] sm:$0xf]
    %v155 = vld [vmem:[%s1 + $0x19c] sm:$0xf]
    %v156 = vld [vmem:[%s1 + $0x1a0] sm:$0xf]
    %v157 = vld [vmem:[%s1 + $0x1a4] sm:$0xf]
    %v158 = vld [vmem:[%s1 + $0x1a8] sm:$0xf]
    %v159 = vld [vmem:[%s1 + $0x1ac] sm:$0xf]
    %v160 = vld [vmem:[%s1 + $0x1b0] sm:$0xf]
    %v161 = vld [vmem:[%s1 + $0x1b4] sm:$0xf]
    %v162 = vld [vmem:[%s1 + $0x1b8] sm:$0xf]
    %v163 = vld [vmem:[%s1 + $0x1bc] sm:$0xf]
    %v164 = vld [vmem:[%s1 + $0x1c0] sm:$0xf]
    %v165 = vld [vmem:[%s1 + $0x1c4] sm:$0xf]
    %v166 = vld [vmem:[%s1 + $0x1c8] sm:$0xf]
    %v167 = vld [vmem:[%s1 + $0x1cc] sm:$0xf]
    %v168 = vld [vmem:[%s1 + $0x1d0] sm:$0xf]
    %v169 = vld [vmem:[%s1 + $0x1d4] sm:$0xf]
    %v170 = vld [vmem:[%s1 + $0x1d8] sm:$0xf]
    %v171 = vld [vmem:[%s1 + $0x1dc] sm:$0xf]
    %v172 = vld [vmem:[%s1 + $0x1e0] sm:$0xf]
    %v173 = vld [vmem:[%s1 + $0x1e4] sm:$0xf]
    %v174 = vld [vmem:[%s1 + $0x1e8] sm:$0xf]
    %v175 = vld [vmem:[%s1 + $0x1ec] sm:$0xf]
    %v176 = vld [vmem:[%s1 + $0x1f0] sm:$0xf]
    %v177 = vld [vmem:[%s1 + $0x1f4] sm:$0xf]
    %v178 = vld [vmem:[%s1 + $0x1f8] sm:$0xf]
    %v179 = vld [vmem:[%s1 + $0x1fc] sm:$0xf]
    %v180 = vld [vmem:[%s1 + $0x200] sm:$0xf]
    %v181 = vld [vmem:[%s1 + $0x204] sm:$0xf]
    %v182 = vld [vmem:[%s1 + $0x208] sm:$0xf]
    %v183 = vld [vmem:[%s1 + $0x20c] sm:$0xf]
    %v184 = vld [vmem:[%s1 + $0x210] sm:$0xf]
    %v185 = vld [vmem:[%s1 + $0x214] sm:$0xf]
    %v186 = vld [vmem:[%s1 + $0x218] sm:$0xf]
    %v187 = vld [vmem:[%s1 + $0x21c] sm:$0xf]
    %v188 = vld [vmem:[%s1 + $0x220] sm:$0xf]
    %v189 = vld [vmem:[%s1 + $0x224] sm:$0xf]
    %v190 = vld [vmem:[%s1 + $0x228] sm:$0xf]
    %v191 = vld [vmem:[%s1 + $0x22c] sm:$0xf]
    %v192 = vld [vmem:[%s1 + $0x230] sm:$0xf]
    %v193 = vld [vmem:[%s1 + $0x234] sm:$0xf]
    %v194 = vld [vmem:[%s1 + $0x238] sm:$0xf]
    %v195 = vld [vmem:[%s1 + $0x23c] sm:$0xf]
    %v196 = vld [vmem:[%s0] sm:$0xff]
    %v197 = vld [vmem:[%s0 + $0x8] sm:$0x1]
    %v200 = vcombine.high %v196, %v196
    %v202 = vunpack.c.l.s4 1966171168
    %v203 = vunpack.c.0.s8 %v202
    %v204 = vlaneseq
    %v205 = vshrl.u32 %v204, 7
    %v206 = vsub.s32 %v203, %v205
    %v207 = vrot.slane %v196, %v206
    %v209 = vunpack.c.l.s4 1966171168
    %v210 = vunpack.c.0.s8 %v209
    %v211 = vlaneseq
    %v212 = vshrl.u32 %v211, 7
    %v213 = vsub.s32 %v210, %v212
    %v214 = vrot.slane %v200, %v213
    %v215 = vcombine.high %v207, %v207
    %v216 = vcombine.high %v214, %v214
    %v218 = vunpack.c.l.s4 1966171168
    %v219 = vunpack.c.0.s8 %v218
    %v220 = vlaneseq
    %v221 = vshrl.u32 %v220, 7
    %v222 = vsub.s32 %v219, %v221
    %v223 = vrot.slane %v207, %v222
    %v225 = vunpack.c.l.s4 1966171168
    %v226 = vunpack.c.0.s8 %v225
    %v227 = vlaneseq
    %v228 = vshrl.u32 %v227, 7
    %v229 = vsub.s32 %v226, %v228
    %v230 = vrot.slane %v214, %v229
    %v232 = vunpack.c.l.s4 1966171168
    %v233 = vunpack.c.0.s8 %v232
    %v234 = vlaneseq
    %v235 = vshrl.u32 %v234, 7
    %v236 = vsub.s32 %v233, %v235
    %v237 = vrot.slane %v215, %v236
    %v239 = vunpack.c.l.s4 1966171168
    %v240 = vunpack.c.0.s8 %v239
    %v241 = vlaneseq
    %v242 = vshrl.u32 %v241, 7
    %v243 = vsub.s32 %v240, %v242
    %v244 = vrot.slane %v216, %v243
    %v245 = vcombine.high %v223, %v223
    %v246 = vcombine.high %v230, %v230
    %v247 = vcombine.high %v237, %v237
    %v248 = vcombine.high %v244, %v244
    %v250 = vunpack.c.l.s4 1966171168
    %v251 = vunpack.c.0.s8 %v250
    %v252 = vlaneseq
    %v253 = vshrl.u32 %v252, 7
    %v254 = vsub.s32 %v251, %v253
    %v255 = vrot.slane %v197, %v254
    %v257 = vunpack.c.l.s4 1966171168
    %v258 = vunpack.c.0.s8 %v257
    %v259 = vlaneseq
    %v260 = vshrl.u32 %v259, 7
    %v261 = vsub.s32 %v258, %v260
    %v262 = vrot.slane %v255, %v261
    %v416 = vunpack.c.l.b16 %v52
    %v417 = vunpack.c.l.b16 %v53
    %v418 = vunpack.c.l.b16 %v54
    %v419 = vunpack.c.l.b16 %v55
    %v420 = vunpack.c.l.b16 %v56
    %v421 = vunpack.c.l.b16 %v57
    %v422 = vunpack.c.l.b16 %v58
    %v423 = vunpack.c.l.b16 %v59
    %v424 = vunpack.c.l.b16 %v60
    %v425 = vunpack.c.l.b16 %v61
    %v426 = vunpack.c.l.b16 %v62
    %v427 = vunpack.c.l.b16 %v63
    %v428 = vunpack.c.l.b16 %v64
    %v429 = vunpack.c.l.b16 %v65
    %v430 = vunpack.c.l.b16 %v66
    %v431 = vunpack.c.l.b16 %v67
    %v432 = vunpack.c.l.b16 %v68
    %v433 = vunpack.c.l.b16 %v69
    %v434 = vunpack.c.l.b16 %v70
    %v435 = vunpack.c.l.b16 %v71
    %v436 = vunpack.c.l.b16 %v72
    %v437 = vunpack.c.l.b16 %v73
    %v438 = vunpack.c.l.b16 %v74
    %v439 = vunpack.c.l.b16 %v75
    %v440 = vunpack.c.l.b16 %v76
    %v441 = vunpack.c.l.b16 %v77
    %v442 = vunpack.c.l.b16 %v78
    %v443 = vunpack.c.l.b16 %v79
    %v444 = vunpack.c.l.b16 %v80
    %v445 = vunpack.c.l.b16 %v81
    %v446 = vunpack.c.l.b16 %v82
    %v447 = vunpack.c.l.b16 %v83
    %v448 = vunpack.c.l.b16 %v84
    %v449 = vunpack.c.l.b16 %v85
    %v450 = vunpack.c.l.b16 %v86
    %v451 = vunpack.c.l.b16 %v87
    %v452 = vunpack.c.l.b16 %v88
    %v453 = vunpack.c.l.b16 %v89
    %v454 = vunpack.c.l.b16 %v90
    %v455 = vunpack.c.l.b16 %v91
    %v456 = vunpack.c.l.b16 %v92
    %v457 = vunpack.c.l.b16 %v93
    %v458 = vunpack.c.l.b16 %v94
    %v459 = vunpack.c.l.b16 %v95
    %v460 = vunpack.c.l.b16 %v96
    %v461 = vunpack.c.l.b16 %v97
    %v462 = vunpack.c.l.b16 %v98
    %v463 = vunpack.c.l.b16 %v99
    %v464 = vunpack.c.l.b16 %v100
    %v465 = vunpack.c.l.b16 %v101
    %v466 = vunpack.c.l.b16 %v102
    %v467 = vunpack.c.l.b16 %v103
    %v468 = vunpack.c.l.b16 %v104
    %v469 = vunpack.c.l.b16 %v105
    %v470 = vunpack.c.l.b16 %v106
    %v471 = vunpack.c.l.b16 %v107
    %v472 = vunpack.c.l.b16 %v108
    %v473 = vunpack.c.l.b16 %v109
    %v474 = vunpack.c.l.b16 %v110
    %v475 = vunpack.c.l.b16 %v111
    %v476 = vunpack.c.l.b16 %v112
    %v477 = vunpack.c.l.b16 %v113
    %v478 = vunpack.c.l.b16 %v114
    %v479 = vunpack.c.l.b16 %v115
    %v480 = vunpack.c.l.b16 %v116
    %v481 = vunpack.c.l.b16 %v117
    %v482 = vunpack.c.l.b16 %v118
    %v483 = vunpack.c.l.b16 %v119
    %v484 = vunpack.c.l.b16 %v120
    %v485 = vunpack.c.l.b16 %v121
    %v486 = vunpack.c.l.b16 %v122
    %v487 = vunpack.c.l.b16 %v123
    %v488 = vunpack.c.l.b16 %v124
    %v489 = vunpack.c.l.b16 %v125
    %v490 = vunpack.c.l.b16 %v126
    %v491 = vunpack.c.l.b16 %v127
    %v492 = vunpack.c.l.b16 %v128
    %v493 = vunpack.c.l.b16 %v129
    %v494 = vunpack.c.l.b16 %v130
    %v495 = vunpack.c.l.b16 %v131
    %v496 = vunpack.c.l.b16 %v132
    %v497 = vunpack.c.l.b16 %v133
    %v498 = vunpack.c.l.b16 %v134
    %v499 = vunpack.c.l.b16 %v135
    %v500 = vunpack.c.l.b16 %v136
    %v501 = vunpack.c.l.b16 %v137
    %v502 = vunpack.c.l.b16 %v138
    %v503 = vunpack.c.l.b16 %v139
    %v504 = vunpack.c.l.b16 %v140
    %v505 = vunpack.c.l.b16 %v141
    %v506 = vunpack.c.l.b16 %v142
    %v507 = vunpack.c.l.b16 %v143
    %v508 = vunpack.c.l.b16 %v144
    %v509 = vunpack.c.l.b16 %v145
    %v510 = vunpack.c.l.b16 %v146
    %v511 = vunpack.c.l.b16 %v147
    %v512 = vunpack.c.l.b16 %v148
    %v513 = vunpack.c.l.b16 %v149
    %v514 = vunpack.c.l.b16 %v150
    %v515 = vunpack.c.l.b16 %v151
    %v516 = vunpack.c.l.b16 %v152
    %v517 = vunpack.c.l.b16 %v153
    %v518 = vunpack.c.l.b16 %v154
    %v519 = vunpack.c.l.b16 %v155
    %v520 = vunpack.c.l.b16 %v156
    %v521 = vunpack.c.l.b16 %v157
    %v522 = vunpack.c.l.b16 %v158
    %v523 = vunpack.c.l.b16 %v159
    %v524 = vunpack.c.l.b16 %v160
    %v525 = vunpack.c.l.b16 %v161
    %v526 = vunpack.c.l.b16 %v162
    %v527 = vunpack.c.l.b16 %v163
    %v528 = vunpack.c.l.b16 %v164
    %v529 = vunpack.c.l.b16 %v165
    %v530 = vunpack.c.l.b16 %v166
    %v531 = vunpack.c.l.b16 %v167
    %v532 = vunpack.c.l.b16 %v168
    %v533 = vunpack.c.l.b16 %v169
    %v534 = vunpack.c.l.b16 %v170
    %v535 = vunpack.c.l.b16 %v171
    %v536 = vunpack.c.l.b16 %v172
    %v537 = vunpack.c.l.b16 %v173
    %v538 = vunpack.c.l.b16 %v174
    %v539 = vunpack.c.l.b16 %v175
    %v540 = vunpack.c.l.b16 %v176
    %v541 = vunpack.c.l.b16 %v177
    %v542 = vunpack.c.l.b16 %v178
    %v543 = vunpack.c.l.b16 %v179
    %v544 = vunpack.c.l.b16 %v180
    %v545 = vunpack.c.l.b16 %v181
    %v546 = vunpack.c.l.b16 %v182
    %v547 = vunpack.c.l.b16 %v183
    %v548 = vunpack.c.l.b16 %v184
    %v549 = vunpack.c.l.b16 %v185
    %v550 = vunpack.c.l.b16 %v186
    %v551 = vunpack.c.l.b16 %v187
    %v552 = vunpack.c.l.b16 %v188
    %v553 = vunpack.c.l.b16 %v189
    %v554 = vunpack.c.l.b16 %v190
    %v555 = vunpack.c.l.b16 %v191
    %v556 = vunpack.c.l.b16 %v192
    %v557 = vunpack.c.l.b16 %v193
    %v558 = vunpack.c.l.b16 %v194
    %v559 = vunpack.c.l.b16 %v195
    %v560 = vpack.c.b16 %v417, %v416
    %v561 = vpack.c.b16 %v419, %v418
    %v562 = vpack.c.b16 %v421, %v420
    %v563 = vpack.c.b16 %v423, %v422
    %v564 = vpack.c.b16 %v425, %v424
    %v565 = vpack.c.b16 %v427, %v426
    %v566 = vpack.c.b16 %v429, %v428
    %v567 = vpack.c.b16 %v431, %v430
    %v568 = vpack.c.b16 %v433, %v432
    %v569 = vpack.c.b16 %v435, %v434
    %v570 = vpack.c.b16 %v437, %v436
    %v571 = vpack.c.b16 %v439, %v438
    %v572 = vpack.c.b16 %v441, %v440
    %v573 = vpack.c.b16 %v443, %v442
    %v574 = vpack.c.b16 %v445, %v444
    %v575 = vpack.c.b16 %v447, %v446
    %v576 = vpack.c.b16 %v449, %v448
    %v577 = vpack.c.b16 %v451, %v450
    %v578 = vpack.c.b16 %v453, %v452
    %v579 = vpack.c.b16 %v455, %v454
    %v580 = vpack.c.b16 %v457, %v456
    %v581 = vpack.c.b16 %v459, %v458
    %v582 = vpack.c.b16 %v461, %v460
    %v583 = vpack.c.b16 %v463, %v462
    %v584 = vpack.c.b16 %v465, %v464
    %v585 = vpack.c.b16 %v467, %v466
    %v586 = vpack.c.b16 %v469, %v468
    %v587 = vpack.c.b16 %v471, %v470
    %v588 = vpack.c.b16 %v473, %v472
    %v589 = vpack.c.b16 %v475, %v474
    %v590 = vpack.c.b16 %v477, %v476
    %v591 = vpack.c.b16 %v479, %v478
    %v592 = vpack.c.b16 %v481, %v480
    %v593 = vpack.c.b16 %v483, %v482
    %v594 = vpack.c.b16 %v485, %v484
    %v595 = vpack.c.b16 %v487, %v486
    %v596 = vpack.c.b16 %v489, %v488
    %v597 = vpack.c.b16 %v491, %v490
    %v598 = vpack.c.b16 %v493, %v492
    %v599 = vpack.c.b16 %v495, %v494
    %v600 = vpack.c.b16 %v497, %v496
    %v601 = vpack.c.b16 %v499, %v498
    %v602 = vpack.c.b16 %v501, %v500
    %v603 = vpack.c.b16 %v503, %v502
    %v604 = vpack.c.b16 %v505, %v504
    %v605 = vpack.c.b16 %v507, %v506
    %v606 = vpack.c.b16 %v509, %v508
    %v607 = vpack.c.b16 %v511, %v510
    %v608 = vpack.c.b16 %v513, %v512
    %v609 = vpack.c.b16 %v515, %v514
    %v610 = vpack.c.b16 %v517, %v516
    %v611 = vpack.c.b16 %v519, %v518
    %v612 = vpack.c.b16 %v521, %v520
    %v613 = vpack.c.b16 %v523, %v522
    %v614 = vpack.c.b16 %v525, %v524
    %v615 = vpack.c.b16 %v527, %v526
    %v616 = vpack.c.b16 %v529, %v528
    %v617 = vpack.c.b16 %v531, %v530
    %v618 = vpack.c.b16 %v533, %v532
    %v619 = vpack.c.b16 %v535, %v534
    %v620 = vpack.c.b16 %v537, %v536
    %v621 = vpack.c.b16 %v539, %v538
    %v622 = vpack.c.b16 %v541, %v540
    %v623 = vpack.c.b16 %v543, %v542
    %v624 = vpack.c.b16 %v545, %v544
    %v625 = vpack.c.b16 %v547, %v546
    %v626 = vpack.c.b16 %v549, %v548
    %v627 = vpack.c.b16 %v551, %v550
    %v628 = vpack.c.b16 %v553, %v552
    %v629 = vpack.c.b16 %v555, %v554
    %v630 = vpack.c.b16 %v557, %v556
    %v631 = vpack.c.b16 %v559, %v558
    %704 = vmatprep.subr.bf16.mxu0 0
    %705 = vmatpush1.bf16.msra.mxu0 %v560
    %706 = vmatprep.subr.bf16.mxu0 0
    %707 = vmatpush1.bf16.msra.mxu0 %v561
    %708 = vmatprep.subr.bf16.mxu0 0
    %709 = vmatpush1.bf16.msra.mxu0 %v562
    %710 = vmatprep.subr.bf16.mxu0 0
    %711 = vmatpush1.bf16.msra.mxu0 %v563
    %712 = vmatprep.subr.bf16.mxu0 0
    %713 = vmatpush1.bf16.msra.mxu0 %v564
    %714 = vmatprep.subr.bf16.mxu0 0
    %715 = vmatpush1.bf16.msra.mxu0 %v565
    %716 = vmatprep.subr.bf16.mxu0 0
    %717 = vmatpush1.bf16.msra.mxu0 %v566
    %718 = vmatprep.subr.bf16.mxu0 0
    %719 = vmatpush1.bf16.msra.mxu0 %v567
    %720 = vmatprep.subr.bf16.mxu0 0
    %721 = vmatpush1.bf16.msra.mxu0 %v568
    %722 = vmatprep.subr.bf16.mxu0 0
    %723 = vmatpush1.bf16.msra.mxu0 %v569
    %724 = vmatprep.subr.bf16.mxu0 0
    %725 = vmatpush1.bf16.msra.mxu0 %v570
    %726 = vmatprep.subr.bf16.mxu0 0
    %727 = vmatpush1.bf16.msra.mxu0 %v571
    %728 = vmatprep.subr.bf16.mxu0 0
    %729 = vmatpush1.bf16.msra.mxu0 %v572
    %730 = vmatprep.subr.bf16.mxu0 0
    %731 = vmatpush1.bf16.msra.mxu0 %v573
    %732 = vmatprep.subr.bf16.mxu0 0
    %733 = vmatpush1.bf16.msra.mxu0 %v574
    %734 = vmatprep.subr.bf16.mxu0 0
    %735 = vmatpush1.bf16.msra.mxu0 %v575
    %736 = vmatprep.mubr.bf16.mxu0 %v237
    %737 = vmatmul.mubr.bf16.gmra.mrb[0].mxu0 %v223
    %v738 = vpop.f32.mrb[0].mxu0
    %v739 = vadd.f32 0.0, %v738
    %v740 = vpop.f32.mrb[0].mxu0
    %v741 = vpop.f32.mrb[0].mxu0
    %v742 = vpop.f32.mrb[0].mxu0
    %743 = vdwg.mxu0
    %744 = vmatprep.subr.bf16.mxu0 0
    %745 = vmatpush1.bf16.msra.mxu0 %v576
    %746 = vmatprep.subr.bf16.mxu0 0
    %747 = vmatpush1.bf16.msra.mxu0 %v577
    %748 = vmatprep.subr.bf16.mxu0 0
    %749 = vmatpush1.bf16.msra.mxu0 %v578
    %750 = vmatprep.subr.bf16.mxu0 0
    %751 = vmatpush1.bf16.msra.mxu0 %v579
    %752 = vmatprep.subr.bf16.mxu0 0
    %753 = vmatpush1.bf16.msra.mxu0 %v580
    %754 = vmatprep.subr.bf16.mxu0 0
    %755 = vmatpush1.bf16.msra.mxu0 %v581
    %756 = vmatprep.subr.bf16.mxu0 0
    %757 = vmatpush1.bf16.msra.mxu0 %v582
    %758 = vmatprep.subr.bf16.mxu0 0
    %759 = vmatpush1.bf16.msra.mxu0 %v583
    %760 = vmatprep.subr.bf16.mxu0 0
    %761 = vmatpush1.bf16.msra.mxu0 %v584
    %762 = vmatprep.subr.bf16.mxu0 0
    %763 = vmatpush1.bf16.msra.mxu0 %v585
    %764 = vmatprep.subr.bf16.mxu0 0
    %765 = vmatpush1.bf16.msra.mxu0 %v586
    %766 = vmatprep.subr.bf16.mxu0 0
    %767 = vmatpush1.bf16.msra.mxu0 %v587
    %768 = vmatprep.subr.bf16.mxu0 0
    %769 = vmatpush1.bf16.msra.mxu0 %v588
    %770 = vmatprep.subr.bf16.mxu0 0
    %771 = vmatpush1.bf16.msra.mxu0 %v589
    %772 = vmatprep.subr.bf16.mxu0 0
    %773 = vmatpush1.bf16.msra.mxu0 %v590
    %774 = vmatprep.subr.bf16.mxu0 0
    %775 = vmatpush1.bf16.msra.mxu0 %v591
    %776 = vmatprep.mubr.bf16.mxu0 %v247
    %777 = vmatmul.mubr.bf16.gmra.mrb[0].mxu0 %v245
    %v778 = vpop.f32.mrb[0].mxu0
    %v779 = vadd.f32 %v739, %v778
    %v780 = vpop.f32.mrb[0].mxu0
    %v781 = vpop.f32.mrb[0].mxu0
    %v782 = vpop.f32.mrb[0].mxu0
    %783 = vdwg.mxu0
    %784 = vmatprep.subr.bf16.mxu0 0
    %785 = vmatpush1.bf16.msra.mxu0 %v592
    %786 = vmatprep.subr.bf16.mxu0 0
    %787 = vmatpush1.bf16.msra.mxu0 %v593
    %788 = vmatprep.subr.bf16.mxu0 0
    %789 = vmatpush1.bf16.msra.mxu0 %v594
    %790 = vmatprep.subr.bf16.mxu0 0
    %791 = vmatpush1.bf16.msra.mxu0 %v595
    %792 = vmatprep.subr.bf16.mxu0 0
    %793 = vmatpush1.bf16.msra.mxu0 %v596
    %794 = vmatprep.subr.bf16.mxu0 0
    %795 = vmatpush1.bf16.msra.mxu0 %v597
    %796 = vmatprep.subr.bf16.mxu0 0
    %797 = vmatpush1.bf16.msra.mxu0 %v598
    %798 = vmatprep.subr.bf16.mxu0 0
    %799 = vmatpush1.bf16.msra.mxu0 %v599
    %800 = vmatprep.subr.bf16.mxu0 0
    %801 = vmatpush1.bf16.msra.mxu0 %v600
    %802 = vmatprep.subr.bf16.mxu0 0
    %803 = vmatpush1.bf16.msra.mxu0 %v601
    %804 = vmatprep.subr.bf16.mxu0 0
    %805 = vmatpush1.bf16.msra.mxu0 %v602
    %806 = vmatprep.subr.bf16.mxu0 0
    %807 = vmatpush1.bf16.msra.mxu0 %v603
    %808 = vmatprep.subr.bf16.mxu0 0
    %809 = vmatpush1.bf16.msra.mxu0 %v604
    %810 = vmatprep.subr.bf16.mxu0 0
    %811 = vmatpush1.bf16.msra.mxu0 %v605
    %812 = vmatprep.subr.bf16.mxu0 0
    %813 = vmatpush1.bf16.msra.mxu0 %v606
    %814 = vmatprep.subr.bf16.mxu0 0
    %815 = vmatpush1.bf16.msra.mxu0 %v607
    %816 = vmatprep.mubr.bf16.mxu0 %v244
    %817 = vmatmul.mubr.bf16.gmra.mrb[0].mxu0 %v230
    %v818 = vpop.f32.mrb[0].mxu0
    %v819 = vadd.f32 %v779, %v818
    %v820 = vpop.f32.mrb[0].mxu0
    %v821 = vpop.f32.mrb[0].mxu0
    %v822 = vpop.f32.mrb[0].mxu0
    %823 = vdwg.mxu0
    %824 = vmatprep.subr.bf16.mxu0 0
    %825 = vmatpush1.bf16.msra.mxu0 %v608
    %826 = vmatprep.subr.bf16.mxu0 0
    %827 = vmatpush1.bf16.msra.mxu0 %v609
    %828 = vmatprep.subr.bf16.mxu0 0
    %829 = vmatpush1.bf16.msra.mxu0 %v610
    %830 = vmatprep.subr.bf16.mxu0 0
    %831 = vmatpush1.bf16.msra.mxu0 %v611
    %832 = vmatprep.subr.bf16.mxu0 0
    %833 = vmatpush1.bf16.msra.mxu0 %v612
    %834 = vmatprep.subr.bf16.mxu0 0
    %835 = vmatpush1.bf16.msra.mxu0 %v613
    %836 = vmatprep.subr.bf16.mxu0 0
    %837 = vmatpush1.bf16.msra.mxu0 %v614
    %838 = vmatprep.subr.bf16.mxu0 0
    %839 = vmatpush1.bf16.msra.mxu0 %v615
    %840 = vmatprep.subr.bf16.mxu0 0
    %841 = vmatpush1.bf16.msra.mxu0 %v616
    %842 = vmatprep.subr.bf16.mxu0 0
    %843 = vmatpush1.bf16.msra.mxu0 %v617
    %844 = vmatprep.subr.bf16.mxu0 0
    %845 = vmatpush1.bf16.msra.mxu0 %v618
    %846 = vmatprep.subr.bf16.mxu0 0
    %847 = vmatpush1.bf16.msra.mxu0 %v619
    %848 = vmatprep.subr.bf16.mxu0 0
    %849 = vmatpush1.bf16.msra.mxu0 %v620
    %850 = vmatprep.subr.bf16.mxu0 0
    %851 = vmatpush1.bf16.msra.mxu0 %v621
    %852 = vmatprep.subr.bf16.mxu0 0
    %853 = vmatpush1.bf16.msra.mxu0 %v622
    %854 = vmatprep.subr.bf16.mxu0 0
    %855 = vmatpush1.bf16.msra.mxu0 %v623
    %856 = vmatprep.mubr.bf16.mxu0 %v248
    %857 = vmatmul.mubr.bf16.gmra.mrb[0].mxu0 %v246
    %v858 = vpop.f32.mrb[0].mxu0
    %v859 = vadd.f32 %v819, %v858
    %v860 = vpop.f32.mrb[0].mxu0
    %v861 = vpop.f32.mrb[0].mxu0
    %v862 = vpop.f32.mrb[0].mxu0
    %863 = vdwg.mxu0
    %864 = vmatprep.subr.bf16.mxu0 0
    %865 = vmatpush1.bf16.msra.mxu0 %v624
    %866 = vmatprep.subr.bf16.mxu0 0
    %867 = vmatpush1.bf16.msra.mxu0 %v625
    %868 = vmatprep.subr.bf16.mxu0 0
    %869 = vmatpush1.bf16.msra.mxu0 %v626
    %870 = vmatprep.subr.bf16.mxu0 0
    %871 = vmatpush1.bf16.msra.mxu0 %v627
    %872 = vmatprep.subr.bf16.mxu0 0
    %873 = vmatpush1.bf16.msra.mxu0 %v628
    %874 = vmatprep.subr.bf16.mxu0 0
    %875 = vmatpush1.bf16.msra.mxu0 %v629
    %876 = vmatprep.subr.bf16.mxu0 0
    %877 = vmatpush1.bf16.msra.mxu0 %v630
    %878 = vmatprep.subr.bf16.mxu0 0
    %879 = vmatpush1.bf16.msra.mxu0 %v631
    %880 = vmatprep.subr.bf16.mxu0 0
    %881 = vmatpush1.bf16.msra.mxu0 0
    %882 = vmatprep.subr.bf16.mxu0 0
    %883 = vmatpush1.bf16.msra.mxu0 0
    %884 = vmatprep.subr.bf16.mxu0 0
    %885 = vmatpush1.bf16.msra.mxu0 0
    %886 = vmatprep.subr.bf16.mxu0 0
    %887 = vmatpush1.bf16.msra.mxu0 0
    %888 = vmatprep.subr.bf16.mxu0 0
    %889 = vmatpush1.bf16.msra.mxu0 0
    %890 = vmatprep.subr.bf16.mxu0 0
    %891 = vmatpush1.bf16.msra.mxu0 0
    %892 = vmatprep.subr.bf16.mxu0 0
    %893 = vmatpush1.bf16.msra.mxu0 0
    %894 = vmatprep.subr.bf16.mxu0 0
    %895 = vmatpush1.bf16.msra.mxu0 0
    %896 = vmatprep.mubr.bf16.mxu0 0
    %897 = vmatmul.mubr.bf16.gmra.mrb[0].mxu0 %v262
    %v898 = vpop.f32.mrb[0].mxu0
    %v899 = vadd.f32 %v859, %v898
    %v900 = vpop.f32.mrb[0].mxu0
    %v901 = vpop.f32.mrb[0].mxu0
    %v902 = vpop.f32.mrb[0].mxu0
    %903 = vdwg.mxu0
    %s904 = scalar_lea.vmem %s0, 9
    %v905 = vld [vmem:[%s904] sm:$0xff]
    %v906 = vld [vmem:[%s904 + $0x8] sm:$0x1]
    %v909 = vcombine.high %v905, %v905
    %v911 = vunpack.c.l.s4 1966171168
    %v912 = vunpack.c.0.s8 %v911
    %v913 = vlaneseq
    %v914 = vshrl.u32 %v913, 7
    %v915 = vsub.s32 %v912, %v914
    %v916 = vrot.slane %v905, %v915
    %v918 = vunpack.c.l.s4 1966171168
    %v919 = vunpack.c.0.s8 %v918
    %v920 = vlaneseq
    %v921 = vshrl.u32 %v920, 7
    %v922 = vsub.s32 %v919, %v921
    %v923 = vrot.slane %v909, %v922
    %v924 = vcombine.high %v916, %v916
    %v925 = vcombine.high %v923, %v923
    %v927 = vunpack.c.l.s4 1966171168
    %v928 = vunpack.c.0.s8 %v927
    %v929 = vlaneseq
    %v930 = vshrl.u32 %v929, 7
    %v931 = vsub.s32 %v928, %v930
    %v932 = vrot.slane %v916, %v931
    %v934 = vunpack.c.l.s4 1966171168
    %v935 = vunpack.c.0.s8 %v934
    %v936 = vlaneseq
    %v937 = vshrl.u32 %v936, 7
    %v938 = vsub.s32 %v935, %v937
    %v939 = vrot.slane %v923, %v938
    %v941 = vunpack.c.l.s4 1966171168
    %v942 = vunpack.c.0.s8 %v941
    %v943 = vlaneseq
    %v944 = vshrl.u32 %v943, 7
    %v945 = vsub.s32 %v942, %v944
    %v946 = vrot.slane %v924, %v945
    %v948 = vunpack.c.l.s4 1966171168
    %v949 = vunpack.c.0.s8 %v948
    %v950 = vlaneseq
    %v951 = vshrl.u32 %v950, 7
    %v952 = vsub.s32 %v949, %v951
    %v953 = vrot.slane %v925, %v952
    %v954 = vcombine.high %v932, %v932
    %v955 = vcombine.high %v939, %v939
    %v956 = vcombine.high %v946, %v946
    %v957 = vcombine.high %v953, %v953
    %v959 = vunpack.c.l.s4 1966171168
    %v960 = vunpack.c.0.s8 %v959
    %v961 = vlaneseq
    %v962 = vshrl.u32 %v961, 7
    %v963 = vsub.s32 %v960, %v962
    %v964 = vrot.slane %v906, %v963
    %v966 = vunpack.c.l.s4 1966171168
    %v967 = vunpack.c.0.s8 %v966
    %v968 = vlaneseq
    %v969 = vshrl.u32 %v968, 7
    %v970 = vsub.s32 %v967, %v969
    %v971 = vrot.slane %v964, %v970
    %981 = vmatprep.subr.bf16.mxu0 0
    %982 = vmatpush1.bf16.msra.mxu0 %v560
    %983 = vmatprep.subr.bf16.mxu0 0
    %984 = vmatpush1.bf16.msra.mxu0 %v561
    %985 = vmatprep.subr.bf16.mxu0 0
    %986 = vmatpush1.bf16.msra.mxu0 %v562
    %987 = vmatprep.subr.bf16.mxu0 0
    %988 = vmatpush1.bf16.msra.mxu0 %v563
    %989 = vmatprep.subr.bf16.mxu0 0
    %990 = vmatpush1.bf16.msra.mxu0 %v564
    %991 = vmatprep.subr.bf16.mxu0 0
    %992 = vmatpush1.bf16.msra.mxu0 %v565
    %993 = vmatprep.subr.bf16.mxu0 0
    %994 = vmatpush1.bf16.msra.mxu0 %v566
    %995 = vmatprep.subr.bf16.mxu0 0
    %996 = vmatpush1.bf16.msra.mxu0 %v567
    %997 = vmatprep.subr.bf16.mxu0 0
    %998 = vmatpush1.bf16.msra.mxu0 %v568
    %999 = vmatprep.subr.bf16.mxu0 0
    %1000 = vmatpush1.bf16.msra.mxu0 %v569
    %1001 = vmatprep.subr.bf16.mxu0 0
    %1002 = vmatpush1.bf16.msra.mxu0 %v570
    %1003 = vmatprep.subr.bf16.mxu0 0
    %1004 = vmatpush1.bf16.msra.mxu0 %v571
    %1005 = vmatprep.subr.bf16.mxu0 0
    %1006 = vmatpush1.bf16.msra.mxu0 %v572
    %1007 = vmatprep.subr.bf16.mxu0 0
    %1008 = vmatpush1.bf16.msra.mxu0 %v573
    %1009 = vmatprep.subr.bf16.mxu0 0
    %1010 = vmatpush1.bf16.msra.mxu0 %v574
    %1011 = vmatprep.subr.bf16.mxu0 0
    %1012 = vmatpush1.bf16.msra.mxu0 %v575
    %1013 = vmatprep.mubr.bf16.mxu0 %v946
    %1014 = vmatmul.mubr.bf16.gmra.mrb[0].mxu0 %v932
    %v1015 = vpop.f32.mrb[0].mxu0
    %v1016 = vadd.f32 0.0, %v1015
    %v1017 = vpop.f32.mrb[0].mxu0
    %v1018 = vpop.f32.mrb[0].mxu0
    %v1019 = vpop.f32.mrb[0].mxu0
    %1020 = vdwg.mxu0
    %1021 = vmatprep.subr.bf16.mxu0 0
    %1022 = vmatpush1.bf16.msra.mxu0 %v576
    %1023 = vmatprep.subr.bf16.mxu0 0
    %1024 = vmatpush1.bf16.msra.mxu0 %v577
    %1025 = vmatprep.subr.bf16.mxu0 0
    %1026 = vmatpush1.bf16.msra.mxu0 %v578
    %1027 = vmatprep.subr.bf16.mxu0 0
    %1028 = vmatpush1.bf16.msra.mxu0 %v579
    %1029 = vmatprep.subr.bf16.mxu0 0
    %1030 = vmatpush1.bf16.msra.mxu0 %v580
    %1031 = vmatprep.subr.bf16.mxu0 0
    %1032 = vmatpush1.bf16.msra.mxu0 %v581
    %1033 = vmatprep.subr.bf16.mxu0 0
    %1034 = vmatpush1.bf16.msra.mxu0 %v582
    %1035 = vmatprep.subr.bf16.mxu0 0
    %1036 = vmatpush1.bf16.msra.mxu0 %v583
    %1037 = vmatprep.subr.bf16.mxu0 0
    %1038 = vmatpush1.bf16.msra.mxu0 %v584
    %1039 = vmatprep.subr.bf16.mxu0 0
    %1040 = vmatpush1.bf16.msra.mxu0 %v585
    %1041 = vmatprep.subr.bf16.mxu0 0
    %1042 = vmatpush1.bf16.msra.mxu0 %v586
    %1043 = vmatprep.subr.bf16.mxu0 0
    %1044 = vmatpush1.bf16.msra.mxu0 %v587
    %1045 = vmatprep.subr.bf16.mxu0 0
    %1046 = vmatpush1.bf16.msra.mxu0 %v588
    %1047 = vmatprep.subr.bf16.mxu0 0
    %1048 = vmatpush1.bf16.msra.mxu0 %v589
    %1049 = vmatprep.subr.bf16.mxu0 0
    %1050 = vmatpush1.bf16.msra.mxu0 %v590
    %1051 = vmatprep.subr.bf16.mxu0 0
    %1052 = vmatpush1.bf16.msra.mxu0 %v591
    %1053 = vmatprep.mubr.bf16.mxu0 %v956
    %1054 = vmatmul.mubr.bf16.gmra.mrb[0].mxu0 %v954
    %v1055 = vpop.f32.mrb[0].mxu0
    %v1056 = vadd.f32 %v1016, %v1055
    %v1057 = vpop.f32.mrb[0].mxu0
    %v1058 = vpop.f32.mrb[0].mxu0
    %v1059 = vpop.f32.mrb[0].mxu0
    %1060 = vdwg.mxu0
    %1061 = vmatprep.subr.bf16.mxu0 0
    %1062 = vmatpush1.bf16.msra.mxu0 %v592
    %1063 = vmatprep.subr.bf16.mxu0 0
    %1064 = vmatpush1.bf16.msra.mxu0 %v593
    %1065 = vmatprep.subr.bf16.mxu0 0
    %1066 = vmatpush1.bf16.msra.mxu0 %v594
    %1067 = vmatprep.subr.bf16.mxu0 0
    %1068 = vmatpush1.bf16.msra.mxu0 %v595
    %1069 = vmatprep.subr.bf16.mxu0 0
    %1070 = vmatpush1.bf16.msra.mxu0 %v596
    %1071 = vmatprep.subr.bf16.mxu0 0
    %1072 = vmatpush1.bf16.msra.mxu0 %v597
    %1073 = vmatprep.subr.bf16.mxu0 0
    %1074 = vmatpush1.bf16.msra.mxu0 %v598
    %1075 = vmatprep.subr.bf16.mxu0 0
    %1076 = vmatpush1.bf16.msra.mxu0 %v599
    %1077 = vmatprep.subr.bf16.mxu0 0
    %1078 = vmatpush1.bf16.msra.mxu0 %v600
    %1079 = vmatprep.subr.bf16.mxu0 0
    %1080 = vmatpush1.bf16.msra.mxu0 %v601
    %1081 = vmatprep.subr.bf16.mxu0 0
    %1082 = vmatpush1.bf16.msra.mxu0 %v602
    %1083 = vmatprep.subr.bf16.mxu0 0
    %1084 = vmatpush1.bf16.msra.mxu0 %v603
    %1085 = vmatprep.subr.bf16.mxu0 0
    %1086 = vmatpush1.bf16.msra.mxu0 %v604
    %1087 = vmatprep.subr.bf16.mxu0 0
    %1088 = vmatpush1.bf16.msra.mxu0 %v605
    %1089 = vmatprep.subr.bf16.mxu0 0
    %1090 = vmatpush1.bf16.msra.mxu0 %v606
    %1091 = vmatprep.subr.bf16.mxu0 0
    %1092 = vmatpush1.bf16.msra.mxu0 %v607
    %1093 = vmatprep.mubr.bf16.mxu0 %v953
    %1094 = vmatmul.mubr.bf16.gmra.mrb[0].mxu0 %v939
    %v1095 = vpop.f32.mrb[0].mxu0
    %v1096 = vadd.f32 %v1056, %v1095
    %v1097 = vpop.f32.mrb[0].mxu0
    %v1098 = vpop.f32.mrb[0].mxu0
    %v1099 = vpop.f32.mrb[0].mxu0
    %1100 = vdwg.mxu0
    %1101 = vmatprep.subr.bf16.mxu0 0
    %1102 = vmatpush1.bf16.msra.mxu0 %v608
    %1103 = vmatprep.subr.bf16.mxu0 0
    %1104 = vmatpush1.bf16.msra.mxu0 %v609
    %1105 = vmatprep.subr.bf16.mxu0 0
    %1106 = vmatpush1.bf16.msra.mxu0 %v610
    %1107 = vmatprep.subr.bf16.mxu0 0
    %1108 = vmatpush1.bf16.msra.mxu0 %v611
    %1109 = vmatprep.subr.bf16.mxu0 0
    %1110 = vmatpush1.bf16.msra.mxu0 %v612
    %1111 = vmatprep.subr.bf16.mxu0 0
    %1112 = vmatpush1.bf16.msra.mxu0 %v613
    %1113 = vmatprep.subr.bf16.mxu0 0
    %1114 = vmatpush1.bf16.msra.mxu0 %v614
    %1115 = vmatprep.subr.bf16.mxu0 0
    %1116 = vmatpush1.bf16.msra.mxu0 %v615
    %1117 = vmatprep.subr.bf16.mxu0 0
    %1118 = vmatpush1.bf16.msra.mxu0 %v616
    %1119 = vmatprep.subr.bf16.mxu0 0
    %1120 = vmatpush1.bf16.msra.mxu0 %v617
    %1121 = vmatprep.subr.bf16.mxu0 0
    %1122 = vmatpush1.bf16.msra.mxu0 %v618
    %1123 = vmatprep.subr.bf16.mxu0 0
    %1124 = vmatpush1.bf16.msra.mxu0 %v619
    %1125 = vmatprep.subr.bf16.mxu0 0
    %1126 = vmatpush1.bf16.msra.mxu0 %v620
    %1127 = vmatprep.subr.bf16.mxu0 0
    %1128 = vmatpush1.bf16.msra.mxu0 %v621
    %1129 = vmatprep.subr.bf16.mxu0 0
    %1130 = vmatpush1.bf16.msra.mxu0 %v622
    %1131 = vmatprep.subr.bf16.mxu0 0
    %1132 = vmatpush1.bf16.msra.mxu0 %v623
    %1133 = vmatprep.mubr.bf16.mxu0 %v957
    %1134 = vmatmul.mubr.bf16.gmra.mrb[0].mxu0 %v955
    %v1135 = vpop.f32.mrb[0].mxu0
    %v1136 = vadd.f32 %v1096, %v1135
    %v1137 = vpop.f32.mrb[0].mxu0
    %v1138 = vpop.f32.mrb[0].mxu0
    %v1139 = vpop.f32.mrb[0].mxu0
    %1140 = vdwg.mxu0
    %1141 = vmatprep.subr.bf16.mxu0 0
    %1142 = vmatpush1.bf16.msra.mxu0 %v624
    %1143 = vmatprep.subr.bf16.mxu0 0
    %1144 = vmatpush1.bf16.msra.mxu0 %v625
    %1145 = vmatprep.subr.bf16.mxu0 0
    %1146 = vmatpush1.bf16.msra.mxu0 %v626
    %1147 = vmatprep.subr.bf16.mxu0 0
    %1148 = vmatpush1.bf16.msra.mxu0 %v627
    %1149 = vmatprep.subr.bf16.mxu0 0
    %1150 = vmatpush1.bf16.msra.mxu0 %v628
    %1151 = vmatprep.subr.bf16.mxu0 0
    %1152 = vmatpush1.bf16.msra.mxu0 %v629
    %1153 = vmatprep.subr.bf16.mxu0 0
    %1154 = vmatpush1.bf16.msra.mxu0 %v630
    %1155 = vmatprep.subr.bf16.mxu0 0
    %1156 = vmatpush1.bf16.msra.mxu0 %v631
    %1157 = vmatprep.subr.bf16.mxu0 0
    %1158 = vmatpush1.bf16.msra.mxu0 0
    %1159 = vmatprep.subr.bf16.mxu0 0
    %1160 = vmatpush1.bf16.msra.mxu0 0
    %1161 = vmatprep.subr.bf16.mxu0 0
    %1162 = vmatpush1.bf16.msra.mxu0 0
    %1163 = vmatprep.subr.bf16.mxu0 0
    %1164 = vmatpush1.bf16.msra.mxu0 0
    %1165 = vmatprep.subr.bf16.mxu0 0
    %1166 = vmatpush1.bf16.msra.mxu0 0
    %1167 = vmatprep.subr.bf16.mxu0 0
    %1168 = vmatpush1.bf16.msra.mxu0 0
    %1169 = vmatprep.subr.bf16.mxu0 0
    %1170 = vmatpush1.bf16.msra.mxu0 0
    %1171 = vmatprep.subr.bf16.mxu0 0
    %1172 = vmatpush1.bf16.msra.mxu0 0
    %1173 = vmatprep.mubr.bf16.mxu0 0
    %1174 = vmatmul.mubr.bf16.gmra.mrb[0].mxu0 %v971
    %v1175 = vpop.f32.mrb[0].mxu0
    %v1176 = vadd.f32 %v1136, %v1175
    %v1177 = vpop.f32.mrb[0].mxu0
    %v1178 = vpop.f32.mrb[0].mxu0
    %v1179 = vpop.f32.mrb[0].mxu0
    %1180 = vdwg.mxu0
    %v1181 = vmax.f32 %v899, %v1176
    %s1182 = scalar_lea.vmem %s0, 18
    %v1183 = vld [vmem:[%s1182] sm:$0xff]
    %v1184 = vld [vmem:[%s1182 + $0x8] sm:$0x1]
    %v1187 = vcombine.high %v1183, %v1183
    %v1189 = vunpack.c.l.s4 1966171168
    %v1190 = vunpack.c.0.s8 %v1189
    %v1191 = vlaneseq
    %v1192 = vshrl.u32 %v1191, 7
    %v1193 = vsub.s32 %v1190, %v1192
    %v1194 = vrot.slane %v1183, %v1193
    %v1196 = vunpack.c.l.s4 1966171168
    %v1197 = vunpack.c.0.s8 %v1196
    %v1198 = vlaneseq
    %v1199 = vshrl.u32 %v1198, 7
    %v1200 = vsub.s32 %v1197, %v1199
    %v1201 = vrot.slane %v1187, %v1200
    %v1202 = vcombine.high %v1194, %v1194
    %v1203 = vcombine.high %v1201, %v1201
    %v1205 = vunpack.c.l.s4 1966171168
    %v1206 = vunpack.c.0.s8 %v1205
    %v1207 = vlaneseq
    %v1208 = vshrl.u32 %v1207, 7
    %v1209 = vsub.s32 %v1206, %v1208
    %v1210 = vrot.slane %v1194, %v1209
    %v1212 = vunpack.c.l.s4 1966171168
    %v1213 = vunpack.c.0.s8 %v1212
    %v1214 = vlaneseq
    %v1215 = vshrl.u32 %v1214, 7
    %v1216 = vsub.s32 %v1213, %v1215
    %v1217 = vrot.slane %v1201, %v1216
    %v1219 = vunpack.c.l.s4 1966171168
    %v1220 = vunpack.c.0.s8 %v1219
    %v1221 = vlaneseq
    %v1222 = vshrl.u32 %v1221, 7
    %v1223 = vsub.s32 %v1220, %v1222
    %v1224 = vrot.slane %v1202, %v1223
    %v1226 = vunpack.c.l.s4 1966171168
    %v1227 = vunpack.c.0.s8 %v1226
    %v1228 = vlaneseq
    %v1229 = vshrl.u32 %v1228, 7
    %v1230 = vsub.s32 %v1227, %v1229
    %v1231 = vrot.slane %v1203, %v1230
    %v1232 = vcombine.high %v1210, %v1210
    %v1233 = vcombine.high %v1217, %v1217
    %v1234 = vcombine.high %v1224, %v1224
    %v1235 = vcombine.high %v1231, %v1231
    %v1237 = vunpack.c.l.s4 1966171168
    %v1238 = vunpack.c.0.s8 %v1237
    %v1239 = vlaneseq
    %v1240 = vshrl.u32 %v1239, 7
    %v1241 = vsub.s32 %v1238, %v1240
    %v1242 = vrot.slane %v1184, %v1241
    %v1244 = vunpack.c.l.s4 1966171168
    %v1245 = vunpack.c.0.s8 %v1244
    %v1246 = vlaneseq
    %v1247 = vshrl.u32 %v1246, 7
    %v1248 = vsub.s32 %v1245, %v1247
    %v1249 = vrot.slane %v1242, %v1248
    %1259 = vmatprep.subr.bf16.mxu0 0
    %1260 = vmatpush1.bf16.msra.mxu0 %v560
    %1261 = vmatprep.subr.bf16.mxu0 0
    %1262 = vmatpush1.bf16.msra.mxu0 %v561
    %1263 = vmatprep.subr.bf16.mxu0 0
    %1264 = vmatpush1.bf16.msra.mxu0 %v562
    %1265 = vmatprep.subr.bf16.mxu0 0
    %1266 = vmatpush1.bf16.msra.mxu0 %v563
    %1267 = vmatprep.subr.bf16.mxu0 0
    %1268 = vmatpush1.bf16.msra.mxu0 %v564
    %1269 = vmatprep.subr.bf16.mxu0 0
    %1270 = vmatpush1.bf16.msra.mxu0 %v565
    %1271 = vmatprep.subr.bf16.mxu0 0
    %1272 = vmatpush1.bf16.msra.mxu0 %v566
    %1273 = vmatprep.subr.bf16.mxu0 0
    %1274 = vmatpush1.bf16.msra.mxu0 %v567
    %1275 = vmatprep.subr.bf16.mxu0 0
    %1276 = vmatpush1.bf16.msra.mxu0 %v568
    %1277 = vmatprep.subr.bf16.mxu0 0
    %1278 = vmatpush1.bf16.msra.mxu0 %v569
    %1279 = vmatprep.subr.bf16.mxu0 0
    %1280 = vmatpush1.bf16.msra.mxu0 %v570
    %1281 = vmatprep.subr.bf16.mxu0 0
    %1282 = vmatpush1.bf16.msra.mxu0 %v571
    %1283 = vmatprep.subr.bf16.mxu0 0
    %1284 = vmatpush1.bf16.msra.mxu0 %v572
    %1285 = vmatprep.subr.bf16.mxu0 0
    %1286 = vmatpush1.bf16.msra.mxu0 %v573
    %1287 = vmatprep.subr.bf16.mxu0 0
    %1288 = vmatpush1.bf16.msra.mxu0 %v574
    %1289 = vmatprep.subr.bf16.mxu0 0
    %1290 = vmatpush1.bf16.msra.mxu0 %v575
    %1291 = vmatprep.mubr.bf16.mxu0 %v1224
    %1292 = vmatmul.mubr.bf16.gmra.mrb[0].mxu0 %v1210
    %v1293 = vpop.f32.mrb[0].mxu0
    %v1294 = vadd.f32 0.0, %v1293
    %v1295 = vpop.f32.mrb[0].mxu0
    %v1296 = vpop.f32.mrb[0].mxu0
    %v1297 = vpop.f32.mrb[0].mxu0
    %1298 = vdwg.mxu0
    %1299 = vmatprep.subr.bf16.mxu0 0
    %1300 = vmatpush1.bf16.msra.mxu0 %v576
    %1301 = vmatprep.subr.bf16.mxu0 0
    %1302 = vmatpush1.bf16.msra.mxu0 %v577
    %1303 = vmatprep.subr.bf16.mxu0 0
    %1304 = vmatpush1.bf16.msra.mxu0 %v578
    %1305 = vmatprep.subr.bf16.mxu0 0
    %1306 = vmatpush1.bf16.msra.mxu0 %v579
    %1307 = vmatprep.subr.bf16.mxu0 0
    %1308 = vmatpush1.bf16.msra.mxu0 %v580
    %1309 = vmatprep.subr.bf16.mxu0 0
    %1310 = vmatpush1.bf16.msra.mxu0 %v581
    %1311 = vmatprep.subr.bf16.mxu0 0
    %1312 = vmatpush1.bf16.msra.mxu0 %v582
    %1313 = vmatprep.subr.bf16.mxu0 0
    %1314 = vmatpush1.bf16.msra.mxu0 %v583
    %1315 = vmatprep.subr.bf16.mxu0 0
    %1316 = vmatpush1.bf16.msra.mxu0 %v584
    %1317 = vmatprep.subr.bf16.mxu0 0
    %1318 = vmatpush1.bf16.msra.mxu0 %v585
    %1319 = vmatprep.subr.bf16.mxu0 0
    %1320 = vmatpush1.bf16.msra.mxu0 %v586
    %1321 = vmatprep.subr.bf16.mxu0 0
    %1322 = vmatpush1.bf16.msra.mxu0 %v587
    %1323 = vmatprep.subr.bf16.mxu0 0
    %1324 = vmatpush1.bf16.msra.mxu0 %v588
    %1325 = vmatprep.subr.bf16.mxu0 0
    %1326 = vmatpush1.bf16.msra.mxu0 %v589
    %1327 = vmatprep.subr.bf16.mxu0 0
    %1328 = vmatpush1.bf16.msra.mxu0 %v590
    %1329 = vmatprep.subr.bf16.mxu0 0
    %1330 = vmatpush1.bf16.msra.mxu0 %v591
    %1331 = vmatprep.mubr.bf16.mxu0 %v1234
    %1332 = vmatmul.mubr.bf16.gmra.mrb[0].mxu0 %v1232
    %v1333 = vpop.f32.mrb[0].mxu0
    %v1334 = vadd.f32 %v1294, %v1333
    %v1335 = vpop.f32.mrb[0].mxu0
    %v1336 = vpop.f32.mrb[0].mxu0
    %v1337 = vpop.f32.mrb[0].mxu0
    %1338 = vdwg.mxu0
    %1339 = vmatprep.subr.bf16.mxu0 0
    %1340 = vmatpush1.bf16.msra.mxu0 %v592
    %1341 = vmatprep.subr.bf16.mxu0 0
    %1342 = vmatpush1.bf16.msra.mxu0 %v593
    %1343 = vmatprep.subr.bf16.mxu0 0
    %1344 = vmatpush1.bf16.msra.mxu0 %v594
    %1345 = vmatprep.subr.bf16.mxu0 0
    %1346 = vmatpush1.bf16.msra.mxu0 %v595
    %1347 = vmatprep.subr.bf16.mxu0 0
    %1348 = vmatpush1.bf16.msra.mxu0 %v596
    %1349 = vmatprep.subr.bf16.mxu0 0
    %1350 = vmatpush1.bf16.msra.mxu0 %v597
    %1351 = vmatprep.subr.bf16.mxu0 0
    %1352 = vmatpush1.bf16.msra.mxu0 %v598
    %1353 = vmatprep.subr.bf16.mxu0 0
    %1354 = vmatpush1.bf16.msra.mxu0 %v599
    %1355 = vmatprep.subr.bf16.mxu0 0
    %1356 = vmatpush1.bf16.msra.mxu0 %v600
    %1357 = vmatprep.subr.bf16.mxu0 0
    %1358 = vmatpush1.bf16.msra.mxu0 %v601
    %1359 = vmatprep.subr.bf16.mxu0 0
    %1360 = vmatpush1.bf16.msra.mxu0 %v602
    %1361 = vmatprep.subr.bf16.mxu0 0
    %1362 = vmatpush1.bf16.msra.mxu0 %v603
    %1363 = vmatprep.subr.bf16.mxu0 0
    %1364 = vmatpush1.bf16.msra.mxu0 %v604
    %1365 = vmatprep.subr.bf16.mxu0 0
    %1366 = vmatpush1.bf16.msra.mxu0 %v605
    %1367 = vmatprep.subr.bf16.mxu0 0
    %1368 = vmatpush1.bf16.msra.mxu0 %v606
    %1369 = vmatprep.subr.bf16.mxu0 0
    %1370 = vmatpush1.bf16.msra.mxu0 %v607
    %1371 = vmatprep.mubr.bf16.mxu0 %v1231
    %1372 = vmatmul.mubr.bf16.gmra.mrb[0].mxu0 %v1217
    %v1373 = vpop.f32.mrb[0].mxu0
    %v1374 = vadd.f32 %v1334, %v1373
    %v1375 = vpop.f32.mrb[0].mxu0
    %v1376 = vpop.f32.mrb[0].mxu0
    %v1377 = vpop.f32.mrb[0].mxu0
    %1378 = vdwg.mxu0
    %1379 = vmatprep.subr.bf16.mxu0 0
    %1380 = vmatpush1.bf16.msra.mxu0 %v608
    %1381 = vmatprep.subr.bf16.mxu0 0
    %1382 = vmatpush1.bf16.msra.mxu0 %v609
    %1383 = vmatprep.subr.bf16.mxu0 0
    %1384 = vmatpush1.bf16.msra.mxu0 %v610
    %1385 = vmatprep.subr.bf16.mxu0 0
    %1386 = vmatpush1.bf16.msra.mxu0 %v611
    %1387 = vmatprep.subr.bf16.mxu0 0
    %1388 = vmatpush1.bf16.msra.mxu0 %v612
    %1389 = vmatprep.subr.bf16.mxu0 0
    %1390 = vmatpush1.bf16.msra.mxu0 %v613
    %1391 = vmatprep.subr.bf16.mxu0 0
    %1392 = vmatpush1.bf16.msra.mxu0 %v614
    %1393 = vmatprep.subr.bf16.mxu0 0
    %1394 = vmatpush1.bf16.msra.mxu0 %v615
    %1395 = vmatprep.subr.bf16.mxu0 0
    %1396 = vmatpush1.bf16.msra.mxu0 %v616
    %1397 = vmatprep.subr.bf16.mxu0 0
    %1398 = vmatpush1.bf16.msra.mxu0 %v617
    %1399 = vmatprep.subr.bf16.mxu0 0
    %1400 = vmatpush1.bf16.msra.mxu0 %v618
    %1401 = vmatprep.subr.bf16.mxu0 0
    %1402 = vmatpush1.bf16.msra.mxu0 %v619
    %1403 = vmatprep.subr.bf16.mxu0 0
    %1404 = vmatpush1.bf16.msra.mxu0 %v620
    %1405 = vmatprep.subr.bf16.mxu0 0
    %1406 = vmatpush1.bf16.msra.mxu0 %v621
    %1407 = vmatprep.subr.bf16.mxu0 0
    %1408 = vmatpush1.bf16.msra.mxu0 %v622
    %1409 = vmatprep.subr.bf16.mxu0 0
    %1410 = vmatpush1.bf16.msra.mxu0 %v623
    %1411 = vmatprep.mubr.bf16.mxu0 %v1235
    %1412 = vmatmul.mubr.bf16.gmra.mrb[0].mxu0 %v1233
    %v1413 = vpop.f32.mrb[0].mxu0
    %v1414 = vadd.f32 %v1374, %v1413
    %v1415 = vpop.f32.mrb[0].mxu0
    %v1416 = vpop.f32.mrb[0].mxu0
    %v1417 = vpop.f32.mrb[0].mxu0
    %1418 = vdwg.mxu0
    %1419 = vmatprep.subr.bf16.mxu0 0
    %1420 = vmatpush1.bf16.msra.mxu0 %v624
    %1421 = vmatprep.subr.bf16.mxu0 0
    %1422 = vmatpush1.bf16.msra.mxu0 %v625
    %1423 = vmatprep.subr.bf16.mxu0 0
    %1424 = vmatpush1.bf16.msra.mxu0 %v626
    %1425 = vmatprep.subr.bf16.mxu0 0
    %1426 = vmatpush1.bf16.msra.mxu0 %v627
    %1427 = vmatprep.subr.bf16.mxu0 0
    %1428 = vmatpush1.bf16.msra.mxu0 %v628
    %1429 = vmatprep.subr.bf16.mxu0 0
    %1430 = vmatpush1.bf16.msra.mxu0 %v629
    %1431 = vmatprep.subr.bf16.mxu0 0
    %1432 = vmatpush1.bf16.msra.mxu0 %v630
    %1433 = vmatprep.subr.bf16.mxu0 0
    %1434 = vmatpush1.bf16.msra.mxu0 %v631
    %1435 = vmatprep.subr.bf16.mxu0 0
    %1436 = vmatpush1.bf16.msra.mxu0 0
    %1437 = vmatprep.subr.bf16.mxu0 0
    %1438 = vmatpush1.bf16.msra.mxu0 0
    %1439 = vmatprep.subr.bf16.mxu0 0
    %1440 = vmatpush1.bf16.msra.mxu0 0
    %1441 = vmatprep.subr.bf16.mxu0 0
    %1442 = vmatpush1.bf16.msra.mxu0 0
    %1443 = vmatprep.subr.bf16.mxu0 0
    %1444 = vmatpush1.bf16.msra.mxu0 0
    %1445 = vmatprep.subr.bf16.mxu0 0
    %1446 = vmatpush1.bf16.msra.mxu0 0
    %1447 = vmatprep.subr.bf16.mxu0 0
    %1448 = vmatpush1.bf16.msra.mxu0 0
    %1449 = vmatprep.subr.bf16.mxu0 0
    %1450 = vmatpush1.bf16.msra.mxu0 0
    %1451 = vmatprep.mubr.bf16.mxu0 0
    %1452 = vmatmul.mubr.bf16.gmra.mrb[0].mxu0 %v1249
    %v1453 = vpop.f32.mrb[0].mxu0
    %v1454 = vadd.f32 %v1414, %v1453
    %v1455 = vpop.f32.mrb[0].mxu0
    %v1456 = vpop.f32.mrb[0].mxu0
    %v1457 = vpop.f32.mrb[0].mxu0
    %1458 = vdwg.mxu0
    %v1459 = vmax.f32 %v1181, %v1454
    %s1460 = scalar_lea.vmem %s0, 27
    %v1461 = vld [vmem:[%s1460] sm:$0xff]
    %v1462 = vld [vmem:[%s1460 + $0x8] sm:$0x1]
    %v1465 = vcombine.high %v1461, %v1461
    %v1467 = vunpack.c.l.s4 1966171168
    %v1468 = vunpack.c.0.s8 %v1467
    %v1469 = vlaneseq
    %v1470 = vshrl.u32 %v1469, 7
    %v1471 = vsub.s32 %v1468, %v1470
    %v1472 = vrot.slane %v1461, %v1471
    %v1474 = vunpack.c.l.s4 1966171168
    %v1475 = vunpack.c.0.s8 %v1474
    %v1476 = vlaneseq
    %v1477 = vshrl.u32 %v1476, 7
    %v1478 = vsub.s32 %v1475, %v1477
    %v1479 = vrot.slane %v1465, %v1478
    %v1480 = vcombine.high %v1472, %v1472
    %v1481 = vcombine.high %v1479, %v1479
    %v1483 = vunpack.c.l.s4 1966171168
    %v1484 = vunpack.c.0.s8 %v1483
    %v1485 = vlaneseq
    %v1486 = vshrl.u32 %v1485, 7
    %v1487 = vsub.s32 %v1484, %v1486
    %v1488 = vrot.slane %v1472, %v1487
    %v1490 = vunpack.c.l.s4 1966171168
    %v1491 = vunpack.c.0.s8 %v1490
    %v1492 = vlaneseq
    %v1493 = vshrl.u32 %v1492, 7
    %v1494 = vsub.s32 %v1491, %v1493
    %v1495 = vrot.slane %v1479, %v1494
    %v1497 = vunpack.c.l.s4 1966171168
    %v1498 = vunpack.c.0.s8 %v1497
    %v1499 = vlaneseq
    %v1500 = vshrl.u32 %v1499, 7
    %v1501 = vsub.s32 %v1498, %v1500
    %v1502 = vrot.slane %v1480, %v1501
    %v1504 = vunpack.c.l.s4 1966171168
    %v1505 = vunpack.c.0.s8 %v1504
    %v1506 = vlaneseq
    %v1507 = vshrl.u32 %v1506, 7
    %v1508 = vsub.s32 %v1505, %v1507
    %v1509 = vrot.slane %v1481, %v1508
    %v1510 = vcombine.high %v1488, %v1488
    %v1511 = vcombine.high %v1495, %v1495
    %v1512 = vcombine.high %v1502, %v1502
    %v1513 = vcombine.high %v1509, %v1509
    %v1515 = vunpack.c.l.s4 1966171168
    %v1516 = vunpack.c.0.s8 %v1515
    %v1517 = vlaneseq
    %v1518 = vshrl.u32 %v1517, 7
    %v1519 = vsub.s32 %v1516, %v1518
    %v1520 = vrot.slane %v1462, %v1519
    %v1522 = vunpack.c.l.s4 1966171168
    %v1523 = vunpack.c.0.s8 %v1522
    %v1524 = vlaneseq
    %v1525 = vshrl.u32 %v1524, 7
    %v1526 = vsub.s32 %v1523, %v1525
    %v1527 = vrot.slane %v1520, %v1526
    %1537 = vmatprep.subr.bf16.mxu0 0
    %1538 = vmatpush1.bf16.msra.mxu0 %v560
    %1539 = vmatprep.subr.bf16.mxu0 0
    %1540 = vmatpush1.bf16.msra.mxu0 %v561
    %1541 = vmatprep.subr.bf16.mxu0 0
    %1542 = vmatpush1.bf16.msra.mxu0 %v562
    %1543 = vmatprep.subr.bf16.mxu0 0
    %1544 = vmatpush1.bf16.msra.mxu0 %v563
    %1545 = vmatprep.subr.bf16.mxu0 0
    %1546 = vmatpush1.bf16.msra.mxu0 %v564
    %1547 = vmatprep.subr.bf16.mxu0 0
    %1548 = vmatpush1.bf16.msra.mxu0 %v565
    %1549 = vmatprep.subr.bf16.mxu0 0
    %1550 = vmatpush1.bf16.msra.mxu0 %v566
    %1551 = vmatprep.subr.bf16.mxu0 0
    %1552 = vmatpush1.bf16.msra.mxu0 %v567
    %1553 = vmatprep.subr.bf16.mxu0 0
    %1554 = vmatpush1.bf16.msra.mxu0 %v568
    %1555 = vmatprep.subr.bf16.mxu0 0
    %1556 = vmatpush1.bf16.msra.mxu0 %v569
    %1557 = vmatprep.subr.bf16.mxu0 0
    %1558 = vmatpush1.bf16.msra.mxu0 %v570
    %1559 = vmatprep.subr.bf16.mxu0 0
    %1560 = vmatpush1.bf16.msra.mxu0 %v571
    %1561 = vmatprep.subr.bf16.mxu0 0
    %1562 = vmatpush1.bf16.msra.mxu0 %v572
    %1563 = vmatprep.subr.bf16.mxu0 0
    %1564 = vmatpush1.bf16.msra.mxu0 %v573
    %1565 = vmatprep.subr.bf16.mxu0 0
    %1566 = vmatpush1.bf16.msra.mxu0 %v574
    %1567 = vmatprep.subr.bf16.mxu0 0
    %1568 = vmatpush1.bf16.msra.mxu0 %v575
    %1569 = vmatprep.mubr.bf16.mxu0 %v1502
    %1570 = vmatmul.mubr.bf16.gmra.mrb[0].mxu0 %v1488
    %v1571 = vpop.f32.mrb[0].mxu0
    %v1572 = vadd.f32 0.0, %v1571
    %v1573 = vpop.f32.mrb[0].mxu0
    %v1574 = vpop.f32.mrb[0].mxu0
    %v1575 = vpop.f32.mrb[0].mxu0
    %1576 = vdwg.mxu0
    %1577 = vmatprep.subr.bf16.mxu0 0
    %1578 = vmatpush1.bf16.msra.mxu0 %v576
    %1579 = vmatprep.subr.bf16.mxu0 0
    %1580 = vmatpush1.bf16.msra.mxu0 %v577
    %1581 = vmatprep.subr.bf16.mxu0 0
    %1582 = vmatpush1.bf16.msra.mxu0 %v578
    %1583 = vmatprep.subr.bf16.mxu0 0
    %1584 = vmatpush1.bf16.msra.mxu0 %v579
    %1585 = vmatprep.subr.bf16.mxu0 0
    %1586 = vmatpush1.bf16.msra.mxu0 %v580
    %1587 = vmatprep.subr.bf16.mxu0 0
    %1588 = vmatpush1.bf16.msra.mxu0 %v581
    %1589 = vmatprep.subr.bf16.mxu0 0
    %1590 = vmatpush1.bf16.msra.mxu0 %v582
    %1591 = vmatprep.subr.bf16.mxu0 0
    %1592 = vmatpush1.bf16.msra.mxu0 %v583
    %1593 = vmatprep.subr.bf16.mxu0 0
    %1594 = vmatpush1.bf16.msra.mxu0 %v584
    %1595 = vmatprep.subr.bf16.mxu0 0
    %1596 = vmatpush1.bf16.msra.mxu0 %v585
    %1597 = vmatprep.subr.bf16.mxu0 0
    %1598 = vmatpush1.bf16.msra.mxu0 %v586
    %1599 = vmatprep.subr.bf16.mxu0 0
    %1600 = vmatpush1.bf16.msra.mxu0 %v587
    %1601 = vmatprep.subr.bf16.mxu0 0
    %1602 = vmatpush1.bf16.msra.mxu0 %v588
    %1603 = vmatprep.subr.bf16.mxu0 0
    %1604 = vmatpush1.bf16.msra.mxu0 %v589
    %1605 = vmatprep.subr.bf16.mxu0 0
    %1606 = vmatpush1.bf16.msra.mxu0 %v590
    %1607 = vmatprep.subr.bf16.mxu0 0
    %1608 = vmatpush1.bf16.msra.mxu0 %v591
    %1609 = vmatprep.mubr.bf16.mxu0 %v1512
    %1610 = vmatmul.mubr.bf16.gmra.mrb[0].mxu0 %v1510
    %v1611 = vpop.f32.mrb[0].mxu0
    %v1612 = vadd.f32 %v1572, %v1611
    %v1613 = vpop.f32.mrb[0].mxu0
    %v1614 = vpop.f32.mrb[0].mxu0
    %v1615 = vpop.f32.mrb[0].mxu0
    %1616 = vdwg.mxu0
    %1617 = vmatprep.subr.bf16.mxu0 0
    %1618 = vmatpush1.bf16.msra.mxu0 %v592
    %1619 = vmatprep.subr.bf16.mxu0 0
    %1620 = vmatpush1.bf16.msra.mxu0 %v593
    %1621 = vmatprep.subr.bf16.mxu0 0
    %1622 = vmatpush1.bf16.msra.mxu0 %v594
    %1623 = vmatprep.subr.bf16.mxu0 0
    %1624 = vmatpush1.bf16.msra.mxu0 %v595
    %1625 = vmatprep.subr.bf16.mxu0 0
    %1626 = vmatpush1.bf16.msra.mxu0 %v596
    %1627 = vmatprep.subr.bf16.mxu0 0
    %1628 = vmatpush1.bf16.msra.mxu0 %v597
    %1629 = vmatprep.subr.bf16.mxu0 0
    %1630 = vmatpush1.bf16.msra.mxu0 %v598
    %1631 = vmatprep.subr.bf16.mxu0 0
    %1632 = vmatpush1.bf16.msra.mxu0 %v599
    %1633 = vmatprep.subr.bf16.mxu0 0
    %1634 = vmatpush1.bf16.msra.mxu0 %v600
    %1635 = vmatprep.subr.bf16.mxu0 0
    %1636 = vmatpush1.bf16.msra.mxu0 %v601
    %1637 = vmatprep.subr.bf16.mxu0 0
    %1638 = vmatpush1.bf16.msra.mxu0 %v602
    %1639 = vmatprep.subr.bf16.mxu0 0
    %1640 = vmatpush1.bf16.msra.mxu0 %v603
    %1641 = vmatprep.subr.bf16.mxu0 0
    %1642 = vmatpush1.bf16.msra.mxu0 %v604
    %1643 = vmatprep.subr.bf16.mxu0 0
    %1644 = vmatpush1.bf16.msra.mxu0 %v605
    %1645 = vmatprep.subr.bf16.mxu0 0
    %1646 = vmatpush1.bf16.msra.mxu0 %v606
    %1647 = vmatprep.subr.bf16.mxu0 0
    %1648 = vmatpush1.bf16.msra.mxu0 %v607
    %1649 = vmatprep.mubr.bf16.mxu0 %v1509
    %1650 = vmatmul.mubr.bf16.gmra.mrb[0].mxu0 %v1495
    %v1651 = vpop.f32.mrb[0].mxu0
    %v1652 = vadd.f32 %v1612, %v1651
    %v1653 = vpop.f32.mrb[0].mxu0
    %v1654 = vpop.f32.mrb[0].mxu0
    %v1655 = vpop.f32.mrb[0].mxu0
    %1656 = vdwg.mxu0
    %1657 = vmatprep.subr.bf16.mxu0 0
    %1658 = vmatpush1.bf16.msra.mxu0 %v608
    %1659 = vmatprep.subr.bf16.mxu0 0
    %1660 = vmatpush1.bf16.msra.mxu0 %v609
    %1661 = vmatprep.subr.bf16.mxu0 0
    %1662 = vmatpush1.bf16.msra.mxu0 %v610
    %1663 = vmatprep.subr.bf16.mxu0 0
    %1664 = vmatpush1.bf16.msra.mxu0 %v611
    %1665 = vmatprep.subr.bf16.mxu0 0
    %1666 = vmatpush1.bf16.msra.mxu0 %v612
    %1667 = vmatprep.subr.bf16.mxu0 0
    %1668 = vmatpush1.bf16.msra.mxu0 %v613
    %1669 = vmatprep.subr.bf16.mxu0 0
    %1670 = vmatpush1.bf16.msra.mxu0 %v614
    %1671 = vmatprep.subr.bf16.mxu0 0
    %1672 = vmatpush1.bf16.msra.mxu0 %v615
    %1673 = vmatprep.subr.bf16.mxu0 0
    %1674 = vmatpush1.bf16.msra.mxu0 %v616
    %1675 = vmatprep.subr.bf16.mxu0 0
    %1676 = vmatpush1.bf16.msra.mxu0 %v617
    %1677 = vmatprep.subr.bf16.mxu0 0
    %1678 = vmatpush1.bf16.msra.mxu0 %v618
    %1679 = vmatprep.subr.bf16.mxu0 0
    %1680 = vmatpush1.bf16.msra.mxu0 %v619
    %1681 = vmatprep.subr.bf16.mxu0 0
    %1682 = vmatpush1.bf16.msra.mxu0 %v620
    %1683 = vmatprep.subr.bf16.mxu0 0
    %1684 = vmatpush1.bf16.msra.mxu0 %v621
    %1685 = vmatprep.subr.bf16.mxu0 0
    %1686 = vmatpush1.bf16.msra.mxu0 %v622
    %1687 = vmatprep.subr.bf16.mxu0 0
    %1688 = vmatpush1.bf16.msra.mxu0 %v623
    %1689 = vmatprep.mubr.bf16.mxu0 %v1513
    %1690 = vmatmul.mubr.bf16.gmra.mrb[0].mxu0 %v1511
    %v1691 = vpop.f32.mrb[0].mxu0
    %v1692 = vadd.f32 %v1652, %v1691
    %v1693 = vpop.f32.mrb[0].mxu0
    %v1694 = vpop.f32.mrb[0].mxu0
    %v1695 = vpop.f32.mrb[0].mxu0
    %1696 = vdwg.mxu0
    %1697 = vmatprep.subr.bf16.mxu0 0
    %1698 = vmatpush1.bf16.msra.mxu0 %v624
    %1699 = vmatprep.subr.bf16.mxu0 0
    %1700 = vmatpush1.bf16.msra.mxu0 %v625
    %1701 = vmatprep.subr.bf16.mxu0 0
    %1702 = vmatpush1.bf16.msra.mxu0 %v626
    %1703 = vmatprep.subr.bf16.mxu0 0
    %1704 = vmatpush1.bf16.msra.mxu0 %v627
    %1705 = vmatprep.subr.bf16.mxu0 0
    %1706 = vmatpush1.bf16.msra.mxu0 %v628
    %1707 = vmatprep.subr.bf16.mxu0 0
    %1708 = vmatpush1.bf16.msra.mxu0 %v629
    %1709 = vmatprep.subr.bf16.mxu0 0
    %1710 = vmatpush1.bf16.msra.mxu0 %v630
    %1711 = vmatprep.subr.bf16.mxu0 0
    %1712 = vmatpush1.bf16.msra.mxu0 %v631
    %1713 = vmatprep.subr.bf16.mxu0 0
    %1714 = vmatpush1.bf16.msra.mxu0 0
    %1715 = vmatprep.subr.bf16.mxu0 0
    %1716 = vmatpush1.bf16.msra.mxu0 0
    %1717 = vmatprep.subr.bf16.mxu0 0
    %1718 = vmatpush1.bf16.msra.mxu0 0
    %1719 = vmatprep.subr.bf16.mxu0 0
    %1720 = vmatpush1.bf16.msra.mxu0 0
    %1721 = vmatprep.subr.bf16.mxu0 0
    %1722 = vmatpush1.bf16.msra.mxu0 0
    %1723 = vmatprep.subr.bf16.mxu0 0
    %1724 = vmatpush1.bf16.msra.mxu0 0
    %1725 = vmatprep.subr.bf16.mxu0 0
    %1726 = vmatpush1.bf16.msra.mxu0 0
    %1727 = vmatprep.subr.bf16.mxu0 0
    %1728 = vmatpush1.bf16.msra.mxu0 0
    %1729 = vmatprep.mubr.bf16.mxu0 0
    %1730 = vmatmul.mubr.bf16.gmra.mrb[0].mxu0 %v1527
    %v1731 = vpop.f32.mrb[0].mxu0
    %v1732 = vadd.f32 %v1692, %v1731
    %v1733 = vpop.f32.mrb[0].mxu0
    %v1734 = vpop.f32.mrb[0].mxu0
    %v1735 = vpop.f32.mrb[0].mxu0
    %1736 = vdwg.mxu0
    %v1737 = vmax.f32 %v1459, %v1732
    %v1738 = vld [vmem:[%s2] sm:$0x1]
    %v1740 = vlaneseq
    %v1741 = vshrl.u32 %v1740, 7
    %v1742 = vsub.s32 0, %v1741
    %v1743 = vrot.slane %v1738, %v1742
    %v1745 = vadd.f32 %v1737, %v1743
    %v1746 = vmax.f32 %v1745, 0.0
    %v1747 = vpack.c.bf16 %v1746, %v1746
    %v1748 = vld [vmem:[%s3] sm:$0xf]
    %v1749 = vld [vmem:[%s3 + $0x4] sm:$0xf]
    %v1750 = vld [vmem:[%s3 + $0x8] sm:$0xf]
    %v1751 = vld [vmem:[%s3 + $0xc] sm:$0xf]
    %v1752 = vld [vmem:[%s3 + $0x10] sm:$0xf]
    %v1753 = vld [vmem:[%s3 + $0x14] sm:$0xf]
    %v1754 = vld [vmem:[%s3 + $0x18] sm:$0xf]
    %v1755 = vld [vmem:[%s3 + $0x1c] sm:$0xf]
    %v1756 = vld [vmem:[%s3 + $0x20] sm:$0xf]
    %v1757 = vld [vmem:[%s3 + $0x24] sm:$0xf]
    %v1758 = vld [vmem:[%s3 + $0x28] sm:$0xf]
    %v1759 = vld [vmem:[%s3 + $0x2c] sm:$0xf]
    %v1760 = vld [vmem:[%s3 + $0x30] sm:$0xf]
    %v1761 = vld [vmem:[%s3 + $0x34] sm:$0xf]
    %v1762 = vld [vmem:[%s3 + $0x38] sm:$0xf]
    %v1763 = vld [vmem:[%s3 + $0x3c] sm:$0xf]
    %v1764 = vld [vmem:[%s4] sm:$0x1]
    %v1766 = vlaneseq
    %v1767 = vshrl.u32 %v1766, 7
    %v1768 = vsub.s32 0, %v1767
    %v1769 = vrot.slane %v1764, %v1768
    %v1787 = vunpack.c.l.b16 %v1748
    %v1788 = vunpack.c.l.b16 %v1749
    %v1789 = vunpack.c.l.b16 %v1750
    %v1790 = vunpack.c.l.b16 %v1751
    %v1791 = vunpack.c.l.b16 %v1752
    %v1792 = vunpack.c.l.b16 %v1753
    %v1793 = vunpack.c.l.b16 %v1754
    %v1794 = vunpack.c.l.b16 %v1755
    %v1795 = vunpack.c.l.b16 %v1756
    %v1796 = vunpack.c.l.b16 %v1757
    %v1797 = vunpack.c.l.b16 %v1758
    %v1798 = vunpack.c.l.b16 %v1759
    %v1799 = vunpack.c.l.b16 %v1760
    %v1800 = vunpack.c.l.b16 %v1761
    %v1801 = vunpack.c.l.b16 %v1762
    %v1802 = vunpack.c.l.b16 %v1763
    %v1803 = vpack.c.b16 %v1788, %v1787
    %v1804 = vpack.c.b16 %v1790, %v1789
    %v1805 = vpack.c.b16 %v1792, %v1791
    %v1806 = vpack.c.b16 %v1794, %v1793
    %v1807 = vpack.c.b16 %v1796, %v1795
    %v1808 = vpack.c.b16 %v1798, %v1797
    %v1809 = vpack.c.b16 %v1800, %v1799
    %v1810 = vpack.c.b16 %v1802, %v1801
    %1819 = vmatprep.subr.bf16.mxu0 0
    %1820 = vmatpush1.bf16.msra.mxu0 %v1803
    %1821 = vmatprep.subr.bf16.mxu0 0
    %1822 = vmatpush1.bf16.msra.mxu0 %v1804
    %1823 = vmatprep.subr.bf16.mxu0 0
    %1824 = vmatpush1.bf16.msra.mxu0 %v1805
    %1825 = vmatprep.subr.bf16.mxu0 0
    %1826 = vmatpush1.bf16.msra.mxu0 %v1806
    %1827 = vmatprep.subr.bf16.mxu0 0
    %1828 = vmatpush1.bf16.msra.mxu0 %v1807
    %1829 = vmatprep.subr.bf16.mxu0 0
    %1830 = vmatpush1.bf16.msra.mxu0 %v1808
    %1831 = vmatprep.subr.bf16.mxu0 0
    %1832 = vmatpush1.bf16.msra.mxu0 %v1809
    %1833 = vmatprep.subr.bf16.mxu0 0
    %1834 = vmatpush1.bf16.msra.mxu0 %v1810
    %1835 = vmatprep.subr.bf16.mxu0 0
    %1836 = vmatpush1.bf16.msra.mxu0 0
    %1837 = vmatprep.subr.bf16.mxu0 0
    %1838 = vmatpush1.bf16.msra.mxu0 0
    %1839 = vmatprep.subr.bf16.mxu0 0
    %1840 = vmatpush1.bf16.msra.mxu0 0
    %1841 = vmatprep.subr.bf16.mxu0 0
    %1842 = vmatpush1.bf16.msra.mxu0 0
    %1843 = vmatprep.subr.bf16.mxu0 0
    %1844 = vmatpush1.bf16.msra.mxu0 0
    %1845 = vmatprep.subr.bf16.mxu0 0
    %1846 = vmatpush1.bf16.msra.mxu0 0
    %1847 = vmatprep.subr.bf16.mxu0 0
    %1848 = vmatpush1.bf16.msra.mxu0 0
    %1849 = vmatprep.subr.bf16.mxu0 0
    %1850 = vmatpush1.bf16.msra.mxu0 0
    %1851 = vmatprep.mubr.bf16.mxu0 0
    %1852 = vmatmul.mubr.bf16.gmra.mrb[0].mxu0 %v1747
    %v1853 = vpop.f32.mrb[0].mxu0
    %v1854 = vadd.f32 %v1769, %v1853
    %v1855 = vpop.f32.mrb[0].mxu0
    %v1856 = vpop.f32.mrb[0].mxu0
    %v1857 = vpop.f32.mrb[0].mxu0
    %1858 = vdwg.mxu0
    %v1859 = vmax.f32 %v1854, 0.0
    %1860 = vst [vmem:[#allocation4] sm:$0x3] %v1859
    %v1861 = vld [vmem:[%s11] sm:$0x3]
    %v1862 = vld [vmem:[%s12] sm:$0x3]
    %v1863 = vsub.f32 %v1861, %v1862
    %v1864 = vrcp.pop %v1861
    %v1865 = vmul.f32 %v1863, %v1864
    %v1866 = vmax.f32 %v1865, 0.0
    %v1867 = vmul.f32 %v1859, %v1866
    %v1868 = vpack.c.bf16 %v1867, %v1867
    %v1869 = vld [vmem:[%s5] sm:$0xf]
    %v1870 = vld [vmem:[%s5 + $0x4] sm:$0xf]
    %v1871 = vld [vmem:[%s5 + $0x8] sm:$0xf]
    %v1872 = vld [vmem:[%s5 + $0xc] sm:$0xf]
    %v1873 = vld [vmem:[%s5 + $0x10] sm:$0xf]
    %v1874 = vld [vmem:[%s5 + $0x14] sm:$0xf]
    %v1875 = vld [vmem:[%s5 + $0x18] sm:$0xf]
    %v1876 = vld [vmem:[%s5 + $0x1c] sm:$0xf]
    %v1877 = vld [vmem:[%s5 + $0x20] sm:$0xf]
    %v1878 = vld [vmem:[%s5 + $0x24] sm:$0xf]
    %v1879 = vld [vmem:[%s5 + $0x28] sm:$0xf]
    %v1880 = vld [vmem:[%s5 + $0x2c] sm:$0xf]
    %v1881 = vld [vmem:[%s5 + $0x30] sm:$0xf]
    %v1882 = vld [vmem:[%s5 + $0x34] sm:$0xf]
    %v1883 = vld [vmem:[%s5 + $0x38] sm:$0xf]
    %v1884 = vld [vmem:[%s5 + $0x3c] sm:$0xf]
    %v1885 = vld [vmem:[%s6] sm:$0x1]
    %v1887 = vlaneseq
    %v1888 = vshrl.u32 %v1887, 7
    %v1889 = vsub.s32 0, %v1888
    %v1890 = vrot.slane %v1885, %v1889
    %v1908 = vunpack.c.l.b16 %v1869
    %v1909 = vunpack.c.l.b16 %v1870
    %v1910 = vunpack.c.l.b16 %v1871
    %v1911 = vunpack.c.l.b16 %v1872
    %v1912 = vunpack.c.l.b16 %v1873
    %v1913 = vunpack.c.l.b16 %v1874
    %v1914 = vunpack.c.l.b16 %v1875
    %v1915 = vunpack.c.l.b16 %v1876
    %v1916 = vunpack.c.l.b16 %v1877
    %v1917 = vunpack.c.l.b16 %v1878
    %v1918 = vunpack.c.l.b16 %v1879
    %v1919 = vunpack.c.l.b16 %v1880
    %v1920 = vunpack.c.l.b16 %v1881
    %v1921 = vunpack.c.l.b16 %v1882
    %v1922 = vunpack.c.l.b16 %v1883
    %v1923 = vunpack.c.l.b16 %v1884
    %v1924 = vpack.c.b16 %v1909, %v1908
    %v1925 = vpack.c.b16 %v1911, %v1910
    %v1926 = vpack.c.b16 %v1913, %v1912
    %v1927 = vpack.c.b16 %v1915, %v1914
    %v1928 = vpack.c.b16 %v1917, %v1916
    %v1929 = vpack.c.b16 %v1919, %v1918
    %v1930 = vpack.c.b16 %v1921, %v1920
    %v1931 = vpack.c.b16 %v1923, %v1922
    %1940 = vmatprep.subr.bf16.mxu0 0
    %1941 = vmatpush1.bf16.msra.mxu0 %v1924
    %1942 = vmatprep.subr.bf16.mxu0 0
    %1943 = vmatpush1.bf16.msra.mxu0 %v1925
    %1944 = vmatprep.subr.bf16.mxu0 0
    %1945 = vmatpush1.bf16.msra.mxu0 %v1926
    %1946 = vmatprep.subr.bf16.mxu0 0
    %1947 = vmatpush1.bf16.msra.mxu0 %v1927
    %1948 = vmatprep.subr.bf16.mxu0 0
    %1949 = vmatpush1.bf16.msra.mxu0 %v1928
    %1950 = vmatprep.subr.bf16.mxu0 0
    %1951 = vmatpush1.bf16.msra.mxu0 %v1929
    %1952 = vmatprep.subr.bf16.mxu0 0
    %1953 = vmatpush1.bf16.msra.mxu0 %v1930
    %1954 = vmatprep.subr.bf16.mxu0 0
    %1955 = vmatpush1.bf16.msra.mxu0 %v1931
    %1956 = vmatprep.subr.bf16.mxu0 0
    %1957 = vmatpush1.bf16.msra.mxu0 0
    %1958 = vmatprep.subr.bf16.mxu0 0
    %1959 = vmatpush1.bf16.msra.mxu0 0
    %1960 = vmatprep.subr.bf16.mxu0 0
    %1961 = vmatpush1.bf16.msra.mxu0 0
    %1962 = vmatprep.subr.bf16.mxu0 0
    %1963 = vmatpush1.bf16.msra.mxu0 0
    %1964 = vmatprep.subr.bf16.mxu0 0
    %1965 = vmatpush1.bf16.msra.mxu0 0
    %1966 = vmatprep.subr.bf16.mxu0 0
    %1967 = vmatpush1.bf16.msra.mxu0 0
    %1968 = vmatprep.subr.bf16.mxu0 0
    %1969 = vmatpush1.bf16.msra.mxu0 0
    %1970 = vmatprep.subr.bf16.mxu0 0
    %1971 = vmatpush1.bf16.msra.mxu0 0
    %1972 = vmatprep.mubr.bf16.mxu0 0
    %1973 = vmatmul.mubr.bf16.gmra.mrb[0].mxu0 %v1868
    %v1974 = vpop.f32.mrb[0].mxu0
    %v1975 = vadd.f32 %v1890, %v1974
    %v1976 = vpop.f32.mrb[0].mxu0
    %v1977 = vpop.f32.mrb[0].mxu0
    %v1978 = vpop.f32.mrb[0].mxu0
    %1979 = vdwg.mxu0
    %v1980 = vmax.f32 %v1975, 0.0
    %1981 = vst [vmem:[#allocation6] sm:$0x3] %v1980
    %s1982 = scalar_lea.vmem %s11, 2
    %v1983 = vld [vmem:[%s1982] sm:$0x3]
    %s1984 = scalar_lea.vmem %s12, 2
    %v1985 = vld [vmem:[%s1984] sm:$0x3]
    %v1986 = vsub.f32 %v1983, %v1985
    %v1987 = vrcp.pop %v1983
    %v1988 = vmul.f32 %v1986, %v1987
    %v1989 = vmax.f32 %v1988, 0.0
    %v1990 = vmul.f32 %v1980, %v1989
    %v1991 = vpack.c.bf16 %v1990, %v1990
    %v1992 = vld [vmem:[%s7] sm:$0xf]
    %v1993 = vld [vmem:[%s7 + $0x4] sm:$0xf]
    %v1994 = vld [vmem:[%s7 + $0x8] sm:$0xf]
    %v1995 = vld [vmem:[%s7 + $0xc] sm:$0xf]
    %v1996 = vld [vmem:[%s7 + $0x10] sm:$0xf]
    %v1997 = vld [vmem:[%s7 + $0x14] sm:$0xf]
    %v1998 = vld [vmem:[%s7 + $0x18] sm:$0xf]
    %v1999 = vld [vmem:[%s7 + $0x1c] sm:$0xf]
    %v2000 = vld [vmem:[%s7 + $0x20] sm:$0xf]
    %v2001 = vld [vmem:[%s7 + $0x24] sm:$0xf]
    %v2002 = vld [vmem:[%s7 + $0x28] sm:$0xf]
    %v2003 = vld [vmem:[%s7 + $0x2c] sm:$0xf]
    %v2004 = vld [vmem:[%s7 + $0x30] sm:$0xf]
    %v2005 = vld [vmem:[%s7 + $0x34] sm:$0xf]
    %v2006 = vld [vmem:[%s7 + $0x38] sm:$0xf]
    %v2007 = vld [vmem:[%s7 + $0x3c] sm:$0xf]
    %v2008 = vld [vmem:[%s8] sm:$0x1]
    %v2010 = vlaneseq
    %v2011 = vshrl.u32 %v2010, 7
    %v2012 = vsub.s32 0, %v2011
    %v2013 = vrot.slane %v2008, %v2012
    %v2031 = vunpack.c.l.b16 %v1992
    %v2032 = vunpack.c.l.b16 %v1993
    %v2033 = vunpack.c.l.b16 %v1994
    %v2034 = vunpack.c.l.b16 %v1995
    %v2035 = vunpack.c.l.b16 %v1996
    %v2036 = vunpack.c.l.b16 %v1997
    %v2037 = vunpack.c.l.b16 %v1998
    %v2038 = vunpack.c.l.b16 %v1999
    %v2039 = vunpack.c.l.b16 %v2000
    %v2040 = vunpack.c.l.b16 %v2001
    %v2041 = vunpack.c.l.b16 %v2002
    %v2042 = vunpack.c.l.b16 %v2003
    %v2043 = vunpack.c.l.b16 %v2004
    %v2044 = vunpack.c.l.b16 %v2005
    %v2045 = vunpack.c.l.b16 %v2006
    %v2046 = vunpack.c.l.b16 %v2007
    %v2047 = vpack.c.b16 %v2032, %v2031
    %v2048 = vpack.c.b16 %v2034, %v2033
    %v2049 = vpack.c.b16 %v2036, %v2035
    %v2050 = vpack.c.b16 %v2038, %v2037
    %v2051 = vpack.c.b16 %v2040, %v2039
    %v2052 = vpack.c.b16 %v2042, %v2041
    %v2053 = vpack.c.b16 %v2044, %v2043
    %v2054 = vpack.c.b16 %v2046, %v2045
    %2063 = vmatprep.subr.bf16.mxu0 0
    %2064 = vmatpush1.bf16.msra.mxu0 %v2047
    %2065 = vmatprep.subr.bf16.mxu0 0
    %2066 = vmatpush1.bf16.msra.mxu0 %v2048
    %2067 = vmatprep.subr.bf16.mxu0 0
    %2068 = vmatpush1.bf16.msra.mxu0 %v2049
    %2069 = vmatprep.subr.bf16.mxu0 0
    %2070 = vmatpush1.bf16.msra.mxu0 %v2050
    %2071 = vmatprep.subr.bf16.mxu0 0
    %2072 = vmatpush1.bf16.msra.mxu0 %v2051
    %2073 = vmatprep.subr.bf16.mxu0 0
    %2074 = vmatpush1.bf16.msra.mxu0 %v2052
    %2075 = vmatprep.subr.bf16.mxu0 0
    %2076 = vmatpush1.bf16.msra.mxu0 %v2053
    %2077 = vmatprep.subr.bf16.mxu0 0
    %2078 = vmatpush1.bf16.msra.mxu0 %v2054
    %2079 = vmatprep.subr.bf16.mxu0 0
    %2080 = vmatpush1.bf16.msra.mxu0 0
    %2081 = vmatprep.subr.bf16.mxu0 0
    %2082 = vmatpush1.bf16.msra.mxu0 0
    %2083 = vmatprep.subr.bf16.mxu0 0
    %2084 = vmatpush1.bf16.msra.mxu0 0
    %2085 = vmatprep.subr.bf16.mxu0 0
    %2086 = vmatpush1.bf16.msra.mxu0 0
    %2087 = vmatprep.subr.bf16.mxu0 0
    %2088 = vmatpush1.bf16.msra.mxu0 0
    %2089 = vmatprep.subr.bf16.mxu0 0
    %2090 = vmatpush1.bf16.msra.mxu0 0
    %2091 = vmatprep.subr.bf16.mxu0 0
    %2092 = vmatpush1.bf16.msra.mxu0 0
    %2093 = vmatprep.subr.bf16.mxu0 0
    %2094 = vmatpush1.bf16.msra.mxu0 0
    %2095 = vmatprep.mubr.bf16.mxu0 0
    %2096 = vmatmul.mubr.bf16.gmra.mrb[0].mxu0 %v1991
    %v2097 = vpop.f32.mrb[0].mxu0
    %v2098 = vadd.f32 %v2013, %v2097
    %v2099 = vpop.f32.mrb[0].mxu0
    %v2100 = vpop.f32.mrb[0].mxu0
    %v2101 = vpop.f32.mrb[0].mxu0
    %2102 = vdwg.mxu0
    %v2103 = vmax.f32 %v2098, 0.0
    %2104 = vst [vmem:[#allocation7] sm:$0x3] %v2103
    %s2105 = scalar_lea.vmem %s11, 4
    %v2106 = vld [vmem:[%s2105] sm:$0x3]
    %s2107 = scalar_lea.vmem %s12, 4
    %v2108 = vld [vmem:[%s2107] sm:$0x3]
    %v2109 = vsub.f32 %v2106, %v2108
    %v2110 = vrcp.pop %v2106
    %v2111 = vmul.f32 %v2109, %v2110
    %v2112 = vmax.f32 %v2111, 0.0
    %v2113 = vmul.f32 %v2103, %v2112
    %v2114 = vpack.c.bf16 %v2113, %v2113
    %v2115 = vld [vmem:[%s9] sm:$0xf]
    %v2116 = vld [vmem:[%s9 + $0x4] sm:$0xf]
    %v2117 = vld [vmem:[%s9 + $0x8] sm:$0xf]
    %v2118 = vld [vmem:[%s9 + $0xc] sm:$0xf]
    %v2119 = vld [vmem:[%s9 + $0x10] sm:$0xf]
    %v2120 = vld [vmem:[%s9 + $0x14] sm:$0xf]
    %v2121 = vld [vmem:[%s9 + $0x18] sm:$0xf]
    %v2122 = vld [vmem:[%s9 + $0x1c] sm:$0xf]
    %v2123 = vld [vmem:[%s9 + $0x20] sm:$0xf]
    %v2124 = vld [vmem:[%s9 + $0x24] sm:$0xf]
    %v2125 = vld [vmem:[%s9 + $0x28] sm:$0xf]
    %v2126 = vld [vmem:[%s9 + $0x2c] sm:$0xf]
    %v2127 = vld [vmem:[%s9 + $0x30] sm:$0xf]
    %v2128 = vld [vmem:[%s9 + $0x34] sm:$0xf]
    %v2129 = vld [vmem:[%s9 + $0x38] sm:$0xf]
    %v2130 = vld [vmem:[%s9 + $0x3c] sm:$0xf]
    %v2131 = vld [vmem:[%s10] sm:$0x1]
    %v2133 = vlaneseq
    %v2134 = vshrl.u32 %v2133, 7
    %v2135 = vsub.s32 0, %v2134
    %v2136 = vrot.slane %v2131, %v2135
    %v2154 = vunpack.c.l.b16 %v2115
    %v2155 = vunpack.c.l.b16 %v2116
    %v2156 = vunpack.c.l.b16 %v2117
    %v2157 = vunpack.c.l.b16 %v2118
    %v2158 = vunpack.c.l.b16 %v2119
    %v2159 = vunpack.c.l.b16 %v2120
    %v2160 = vunpack.c.l.b16 %v2121
    %v2161 = vunpack.c.l.b16 %v2122
    %v2162 = vunpack.c.l.b16 %v2123
    %v2163 = vunpack.c.l.b16 %v2124
    %v2164 = vunpack.c.l.b16 %v2125
    %v2165 = vunpack.c.l.b16 %v2126
    %v2166 = vunpack.c.l.b16 %v2127
    %v2167 = vunpack.c.l.b16 %v2128
    %v2168 = vunpack.c.l.b16 %v2129
    %v2169 = vunpack.c.l.b16 %v2130
    %v2170 = vpack.c.b16 %v2155, %v2154
    %v2171 = vpack.c.b16 %v2157, %v2156
    %v2172 = vpack.c.b16 %v2159, %v2158
    %v2173 = vpack.c.b16 %v2161, %v2160
    %v2174 = vpack.c.b16 %v2163, %v2162
    %v2175 = vpack.c.b16 %v2165, %v2164
    %v2176 = vpack.c.b16 %v2167, %v2166
    %v2177 = vpack.c.b16 %v2169, %v2168
    %2186 = vmatprep.subr.bf16.mxu0 0
    %2187 = vmatpush1.bf16.msra.mxu0 %v2170
    %2188 = vmatprep.subr.bf16.mxu0 0
    %2189 = vmatpush1.bf16.msra.mxu0 %v2171
    %2190 = vmatprep.subr.bf16.mxu0 0
    %2191 = vmatpush1.bf16.msra.mxu0 %v2172
    %2192 = vmatprep.subr.bf16.mxu0 0
    %2193 = vmatpush1.bf16.msra.mxu0 %v2173
    %2194 = vmatprep.subr.bf16.mxu0 0
    %2195 = vmatpush1.bf16.msra.mxu0 %v2174
    %2196 = vmatprep.subr.bf16.mxu0 0
    %2197 = vmatpush1.bf16.msra.mxu0 %v2175
    %2198 = vmatprep.subr.bf16.mxu0 0
    %2199 = vmatpush1.bf16.msra.mxu0 %v2176
    %2200 = vmatprep.subr.bf16.mxu0 0
    %2201 = vmatpush1.bf16.msra.mxu0 %v2177
    %2202 = vmatprep.subr.bf16.mxu0 0
    %2203 = vmatpush1.bf16.msra.mxu0 0
    %2204 = vmatprep.subr.bf16.mxu0 0
    %2205 = vmatpush1.bf16.msra.mxu0 0
    %2206 = vmatprep.subr.bf16.mxu0 0
    %2207 = vmatpush1.bf16.msra.mxu0 0
    %2208 = vmatprep.subr.bf16.mxu0 0
    %2209 = vmatpush1.bf16.msra.mxu0 0
    %2210 = vmatprep.subr.bf16.mxu0 0
    %2211 = vmatpush1.bf16.msra.mxu0 0
    %2212 = vmatprep.subr.bf16.mxu0 0
    %2213 = vmatpush1.bf16.msra.mxu0 0
    %2214 = vmatprep.subr.bf16.mxu0 0
    %2215 = vmatpush1.bf16.msra.mxu0 0
    %2216 = vmatprep.subr.bf16.mxu0 0
    %2217 = vmatpush1.bf16.msra.mxu0 0
    %2218 = vmatprep.mubr.bf16.mxu0 0
    %2219 = vmatmul.mubr.bf16.gmra.mrb[0].mxu0 %v2114
    %v2220 = vpop.f32.mrb[0].mxu0
    %v2221 = vadd.f32 %v2136, %v2220
    %v2222 = vpop.f32.mrb[0].mxu0
    %v2223 = vpop.f32.mrb[0].mxu0
    %v2224 = vpop.f32.mrb[0].mxu0
    %2225 = vdwg.mxu0
    %vm2226 = vcmask 25600
    %v2227 = vsel %vm2226, %v2221, -inf
    %2228 = vmax.xlane.f32.xlu0 %v2227
    %v2229 = vpop.xlane.xlu0 %2228
    %v2230 = vsub.f32 %v2221, %v2229
    %v2231 = vmul.f32 %v2230, 1.442695
    %v2232 = vpow.pop %v2231
    %v2233 = vsel %vm2226, %v2232, 0.0
    %2234 = vadd.xlane.f32.xlu0 %v2233
    %v2235 = vpop.xlane.xlu0 %2234
    %v2236 = vrcp.pop %v2235
    %v2237 = vmul.f32 %v2232, %v2236
    %2238 = vst.msk [vmem:[#allocation2] sm:$0x3] %vm2226, %v2237
    // Predicated region
    $region54: #{my_model_forward.5} parent=1 // pred_check
      _
    $region55: #{my_model_forward.5} parent=1 // pred_check_branch
      %2240 = sbr.rel (0) target = $region57
    $region56: #{my_model_forward.5} parent=1 // pred_region
      %s2242 = ssub.s32 32, 32
      %2243 = vsyncadd [#allocation3], %s2242
      %s2245 = sshll.u32 [#allocation2], 4
      %s2246 = int_to_ptr.vmem [resolvable:$true] %s2245
      %2248 = dma.vmem_to_hbm [thread:$0]  %s2246, 32, %s13, [#allocation3]
    $region57: #{my_model_forward.5} parent=1 // pred_fallthru
      _
    // Predicated region
    $region58: #{my_model_forward.5} parent=1 // pred_check
      _
    $region59: #{my_model_forward.5} parent=1 // pred_check_branch
      %2250 = sbr.rel (0) target = $region61
    $region60: #{my_model_forward.5} parent=1 // pred_region
      %s2252 = ssub.s32 32, 32
      %2253 = vsyncadd [#allocation5], %s2252
      %s2255 = sshll.u32 [#allocation4], 4
      %s2256 = int_to_ptr.vmem [resolvable:$true] %s2255
      %2258 = dma.vmem_to_hbm [thread:$0]  %s2256, 32, %s14, [#allocation5]
    $region61: #{my_model_forward.5} parent=1 // pred_fallthru
      _
    // Predicated region
    $region62: #{my_model_forward.5} parent=1 // pred_check
      _
    $region63: #{my_model_forward.5} parent=1 // pred_check_branch
      %2260 = sbr.rel (0) target = $region65
    $region64: #{my_model_forward.5} parent=1 // pred_region
      %s2262 = ssub.s32 32, 32
      %2263 = vsyncadd [#allocation5], %s2262
      %s2265 = sshll.u32 [#allocation6], 4
      %s2266 = int_to_ptr.vmem [resolvable:$true] %s2265
      %2268 = dma.vmem_to_hbm [thread:$0]  %s2266, 32, %s15, [#allocation5]
    $region65: #{my_model_forward.5} parent=1 // pred_fallthru
      _
    // Predicated region
    $region66: #{my_model_forward.5} parent=1 // pred_check
      _
    $region67: #{my_model_forward.5} parent=1 // pred_check_branch
      %2270 = sbr.rel (0) target = $region69
    $region68: #{my_model_forward.5} parent=1 // pred_region
      %s2272 = ssub.s32 32, 32
      %2273 = vsyncadd [#allocation8], %s2272
      %s2275 = sshll.u32 [#allocation7], 4
      %s2276 = int_to_ptr.vmem [resolvable:$true] %s2275
      %2278 = dma.vmem_to_hbm [thread:$0]  %s2276, 32, %s16, [#allocation8]
    $region69: #{my_model_forward.5} parent=1 // pred_fallthru
      _
    // Predicated region
    $region70: #{my_model_forward.5} parent=1 // pred_check
      _
    $region71: #{my_model_forward.5} parent=1 // pred_check_branch
      %2280 = sbr.rel (0) target = $region73
    $region72: #{my_model_forward.5} parent=1 // pred_region
      %2281 = dma.done [#allocation3], 32
    $region73: #{my_model_forward.5} parent=1 // pred_fallthru
      _
    // Predicated region
    $region74: #{my_model_forward.5} parent=1 // pred_check
      _
    $region75: #{my_model_forward.5} parent=1 // pred_check_branch
      %2283 = sbr.rel (0) target = $region77
    $region76: #{my_model_forward.5} parent=1 // pred_region
      %2284 = dma.done [#allocation5], 32
    $region77: #{my_model_forward.5} parent=1 // pred_fallthru
      _
    // Predicated region
    $region78: #{my_model_forward.5} parent=1 // pred_check
      _
    $region79: #{my_model_forward.5} parent=1 // pred_check_branch
      %2286 = sbr.rel (0) target = $region81
    $region80: #{my_model_forward.5} parent=1 // pred_region
      %2287 = dma.done [#allocation5], 32
    $region81: #{my_model_forward.5} parent=1 // pred_fallthru
      _
    // Predicated region
    $region82: #{my_model_forward.5} parent=1 // pred_check
      _
    $region83: #{my_model_forward.5} parent=1 // pred_check_branch
      %2289 = sbr.rel (0) target = $region85
    $region84: #{my_model_forward.5} parent=1 // pred_region
      %2290 = dma.done [#allocation8], 32
    $region85: #{my_model_forward.5} parent=1 // pred_fallthru
      _
    %2291 = vsyncpa [#allocation3], 1
    %2292 = vsyncpa [#allocation5], 1
    %2293 = vsyncpa [#allocation8], 1

</llo_original>
